<compile_context>
chip_gen: v7x
topology: tpu7x:2x2x1
jax: 0.10.0
libtpu: 0.0.40
codegen_flags: <defaults>
</compile_context>

<pallas_src>
import functools

import jax
import jax.numpy as jnp
from jax.experimental import pallas as pl
from jax.experimental.pallas import tpu as pltpu


def _convlstm_kernel(xh_ref, w_ref, b_ref, c_ref, wci_ref, wcf_ref, wco_ref,
                     ch_ref, cc_ref, *, H, W, K, NB):
    """Processes NB batch elements per grid step.

    xh_ref : (NB, H+2p, W+2p, Cin+Ch)  bf16  zero-padded concat([x, h], channels)
    w_ref  : (K, K, Cin+Ch, 4*Ch)      bf16  gates folded into out-channels [i|f|c|o]
    b_ref  : (1, 4*Ch)                 f32   Wx* conv biases (Wh* convs have none)
    c_ref  : (NB, H*W, Ch)             f32   cell state
    wci/wcf/wco_ref : (H*W, Ch)        f32   peephole weights (broadcast over batch)
    ch_ref, cc_ref  : (NB, H*W, Ch)          outputs
    """
    Cxh = xh_ref.shape[-1]
    Ch = c_ref.shape[-1]
    Cg = 4 * Ch
    M = NB * H * W

    # All 4 gates + both conv paths fused: per kernel offset, a single
    # (M, Cin+Ch) x (Cin+Ch, 4*Ch) bf16 MXU matmul, accumulated in f32.
    # The bias is the accumulator init (broadcast once, outside the loop).
    acc = jnp.broadcast_to(b_ref[...], (M, Cg))             # f32 (M, 4*Ch)
    for dy in range(K):
        for dx in range(K):
            # Load only the current shifted window (keeps live ranges short);
            # the reshape merges leading dims only (W % 8 == 0 -> no relayout).
            patch = xh_ref[:, dy:dy + H, dx:dx + W, :].reshape(M, Cxh)
            acc = acc + jnp.dot(patch, w_ref[dy, dx],
                                preferred_element_type=jnp.float32)

    # Split the fused gate axis with static lane slices (gate order i,f,c,o);
    # the trailing reshape only splits the leading dim (no lane relayout).
    g_i = acc[:, 0 * Ch:1 * Ch].reshape(NB, H * W, Ch)
    g_f = acc[:, 1 * Ch:2 * Ch].reshape(NB, H * W, Ch)
    g_c = acc[:, 2 * Ch:3 * Ch].reshape(NB, H * W, Ch)
    g_o = acc[:, 3 * Ch:4 * Ch].reshape(NB, H * W, Ch)

    c = c_ref[...]                                           # (NB, H*W, Ch) f32
    ci = jax.nn.sigmoid(g_i + c * wci_ref[...])
    cf = jax.nn.sigmoid(g_f + c * wcf_ref[...])
    cc = cf * c + ci * jnp.tanh(g_c)
    co = jax.nn.sigmoid(g_o + cc * wco_ref[...])
    ch = co * jnp.tanh(cc)

    ch_ref[...] = ch.astype(ch_ref.dtype)
    cc_ref[...] = cc.astype(cc_ref.dtype)


def _auto_batch_block(N, H, W, K, Cin, Ch, act_bytes, budget_bytes=8 << 20):
    """Largest divisor of N whose per-step footprint fits a conservative
    VMEM budget (well under the 16 MiB default scoped limit on v5e, assuming
    double-buffered pipeline blocks)."""
    p = (K - 1) // 2
    Hp, Wp = H + 2 * p, W + 2 * p
    Cxh, Cg = Cin + Ch, 4 * Ch

    def footprint(nb):
        blocks = (nb * Hp * Wp * Cxh * 2            # xh (bf16)
                  + nb * H * W * Ch * 4             # c (f32)
                  + 2 * nb * H * W * Ch * act_bytes)  # ch, cc outputs
        fixed = K * K * Cxh * Cg * 2 + Cg * 4 + 3 * H * W * Ch * 4
        temps = 3 * nb * H * W * Cg * 4             # acc + live f32 temporaries
        return 2 * (blocks + fixed) + temps         # x2: double buffering

    nb = 1
    for cand in range(1, N + 1):
        if N % cand == 0 and footprint(cand) <= budget_bytes:
            nb = cand
    return nb


def conv_lstm_cell_forward(x, h, c, wx, wh, b, wci, wcf, wco, *,
                           kernel_size, batch_block=None):
    """Pallas ConvLSTMCell forward.

    x   : (N, H, W, Cin)   NHWC
    h,c : (N, H, W, Ch)
    wx  : (4, K, K, Cin, Ch)   HWIO per gate, gate order [i, f, c, o]
    wh  : (4, K, K, Ch, Ch)
    b   : (4, Ch)
    wci/wcf/wco : (H, W, Ch)
    batch_block : batch elements folded into one grid step.  None = auto
                  (fold as much as fits VMEM; best on single-TC v5e/v6e).
                  Use 1 to keep a parallel batch axis for v7x's 2 TCs.
    returns (ch, cc), each (N, H, W, Ch)
    """
    N, H, W, Cin = x.shape
    Ch = h.shape[-1]
    K = kernel_size
    p = (K - 1) // 2
    Hp, Wp = H + 2 * p, W + 2 * p
    Cxh = Cin + Ch
    Cg = 4 * Ch

    if batch_block is None:
        batch_block = _auto_batch_block(N, H, W, K, Cin, Ch, x.dtype.itemsize)
    NB = batch_block
    assert N % NB == 0, "batch_block must divide the batch size"
    G = N // NB

    # ---- wrapper-side layout plumbing only (no math) ----
    # Concat x/h on channels, zero-pad spatially ("SAME" for stride-1 conv,
    # identical to nn.Conv2d(padding=p)), cast MXU operands to bf16.
    xh = jnp.concatenate([x, h], axis=-1)
    xh_pad = jnp.pad(xh, ((0, 0), (p, p), (p, p), (0, 0))).astype(jnp.bfloat16)

    # Fold the gate axis into the output channels and stack x/h weights along
    # the input-channel axis: (K, K, Cin+Ch, 4*Ch), columns ordered [i|f|c|o].
    wx_f = jnp.transpose(wx, (1, 2, 3, 0, 4)).reshape(K, K, Cin, Cg)
    wh_f = jnp.transpose(wh, (1, 2, 3, 0, 4)).reshape(K, K, Ch, Cg)
    w = jnp.concatenate([wx_f, wh_f], axis=2).astype(jnp.bfloat16)

    b_f = b.reshape(1, Cg).astype(jnp.float32)
    c_f = c.reshape(N, H * W, Ch).astype(jnp.float32)
    wci_f = wci.reshape(H * W, Ch).astype(jnp.float32)
    wcf_f = wcf.reshape(H * W, Ch).astype(jnp.float32)
    wco_f = wco.reshape(H * W, Ch).astype(jnp.float32)

    kernel = functools.partial(_convlstm_kernel, H=H, W=W, K=K, NB=NB)

    out_shape = (
        jax.ShapeDtypeStruct((N, H * W, Ch), x.dtype),   # ch
        jax.ShapeDtypeStruct((N, H * W, Ch), x.dtype),   # cc
    )

    grid_spec = pltpu.PrefetchScalarGridSpec(
        num_scalar_prefetch=0,
        grid=(G,),
        in_specs=[
            pl.BlockSpec((NB, Hp, Wp, Cxh), lambda g: (g, 0, 0, 0)),
            pl.BlockSpec((K, K, Cxh, Cg), lambda g: (0, 0, 0, 0)),
            pl.BlockSpec((1, Cg), lambda g: (0, 0)),
            pl.BlockSpec((NB, H * W, Ch), lambda g: (g, 0, 0)),
            pl.BlockSpec((H * W, Ch), lambda g: (0, 0)),
            pl.BlockSpec((H * W, Ch), lambda g: (0, 0)),
            pl.BlockSpec((H * W, Ch), lambda g: (0, 0)),
        ],
        out_specs=[
            pl.BlockSpec((NB, H * W, Ch), lambda g: (g, 0, 0)),
            pl.BlockSpec((NB, H * W, Ch), lambda g: (g, 0, 0)),
        ],
    )

    ch_flat, cc_flat = pl.pallas_call(
        kernel,
        out_shape=out_shape,
        grid_spec=grid_spec,
        compiler_params=pltpu.CompilerParams(
            dimension_semantics=("parallel",)),
    )(xh_pad, w, b_f, c_f, wci_f, wcf_f, wco_f)

    return ch_flat.reshape(N, H, W, Ch), cc_flat.reshape(N, H, W, Ch)


def conv_lstm_cell_reference(x, h, c, wx, wh, b, wci, wcf, wco, *, kernel_size):
    """Pure-JAX f32 reference (NHWC / HWIO), mirrors the PyTorch forward."""
    p = (kernel_size - 1) // 2

    def conv(inp, w, bias=None):
        out = jax.lax.conv_general_dilated(
            inp, w, window_strides=(1, 1), padding=[(p, p), (p, p)],
            dimension_numbers=("NHWC", "HWIO", "NHWC"))
        if bias is not None:
            out = out + bias
        return out

    wxi, wxf, wxc, wxo = wx[0], wx[1], wx[2], wx[3]
    whi, whf, whc, who = wh[0], wh[1], wh[2], wh[3]
    bi, bf, bc, bo = b[0], b[1], b[2], b[3]

    ci = jax.nn.sigmoid(conv(x, wxi, bi) + conv(h, whi) + c * wci[None])
    cf = jax.nn.sigmoid(conv(x, wxf, bf) + conv(h, whf) + c * wcf[None])
    cc = cf * c + ci * jnp.tanh(conv(x, wxc, bc) + conv(h, whc))
    co = jax.nn.sigmoid(conv(x, wxo, bo) + conv(h, who) + cc * wco[None])
    ch = co * jnp.tanh(cc)
    return ch, cc


if __name__ == "__main__":
    # Small shapes consistent with the module (hidden_channels must be even).
    N, Cin, Ch, H, W, K = 2, 4, 32, 16, 16, 3

    key = jax.random.PRNGKey(0)
    keys = jax.random.split(key, 10)

    # Deterministic synthetic parameters (gate order: i, f, c, o).
    wx = 0.1 * jax.random.normal(keys[0], (4, K, K, Cin, Ch), jnp.float32)
    wh = 0.1 * jax.random.normal(keys[1], (4, K, K, Ch, Ch), jnp.float32)
    b = 0.1 * jax.random.normal(keys[2], (4, Ch), jnp.float32)
    # init_hidden() creates the peephole weights as zero Parameters; use small
    # random values so the peephole path is actually exercised.
    wci = 0.1 * jax.random.normal(keys[3], (H, W, Ch), jnp.float32)
    wcf = 0.1 * jax.random.normal(keys[4], (H, W, Ch), jnp.float32)
    wco = 0.1 * jax.random.normal(keys[5], (H, W, Ch), jnp.float32)

    # Inputs (NHWC; PyTorch equivalents are the NCHW transposes).
    x = jax.random.normal(keys[6], (N, H, W, Cin), jnp.float32)
    h = jax.random.normal(keys[7], (N, H, W, Ch), jnp.float32)
    c = jax.random.normal(keys[8], (N, H, W, Ch), jnp.float32)

    # Auto batch folding (folds the whole batch at these sizes -> one grid
    # step, a single fat (N*H*W, Cin+Ch)x(Cin+Ch, 4*Ch) matmul per offset).
    ch_out, cc_out = conv_lstm_cell_forward(
        x, h, c, wx, wh, b, wci, wcf, wco, kernel_size=K, batch_block=None)
    jax.block_until_ready((ch_out, cc_out))

    ch_ref, cc_ref = conv_lstm_cell_reference(
        x, h, c, wx, wh, b, wci, wcf, wco, kernel_size=K)

    # Tolerance reflects bf16 MXU operands (f32 accumulation); the f32-operand
    # version matched at 1e-5.
    assert jnp.allclose(ch_out, ch_ref, atol=3e-2, rtol=3e-2), "ch mismatch"
    assert jnp.allclose(cc_out, cc_ref, atol=3e-2, rtol=3e-2), "cc mismatch"

    print("KERNEL_OK")
</pallas_src>

<mosaic_0001>
module attributes {stable_mosaic.version = 11 : i64} {
  func.func @_convlstm_kernel(%arg0: i32, %arg1: memref<2x18x18x36xbf16, #tpu.memory_space<vmem>>, %arg2: memref<3x3x36x128xbf16, #tpu.memory_space<vmem>>, %arg3: memref<1x128xf32, #tpu.memory_space<vmem>>, %arg4: memref<2x256x32xf32, #tpu.memory_space<vmem>>, %arg5: memref<256x32xf32, #tpu.memory_space<vmem>>, %arg6: memref<256x32xf32, #tpu.memory_space<vmem>>, %arg7: memref<256x32xf32, #tpu.memory_space<vmem>>, %arg8: memref<2x256x32xf32, #tpu.memory_space<vmem>>, %arg9: memref<2x256x32xf32, #tpu.memory_space<vmem>>) attributes {dimension_semantics = [#tpu.dimension_semantics<parallel>], iteration_bounds = array<i64: 1>, scalar_prefetch = 0 : i64, scratch_operands = 0 : i64, tpu.core_type = #tpu.core_type<tc>, window_params = [{transform_indices = @transform_0, window_bounds = array<i64: 2, 18, 18, 36>}, {pipeline_mode = #tpu.pipeline_mode<synchronous>, transform_indices = @transform_1, window_bounds = array<i64: 3, 3, 36, 128>}, {pipeline_mode = #tpu.pipeline_mode<synchronous>, transform_indices = @transform_2, window_bounds = array<i64: 1, 128>}, {transform_indices = @transform_3, window_bounds = array<i64: 2, 256, 32>}, {pipeline_mode = #tpu.pipeline_mode<synchronous>, transform_indices = @transform_4, window_bounds = array<i64: 256, 32>}, {pipeline_mode = #tpu.pipeline_mode<synchronous>, transform_indices = @transform_5, window_bounds = array<i64: 256, 32>}, {pipeline_mode = #tpu.pipeline_mode<synchronous>, transform_indices = @transform_6, window_bounds = array<i64: 256, 32>}, {transform_indices = @transform_7, window_bounds = array<i64: 2, 256, 32>}, {transform_indices = @transform_8, window_bounds = array<i64: 2, 256, 32>}]} {
    %c0 = arith.constant 0 : index
    %c0_0 = arith.constant 0 : index
    %0 = vector.load %arg3[%c0, %c0_0] : memref<1x128xf32, #tpu.memory_space<vmem>>, vector<1x128xf32>
    %1 = vector.shape_cast %0 : vector<1x128xf32> to vector<1x128xf32>
    %2 = vector.broadcast %1 : vector<1x128xf32> to vector<512x128xf32>
    %c0_1 = arith.constant 0 : index
    %c0_2 = arith.constant 0 : index
    %c0_3 = arith.constant 0 : index
    %c0_4 = arith.constant 0 : index
    %3 = vector.load %arg1[%c0_1, %c0_2, %c0_3, %c0_4] : memref<2x18x18x36xbf16, #tpu.memory_space<vmem>>, vector<2x16x16x36xbf16>
    %4 = vector.shape_cast %3 : vector<2x16x16x36xbf16> to vector<512x36xbf16>
    %c0_5 = arith.constant 0 : index
    %c0_6 = arith.constant 0 : index
    %c0_7 = arith.constant 0 : index
    %c0_8 = arith.constant 0 : index
    %5 = vector.load %arg2[%c0_5, %c0_6, %c0_7, %c0_8] : memref<3x3x36x128xbf16, #tpu.memory_space<vmem>>, vector<1x1x36x128xbf16>
    %6 = vector.shape_cast %5 : vector<1x1x36x128xbf16> to vector<36x128xbf16>
    %cst = arith.constant dense<0.000000e+00> : vector<512x128xf32>
    %7 = tpu.matmul %4, %6, %cst {dimension_numbers = #tpu.dot_dimension_numbers<[1], [0], [0], [1], [0, 0, 1, 1], [], []>} : vector<512x36xbf16>, vector<36x128xbf16>, vector<512x128xf32> -> vector<512x128xf32>
    %8 = arith.addf %2, %7 : vector<512x128xf32>
    %c0_9 = arith.constant 0 : index
    %c0_10 = arith.constant 0 : index
    %c1 = arith.constant 1 : index
    %c0_11 = arith.constant 0 : index
    %9 = vector.load %arg1[%c0_9, %c0_10, %c1, %c0_11] : memref<2x18x18x36xbf16, #tpu.memory_space<vmem>>, vector<2x16x16x36xbf16>
    %10 = vector.shape_cast %9 : vector<2x16x16x36xbf16> to vector<512x36xbf16>
    %c0_12 = arith.constant 0 : index
    %c1_13 = arith.constant 1 : index
    %c0_14 = arith.constant 0 : index
    %c0_15 = arith.constant 0 : index
    %11 = vector.load %arg2[%c0_12, %c1_13, %c0_14, %c0_15] : memref<3x3x36x128xbf16, #tpu.memory_space<vmem>>, vector<1x1x36x128xbf16>
    %12 = vector.shape_cast %11 : vector<1x1x36x128xbf16> to vector<36x128xbf16>
    %cst_16 = arith.constant dense<0.000000e+00> : vector<512x128xf32>
    %13 = tpu.matmul %10, %12, %cst_16 {dimension_numbers = #tpu.dot_dimension_numbers<[1], [0], [0], [1], [0, 0, 1, 1], [], []>} : vector<512x36xbf16>, vector<36x128xbf16>, vector<512x128xf32> -> vector<512x128xf32>
    %14 = arith.addf %8, %13 : vector<512x128xf32>
    %c0_17 = arith.constant 0 : index
    %c0_18 = arith.constant 0 : index
    %c2 = arith.constant 2 : index
    %c0_19 = arith.constant 0 : index
    %15 = vector.load %arg1[%c0_17, %c0_18, %c2, %c0_19] : memref<2x18x18x36xbf16, #tpu.memory_space<vmem>>, vector<2x16x16x36xbf16>
    %16 = vector.shape_cast %15 : vector<2x16x16x36xbf16> to vector<512x36xbf16>
    %c0_20 = arith.constant 0 : index
    %c2_21 = arith.constant 2 : index
    %c0_22 = arith.constant 0 : index
    %c0_23 = arith.constant 0 : index
    %17 = vector.load %arg2[%c0_20, %c2_21, %c0_22, %c0_23] : memref<3x3x36x128xbf16, #tpu.memory_space<vmem>>, vector<1x1x36x128xbf16>
    %18 = vector.shape_cast %17 : vector<1x1x36x128xbf16> to vector<36x128xbf16>
    %cst_24 = arith.constant dense<0.000000e+00> : vector<512x128xf32>
    %19 = tpu.matmul %16, %18, %cst_24 {dimension_numbers = #tpu.dot_dimension_numbers<[1], [0], [0], [1], [0, 0, 1, 1], [], []>} : vector<512x36xbf16>, vector<36x128xbf16>, vector<512x128xf32> -> vector<512x128xf32>
    %20 = arith.addf %14, %19 : vector<512x128xf32>
    %c0_25 = arith.constant 0 : index
    %c1_26 = arith.constant 1 : index
    %c0_27 = arith.constant 0 : index
    %c0_28 = arith.constant 0 : index
    %21 = vector.load %arg1[%c0_25, %c1_26, %c0_27, %c0_28] : memref<2x18x18x36xbf16, #tpu.memory_space<vmem>>, vector<2x16x16x36xbf16>
    %22 = vector.shape_cast %21 : vector<2x16x16x36xbf16> to vector<512x36xbf16>
    %c1_29 = arith.constant 1 : index
    %c0_30 = arith.constant 0 : index
    %c0_31 = arith.constant 0 : index
    %c0_32 = arith.constant 0 : index
    %23 = vector.load %arg2[%c1_29, %c0_30, %c0_31, %c0_32] : memref<3x3x36x128xbf16, #tpu.memory_space<vmem>>, vector<1x1x36x128xbf16>
    %24 = vector.shape_cast %23 : vector<1x1x36x128xbf16> to vector<36x128xbf16>
    %cst_33 = arith.constant dense<0.000000e+00> : vector<512x128xf32>
    %25 = tpu.matmul %22, %24, %cst_33 {dimension_numbers = #tpu.dot_dimension_numbers<[1], [0], [0], [1], [0, 0, 1, 1], [], []>} : vector<512x36xbf16>, vector<36x128xbf16>, vector<512x128xf32> -> vector<512x128xf32>
    %26 = arith.addf %20, %25 : vector<512x128xf32>
    %c0_34 = arith.constant 0 : index
    %c1_35 = arith.constant 1 : index
    %c1_36 = arith.constant 1 : index
    %c0_37 = arith.constant 0 : index
    %27 = vector.load %arg1[%c0_34, %c1_35, %c1_36, %c0_37] : memref<2x18x18x36xbf16, #tpu.memory_space<vmem>>, vector<2x16x16x36xbf16>
    %28 = vector.shape_cast %27 : vector<2x16x16x36xbf16> to vector<512x36xbf16>
    %c1_38 = arith.constant 1 : index
    %c1_39 = arith.constant 1 : index
    %c0_40 = arith.constant 0 : index
    %c0_41 = arith.constant 0 : index
    %29 = vector.load %arg2[%c1_38, %c1_39, %c0_40, %c0_41] : memref<3x3x36x128xbf16, #tpu.memory_space<vmem>>, vector<1x1x36x128xbf16>
    %30 = vector.shape_cast %29 : vector<1x1x36x128xbf16> to vector<36x128xbf16>
    %cst_42 = arith.constant dense<0.000000e+00> : vector<512x128xf32>
    %31 = tpu.matmul %28, %30, %cst_42 {dimension_numbers = #tpu.dot_dimension_numbers<[1], [0], [0], [1], [0, 0, 1, 1], [], []>} : vector<512x36xbf16>, vector<36x128xbf16>, vector<512x128xf32> -> vector<512x128xf32>
    %32 = arith.addf %26, %31 : vector<512x128xf32>
    %c0_43 = arith.constant 0 : index
    %c1_44 = arith.constant 1 : index
    %c2_45 = arith.constant 2 : index
    %c0_46 = arith.constant 0 : index
    %33 = vector.load %arg1[%c0_43, %c1_44, %c2_45, %c0_46] : memref<2x18x18x36xbf16, #tpu.memory_space<vmem>>, vector<2x16x16x36xbf16>
    %34 = vector.shape_cast %33 : vector<2x16x16x36xbf16> to vector<512x36xbf16>
    %c1_47 = arith.constant 1 : index
    %c2_48 = arith.constant 2 : index
    %c0_49 = arith.constant 0 : index
    %c0_50 = arith.constant 0 : index
    %35 = vector.load %arg2[%c1_47, %c2_48, %c0_49, %c0_50] : memref<3x3x36x128xbf16, #tpu.memory_space<vmem>>, vector<1x1x36x128xbf16>
    %36 = vector.shape_cast %35 : vector<1x1x36x128xbf16> to vector<36x128xbf16>
    %cst_51 = arith.constant dense<0.000000e+00> : vector<512x128xf32>
    %37 = tpu.matmul %34, %36, %cst_51 {dimension_numbers = #tpu.dot_dimension_numbers<[1], [0], [0], [1], [0, 0, 1, 1], [], []>} : vector<512x36xbf16>, vector<36x128xbf16>, vector<512x128xf32> -> vector<512x128xf32>
    %38 = arith.addf %32, %37 : vector<512x128xf32>
    %c0_52 = arith.constant 0 : index
    %c2_53 = arith.constant 2 : index
    %c0_54 = arith.constant 0 : index
    %c0_55 = arith.constant 0 : index
    %39 = vector.load %arg1[%c0_52, %c2_53, %c0_54, %c0_55] : memref<2x18x18x36xbf16, #tpu.memory_space<vmem>>, vector<2x16x16x36xbf16>
    %40 = vector.shape_cast %39 : vector<2x16x16x36xbf16> to vector<512x36xbf16>
    %c2_56 = arith.constant 2 : index
    %c0_57 = arith.constant 0 : index
    %c0_58 = arith.constant 0 : index
    %c0_59 = arith.constant 0 : index
    %41 = vector.load %arg2[%c2_56, %c0_57, %c0_58, %c0_59] : memref<3x3x36x128xbf16, #tpu.memory_space<vmem>>, vector<1x1x36x128xbf16>
    %42 = vector.shape_cast %41 : vector<1x1x36x128xbf16> to vector<36x128xbf16>
    %cst_60 = arith.constant dense<0.000000e+00> : vector<512x128xf32>
    %43 = tpu.matmul %40, %42, %cst_60 {dimension_numbers = #tpu.dot_dimension_numbers<[1], [0], [0], [1], [0, 0, 1, 1], [], []>} : vector<512x36xbf16>, vector<36x128xbf16>, vector<512x128xf32> -> vector<512x128xf32>
    %44 = arith.addf %38, %43 : vector<512x128xf32>
    %c0_61 = arith.constant 0 : index
    %c2_62 = arith.constant 2 : index
    %c1_63 = arith.constant 1 : index
    %c0_64 = arith.constant 0 : index
    %45 = vector.load %arg1[%c0_61, %c2_62, %c1_63, %c0_64] : memref<2x18x18x36xbf16, #tpu.memory_space<vmem>>, vector<2x16x16x36xbf16>
    %46 = vector.shape_cast %45 : vector<2x16x16x36xbf16> to vector<512x36xbf16>
    %c2_65 = arith.constant 2 : index
    %c1_66 = arith.constant 1 : index
    %c0_67 = arith.constant 0 : index
    %c0_68 = arith.constant 0 : index
    %47 = vector.load %arg2[%c2_65, %c1_66, %c0_67, %c0_68] : memref<3x3x36x128xbf16, #tpu.memory_space<vmem>>, vector<1x1x36x128xbf16>
    %48 = vector.shape_cast %47 : vector<1x1x36x128xbf16> to vector<36x128xbf16>
    %cst_69 = arith.constant dense<0.000000e+00> : vector<512x128xf32>
    %49 = tpu.matmul %46, %48, %cst_69 {dimension_numbers = #tpu.dot_dimension_numbers<[1], [0], [0], [1], [0, 0, 1, 1], [], []>} : vector<512x36xbf16>, vector<36x128xbf16>, vector<512x128xf32> -> vector<512x128xf32>
    %50 = arith.addf %44, %49 : vector<512x128xf32>
    %c0_70 = arith.constant 0 : index
    %c2_71 = arith.constant 2 : index
    %c2_72 = arith.constant 2 : index
    %c0_73 = arith.constant 0 : index
    %51 = vector.load %arg1[%c0_70, %c2_71, %c2_72, %c0_73] : memref<2x18x18x36xbf16, #tpu.memory_space<vmem>>, vector<2x16x16x36xbf16>
    %52 = vector.shape_cast %51 : vector<2x16x16x36xbf16> to vector<512x36xbf16>
    %c2_74 = arith.constant 2 : index
    %c2_75 = arith.constant 2 : index
    %c0_76 = arith.constant 0 : index
    %c0_77 = arith.constant 0 : index
    %53 = vector.load %arg2[%c2_74, %c2_75, %c0_76, %c0_77] : memref<3x3x36x128xbf16, #tpu.memory_space<vmem>>, vector<1x1x36x128xbf16>
    %54 = vector.shape_cast %53 : vector<1x1x36x128xbf16> to vector<36x128xbf16>
    %cst_78 = arith.constant dense<0.000000e+00> : vector<512x128xf32>
    %55 = tpu.matmul %52, %54, %cst_78 {dimension_numbers = #tpu.dot_dimension_numbers<[1], [0], [0], [1], [0, 0, 1, 1], [], []>} : vector<512x36xbf16>, vector<36x128xbf16>, vector<512x128xf32> -> vector<512x128xf32>
    %56 = arith.addf %50, %55 : vector<512x128xf32>
    %57 = vector.extract_strided_slice %56 {offsets = [0, 0], sizes = [512, 32], strides = [1, 1]} : vector<512x128xf32> to vector<512x32xf32>
    %58 = vector.shape_cast %57 : vector<512x32xf32> to vector<2x256x32xf32>
    %59 = vector.extract_strided_slice %56 {offsets = [0, 32], sizes = [512, 32], strides = [1, 1]} : vector<512x128xf32> to vector<512x32xf32>
    %60 = vector.shape_cast %59 : vector<512x32xf32> to vector<2x256x32xf32>
    %61 = vector.extract_strided_slice %56 {offsets = [0, 64], sizes = [512, 32], strides = [1, 1]} : vector<512x128xf32> to vector<512x32xf32>
    %62 = vector.shape_cast %61 : vector<512x32xf32> to vector<2x256x32xf32>
    %63 = vector.extract_strided_slice %56 {offsets = [0, 96], sizes = [512, 32], strides = [1, 1]} : vector<512x128xf32> to vector<512x32xf32>
    %64 = vector.shape_cast %63 : vector<512x32xf32> to vector<2x256x32xf32>
    %c0_79 = arith.constant 0 : index
    %c0_80 = arith.constant 0 : index
    %c0_81 = arith.constant 0 : index
    %65 = vector.load %arg4[%c0_79, %c0_80, %c0_81] : memref<2x256x32xf32, #tpu.memory_space<vmem>>, vector<2x256x32xf32>
    %c0_82 = arith.constant 0 : index
    %c0_83 = arith.constant 0 : index
    %66 = vector.load %arg5[%c0_82, %c0_83] : memref<256x32xf32, #tpu.memory_space<vmem>>, vector<256x32xf32>
    %67 = vector.shape_cast %66 : vector<256x32xf32> to vector<1x256x32xf32>
    %68 = vector.broadcast %67 : vector<1x256x32xf32> to vector<2x256x32xf32>
    %69 = arith.mulf %65, %68 : vector<2x256x32xf32>
    %70 = arith.addf %58, %69 : vector<2x256x32xf32>
    %71 = arith.negf %70 : vector<2x256x32xf32>
    %72 = math.exp %71 : vector<2x256x32xf32>
    %cst_84 = arith.constant 1.000000e+00 : f32
    %73 = vector.broadcast %cst_84 : f32 to vector<2x256x32xf32>
    %74 = arith.addf %73, %72 : vector<2x256x32xf32>
    %75 = arith.divf %73, %74 : vector<2x256x32xf32>
    %c0_85 = arith.constant 0 : index
    %c0_86 = arith.constant 0 : index
    %76 = vector.load %arg6[%c0_85, %c0_86] : memref<256x32xf32, #tpu.memory_space<vmem>>, vector<256x32xf32>
    %77 = vector.shape_cast %76 : vector<256x32xf32> to vector<1x256x32xf32>
    %78 = vector.broadcast %77 : vector<1x256x32xf32> to vector<2x256x32xf32>
    %79 = arith.mulf %65, %78 : vector<2x256x32xf32>
    %80 = arith.addf %60, %79 : vector<2x256x32xf32>
    %81 = arith.negf %80 : vector<2x256x32xf32>
    %82 = math.exp %81 : vector<2x256x32xf32>
    %cst_87 = arith.constant 1.000000e+00 : f32
    %83 = vector.broadcast %cst_87 : f32 to vector<2x256x32xf32>
    %84 = arith.addf %83, %82 : vector<2x256x32xf32>
    %85 = arith.divf %83, %84 : vector<2x256x32xf32>
    %86 = arith.mulf %85, %65 : vector<2x256x32xf32>
    %87 = math.tanh %62 : vector<2x256x32xf32>
    %88 = arith.mulf %75, %87 : vector<2x256x32xf32>
    %89 = arith.addf %86, %88 : vector<2x256x32xf32>
    %c0_88 = arith.constant 0 : index
    %c0_89 = arith.constant 0 : index
    %90 = vector.load %arg7[%c0_88, %c0_89] : memref<256x32xf32, #tpu.memory_space<vmem>>, vector<256x32xf32>
    %91 = vector.shape_cast %90 : vector<256x32xf32> to vector<1x256x32xf32>
    %92 = vector.broadcast %91 : vector<1x256x32xf32> to vector<2x256x32xf32>
    %93 = arith.mulf %89, %92 : vector<2x256x32xf32>
    %94 = arith.addf %64, %93 : vector<2x256x32xf32>
    %95 = arith.negf %94 : vector<2x256x32xf32>
    %96 = math.exp %95 : vector<2x256x32xf32>
    %cst_90 = arith.constant 1.000000e+00 : f32
    %97 = vector.broadcast %cst_90 : f32 to vector<2x256x32xf32>
    %98 = arith.addf %97, %96 : vector<2x256x32xf32>
    %99 = arith.divf %97, %98 : vector<2x256x32xf32>
    %100 = math.tanh %89 : vector<2x256x32xf32>
    %101 = arith.mulf %99, %100 : vector<2x256x32xf32>
    %c0_91 = arith.constant 0 : index
    %c0_92 = arith.constant 0 : index
    %c0_93 = arith.constant 0 : index
    %102 = vector.load %arg8[%c0_91, %c0_92, %c0_93] : memref<2x256x32xf32, #tpu.memory_space<vmem>>, vector<2x256x32xf32>
    tpu.vector_store %arg8[%c0_91, %c0_92, %c0_93], %101 {strides = array<i32>} : memref<2x256x32xf32, #tpu.memory_space<vmem>>, vector<2x256x32xf32>,
    %c0_94 = arith.constant 0 : index
    %c0_95 = arith.constant 0 : index
    %c0_96 = arith.constant 0 : index
    %103 = vector.load %arg9[%c0_94, %c0_95, %c0_96] : memref<2x256x32xf32, #tpu.memory_space<vmem>>, vector<2x256x32xf32>
    tpu.vector_store %arg9[%c0_94, %c0_95, %c0_96], %89 {strides = array<i32>} : memref<2x256x32xf32, #tpu.memory_space<vmem>>, vector<2x256x32xf32>,
    return
  }
  func.func @transform_0(%arg0: i32) -> (i32, i32, i32, i32) {
    %c0_i32 = arith.constant 0 : i32
    %c0_i32_0 = arith.constant 0 : i32
    %c0_i32_1 = arith.constant 0 : i32
    %c0_i32_2 = arith.constant 0 : i32
    return %arg0, %c0_i32, %c0_i32_0, %c0_i32_1 : i32, i32, i32, i32
  }
  func.func @transform_1(%arg0: i32) -> (i32, i32, i32, i32) {
    %c0_i32 = arith.constant 0 : i32
    %c0_i32_0 = arith.constant 0 : i32
    %c0_i32_1 = arith.constant 0 : i32
    %c0_i32_2 = arith.constant 0 : i32
    %c0_i32_3 = arith.constant 0 : i32
    return %c0_i32, %c0_i32_0, %c0_i32_1, %c0_i32_2 : i32, i32, i32, i32
  }
  func.func @transform_2(%arg0: i32) -> (i32, i32) {
    %c0_i32 = arith.constant 0 : i32
    %c0_i32_0 = arith.constant 0 : i32
    %c0_i32_1 = arith.constant 0 : i32
    return %c0_i32, %c0_i32_0 : i32, i32
  }
  func.func @transform_3(%arg0: i32) -> (i32, i32, i32) {
    %c0_i32 = arith.constant 0 : i32
    %c0_i32_0 = arith.constant 0 : i32
    %c0_i32_1 = arith.constant 0 : i32
    return %arg0, %c0_i32, %c0_i32_0 : i32, i32, i32
  }
  func.func @transform_4(%arg0: i32) -> (i32, i32) {
    %c0_i32 = arith.constant 0 : i32
    %c0_i32_0 = arith.constant 0 : i32
    %c0_i32_1 = arith.constant 0 : i32
    return %c0_i32, %c0_i32_0 : i32, i32
  }
  func.func @transform_5(%arg0: i32) -> (i32, i32) {
    %c0_i32 = arith.constant 0 : i32
    %c0_i32_0 = arith.constant 0 : i32
    %c0_i32_1 = arith.constant 0 : i32
    return %c0_i32, %c0_i32_0 : i32, i32
  }
  func.func @transform_6(%arg0: i32) -> (i32, i32) {
    %c0_i32 = arith.constant 0 : i32
    %c0_i32_0 = arith.constant 0 : i32
    %c0_i32_1 = arith.constant 0 : i32
    return %c0_i32, %c0_i32_0 : i32, i32
  }
  func.func @transform_7(%arg0: i32) -> (i32, i32, i32) {
    %c0_i32 = arith.constant 0 : i32
    %c0_i32_0 = arith.constant 0 : i32
    %c0_i32_1 = arith.constant 0 : i32
    return %arg0, %c0_i32, %c0_i32_0 : i32, i32, i32
  }
  func.func @transform_8(%arg0: i32) -> (i32, i32, i32) {
    %c0_i32 = arith.constant 0 : i32
    %c0_i32_0 = arith.constant 0 : i32
    %c0_i32_1 = arith.constant 0 : i32
    return %arg0, %c0_i32, %c0_i32_0 : i32, i32, i32
  }
}

</mosaic_0001>

<llo_original>
// kernel: tpu_custom_call.1
$region0: #{tpu_custom_call.1}
  #allocation0 [shape = 'u32[]', space=smem, size = 0x4, offset = 0x4, fixed_abs, tag = 'smem constant byte address 0x4 - core index']
  #allocation1 [shape = 'u32[144,128]{1,0:T(1,128)}', space=vmem, size = 0x12000, scoped, tag = 'internal scratch']
  %s0 = inlined_call_operand.vmem [shape: bf16[2,18,18,36], index: 0, kind: input, shape index: {}]
  %s1 = inlined_call_operand.vmem [shape: bf16[3,3,36,128], index: 1, kind: input, shape index: {}]
  %s2 = inlined_call_operand.vmem [shape: f32[1,128], index: 2, kind: input, shape index: {}]
  %s3 = inlined_call_operand.vmem [shape: f32[2,256,32], index: 3, kind: input, shape index: {}]
  %s4 = inlined_call_operand.vmem [shape: f32[256,32], index: 4, kind: input, shape index: {}]
  %s5 = inlined_call_operand.vmem [shape: f32[256,32], index: 5, kind: input, shape index: {}]
  %s6 = inlined_call_operand.vmem [shape: f32[256,32], index: 6, kind: input, shape index: {}]
  %s7 = inlined_call_operand.vmem [shape: f32[2,256,32], index: 7, kind: output, shape index: {0}]
  %s8 = inlined_call_operand.vmem [shape: f32[2,256,32], index: 8, kind: output, shape index: {1}]
  %9 = xla_tuple %s7, %s8
  %s10 = sld [smem:[#allocation0]]
  $region46: #{tpu_custom_call.1} parent=0
    _
  %s12 = ssub.s32 1, %s10
  %s13 = scalar_select 0, %s12, %s10
  // Predicated region
  $region2: #{tpu_custom_call.1} parent=0 // pred_check
    _
  $region3: #{tpu_custom_call.1} parent=0 // pred_check_branch
    %15 = sbr.rel (0) target = $region5
  $region4: #{tpu_custom_call.1} parent=0 // pred_region
    _
  $region5: #{tpu_custom_call.1} parent=0 // pred_fallthru
    _
  // Predicated region
  $region6: #{tpu_custom_call.1} parent=0 // pred_check
    _
  $region7: #{tpu_custom_call.1} parent=0 // pred_check_branch
    %17 = sbr.rel (0) target = $region9
  $region8: #{tpu_custom_call.1} parent=0 // pred_region
    _
  $region9: #{tpu_custom_call.1} parent=0 // pred_fallthru
    _
  // Predicated region
  $region10: #{tpu_custom_call.1} parent=0 // pred_check
    _
  $region11: #{tpu_custom_call.1} parent=0 // pred_check_branch
    %19 = sbr.rel (0) target = $region13
  $region12: #{tpu_custom_call.1} parent=0 // pred_region
    _
  $region13: #{tpu_custom_call.1} parent=0 // pred_fallthru
    _
  // Predicated region
  $region14: #{tpu_custom_call.1} parent=0 // pred_check
    _
  $region15: #{tpu_custom_call.1} parent=0 // pred_check_branch
    %21 = sbr.rel (0) target = $region17
  $region16: #{tpu_custom_call.1} parent=0 // pred_region
    _
  $region17: #{tpu_custom_call.1} parent=0 // pred_fallthru
    _
  // Predicated region
  $region18: #{tpu_custom_call.1} parent=0 // pred_check
    _
  $region19: #{tpu_custom_call.1} parent=0 // pred_check_branch
    %23 = sbr.rel (0) target = $region21
  $region20: #{tpu_custom_call.1} parent=0 // pred_region
    _
  $region21: #{tpu_custom_call.1} parent=0 // pred_fallthru
    _
  // Predicated region
  $region22: #{tpu_custom_call.1} parent=0 // pred_check
    _
  $region23: #{tpu_custom_call.1} parent=0 // pred_check_branch
    %25 = sbr.rel (0) target = $region25
  $region24: #{tpu_custom_call.1} parent=0 // pred_region
    _
  $region25: #{tpu_custom_call.1} parent=0 // pred_fallthru
    _
  // Predicated region
  $region26: #{tpu_custom_call.1} parent=0 // pred_check
    _
  $region27: #{tpu_custom_call.1} parent=0 // pred_check_branch
    %27 = sbr.rel (0) target = $region29
  $region28: #{tpu_custom_call.1} parent=0 // pred_region
    _
  $region29: #{tpu_custom_call.1} parent=0 // pred_fallthru
    _
  %v29 = vld [vmem:[%s2] sm:$0x1]
  %v31 = vlaneseq
  %v32 = vshrl.u32 %v31, 7
  %v33 = vsub.s32 0, %v32
  %v34 = vrot.slane %v29, %v33
  %v36 = vld [vmem:[%s0] sm:$0xf]
  %v37 = vld [vmem:[%s0 + $0x4] sm:$0xf]
  %v38 = vld [vmem:[%s0 + $0xc] sm:$0xf]
  %v39 = vld [vmem:[%s0 + $0x10] sm:$0xf]
  %v40 = vld [vmem:[%s0 + $0x18] sm:$0xf]
  %v41 = vld [vmem:[%s0 + $0x1c] sm:$0xf]
  %v42 = vld [vmem:[%s0 + $0x24] sm:$0xf]
  %v43 = vld [vmem:[%s0 + $0x28] sm:$0xf]
  %v44 = vld [vmem:[%s0 + $0x30] sm:$0xf]
  %v45 = vld [vmem:[%s0 + $0x34] sm:$0xf]
  %v46 = vld [vmem:[%s0 + $0x3c] sm:$0xf]
  %v47 = vld [vmem:[%s0 + $0x40] sm:$0xf]
  %v48 = vld [vmem:[%s0 + $0x48] sm:$0xf]
  %v49 = vld [vmem:[%s0 + $0x4c] sm:$0xf]
  %v50 = vld [vmem:[%s0 + $0x54] sm:$0xf]
  %v51 = vld [vmem:[%s0 + $0x58] sm:$0xf]
  %v52 = vld [vmem:[%s0 + $0x60] sm:$0xf]
  %v53 = vld [vmem:[%s0 + $0x64] sm:$0xf]
  %v54 = vld [vmem:[%s0 + $0x6c] sm:$0xf]
  %v55 = vld [vmem:[%s0 + $0x70] sm:$0xf]
  %v56 = vld [vmem:[%s0 + $0x78] sm:$0xf]
  %v57 = vld [vmem:[%s0 + $0x7c] sm:$0xf]
  %v58 = vld [vmem:[%s0 + $0x84] sm:$0xf]
  %v59 = vld [vmem:[%s0 + $0x88] sm:$0xf]
  %v60 = vld [vmem:[%s0 + $0x90] sm:$0xf]
  %v61 = vld [vmem:[%s0 + $0x94] sm:$0xf]
  %v62 = vld [vmem:[%s0 + $0x9c] sm:$0xf]
  %v63 = vld [vmem:[%s0 + $0xa0] sm:$0xf]
  %v64 = vld [vmem:[%s0 + $0xa8] sm:$0xf]
  %v65 = vld [vmem:[%s0 + $0xac] sm:$0xf]
  %v66 = vld [vmem:[%s0 + $0xb4] sm:$0xf]
  %v67 = vld [vmem:[%s0 + $0xb8] sm:$0xf]
  %v68 = vld [vmem:[%s0 + $0xd8] sm:$0xf]
  %v69 = vld [vmem:[%s0 + $0xdc] sm:$0xf]
  %v70 = vld [vmem:[%s0 + $0xe4] sm:$0xf]
  %v71 = vld [vmem:[%s0 + $0xe8] sm:$0xf]
  %v72 = vld [vmem:[%s0 + $0xf0] sm:$0xf]
  %v73 = vld [vmem:[%s0 + $0xf4] sm:$0xf]
  %v74 = vld [vmem:[%s0 + $0xfc] sm:$0xf]
  %v75 = vld [vmem:[%s0 + $0x100] sm:$0xf]
  %v76 = vld [vmem:[%s0 + $0x108] sm:$0xf]
  %v77 = vld [vmem:[%s0 + $0x10c] sm:$0xf]
  %v78 = vld [vmem:[%s0 + $0x114] sm:$0xf]
  %v79 = vld [vmem:[%s0 + $0x118] sm:$0xf]
  %v80 = vld [vmem:[%s0 + $0x120] sm:$0xf]
  %v81 = vld [vmem:[%s0 + $0x124] sm:$0xf]
  %v82 = vld [vmem:[%s0 + $0x12c] sm:$0xf]
  %v83 = vld [vmem:[%s0 + $0x130] sm:$0xf]
  %v84 = vld [vmem:[%s0 + $0x138] sm:$0xf]
  %v85 = vld [vmem:[%s0 + $0x13c] sm:$0xf]
  %v86 = vld [vmem:[%s0 + $0x144] sm:$0xf]
  %v87 = vld [vmem:[%s0 + $0x148] sm:$0xf]
  %v88 = vld [vmem:[%s0 + $0x150] sm:$0xf]
  %v89 = vld [vmem:[%s0 + $0x154] sm:$0xf]
  %v90 = vld [vmem:[%s0 + $0x15c] sm:$0xf]
  %v91 = vld [vmem:[%s0 + $0x160] sm:$0xf]
  %v92 = vld [vmem:[%s0 + $0x168] sm:$0xf]
  %v93 = vld [vmem:[%s0 + $0x16c] sm:$0xf]
  %v94 = vld [vmem:[%s0 + $0x174] sm:$0xf]
  %v95 = vld [vmem:[%s0 + $0x178] sm:$0xf]
  %v96 = vld [vmem:[%s0 + $0x180] sm:$0xf]
  %v97 = vld [vmem:[%s0 + $0x184] sm:$0xf]
  %v98 = vld [vmem:[%s0 + $0x18c] sm:$0xf]
  %v99 = vld [vmem:[%s0 + $0x190] sm:$0xf]
  %v100 = vld [vmem:[%s1] sm:$0xf]
  %v101 = vld [vmem:[%s1 + $0x4] sm:$0xf]
  %v102 = vld [vmem:[%s1 + $0x8] sm:$0xf]
  %v103 = vld [vmem:[%s1 + $0xc] sm:$0xf]
  %v104 = vld [vmem:[%s1 + $0x10] sm:$0x3]
  %v169 = vunpack.c.l.b16 %v36
  %v170 = vunpack.c.l.b16 %v37
  %v171 = vunpack.c.l.b16 %v38
  %v172 = vunpack.c.l.b16 %v39
  %v173 = vunpack.c.l.b16 %v40
  %v174 = vunpack.c.l.b16 %v41
  %v175 = vunpack.c.l.b16 %v42
  %v176 = vunpack.c.l.b16 %v43
  %v177 = vunpack.c.l.b16 %v44
  %v178 = vunpack.c.l.b16 %v45
  %v179 = vunpack.c.l.b16 %v46
  %v180 = vunpack.c.l.b16 %v47
  %v181 = vunpack.c.l.b16 %v48
  %v182 = vunpack.c.l.b16 %v49
  %v183 = vunpack.c.l.b16 %v50
  %v184 = vunpack.c.l.b16 %v51
  %v185 = vunpack.c.l.b16 %v52
  %v186 = vunpack.c.l.b16 %v53
  %v187 = vunpack.c.l.b16 %v54
  %v188 = vunpack.c.l.b16 %v55
  %v189 = vunpack.c.l.b16 %v56
  %v190 = vunpack.c.l.b16 %v57
  %v191 = vunpack.c.l.b16 %v58
  %v192 = vunpack.c.l.b16 %v59
  %v193 = vunpack.c.l.b16 %v60
  %v194 = vunpack.c.l.b16 %v61
  %v195 = vunpack.c.l.b16 %v62
  %v196 = vunpack.c.l.b16 %v63
  %v197 = vunpack.c.l.b16 %v64
  %v198 = vunpack.c.l.b16 %v65
  %v199 = vunpack.c.l.b16 %v66
  %v200 = vunpack.c.l.b16 %v67
  %v201 = vunpack.c.l.b16 %v68
  %v202 = vunpack.c.l.b16 %v69
  %v203 = vunpack.c.l.b16 %v70
  %v204 = vunpack.c.l.b16 %v71
  %v205 = vunpack.c.l.b16 %v72
  %v206 = vunpack.c.l.b16 %v73
  %v207 = vunpack.c.l.b16 %v74
  %v208 = vunpack.c.l.b16 %v75
  %v209 = vunpack.c.l.b16 %v76
  %v210 = vunpack.c.l.b16 %v77
  %v211 = vunpack.c.l.b16 %v78
  %v212 = vunpack.c.l.b16 %v79
  %v213 = vunpack.c.l.b16 %v80
  %v214 = vunpack.c.l.b16 %v81
  %v215 = vunpack.c.l.b16 %v82
  %v216 = vunpack.c.l.b16 %v83
  %v217 = vunpack.c.l.b16 %v84
  %v218 = vunpack.c.l.b16 %v85
  %v219 = vunpack.c.l.b16 %v86
  %v220 = vunpack.c.l.b16 %v87
  %v221 = vunpack.c.l.b16 %v88
  %v222 = vunpack.c.l.b16 %v89
  %v223 = vunpack.c.l.b16 %v90
  %v224 = vunpack.c.l.b16 %v91
  %v225 = vunpack.c.l.b16 %v92
  %v226 = vunpack.c.l.b16 %v93
  %v227 = vunpack.c.l.b16 %v94
  %v228 = vunpack.c.l.b16 %v95
  %v229 = vunpack.c.l.b16 %v96
  %v230 = vunpack.c.l.b16 %v97
  %v231 = vunpack.c.l.b16 %v98
  %v232 = vunpack.c.l.b16 %v99
  %v233 = vpack.c.b16 %v170, %v169
  %v234 = vpack.c.b16 %v172, %v171
  %v235 = vpack.c.b16 %v174, %v173
  %v236 = vpack.c.b16 %v176, %v175
  %v237 = vpack.c.b16 %v178, %v177
  %v238 = vpack.c.b16 %v180, %v179
  %v239 = vpack.c.b16 %v182, %v181
  %v240 = vpack.c.b16 %v184, %v183
  %v241 = vpack.c.b16 %v186, %v185
  %v242 = vpack.c.b16 %v188, %v187
  %v243 = vpack.c.b16 %v190, %v189
  %v244 = vpack.c.b16 %v192, %v191
  %v245 = vpack.c.b16 %v194, %v193
  %v246 = vpack.c.b16 %v196, %v195
  %v247 = vpack.c.b16 %v198, %v197
  %v248 = vpack.c.b16 %v200, %v199
  %v249 = vpack.c.b16 %v202, %v201
  %v250 = vpack.c.b16 %v204, %v203
  %v251 = vpack.c.b16 %v206, %v205
  %v252 = vpack.c.b16 %v208, %v207
  %v253 = vpack.c.b16 %v210, %v209
  %v254 = vpack.c.b16 %v212, %v211
  %v255 = vpack.c.b16 %v214, %v213
  %v256 = vpack.c.b16 %v216, %v215
  %v257 = vpack.c.b16 %v218, %v217
  %v258 = vpack.c.b16 %v220, %v219
  %v259 = vpack.c.b16 %v222, %v221
  %v260 = vpack.c.b16 %v224, %v223
  %v261 = vpack.c.b16 %v226, %v225
  %v262 = vpack.c.b16 %v228, %v227
  %v263 = vpack.c.b16 %v230, %v229
  %v264 = vpack.c.b16 %v232, %v231
  %v270 = vunpack.c.l.b16 %v100
  %v271 = vunpack.c.l.b16 %v101
  %v272 = vunpack.c.l.b16 %v102
  %v273 = vunpack.c.l.b16 %v103
  %v274 = vunpack.c.l.b16 %v104
  %v275 = vpack.c.b16 %v271, %v270
  %v276 = vpack.c.b16 %v273, %v272
  %v277 = vpack.c.b16 %v274, %v274
  %vm280 = vcmask 293888
  %v282 = vsel %vm280, %v233, 0
  %v285 = vsel %vm280, %v234, 0
  %v288 = vsel %vm280, %v235, 0
  %v291 = vsel %vm280, %v236, 0
  %v294 = vsel %vm280, %v237, 0
  %v297 = vsel %vm280, %v238, 0
  %v300 = vsel %vm280, %v239, 0
  %v303 = vsel %vm280, %v240, 0
  %v306 = vsel %vm280, %v241, 0
  %v309 = vsel %vm280, %v242, 0
  %v312 = vsel %vm280, %v243, 0
  %v315 = vsel %vm280, %v244, 0
  %v318 = vsel %vm280, %v245, 0
  %v321 = vsel %vm280, %v246, 0
  %v324 = vsel %vm280, %v247, 0
  %v327 = vsel %vm280, %v248, 0
  %v330 = vsel %vm280, %v249, 0
  %v333 = vsel %vm280, %v250, 0
  %v336 = vsel %vm280, %v251, 0
  %v339 = vsel %vm280, %v252, 0
  %v342 = vsel %vm280, %v253, 0
  %v345 = vsel %vm280, %v254, 0
  %v348 = vsel %vm280, %v255, 0
  %v351 = vsel %vm280, %v256, 0
  %v354 = vsel %vm280, %v257, 0
  %v357 = vsel %vm280, %v258, 0
  %v360 = vsel %vm280, %v259, 0
  %v363 = vsel %vm280, %v260, 0
  %v366 = vsel %vm280, %v261, 0
  %v369 = vsel %vm280, %v262, 0
  %v372 = vsel %vm280, %v263, 0
  %v375 = vsel %vm280, %v264, 0
  %vm377 = vcmask 1041408
  %v379 = vsel %vm377, %v277, 0
  %381 = vmatprep.subr.bf16.mxu0 0
  %382 = vmatpush1.bf16.msra.mxu0 %v275
  %383 = vmatprep.subr.bf16.mxu0 0
  %384 = vmatpush1.bf16.msra.mxu0 %v276
  %385 = vmatprep.subr.bf16.mxu0 0
  %386 = vmatpush1.bf16.msra.mxu0 %v379
  %387 = vmatprep.subr.bf16.mxu0 0
  %388 = vmatpush1.bf16.msra.mxu0 0
  %389 = vmatprep.subr.bf16.mxu0 0
  %390 = vmatpush1.bf16.msra.mxu0 0
  %391 = vmatprep.subr.bf16.mxu0 0
  %392 = vmatpush1.bf16.msra.mxu0 0
  %393 = vmatprep.subr.bf16.mxu0 0
  %394 = vmatpush1.bf16.msra.mxu0 0
  %395 = vmatprep.subr.bf16.mxu0 0
  %396 = vmatpush1.bf16.msra.mxu0 0
  %397 = vmatprep.subr.bf16.mxu0 0
  %398 = vmatpush1.bf16.msra.mxu0 0
  %399 = vmatprep.subr.bf16.mxu0 0
  %400 = vmatpush1.bf16.msra.mxu0 0
  %401 = vmatprep.subr.bf16.mxu0 0
  %402 = vmatpush1.bf16.msra.mxu0 0
  %403 = vmatprep.subr.bf16.mxu0 0
  %404 = vmatpush1.bf16.msra.mxu0 0
  %405 = vmatprep.subr.bf16.mxu0 0
  %406 = vmatpush1.bf16.msra.mxu0 0
  %407 = vmatprep.subr.bf16.mxu0 0
  %408 = vmatpush1.bf16.msra.mxu0 0
  %409 = vmatprep.subr.bf16.mxu0 0
  %410 = vmatpush1.bf16.msra.mxu0 0
  %411 = vmatprep.subr.bf16.mxu0 0
  %412 = vmatpush1.bf16.msra.mxu0 0
  %413 = vmatprep.mubr.bf16.mxu0 0
  %414 = vmatmul.mubr.bf16.gmra.mrb[0].mxu0 %v282
  %v415 = vpop.f32.mrb[0].mxu0
  %v416 = vadd.f32 0.0, %v415
  %v417 = vpop.f32.mrb[0].mxu0
  %v418 = vpop.f32.mrb[0].mxu0
  %v419 = vadd.f32 0.0, %v418
  %v420 = vpop.f32.mrb[0].mxu0
  %421 = vmatprep.mubr.bf16.mxu0 0
  %422 = vmatmul.mubr.bf16.gmra.mrb[0].mxu0 %v285
  %v423 = vpop.f32.mrb[0].mxu0
  %v424 = vadd.f32 0.0, %v423
  %v425 = vpop.f32.mrb[0].mxu0
  %v426 = vpop.f32.mrb[0].mxu0
  %v427 = vadd.f32 0.0, %v426
  %v428 = vpop.f32.mrb[0].mxu0
  %429 = vmatprep.mubr.bf16.mxu0 0
  %430 = vmatmul.mubr.bf16.gmra.mrb[0].mxu0 %v288
  %v431 = vpop.f32.mrb[0].mxu0
  %v432 = vadd.f32 0.0, %v431
  %v433 = vpop.f32.mrb[0].mxu0
  %v434 = vpop.f32.mrb[0].mxu0
  %v435 = vadd.f32 0.0, %v434
  %v436 = vpop.f32.mrb[0].mxu0
  %437 = vmatprep.mubr.bf16.mxu0 0
  %438 = vmatmul.mubr.bf16.gmra.mrb[0].mxu0 %v291
  %v439 = vpop.f32.mrb[0].mxu0
  %v440 = vadd.f32 0.0, %v439
  %v441 = vpop.f32.mrb[0].mxu0
  %v442 = vpop.f32.mrb[0].mxu0
  %v443 = vadd.f32 0.0, %v442
  %v444 = vpop.f32.mrb[0].mxu0
  %445 = vmatprep.mubr.bf16.mxu0 0
  %446 = vmatmul.mubr.bf16.gmra.mrb[0].mxu0 %v294
  %v447 = vpop.f32.mrb[0].mxu0
  %v448 = vadd.f32 0.0, %v447
  %v449 = vpop.f32.mrb[0].mxu0
  %v450 = vpop.f32.mrb[0].mxu0
  %v451 = vadd.f32 0.0, %v450
  %v452 = vpop.f32.mrb[0].mxu0
  %453 = vmatprep.mubr.bf16.mxu0 0
  %454 = vmatmul.mubr.bf16.gmra.mrb[0].mxu0 %v297
  %v455 = vpop.f32.mrb[0].mxu0
  %v456 = vadd.f32 0.0, %v455
  %v457 = vpop.f32.mrb[0].mxu0
  %v458 = vpop.f32.mrb[0].mxu0
  %v459 = vadd.f32 0.0, %v458
  %v460 = vpop.f32.mrb[0].mxu0
  %461 = vmatprep.mubr.bf16.mxu0 0
  %462 = vmatmul.mubr.bf16.gmra.mrb[0].mxu0 %v300
  %v463 = vpop.f32.mrb[0].mxu0
  %v464 = vadd.f32 0.0, %v463
  %v465 = vpop.f32.mrb[0].mxu0
  %v466 = vpop.f32.mrb[0].mxu0
  %v467 = vadd.f32 0.0, %v466
  %v468 = vpop.f32.mrb[0].mxu0
  %469 = vmatprep.mubr.bf16.mxu0 0
  %470 = vmatmul.mubr.bf16.gmra.mrb[0].mxu0 %v303
  %v471 = vpop.f32.mrb[0].mxu0
  %v472 = vadd.f32 0.0, %v471
  %v473 = vpop.f32.mrb[0].mxu0
  %v474 = vpop.f32.mrb[0].mxu0
  %v475 = vadd.f32 0.0, %v474
  %v476 = vpop.f32.mrb[0].mxu0
  %477 = vmatprep.mubr.bf16.mxu0 0
  %478 = vmatmul.mubr.bf16.gmra.mrb[0].mxu0 %v306
  %v479 = vpop.f32.mrb[0].mxu0
  %v480 = vadd.f32 0.0, %v479
  %v481 = vpop.f32.mrb[0].mxu0
  %v482 = vpop.f32.mrb[0].mxu0
  %v483 = vadd.f32 0.0, %v482
  %v484 = vpop.f32.mrb[0].mxu0
  %485 = vmatprep.mubr.bf16.mxu0 0
  %486 = vmatmul.mubr.bf16.gmra.mrb[0].mxu0 %v309
  %v487 = vpop.f32.mrb[0].mxu0
  %v488 = vadd.f32 0.0, %v487
  %v489 = vpop.f32.mrb[0].mxu0
  %v490 = vpop.f32.mrb[0].mxu0
  %v491 = vadd.f32 0.0, %v490
  %v492 = vpop.f32.mrb[0].mxu0
  %493 = vmatprep.mubr.bf16.mxu0 0
  %494 = vmatmul.mubr.bf16.gmra.mrb[0].mxu0 %v312
  %v495 = vpop.f32.mrb[0].mxu0
  %v496 = vadd.f32 0.0, %v495
  %v497 = vpop.f32.mrb[0].mxu0
  %v498 = vpop.f32.mrb[0].mxu0
  %v499 = vadd.f32 0.0, %v498
  %v500 = vpop.f32.mrb[0].mxu0
  %501 = vmatprep.mubr.bf16.mxu0 0
  %502 = vmatmul.mubr.bf16.gmra.mrb[0].mxu0 %v315
  %v503 = vpop.f32.mrb[0].mxu0
  %v504 = vadd.f32 0.0, %v503
  %v505 = vpop.f32.mrb[0].mxu0
  %v506 = vpop.f32.mrb[0].mxu0
  %v507 = vadd.f32 0.0, %v506
  %v508 = vpop.f32.mrb[0].mxu0
  %509 = vmatprep.mubr.bf16.mxu0 0
  %510 = vmatmul.mubr.bf16.gmra.mrb[0].mxu0 %v318
  %v511 = vpop.f32.mrb[0].mxu0
  %v512 = vadd.f32 0.0, %v511
  %v513 = vpop.f32.mrb[0].mxu0
  %v514 = vpop.f32.mrb[0].mxu0
  %v515 = vadd.f32 0.0, %v514
  %v516 = vpop.f32.mrb[0].mxu0
  %517 = vmatprep.mubr.bf16.mxu0 0
  %518 = vmatmul.mubr.bf16.gmra.mrb[0].mxu0 %v321
  %v519 = vpop.f32.mrb[0].mxu0
  %v520 = vadd.f32 0.0, %v519
  %v521 = vpop.f32.mrb[0].mxu0
  %v522 = vpop.f32.mrb[0].mxu0
  %v523 = vadd.f32 0.0, %v522
  %v524 = vpop.f32.mrb[0].mxu0
  %525 = vmatprep.mubr.bf16.mxu0 0
  %526 = vmatmul.mubr.bf16.gmra.mrb[0].mxu0 %v324
  %v527 = vpop.f32.mrb[0].mxu0
  %v528 = vadd.f32 0.0, %v527
  %v529 = vpop.f32.mrb[0].mxu0
  %v530 = vpop.f32.mrb[0].mxu0
  %v531 = vadd.f32 0.0, %v530
  %v532 = vpop.f32.mrb[0].mxu0
  %533 = vmatprep.mubr.bf16.mxu0 0
  %534 = vmatmul.mubr.bf16.gmra.mrb[0].mxu0 %v327
  %v535 = vpop.f32.mrb[0].mxu0
  %v536 = vadd.f32 0.0, %v535
  %v537 = vpop.f32.mrb[0].mxu0
  %v538 = vpop.f32.mrb[0].mxu0
  %v539 = vadd.f32 0.0, %v538
  %v540 = vpop.f32.mrb[0].mxu0
  %541 = vmatprep.mubr.bf16.mxu0 0
  %542 = vmatmul.mubr.bf16.gmra.mrb[0].mxu0 %v330
  %v543 = vpop.f32.mrb[0].mxu0
  %v544 = vadd.f32 0.0, %v543
  %v545 = vpop.f32.mrb[0].mxu0
  %v546 = vpop.f32.mrb[0].mxu0
  %v547 = vadd.f32 0.0, %v546
  %v548 = vpop.f32.mrb[0].mxu0
  %549 = vmatprep.mubr.bf16.mxu0 0
  %550 = vmatmul.mubr.bf16.gmra.mrb[0].mxu0 %v333
  %v551 = vpop.f32.mrb[0].mxu0
  %v552 = vadd.f32 0.0, %v551
  %v553 = vpop.f32.mrb[0].mxu0
  %v554 = vpop.f32.mrb[0].mxu0
  %v555 = vadd.f32 0.0, %v554
  %v556 = vpop.f32.mrb[0].mxu0
  %557 = vmatprep.mubr.bf16.mxu0 0
  %558 = vmatmul.mubr.bf16.gmra.mrb[0].mxu0 %v336
  %v559 = vpop.f32.mrb[0].mxu0
  %v560 = vadd.f32 0.0, %v559
  %v561 = vpop.f32.mrb[0].mxu0
  %v562 = vpop.f32.mrb[0].mxu0
  %v563 = vadd.f32 0.0, %v562
  %v564 = vpop.f32.mrb[0].mxu0
  %565 = vmatprep.mubr.bf16.mxu0 0
  %566 = vmatmul.mubr.bf16.gmra.mrb[0].mxu0 %v339
  %v567 = vpop.f32.mrb[0].mxu0
  %v568 = vadd.f32 0.0, %v567
  %v569 = vpop.f32.mrb[0].mxu0
  %v570 = vpop.f32.mrb[0].mxu0
  %v571 = vadd.f32 0.0, %v570
  %v572 = vpop.f32.mrb[0].mxu0
  %573 = vmatprep.mubr.bf16.mxu0 0
  %574 = vmatmul.mubr.bf16.gmra.mrb[0].mxu0 %v342
  %v575 = vpop.f32.mrb[0].mxu0
  %v576 = vadd.f32 0.0, %v575
  %v577 = vpop.f32.mrb[0].mxu0
  %v578 = vpop.f32.mrb[0].mxu0
  %v579 = vadd.f32 0.0, %v578
  %v580 = vpop.f32.mrb[0].mxu0
  %581 = vmatprep.mubr.bf16.mxu0 0
  %582 = vmatmul.mubr.bf16.gmra.mrb[0].mxu0 %v345
  %v583 = vpop.f32.mrb[0].mxu0
  %v584 = vadd.f32 0.0, %v583
  %v585 = vpop.f32.mrb[0].mxu0
  %v586 = vpop.f32.mrb[0].mxu0
  %v587 = vadd.f32 0.0, %v586
  %v588 = vpop.f32.mrb[0].mxu0
  %589 = vmatprep.mubr.bf16.mxu0 0
  %590 = vmatmul.mubr.bf16.gmra.mrb[0].mxu0 %v348
  %v591 = vpop.f32.mrb[0].mxu0
  %v592 = vadd.f32 0.0, %v591
  %v593 = vpop.f32.mrb[0].mxu0
  %v594 = vpop.f32.mrb[0].mxu0
  %v595 = vadd.f32 0.0, %v594
  %v596 = vpop.f32.mrb[0].mxu0
  %597 = vmatprep.mubr.bf16.mxu0 0
  %598 = vmatmul.mubr.bf16.gmra.mrb[0].mxu0 %v351
  %v599 = vpop.f32.mrb[0].mxu0
  %v600 = vadd.f32 0.0, %v599
  %v601 = vpop.f32.mrb[0].mxu0
  %v602 = vpop.f32.mrb[0].mxu0
  %v603 = vadd.f32 0.0, %v602
  %v604 = vpop.f32.mrb[0].mxu0
  %605 = vmatprep.mubr.bf16.mxu0 0
  %606 = vmatmul.mubr.bf16.gmra.mrb[0].mxu0 %v354
  %v607 = vpop.f32.mrb[0].mxu0
  %v608 = vadd.f32 0.0, %v607
  %v609 = vpop.f32.mrb[0].mxu0
  %v610 = vpop.f32.mrb[0].mxu0
  %v611 = vadd.f32 0.0, %v610
  %v612 = vpop.f32.mrb[0].mxu0
  %613 = vmatprep.mubr.bf16.mxu0 0
  %614 = vmatmul.mubr.bf16.gmra.mrb[0].mxu0 %v357
  %v615 = vpop.f32.mrb[0].mxu0
  %v616 = vadd.f32 0.0, %v615
  %v617 = vpop.f32.mrb[0].mxu0
  %v618 = vpop.f32.mrb[0].mxu0
  %v619 = vadd.f32 0.0, %v618
  %v620 = vpop.f32.mrb[0].mxu0
  %621 = vmatprep.mubr.bf16.mxu0 0
  %622 = vmatmul.mubr.bf16.gmra.mrb[0].mxu0 %v360
  %v623 = vpop.f32.mrb[0].mxu0
  %v624 = vadd.f32 0.0, %v623
  %v625 = vpop.f32.mrb[0].mxu0
  %v626 = vpop.f32.mrb[0].mxu0
  %v627 = vadd.f32 0.0, %v626
  %v628 = vpop.f32.mrb[0].mxu0
  %629 = vmatprep.mubr.bf16.mxu0 0
  %630 = vmatmul.mubr.bf16.gmra.mrb[0].mxu0 %v363
  %v631 = vpop.f32.mrb[0].mxu0
  %v632 = vadd.f32 0.0, %v631
  %v633 = vpop.f32.mrb[0].mxu0
  %v634 = vpop.f32.mrb[0].mxu0
  %v635 = vadd.f32 0.0, %v634
  %v636 = vpop.f32.mrb[0].mxu0
  %637 = vmatprep.mubr.bf16.mxu0 0
  %638 = vmatmul.mubr.bf16.gmra.mrb[0].mxu0 %v366
  %v639 = vpop.f32.mrb[0].mxu0
  %v640 = vadd.f32 0.0, %v639
  %v641 = vpop.f32.mrb[0].mxu0
  %v642 = vpop.f32.mrb[0].mxu0
  %v643 = vadd.f32 0.0, %v642
  %v644 = vpop.f32.mrb[0].mxu0
  %645 = vmatprep.mubr.bf16.mxu0 0
  %646 = vmatmul.mubr.bf16.gmra.mrb[0].mxu0 %v369
  %v647 = vpop.f32.mrb[0].mxu0
  %v648 = vadd.f32 0.0, %v647
  %v649 = vpop.f32.mrb[0].mxu0
  %v650 = vpop.f32.mrb[0].mxu0
  %v651 = vadd.f32 0.0, %v650
  %v652 = vpop.f32.mrb[0].mxu0
  %653 = vmatprep.mubr.bf16.mxu0 0
  %654 = vmatmul.mubr.bf16.gmra.mrb[0].mxu0 %v372
  %v655 = vpop.f32.mrb[0].mxu0
  %v656 = vadd.f32 0.0, %v655
  %v657 = vpop.f32.mrb[0].mxu0
  %v658 = vpop.f32.mrb[0].mxu0
  %v659 = vadd.f32 0.0, %v658
  %v660 = vpop.f32.mrb[0].mxu0
  %661 = vmatprep.mubr.bf16.mxu0 0
  %662 = vmatmul.mubr.bf16.gmra.mrb[0].mxu0 %v375
  %v663 = vpop.f32.mrb[0].mxu0
  %v664 = vadd.f32 0.0, %v663
  %v665 = vpop.f32.mrb[0].mxu0
  %v666 = vpop.f32.mrb[0].mxu0
  %v667 = vadd.f32 0.0, %v666
  %v668 = vpop.f32.mrb[0].mxu0
  %669 = vdwg.mxu0
  %v670 = vadd.f32 %v34, %v416
  %v671 = vadd.f32 %v34, %v419
  %v672 = vadd.f32 %v34, %v424
  %v673 = vadd.f32 %v34, %v427
  %v674 = vadd.f32 %v34, %v432
  %v675 = vadd.f32 %v34, %v435
  %v676 = vadd.f32 %v34, %v440
  %v677 = vadd.f32 %v34, %v443
  %v678 = vadd.f32 %v34, %v448
  %v679 = vadd.f32 %v34, %v451
  %v680 = vadd.f32 %v34, %v456
  %v681 = vadd.f32 %v34, %v459
  %v682 = vadd.f32 %v34, %v464
  %v683 = vadd.f32 %v34, %v467
  %v684 = vadd.f32 %v34, %v472
  %v685 = vadd.f32 %v34, %v475
  %v686 = vadd.f32 %v34, %v480
  %v687 = vadd.f32 %v34, %v483
  %v688 = vadd.f32 %v34, %v488
  %v689 = vadd.f32 %v34, %v491
  %v690 = vadd.f32 %v34, %v496
  %v691 = vadd.f32 %v34, %v499
  %v692 = vadd.f32 %v34, %v504
  %v693 = vadd.f32 %v34, %v507
  %v694 = vadd.f32 %v34, %v512
  %v695 = vadd.f32 %v34, %v515
  %v696 = vadd.f32 %v34, %v520
  %v697 = vadd.f32 %v34, %v523
  %v698 = vadd.f32 %v34, %v528
  %v699 = vadd.f32 %v34, %v531
  %v700 = vadd.f32 %v34, %v536
  %v701 = vadd.f32 %v34, %v539
  %v702 = vadd.f32 %v34, %v544
  %v703 = vadd.f32 %v34, %v547
  %v704 = vadd.f32 %v34, %v552
  %v705 = vadd.f32 %v34, %v555
  %v706 = vadd.f32 %v34, %v560
  %v707 = vadd.f32 %v34, %v563
  %v708 = vadd.f32 %v34, %v568
  %v709 = vadd.f32 %v34, %v571
  %v710 = vadd.f32 %v34, %v576
  %v711 = vadd.f32 %v34, %v579
  %v712 = vadd.f32 %v34, %v584
  %v713 = vadd.f32 %v34, %v587
  %v714 = vadd.f32 %v34, %v592
  %v715 = vadd.f32 %v34, %v595
  %v716 = vadd.f32 %v34, %v600
  %v717 = vadd.f32 %v34, %v603
  %v718 = vadd.f32 %v34, %v608
  %v719 = vadd.f32 %v34, %v611
  %v720 = vadd.f32 %v34, %v616
  %v721 = vadd.f32 %v34, %v619
  %v722 = vadd.f32 %v34, %v624
  %v723 = vadd.f32 %v34, %v627
  %v724 = vadd.f32 %v34, %v632
  %v725 = vadd.f32 %v34, %v635
  %v726 = vadd.f32 %v34, %v640
  %v727 = vadd.f32 %v34, %v643
  %v728 = vadd.f32 %v34, %v648
  %v729 = vadd.f32 %v34, %v651
  %v730 = vadd.f32 %v34, %v656
  %v731 = vadd.f32 %v34, %v659
  %v732 = vadd.f32 %v34, %v664
  %v733 = vadd.f32 %v34, %v667
  %v734 = vld [vmem:[%s0] sm:$0xf]
  %v735 = vld [vmem:[%s0 + $0x4] sm:$0xf]
  %v736 = vld [vmem:[%s0 + $0x8] sm:$0x1]
  %v737 = vld [vmem:[%s0 + $0xc] sm:$0xf]
  %v738 = vld [vmem:[%s0 + $0x10] sm:$0xf]
  %v739 = vld [vmem:[%s0 + $0x14] sm:$0x1]
  %v740 = vld [vmem:[%s0 + $0x18] sm:$0xf]
  %v741 = vld [vmem:[%s0 + $0x1c] sm:$0xf]
  %v742 = vld [vmem:[%s0 + $0x20] sm:$0x1]
  %v743 = vld [vmem:[%s0 + $0x24] sm:$0xf]
  %v744 = vld [vmem:[%s0 + $0x28] sm:$0xf]
  %v745 = vld [vmem:[%s0 + $0x2c] sm:$0x1]
  %v746 = vld [vmem:[%s0 + $0x30] sm:$0xf]
  %v747 = vld [vmem:[%s0 + $0x34] sm:$0xf]
  %v748 = vld [vmem:[%s0 + $0x38] sm:$0x1]
  %v749 = vld [vmem:[%s0 + $0x3c] sm:$0xf]
  %v750 = vld [vmem:[%s0 + $0x40] sm:$0xf]
  %v751 = vld [vmem:[%s0 + $0x44] sm:$0x1]
  %v752 = vld [vmem:[%s0 + $0x48] sm:$0xf]
  %v753 = vld [vmem:[%s0 + $0x4c] sm:$0xf]
  %v754 = vld [vmem:[%s0 + $0x50] sm:$0x1]
  %v755 = vld [vmem:[%s0 + $0x54] sm:$0xf]
  %v756 = vld [vmem:[%s0 + $0x58] sm:$0xf]
  %v757 = vld [vmem:[%s0 + $0x5c] sm:$0x1]
  %v758 = vld [vmem:[%s0 + $0x60] sm:$0xf]
  %v759 = vld [vmem:[%s0 + $0x64] sm:$0xf]
  %v760 = vld [vmem:[%s0 + $0x68] sm:$0x1]
  %v761 = vld [vmem:[%s0 + $0x6c] sm:$0xf]
  %v762 = vld [vmem:[%s0 + $0x70] sm:$0xf]
  %v763 = vld [vmem:[%s0 + $0x74] sm:$0x1]
  %v764 = vld [vmem:[%s0 + $0x78] sm:$0xf]
  %v765 = vld [vmem:[%s0 + $0x7c] sm:$0xf]
  %v766 = vld [vmem:[%s0 + $0x80] sm:$0x1]
  %v767 = vld [vmem:[%s0 + $0x84] sm:$0xf]
  %v768 = vld [vmem:[%s0 + $0x88] sm:$0xf]
  %v769 = vld [vmem:[%s0 + $0x8c] sm:$0x1]
  %v770 = vld [vmem:[%s0 + $0x90] sm:$0xf]
  %v771 = vld [vmem:[%s0 + $0x94] sm:$0xf]
  %v772 = vld [vmem:[%s0 + $0x98] sm:$0x1]
  %v773 = vld [vmem:[%s0 + $0x9c] sm:$0xf]
  %v774 = vld [vmem:[%s0 + $0xa0] sm:$0xf]
  %v775 = vld [vmem:[%s0 + $0xa4] sm:$0x1]
  %v776 = vld [vmem:[%s0 + $0xa8] sm:$0xf]
  %v777 = vld [vmem:[%s0 + $0xac] sm:$0xf]
  %v778 = vld [vmem:[%s0 + $0xb0] sm:$0x1]
  %v779 = vld [vmem:[%s0 + $0xb4] sm:$0xf]
  %v780 = vld [vmem:[%s0 + $0xb8] sm:$0xf]
  %v781 = vld [vmem:[%s0 + $0xbc] sm:$0x1]
  %v782 = vld [vmem:[%s0 + $0xd8] sm:$0xf]
  %v783 = vld [vmem:[%s0 + $0xdc] sm:$0xf]
  %v784 = vld [vmem:[%s0 + $0xe0] sm:$0x1]
  %v785 = vld [vmem:[%s0 + $0xe4] sm:$0xf]
  %v786 = vld [vmem:[%s0 + $0xe8] sm:$0xf]
  %v787 = vld [vmem:[%s0 + $0xec] sm:$0x1]
  %v788 = vld [vmem:[%s0 + $0xf0] sm:$0xf]
  %v789 = vld [vmem:[%s0 + $0xf4] sm:$0xf]
  %v790 = vld [vmem:[%s0 + $0xf8] sm:$0x1]
  %v791 = vld [vmem:[%s0 + $0xfc] sm:$0xf]
  %v792 = vld [vmem:[%s0 + $0x100] sm:$0xf]
  %v793 = vld [vmem:[%s0 + $0x104] sm:$0x1]
  %v794 = vld [vmem:[%s0 + $0x108] sm:$0xf]
  %v795 = vld [vmem:[%s0 + $0x10c] sm:$0xf]
  %v796 = vld [vmem:[%s0 + $0x110] sm:$0x1]
  %v797 = vld [vmem:[%s0 + $0x114] sm:$0xf]
  %v798 = vld [vmem:[%s0 + $0x118] sm:$0xf]
  %v799 = vld [vmem:[%s0 + $0x11c] sm:$0x1]
  %v800 = vld [vmem:[%s0 + $0x120] sm:$0xf]
  %v801 = vld [vmem:[%s0 + $0x124] sm:$0xf]
  %v802 = vld [vmem:[%s0 + $0x128] sm:$0x1]
  %v803 = vld [vmem:[%s0 + $0x12c] sm:$0xf]
  %v804 = vld [vmem:[%s0 + $0x130] sm:$0xf]
  %v805 = vld [vmem:[%s0 + $0x134] sm:$0x1]
  %v806 = vld [vmem:[%s0 + $0x138] sm:$0xf]
  %v807 = vld [vmem:[%s0 + $0x13c] sm:$0xf]
  %v808 = vld [vmem:[%s0 + $0x140] sm:$0x1]
  %v809 = vld [vmem:[%s0 + $0x144] sm:$0xf]
  %v810 = vld [vmem:[%s0 + $0x148] sm:$0xf]
  %v811 = vld [vmem:[%s0 + $0x14c] sm:$0x1]
  %v812 = vld [vmem:[%s0 + $0x150] sm:$0xf]
  %v813 = vld [vmem:[%s0 + $0x154] sm:$0xf]
  %v814 = vld [vmem:[%s0 + $0x158] sm:$0x1]
  %v815 = vld [vmem:[%s0 + $0x15c] sm:$0xf]
  %v816 = vld [vmem:[%s0 + $0x160] sm:$0xf]
  %v817 = vld [vmem:[%s0 + $0x164] sm:$0x1]
  %v818 = vld [vmem:[%s0 + $0x168] sm:$0xf]
  %v819 = vld [vmem:[%s0 + $0x16c] sm:$0xf]
  %v820 = vld [vmem:[%s0 + $0x170] sm:$0x1]
  %v821 = vld [vmem:[%s0 + $0x174] sm:$0xf]
  %v822 = vld [vmem:[%s0 + $0x178] sm:$0xf]
  %v823 = vld [vmem:[%s0 + $0x17c] sm:$0x1]
  %v824 = vld [vmem:[%s0 + $0x180] sm:$0xf]
  %v825 = vld [vmem:[%s0 + $0x184] sm:$0xf]
  %v826 = vld [vmem:[%s0 + $0x188] sm:$0x1]
  %v827 = vld [vmem:[%s0 + $0x18c] sm:$0xf]
  %v828 = vld [vmem:[%s0 + $0x190] sm:$0xf]
  %v829 = vld [vmem:[%s0 + $0x194] sm:$0x1]
  %vm830 = vsmask.f32 3328
  %vm831 = vsmask.f32 7440
  %vm832 = vmor %vm830, %vm831
  %v834 = vshrl.u32 %v734, 16
  %v836 = vrot.slane %v834, 4
  %v837 = vshll.u32 %v734, 16
  %v839 = vrot.slane %v837, 5
  %v840 = vor.u32 %v836, %v839
  %v841 = vrot.slane %v840, 4
  %v843 = vshll.u32 %v735, 16
  %v845 = vrot.slane %v843, 5
  %v846 = vsel %vm832, %v841, %v845
  %v847 = vshrl.u32 %v735, 16
  %v849 = vrot.slane %v847, 4
  %v850 = vor.u32 %v849, %v845
  %v851 = vrot.slane %v850, 4
  %v853 = vshll.u32 %v736, 16
  %v855 = vrot.slane %v853, 5
  %v856 = vsel %vm832, %v851, %v855
  %v858 = vshrl.u32 %v737, 16
  %v860 = vrot.slane %v858, 4
  %v861 = vshll.u32 %v737, 16
  %v863 = vrot.slane %v861, 5
  %v864 = vor.u32 %v860, %v863
  %v865 = vrot.slane %v864, 4
  %v867 = vshll.u32 %v738, 16
  %v869 = vrot.slane %v867, 5
  %v870 = vsel %vm832, %v865, %v869
  %v871 = vshrl.u32 %v738, 16
  %v873 = vrot.slane %v871, 4
  %v874 = vor.u32 %v873, %v869
  %v875 = vrot.slane %v874, 4
  %v877 = vshll.u32 %v739, 16
  %v879 = vrot.slane %v877, 5
  %v880 = vsel %vm832, %v875, %v879
  %v882 = vshrl.u32 %v740, 16
  %v884 = vrot.slane %v882, 4
  %v885 = vshll.u32 %v740, 16
  %v887 = vrot.slane %v885, 5
  %v888 = vor.u32 %v884, %v887
  %v889 = vrot.slane %v888, 4
  %v891 = vshll.u32 %v741, 16
  %v893 = vrot.slane %v891, 5
  %v894 = vsel %vm832, %v889, %v893
  %v895 = vshrl.u32 %v741, 16
  %v897 = vrot.slane %v895, 4
  %v898 = vor.u32 %v897, %v893
  %v899 = vrot.slane %v898, 4
  %v901 = vshll.u32 %v742, 16
  %v903 = vrot.slane %v901, 5
  %v904 = vsel %vm832, %v899, %v903
  %v906 = vshrl.u32 %v743, 16
  %v908 = vrot.slane %v906, 4
  %v909 = vshll.u32 %v743, 16
  %v911 = vrot.slane %v909, 5
  %v912 = vor.u32 %v908, %v911
  %v913 = vrot.slane %v912, 4
  %v915 = vshll.u32 %v744, 16
  %v917 = vrot.slane %v915, 5
  %v918 = vsel %vm832, %v913, %v917
  %v919 = vshrl.u32 %v744, 16
  %v921 = vrot.slane %v919, 4
  %v922 = vor.u32 %v921, %v917
  %v923 = vrot.slane %v922, 4
  %v925 = vshll.u32 %v745, 16
  %v927 = vrot.slane %v925, 5
  %v928 = vsel %vm832, %v923, %v927
  %v930 = vshrl.u32 %v746, 16
  %v932 = vrot.slane %v930, 4
  %v933 = vshll.u32 %v746, 16
  %v935 = vrot.slane %v933, 5
  %v936 = vor.u32 %v932, %v935
  %v937 = vrot.slane %v936, 4
  %v939 = vshll.u32 %v747, 16
  %v941 = vrot.slane %v939, 5
  %v942 = vsel %vm832, %v937, %v941
  %v943 = vshrl.u32 %v747, 16
  %v945 = vrot.slane %v943, 4
  %v946 = vor.u32 %v945, %v941
  %v947 = vrot.slane %v946, 4
  %v949 = vshll.u32 %v748, 16
  %v951 = vrot.slane %v949, 5
  %v952 = vsel %vm832, %v947, %v951
  %v954 = vshrl.u32 %v749, 16
  %v956 = vrot.slane %v954, 4
  %v957 = vshll.u32 %v749, 16
  %v959 = vrot.slane %v957, 5
  %v960 = vor.u32 %v956, %v959
  %v961 = vrot.slane %v960, 4
  %v963 = vshll.u32 %v750, 16
  %v965 = vrot.slane %v963, 5
  %v966 = vsel %vm832, %v961, %v965
  %v967 = vshrl.u32 %v750, 16
  %v969 = vrot.slane %v967, 4
  %v970 = vor.u32 %v969, %v965
  %v971 = vrot.slane %v970, 4
  %v973 = vshll.u32 %v751, 16
  %v975 = vrot.slane %v973, 5
  %v976 = vsel %vm832, %v971, %v975
  %v978 = vshrl.u32 %v752, 16
  %v980 = vrot.slane %v978, 4
  %v981 = vshll.u32 %v752, 16
  %v983 = vrot.slane %v981, 5
  %v984 = vor.u32 %v980, %v983
  %v985 = vrot.slane %v984, 4
  %v987 = vshll.u32 %v753, 16
  %v989 = vrot.slane %v987, 5
  %v990 = vsel %vm832, %v985, %v989
  %v991 = vshrl.u32 %v753, 16
  %v993 = vrot.slane %v991, 4
  %v994 = vor.u32 %v993, %v989
  %v995 = vrot.slane %v994, 4
  %v997 = vshll.u32 %v754, 16
  %v999 = vrot.slane %v997, 5
  %v1000 = vsel %vm832, %v995, %v999
  %v1002 = vshrl.u32 %v755, 16
  %v1004 = vrot.slane %v1002, 4
  %v1005 = vshll.u32 %v755, 16
  %v1007 = vrot.slane %v1005, 5
  %v1008 = vor.u32 %v1004, %v1007
  %v1009 = vrot.slane %v1008, 4
  %v1011 = vshll.u32 %v756, 16
  %v1013 = vrot.slane %v1011, 5
  %v1014 = vsel %vm832, %v1009, %v1013
  %v1015 = vshrl.u32 %v756, 16
  %v1017 = vrot.slane %v1015, 4
  %v1018 = vor.u32 %v1017, %v1013
  %v1019 = vrot.slane %v1018, 4
  %v1021 = vshll.u32 %v757, 16
  %v1023 = vrot.slane %v1021, 5
  %v1024 = vsel %vm832, %v1019, %v1023
  %v1026 = vshrl.u32 %v758, 16
  %v1028 = vrot.slane %v1026, 4
  %v1029 = vshll.u32 %v758, 16
  %v1031 = vrot.slane %v1029, 5
  %v1032 = vor.u32 %v1028, %v1031
  %v1033 = vrot.slane %v1032, 4
  %v1035 = vshll.u32 %v759, 16
  %v1037 = vrot.slane %v1035, 5
  %v1038 = vsel %vm832, %v1033, %v1037
  %v1039 = vshrl.u32 %v759, 16
  %v1041 = vrot.slane %v1039, 4
  %v1042 = vor.u32 %v1041, %v1037
  %v1043 = vrot.slane %v1042, 4
  %v1045 = vshll.u32 %v760, 16
  %v1047 = vrot.slane %v1045, 5
  %v1048 = vsel %vm832, %v1043, %v1047
  %v1050 = vshrl.u32 %v761, 16
  %v1052 = vrot.slane %v1050, 4
  %v1053 = vshll.u32 %v761, 16
  %v1055 = vrot.slane %v1053, 5
  %v1056 = vor.u32 %v1052, %v1055
  %v1057 = vrot.slane %v1056, 4
  %v1059 = vshll.u32 %v762, 16
  %v1061 = vrot.slane %v1059, 5
  %v1062 = vsel %vm832, %v1057, %v1061
  %v1063 = vshrl.u32 %v762, 16
  %v1065 = vrot.slane %v1063, 4
  %v1066 = vor.u32 %v1065, %v1061
  %v1067 = vrot.slane %v1066, 4
  %v1069 = vshll.u32 %v763, 16
  %v1071 = vrot.slane %v1069, 5
  %v1072 = vsel %vm832, %v1067, %v1071
  %v1074 = vshrl.u32 %v764, 16
  %v1076 = vrot.slane %v1074, 4
  %v1077 = vshll.u32 %v764, 16
  %v1079 = vrot.slane %v1077, 5
  %v1080 = vor.u32 %v1076, %v1079
  %v1081 = vrot.slane %v1080, 4
  %v1083 = vshll.u32 %v765, 16
  %v1085 = vrot.slane %v1083, 5
  %v1086 = vsel %vm832, %v1081, %v1085
  %v1087 = vshrl.u32 %v765, 16
  %v1089 = vrot.slane %v1087, 4
  %v1090 = vor.u32 %v1089, %v1085
  %v1091 = vrot.slane %v1090, 4
  %v1093 = vshll.u32 %v766, 16
  %v1095 = vrot.slane %v1093, 5
  %v1096 = vsel %vm832, %v1091, %v1095
  %v1098 = vshrl.u32 %v767, 16
  %v1100 = vrot.slane %v1098, 4
  %v1101 = vshll.u32 %v767, 16
  %v1103 = vrot.slane %v1101, 5
  %v1104 = vor.u32 %v1100, %v1103
  %v1105 = vrot.slane %v1104, 4
  %v1107 = vshll.u32 %v768, 16
  %v1109 = vrot.slane %v1107, 5
  %v1110 = vsel %vm832, %v1105, %v1109
  %v1111 = vshrl.u32 %v768, 16
  %v1113 = vrot.slane %v1111, 4
  %v1114 = vor.u32 %v1113, %v1109
  %v1115 = vrot.slane %v1114, 4
  %v1117 = vshll.u32 %v769, 16
  %v1119 = vrot.slane %v1117, 5
  %v1120 = vsel %vm832, %v1115, %v1119
  %v1122 = vshrl.u32 %v770, 16
  %v1124 = vrot.slane %v1122, 4
  %v1125 = vshll.u32 %v770, 16
  %v1127 = vrot.slane %v1125, 5
  %v1128 = vor.u32 %v1124, %v1127
  %v1129 = vrot.slane %v1128, 4
  %v1131 = vshll.u32 %v771, 16
  %v1133 = vrot.slane %v1131, 5
  %v1134 = vsel %vm832, %v1129, %v1133
  %v1135 = vshrl.u32 %v771, 16
  %v1137 = vrot.slane %v1135, 4
  %v1138 = vor.u32 %v1137, %v1133
  %v1139 = vrot.slane %v1138, 4
  %v1141 = vshll.u32 %v772, 16
  %v1143 = vrot.slane %v1141, 5
  %v1144 = vsel %vm832, %v1139, %v1143
  %v1146 = vshrl.u32 %v773, 16
  %v1148 = vrot.slane %v1146, 4
  %v1149 = vshll.u32 %v773, 16
  %v1151 = vrot.slane %v1149, 5
  %v1152 = vor.u32 %v1148, %v1151
  %v1153 = vrot.slane %v1152, 4
  %v1155 = vshll.u32 %v774, 16
  %v1157 = vrot.slane %v1155, 5
  %v1158 = vsel %vm832, %v1153, %v1157
  %v1159 = vshrl.u32 %v774, 16
  %v1161 = vrot.slane %v1159, 4
  %v1162 = vor.u32 %v1161, %v1157
  %v1163 = vrot.slane %v1162, 4
  %v1165 = vshll.u32 %v775, 16
  %v1167 = vrot.slane %v1165, 5
  %v1168 = vsel %vm832, %v1163, %v1167
  %v1170 = vshrl.u32 %v776, 16
  %v1172 = vrot.slane %v1170, 4
  %v1173 = vshll.u32 %v776, 16
  %v1175 = vrot.slane %v1173, 5
  %v1176 = vor.u32 %v1172, %v1175
  %v1177 = vrot.slane %v1176, 4
  %v1179 = vshll.u32 %v777, 16
  %v1181 = vrot.slane %v1179, 5
  %v1182 = vsel %vm832, %v1177, %v1181
  %v1183 = vshrl.u32 %v777, 16
  %v1185 = vrot.slane %v1183, 4
  %v1186 = vor.u32 %v1185, %v1181
  %v1187 = vrot.slane %v1186, 4
  %v1189 = vshll.u32 %v778, 16
  %v1191 = vrot.slane %v1189, 5
  %v1192 = vsel %vm832, %v1187, %v1191
  %v1194 = vshrl.u32 %v779, 16
  %v1196 = vrot.slane %v1194, 4
  %v1197 = vshll.u32 %v779, 16
  %v1199 = vrot.slane %v1197, 5
  %v1200 = vor.u32 %v1196, %v1199
  %v1201 = vrot.slane %v1200, 4
  %v1203 = vshll.u32 %v780, 16
  %v1205 = vrot.slane %v1203, 5
  %v1206 = vsel %vm832, %v1201, %v1205
  %v1207 = vshrl.u32 %v780, 16
  %v1209 = vrot.slane %v1207, 4
  %v1210 = vor.u32 %v1209, %v1205
  %v1211 = vrot.slane %v1210, 4
  %v1213 = vshll.u32 %v781, 16
  %v1215 = vrot.slane %v1213, 5
  %v1216 = vsel %vm832, %v1211, %v1215
  %v1218 = vshrl.u32 %v782, 16
  %v1220 = vrot.slane %v1218, 4
  %v1221 = vshll.u32 %v782, 16
  %v1223 = vrot.slane %v1221, 5
  %v1224 = vor.u32 %v1220, %v1223
  %v1225 = vrot.slane %v1224, 4
  %v1227 = vshll.u32 %v783, 16
  %v1229 = vrot.slane %v1227, 5
  %v1230 = vsel %vm832, %v1225, %v1229
  %v1231 = vshrl.u32 %v783, 16
  %v1233 = vrot.slane %v1231, 4
  %v1234 = vor.u32 %v1233, %v1229
  %v1235 = vrot.slane %v1234, 4
  %v1237 = vshll.u32 %v784, 16
  %v1239 = vrot.slane %v1237, 5
  %v1240 = vsel %vm832, %v1235, %v1239
  %v1242 = vshrl.u32 %v785, 16
  %v1244 = vrot.slane %v1242, 4
  %v1245 = vshll.u32 %v785, 16
  %v1247 = vrot.slane %v1245, 5
  %v1248 = vor.u32 %v1244, %v1247
  %v1249 = vrot.slane %v1248, 4
  %v1251 = vshll.u32 %v786, 16
  %v1253 = vrot.slane %v1251, 5
  %v1254 = vsel %vm832, %v1249, %v1253
  %v1255 = vshrl.u32 %v786, 16
  %v1257 = vrot.slane %v1255, 4
  %v1258 = vor.u32 %v1257, %v1253
  %v1259 = vrot.slane %v1258, 4
  %v1261 = vshll.u32 %v787, 16
  %v1263 = vrot.slane %v1261, 5
  %v1264 = vsel %vm832, %v1259, %v1263
  %v1266 = vshrl.u32 %v788, 16
  %v1268 = vrot.slane %v1266, 4
  %v1269 = vshll.u32 %v788, 16
  %v1271 = vrot.slane %v1269, 5
  %v1272 = vor.u32 %v1268, %v1271
  %v1273 = vrot.slane %v1272, 4
  %v1275 = vshll.u32 %v789, 16
  %v1277 = vrot.slane %v1275, 5
  %v1278 = vsel %vm832, %v1273, %v1277
  %v1279 = vshrl.u32 %v789, 16
  %v1281 = vrot.slane %v1279, 4
  %v1282 = vor.u32 %v1281, %v1277
  %v1283 = vrot.slane %v1282, 4
  %v1285 = vshll.u32 %v790, 16
  %v1287 = vrot.slane %v1285, 5
  %v1288 = vsel %vm832, %v1283, %v1287
  %v1290 = vshrl.u32 %v791, 16
  %v1292 = vrot.slane %v1290, 4
  %v1293 = vshll.u32 %v791, 16
  %v1295 = vrot.slane %v1293, 5
  %v1296 = vor.u32 %v1292, %v1295
  %v1297 = vrot.slane %v1296, 4
  %v1299 = vshll.u32 %v792, 16
  %v1301 = vrot.slane %v1299, 5
  %v1302 = vsel %vm832, %v1297, %v1301
  %v1303 = vshrl.u32 %v792, 16
  %v1305 = vrot.slane %v1303, 4
  %v1306 = vor.u32 %v1305, %v1301
  %v1307 = vrot.slane %v1306, 4
  %v1309 = vshll.u32 %v793, 16
  %v1311 = vrot.slane %v1309, 5
  %v1312 = vsel %vm832, %v1307, %v1311
  %v1314 = vshrl.u32 %v794, 16
  %v1316 = vrot.slane %v1314, 4
  %v1317 = vshll.u32 %v794, 16
  %v1319 = vrot.slane %v1317, 5
  %v1320 = vor.u32 %v1316, %v1319
  %v1321 = vrot.slane %v1320, 4
  %v1323 = vshll.u32 %v795, 16
  %v1325 = vrot.slane %v1323, 5
  %v1326 = vsel %vm832, %v1321, %v1325
  %v1327 = vshrl.u32 %v795, 16
  %v1329 = vrot.slane %v1327, 4
  %v1330 = vor.u32 %v1329, %v1325
  %v1331 = vrot.slane %v1330, 4
  %v1333 = vshll.u32 %v796, 16
  %v1335 = vrot.slane %v1333, 5
  %v1336 = vsel %vm832, %v1331, %v1335
  %v1338 = vshrl.u32 %v797, 16
  %v1340 = vrot.slane %v1338, 4
  %v1341 = vshll.u32 %v797, 16
  %v1343 = vrot.slane %v1341, 5
  %v1344 = vor.u32 %v1340, %v1343
  %v1345 = vrot.slane %v1344, 4
  %v1347 = vshll.u32 %v798, 16
  %v1349 = vrot.slane %v1347, 5
  %v1350 = vsel %vm832, %v1345, %v1349
  %v1351 = vshrl.u32 %v798, 16
  %v1353 = vrot.slane %v1351, 4
  %v1354 = vor.u32 %v1353, %v1349
  %v1355 = vrot.slane %v1354, 4
  %v1357 = vshll.u32 %v799, 16
  %v1359 = vrot.slane %v1357, 5
  %v1360 = vsel %vm832, %v1355, %v1359
  %v1362 = vshrl.u32 %v800, 16
  %v1364 = vrot.slane %v1362, 4
  %v1365 = vshll.u32 %v800, 16
  %v1367 = vrot.slane %v1365, 5
  %v1368 = vor.u32 %v1364, %v1367
  %v1369 = vrot.slane %v1368, 4
  %v1371 = vshll.u32 %v801, 16
  %v1373 = vrot.slane %v1371, 5
  %v1374 = vsel %vm832, %v1369, %v1373
  %v1375 = vshrl.u32 %v801, 16
  %v1377 = vrot.slane %v1375, 4
  %v1378 = vor.u32 %v1377, %v1373
  %v1379 = vrot.slane %v1378, 4
  %v1381 = vshll.u32 %v802, 16
  %v1383 = vrot.slane %v1381, 5
  %v1384 = vsel %vm832, %v1379, %v1383
  %v1386 = vshrl.u32 %v803, 16
  %v1388 = vrot.slane %v1386, 4
  %v1389 = vshll.u32 %v803, 16
  %v1391 = vrot.slane %v1389, 5
  %v1392 = vor.u32 %v1388, %v1391
  %v1393 = vrot.slane %v1392, 4
  %v1395 = vshll.u32 %v804, 16
  %v1397 = vrot.slane %v1395, 5
  %v1398 = vsel %vm832, %v1393, %v1397
  %v1399 = vshrl.u32 %v804, 16
  %v1401 = vrot.slane %v1399, 4
  %v1402 = vor.u32 %v1401, %v1397
  %v1403 = vrot.slane %v1402, 4
  %v1405 = vshll.u32 %v805, 16
  %v1407 = vrot.slane %v1405, 5
  %v1408 = vsel %vm832, %v1403, %v1407
  %v1410 = vshrl.u32 %v806, 16
  %v1412 = vrot.slane %v1410, 4
  %v1413 = vshll.u32 %v806, 16
  %v1415 = vrot.slane %v1413, 5
  %v1416 = vor.u32 %v1412, %v1415
  %v1417 = vrot.slane %v1416, 4
  %v1419 = vshll.u32 %v807, 16
  %v1421 = vrot.slane %v1419, 5
  %v1422 = vsel %vm832, %v1417, %v1421
  %v1423 = vshrl.u32 %v807, 16
  %v1425 = vrot.slane %v1423, 4
  %v1426 = vor.u32 %v1425, %v1421
  %v1427 = vrot.slane %v1426, 4
  %v1429 = vshll.u32 %v808, 16
  %v1431 = vrot.slane %v1429, 5
  %v1432 = vsel %vm832, %v1427, %v1431
  %v1434 = vshrl.u32 %v809, 16
  %v1436 = vrot.slane %v1434, 4
  %v1437 = vshll.u32 %v809, 16
  %v1439 = vrot.slane %v1437, 5
  %v1440 = vor.u32 %v1436, %v1439
  %v1441 = vrot.slane %v1440, 4
  %v1443 = vshll.u32 %v810, 16
  %v1445 = vrot.slane %v1443, 5
  %v1446 = vsel %vm832, %v1441, %v1445
  %v1447 = vshrl.u32 %v810, 16
  %v1449 = vrot.slane %v1447, 4
  %v1450 = vor.u32 %v1449, %v1445
  %v1451 = vrot.slane %v1450, 4
  %v1453 = vshll.u32 %v811, 16
  %v1455 = vrot.slane %v1453, 5
  %v1456 = vsel %vm832, %v1451, %v1455
  %v1458 = vshrl.u32 %v812, 16
  %v1460 = vrot.slane %v1458, 4
  %v1461 = vshll.u32 %v812, 16
  %v1463 = vrot.slane %v1461, 5
  %v1464 = vor.u32 %v1460, %v1463
  %v1465 = vrot.slane %v1464, 4
  %v1467 = vshll.u32 %v813, 16
  %v1469 = vrot.slane %v1467, 5
  %v1470 = vsel %vm832, %v1465, %v1469
  %v1471 = vshrl.u32 %v813, 16
  %v1473 = vrot.slane %v1471, 4
  %v1474 = vor.u32 %v1473, %v1469
  %v1475 = vrot.slane %v1474, 4
  %v1477 = vshll.u32 %v814, 16
  %v1479 = vrot.slane %v1477, 5
  %v1480 = vsel %vm832, %v1475, %v1479
  %v1482 = vshrl.u32 %v815, 16
  %v1484 = vrot.slane %v1482, 4
  %v1485 = vshll.u32 %v815, 16
  %v1487 = vrot.slane %v1485, 5
  %v1488 = vor.u32 %v1484, %v1487
  %v1489 = vrot.slane %v1488, 4
  %v1491 = vshll.u32 %v816, 16
  %v1493 = vrot.slane %v1491, 5
  %v1494 = vsel %vm832, %v1489, %v1493
  %v1495 = vshrl.u32 %v816, 16
  %v1497 = vrot.slane %v1495, 4
  %v1498 = vor.u32 %v1497, %v1493
  %v1499 = vrot.slane %v1498, 4
  %v1501 = vshll.u32 %v817, 16
  %v1503 = vrot.slane %v1501, 5
  %v1504 = vsel %vm832, %v1499, %v1503
  %v1506 = vshrl.u32 %v818, 16
  %v1508 = vrot.slane %v1506, 4
  %v1509 = vshll.u32 %v818, 16
  %v1511 = vrot.slane %v1509, 5
  %v1512 = vor.u32 %v1508, %v1511
  %v1513 = vrot.slane %v1512, 4
  %v1515 = vshll.u32 %v819, 16
  %v1517 = vrot.slane %v1515, 5
  %v1518 = vsel %vm832, %v1513, %v1517
  %v1519 = vshrl.u32 %v819, 16
  %v1521 = vrot.slane %v1519, 4
  %v1522 = vor.u32 %v1521, %v1517
  %v1523 = vrot.slane %v1522, 4
  %v1525 = vshll.u32 %v820, 16
  %v1527 = vrot.slane %v1525, 5
  %v1528 = vsel %vm832, %v1523, %v1527
  %v1530 = vshrl.u32 %v821, 16
  %v1532 = vrot.slane %v1530, 4
  %v1533 = vshll.u32 %v821, 16
  %v1535 = vrot.slane %v1533, 5
  %v1536 = vor.u32 %v1532, %v1535
  %v1537 = vrot.slane %v1536, 4
  %v1539 = vshll.u32 %v822, 16
  %v1541 = vrot.slane %v1539, 5
  %v1542 = vsel %vm832, %v1537, %v1541
  %v1543 = vshrl.u32 %v822, 16
  %v1545 = vrot.slane %v1543, 4
  %v1546 = vor.u32 %v1545, %v1541
  %v1547 = vrot.slane %v1546, 4
  %v1549 = vshll.u32 %v823, 16
  %v1551 = vrot.slane %v1549, 5
  %v1552 = vsel %vm832, %v1547, %v1551
  %v1554 = vshrl.u32 %v824, 16
  %v1556 = vrot.slane %v1554, 4
  %v1557 = vshll.u32 %v824, 16
  %v1559 = vrot.slane %v1557, 5
  %v1560 = vor.u32 %v1556, %v1559
  %v1561 = vrot.slane %v1560, 4
  %v1563 = vshll.u32 %v825, 16
  %v1565 = vrot.slane %v1563, 5
  %v1566 = vsel %vm832, %v1561, %v1565
  %v1567 = vshrl.u32 %v825, 16
  %v1569 = vrot.slane %v1567, 4
  %v1570 = vor.u32 %v1569, %v1565
  %v1571 = vrot.slane %v1570, 4
  %v1573 = vshll.u32 %v826, 16
  %v1575 = vrot.slane %v1573, 5
  %v1576 = vsel %vm832, %v1571, %v1575
  %v1578 = vshrl.u32 %v827, 16
  %v1580 = vrot.slane %v1578, 4
  %v1581 = vshll.u32 %v827, 16
  %v1583 = vrot.slane %v1581, 5
  %v1584 = vor.u32 %v1580, %v1583
  %v1585 = vrot.slane %v1584, 4
  %v1587 = vshll.u32 %v828, 16
  %v1589 = vrot.slane %v1587, 5
  %v1590 = vsel %vm832, %v1585, %v1589
  %v1591 = vshrl.u32 %v828, 16
  %v1593 = vrot.slane %v1591, 4
  %v1594 = vor.u32 %v1593, %v1589
  %v1595 = vrot.slane %v1594, 4
  %v1597 = vshll.u32 %v829, 16
  %v1599 = vrot.slane %v1597, 5
  %v1600 = vsel %vm832, %v1595, %v1599
  %s1601 = scalar_lea.vmem %s1, 20
  %v1602 = vld [vmem:[%s1601] sm:$0xf]
  %v1603 = vld [vmem:[%s1601 + $0x4] sm:$0xf]
  %v1604 = vld [vmem:[%s1601 + $0x8] sm:$0xf]
  %v1605 = vld [vmem:[%s1601 + $0xc] sm:$0xf]
  %v1606 = vld [vmem:[%s1601 + $0x10] sm:$0x3]
  %v1607 = vunpack.c.l.b16 %v846
  %v1608 = vunpack.c.l.b16 %v856
  %v1609 = vunpack.c.l.b16 %v870
  %v1610 = vunpack.c.l.b16 %v880
  %v1611 = vunpack.c.l.b16 %v894
  %v1612 = vunpack.c.l.b16 %v904
  %v1613 = vunpack.c.l.b16 %v918
  %v1614 = vunpack.c.l.b16 %v928
  %v1615 = vunpack.c.l.b16 %v942
  %v1616 = vunpack.c.l.b16 %v952
  %v1617 = vunpack.c.l.b16 %v966
  %v1618 = vunpack.c.l.b16 %v976
  %v1619 = vunpack.c.l.b16 %v990
  %v1620 = vunpack.c.l.b16 %v1000
  %v1621 = vunpack.c.l.b16 %v1014
  %v1622 = vunpack.c.l.b16 %v1024
  %v1623 = vunpack.c.l.b16 %v1038
  %v1624 = vunpack.c.l.b16 %v1048
  %v1625 = vunpack.c.l.b16 %v1062
  %v1626 = vunpack.c.l.b16 %v1072
  %v1627 = vunpack.c.l.b16 %v1086
  %v1628 = vunpack.c.l.b16 %v1096
  %v1629 = vunpack.c.l.b16 %v1110
  %v1630 = vunpack.c.l.b16 %v1120
  %v1631 = vunpack.c.l.b16 %v1134
  %v1632 = vunpack.c.l.b16 %v1144
  %v1633 = vunpack.c.l.b16 %v1158
  %v1634 = vunpack.c.l.b16 %v1168
  %v1635 = vunpack.c.l.b16 %v1182
  %v1636 = vunpack.c.l.b16 %v1192
  %v1637 = vunpack.c.l.b16 %v1206
  %v1638 = vunpack.c.l.b16 %v1216
  %v1639 = vunpack.c.l.b16 %v1230
  %v1640 = vunpack.c.l.b16 %v1240
  %v1641 = vunpack.c.l.b16 %v1254
  %v1642 = vunpack.c.l.b16 %v1264
  %v1643 = vunpack.c.l.b16 %v1278
  %v1644 = vunpack.c.l.b16 %v1288
  %v1645 = vunpack.c.l.b16 %v1302
  %v1646 = vunpack.c.l.b16 %v1312
  %v1647 = vunpack.c.l.b16 %v1326
  %v1648 = vunpack.c.l.b16 %v1336
  %v1649 = vunpack.c.l.b16 %v1350
  %v1650 = vunpack.c.l.b16 %v1360
  %v1651 = vunpack.c.l.b16 %v1374
  %v1652 = vunpack.c.l.b16 %v1384
  %v1653 = vunpack.c.l.b16 %v1398
  %v1654 = vunpack.c.l.b16 %v1408
  %v1655 = vunpack.c.l.b16 %v1422
  %v1656 = vunpack.c.l.b16 %v1432
  %v1657 = vunpack.c.l.b16 %v1446
  %v1658 = vunpack.c.l.b16 %v1456
  %v1659 = vunpack.c.l.b16 %v1470
  %v1660 = vunpack.c.l.b16 %v1480
  %v1661 = vunpack.c.l.b16 %v1494
  %v1662 = vunpack.c.l.b16 %v1504
  %v1663 = vunpack.c.l.b16 %v1518
  %v1664 = vunpack.c.l.b16 %v1528
  %v1665 = vunpack.c.l.b16 %v1542
  %v1666 = vunpack.c.l.b16 %v1552
  %v1667 = vunpack.c.l.b16 %v1566
  %v1668 = vunpack.c.l.b16 %v1576
  %v1669 = vunpack.c.l.b16 %v1590
  %v1670 = vunpack.c.l.b16 %v1600
  %v1671 = vpack.c.b16 %v1608, %v1607
  %v1672 = vpack.c.b16 %v1610, %v1609
  %v1673 = vpack.c.b16 %v1612, %v1611
  %v1674 = vpack.c.b16 %v1614, %v1613
  %v1675 = vpack.c.b16 %v1616, %v1615
  %v1676 = vpack.c.b16 %v1618, %v1617
  %v1677 = vpack.c.b16 %v1620, %v1619
  %v1678 = vpack.c.b16 %v1622, %v1621
  %v1679 = vpack.c.b16 %v1624, %v1623
  %v1680 = vpack.c.b16 %v1626, %v1625
  %v1681 = vpack.c.b16 %v1628, %v1627
  %v1682 = vpack.c.b16 %v1630, %v1629
  %v1683 = vpack.c.b16 %v1632, %v1631
  %v1684 = vpack.c.b16 %v1634, %v1633
  %v1685 = vpack.c.b16 %v1636, %v1635
  %v1686 = vpack.c.b16 %v1638, %v1637
  %v1687 = vpack.c.b16 %v1640, %v1639
  %v1688 = vpack.c.b16 %v1642, %v1641
  %v1689 = vpack.c.b16 %v1644, %v1643
  %v1690 = vpack.c.b16 %v1646, %v1645
  %v1691 = vpack.c.b16 %v1648, %v1647
  %v1692 = vpack.c.b16 %v1650, %v1649
  %v1693 = vpack.c.b16 %v1652, %v1651
  %v1694 = vpack.c.b16 %v1654, %v1653
  %v1695 = vpack.c.b16 %v1656, %v1655
  %v1696 = vpack.c.b16 %v1658, %v1657
  %v1697 = vpack.c.b16 %v1660, %v1659
  %v1698 = vpack.c.b16 %v1662, %v1661
  %v1699 = vpack.c.b16 %v1664, %v1663
  %v1700 = vpack.c.b16 %v1666, %v1665
  %v1701 = vpack.c.b16 %v1668, %v1667
  %v1702 = vpack.c.b16 %v1670, %v1669
  %v1708 = vunpack.c.l.b16 %v1602
  %v1709 = vunpack.c.l.b16 %v1603
  %v1710 = vunpack.c.l.b16 %v1604
  %v1711 = vunpack.c.l.b16 %v1605
  %v1712 = vunpack.c.l.b16 %v1606
  %v1713 = vpack.c.b16 %v1709, %v1708
  %v1714 = vpack.c.b16 %v1711, %v1710
  %v1715 = vpack.c.b16 %v1712, %v1712
  %v1719 = vsel %vm280, %v1671, 0
  %v1722 = vsel %vm280, %v1672, 0
  %v1725 = vsel %vm280, %v1673, 0
  %v1728 = vsel %vm280, %v1674, 0
  %v1731 = vsel %vm280, %v1675, 0
  %v1734 = vsel %vm280, %v1676, 0
  %v1737 = vsel %vm280, %v1677, 0
  %v1740 = vsel %vm280, %v1678, 0
  %v1743 = vsel %vm280, %v1679, 0
  %v1746 = vsel %vm280, %v1680, 0
  %v1749 = vsel %vm280, %v1681, 0
  %v1752 = vsel %vm280, %v1682, 0
  %v1755 = vsel %vm280, %v1683, 0
  %v1758 = vsel %vm280, %v1684, 0
  %v1761 = vsel %vm280, %v1685, 0
  %v1764 = vsel %vm280, %v1686, 0
  %v1767 = vsel %vm280, %v1687, 0
  %v1770 = vsel %vm280, %v1688, 0
  %v1773 = vsel %vm280, %v1689, 0
  %v1776 = vsel %vm280, %v1690, 0
  %v1779 = vsel %vm280, %v1691, 0
  %v1782 = vsel %vm280, %v1692, 0
  %v1785 = vsel %vm280, %v1693, 0
  %v1788 = vsel %vm280, %v1694, 0
  %v1791 = vsel %vm280, %v1695, 0
  %v1794 = vsel %vm280, %v1696, 0
  %v1797 = vsel %vm280, %v1697, 0
  %v1800 = vsel %vm280, %v1698, 0
  %v1803 = vsel %vm280, %v1699, 0
  %v1806 = vsel %vm280, %v1700, 0
  %v1809 = vsel %vm280, %v1701, 0
  %v1812 = vsel %vm280, %v1702, 0
  %v1815 = vsel %vm377, %v1715, 0
  %1817 = vmatprep.subr.bf16.mxu0 0
  %1818 = vmatpush1.bf16.msra.mxu0 %v1713
  %1819 = vmatprep.subr.bf16.mxu0 0
  %1820 = vmatpush1.bf16.msra.mxu0 %v1714
  %1821 = vmatprep.subr.bf16.mxu0 0
  %1822 = vmatpush1.bf16.msra.mxu0 %v1815
  %1823 = vmatprep.subr.bf16.mxu0 0
  %1824 = vmatpush1.bf16.msra.mxu0 0
  %1825 = vmatprep.subr.bf16.mxu0 0
  %1826 = vmatpush1.bf16.msra.mxu0 0
  %1827 = vmatprep.subr.bf16.mxu0 0
  %1828 = vmatpush1.bf16.msra.mxu0 0
  %1829 = vmatprep.subr.bf16.mxu0 0
  %1830 = vmatpush1.bf16.msra.mxu0 0
  %1831 = vmatprep.subr.bf16.mxu0 0
  %1832 = vmatpush1.bf16.msra.mxu0 0
  %1833 = vmatprep.subr.bf16.mxu0 0
  %1834 = vmatpush1.bf16.msra.mxu0 0
  %1835 = vmatprep.subr.bf16.mxu0 0
  %1836 = vmatpush1.bf16.msra.mxu0 0
  %1837 = vmatprep.subr.bf16.mxu0 0
  %1838 = vmatpush1.bf16.msra.mxu0 0
  %1839 = vmatprep.subr.bf16.mxu0 0
  %1840 = vmatpush1.bf16.msra.mxu0 0
  %1841 = vmatprep.subr.bf16.mxu0 0
  %1842 = vmatpush1.bf16.msra.mxu0 0
  %1843 = vmatprep.subr.bf16.mxu0 0
  %1844 = vmatpush1.bf16.msra.mxu0 0
  %1845 = vmatprep.subr.bf16.mxu0 0
  %1846 = vmatpush1.bf16.msra.mxu0 0
  %1847 = vmatprep.subr.bf16.mxu0 0
  %1848 = vmatpush1.bf16.msra.mxu0 0
  %1849 = vmatprep.mubr.bf16.mxu0 0
  %1850 = vmatmul.mubr.bf16.gmra.mrb[0].mxu0 %v1719
  %v1851 = vpop.f32.mrb[0].mxu0
  %v1852 = vadd.f32 0.0, %v1851
  %v1853 = vpop.f32.mrb[0].mxu0
  %v1854 = vpop.f32.mrb[0].mxu0
  %v1855 = vadd.f32 0.0, %v1854
  %v1856 = vpop.f32.mrb[0].mxu0
  %1857 = vmatprep.mubr.bf16.mxu0 0
  %1858 = vmatmul.mubr.bf16.gmra.mrb[0].mxu0 %v1722
  %v1859 = vpop.f32.mrb[0].mxu0
  %v1860 = vadd.f32 0.0, %v1859
  %v1861 = vpop.f32.mrb[0].mxu0
  %v1862 = vpop.f32.mrb[0].mxu0
  %v1863 = vadd.f32 0.0, %v1862
  %v1864 = vpop.f32.mrb[0].mxu0
  %1865 = vmatprep.mubr.bf16.mxu0 0
  %1866 = vmatmul.mubr.bf16.gmra.mrb[0].mxu0 %v1725
  %v1867 = vpop.f32.mrb[0].mxu0
  %v1868 = vadd.f32 0.0, %v1867
  %v1869 = vpop.f32.mrb[0].mxu0
  %v1870 = vpop.f32.mrb[0].mxu0
  %v1871 = vadd.f32 0.0, %v1870
  %v1872 = vpop.f32.mrb[0].mxu0
  %1873 = vmatprep.mubr.bf16.mxu0 0
  %1874 = vmatmul.mubr.bf16.gmra.mrb[0].mxu0 %v1728
  %v1875 = vpop.f32.mrb[0].mxu0
  %v1876 = vadd.f32 0.0, %v1875
  %v1877 = vpop.f32.mrb[0].mxu0
  %v1878 = vpop.f32.mrb[0].mxu0
  %v1879 = vadd.f32 0.0, %v1878
  %v1880 = vpop.f32.mrb[0].mxu0
  %1881 = vmatprep.mubr.bf16.mxu0 0
  %1882 = vmatmul.mubr.bf16.gmra.mrb[0].mxu0 %v1731
  %v1883 = vpop.f32.mrb[0].mxu0
  %v1884 = vadd.f32 0.0, %v1883
  %v1885 = vpop.f32.mrb[0].mxu0
  %v1886 = vpop.f32.mrb[0].mxu0
  %v1887 = vadd.f32 0.0, %v1886
  %v1888 = vpop.f32.mrb[0].mxu0
  %1889 = vmatprep.mubr.bf16.mxu0 0
  %1890 = vmatmul.mubr.bf16.gmra.mrb[0].mxu0 %v1734
  %v1891 = vpop.f32.mrb[0].mxu0
  %v1892 = vadd.f32 0.0, %v1891
  %v1893 = vpop.f32.mrb[0].mxu0
  %v1894 = vpop.f32.mrb[0].mxu0
  %v1895 = vadd.f32 0.0, %v1894
  %v1896 = vpop.f32.mrb[0].mxu0
  %1897 = vmatprep.mubr.bf16.mxu0 0
  %1898 = vmatmul.mubr.bf16.gmra.mrb[0].mxu0 %v1737
  %v1899 = vpop.f32.mrb[0].mxu0
  %v1900 = vadd.f32 0.0, %v1899
  %v1901 = vpop.f32.mrb[0].mxu0
  %v1902 = vpop.f32.mrb[0].mxu0
  %v1903 = vadd.f32 0.0, %v1902
  %v1904 = vpop.f32.mrb[0].mxu0
  %1905 = vmatprep.mubr.bf16.mxu0 0
  %1906 = vmatmul.mubr.bf16.gmra.mrb[0].mxu0 %v1740
  %v1907 = vpop.f32.mrb[0].mxu0
  %v1908 = vadd.f32 0.0, %v1907
  %v1909 = vpop.f32.mrb[0].mxu0
  %v1910 = vpop.f32.mrb[0].mxu0
  %v1911 = vadd.f32 0.0, %v1910
  %v1912 = vpop.f32.mrb[0].mxu0
  %1913 = vmatprep.mubr.bf16.mxu0 0
  %1914 = vmatmul.mubr.bf16.gmra.mrb[0].mxu0 %v1743
  %v1915 = vpop.f32.mrb[0].mxu0
  %v1916 = vadd.f32 0.0, %v1915
  %v1917 = vpop.f32.mrb[0].mxu0
  %v1918 = vpop.f32.mrb[0].mxu0
  %v1919 = vadd.f32 0.0, %v1918
  %v1920 = vpop.f32.mrb[0].mxu0
  %1921 = vmatprep.mubr.bf16.mxu0 0
  %1922 = vmatmul.mubr.bf16.gmra.mrb[0].mxu0 %v1746
  %v1923 = vpop.f32.mrb[0].mxu0
  %v1924 = vadd.f32 0.0, %v1923
  %v1925 = vpop.f32.mrb[0].mxu0
  %v1926 = vpop.f32.mrb[0].mxu0
  %v1927 = vadd.f32 0.0, %v1926
  %v1928 = vpop.f32.mrb[0].mxu0
  %1929 = vmatprep.mubr.bf16.mxu0 0
  %1930 = vmatmul.mubr.bf16.gmra.mrb[0].mxu0 %v1749
  %v1931 = vpop.f32.mrb[0].mxu0
  %v1932 = vadd.f32 0.0, %v1931
  %v1933 = vpop.f32.mrb[0].mxu0
  %v1934 = vpop.f32.mrb[0].mxu0
  %v1935 = vadd.f32 0.0, %v1934
  %v1936 = vpop.f32.mrb[0].mxu0
  %1937 = vmatprep.mubr.bf16.mxu0 0
  %1938 = vmatmul.mubr.bf16.gmra.mrb[0].mxu0 %v1752
  %v1939 = vpop.f32.mrb[0].mxu0
  %v1940 = vadd.f32 0.0, %v1939
  %v1941 = vpop.f32.mrb[0].mxu0
  %v1942 = vpop.f32.mrb[0].mxu0
  %v1943 = vadd.f32 0.0, %v1942
  %v1944 = vpop.f32.mrb[0].mxu0
  %1945 = vmatprep.mubr.bf16.mxu0 0
  %1946 = vmatmul.mubr.bf16.gmra.mrb[0].mxu0 %v1755
  %v1947 = vpop.f32.mrb[0].mxu0
  %v1948 = vadd.f32 0.0, %v1947
  %v1949 = vpop.f32.mrb[0].mxu0
  %v1950 = vpop.f32.mrb[0].mxu0
  %v1951 = vadd.f32 0.0, %v1950
  %v1952 = vpop.f32.mrb[0].mxu0
  %1953 = vmatprep.mubr.bf16.mxu0 0
  %1954 = vmatmul.mubr.bf16.gmra.mrb[0].mxu0 %v1758
  %v1955 = vpop.f32.mrb[0].mxu0
  %v1956 = vadd.f32 0.0, %v1955
  %v1957 = vpop.f32.mrb[0].mxu0
  %v1958 = vpop.f32.mrb[0].mxu0
  %v1959 = vadd.f32 0.0, %v1958
  %v1960 = vpop.f32.mrb[0].mxu0
  %1961 = vmatprep.mubr.bf16.mxu0 0
  %1962 = vmatmul.mubr.bf16.gmra.mrb[0].mxu0 %v1761
  %v1963 = vpop.f32.mrb[0].mxu0
  %v1964 = vadd.f32 0.0, %v1963
  %v1965 = vpop.f32.mrb[0].mxu0
  %v1966 = vpop.f32.mrb[0].mxu0
  %v1967 = vadd.f32 0.0, %v1966
  %v1968 = vpop.f32.mrb[0].mxu0
  %1969 = vmatprep.mubr.bf16.mxu0 0
  %1970 = vmatmul.mubr.bf16.gmra.mrb[0].mxu0 %v1764
  %v1971 = vpop.f32.mrb[0].mxu0
  %v1972 = vadd.f32 0.0, %v1971
  %v1973 = vpop.f32.mrb[0].mxu0
  %v1974 = vpop.f32.mrb[0].mxu0
  %v1975 = vadd.f32 0.0, %v1974
  %v1976 = vpop.f32.mrb[0].mxu0
  %1977 = vmatprep.mubr.bf16.mxu0 0
  %1978 = vmatmul.mubr.bf16.gmra.mrb[0].mxu0 %v1767
  %v1979 = vpop.f32.mrb[0].mxu0
  %v1980 = vadd.f32 0.0, %v1979
  %v1981 = vpop.f32.mrb[0].mxu0
  %v1982 = vpop.f32.mrb[0].mxu0
  %v1983 = vadd.f32 0.0, %v1982
  %v1984 = vpop.f32.mrb[0].mxu0
  %1985 = vmatprep.mubr.bf16.mxu0 0
  %1986 = vmatmul.mubr.bf16.gmra.mrb[0].mxu0 %v1770
  %v1987 = vpop.f32.mrb[0].mxu0
  %v1988 = vadd.f32 0.0, %v1987
  %v1989 = vpop.f32.mrb[0].mxu0
  %v1990 = vpop.f32.mrb[0].mxu0
  %v1991 = vadd.f32 0.0, %v1990
  %v1992 = vpop.f32.mrb[0].mxu0
  %1993 = vmatprep.mubr.bf16.mxu0 0
  %1994 = vmatmul.mubr.bf16.gmra.mrb[0].mxu0 %v1773
  %v1995 = vpop.f32.mrb[0].mxu0
  %v1996 = vadd.f32 0.0, %v1995
  %v1997 = vpop.f32.mrb[0].mxu0
  %v1998 = vpop.f32.mrb[0].mxu0
  %v1999 = vadd.f32 0.0, %v1998
  %v2000 = vpop.f32.mrb[0].mxu0
  %2001 = vmatprep.mubr.bf16.mxu0 0
  %2002 = vmatmul.mubr.bf16.gmra.mrb[0].mxu0 %v1776
  %v2003 = vpop.f32.mrb[0].mxu0
  %v2004 = vadd.f32 0.0, %v2003
  %v2005 = vpop.f32.mrb[0].mxu0
  %v2006 = vpop.f32.mrb[0].mxu0
  %v2007 = vadd.f32 0.0, %v2006
  %v2008 = vpop.f32.mrb[0].mxu0
  %2009 = vmatprep.mubr.bf16.mxu0 0
  %2010 = vmatmul.mubr.bf16.gmra.mrb[0].mxu0 %v1779
  %v2011 = vpop.f32.mrb[0].mxu0
  %v2012 = vadd.f32 0.0, %v2011
  %v2013 = vpop.f32.mrb[0].mxu0
  %v2014 = vpop.f32.mrb[0].mxu0
  %v2015 = vadd.f32 0.0, %v2014
  %v2016 = vpop.f32.mrb[0].mxu0
  %2017 = vmatprep.mubr.bf16.mxu0 0
  %2018 = vmatmul.mubr.bf16.gmra.mrb[0].mxu0 %v1782
  %v2019 = vpop.f32.mrb[0].mxu0
  %v2020 = vadd.f32 0.0, %v2019
  %v2021 = vpop.f32.mrb[0].mxu0
  %v2022 = vpop.f32.mrb[0].mxu0
  %v2023 = vadd.f32 0.0, %v2022
  %v2024 = vpop.f32.mrb[0].mxu0
  %2025 = vmatprep.mubr.bf16.mxu0 0
  %2026 = vmatmul.mubr.bf16.gmra.mrb[0].mxu0 %v1785
  %v2027 = vpop.f32.mrb[0].mxu0
  %v2028 = vadd.f32 0.0, %v2027
  %v2029 = vpop.f32.mrb[0].mxu0
  %v2030 = vpop.f32.mrb[0].mxu0
  %v2031 = vadd.f32 0.0, %v2030
  %v2032 = vpop.f32.mrb[0].mxu0
  %2033 = vmatprep.mubr.bf16.mxu0 0
  %2034 = vmatmul.mubr.bf16.gmra.mrb[0].mxu0 %v1788
  %v2035 = vpop.f32.mrb[0].mxu0
  %v2036 = vadd.f32 0.0, %v2035
  %v2037 = vpop.f32.mrb[0].mxu0
  %v2038 = vpop.f32.mrb[0].mxu0
  %v2039 = vadd.f32 0.0, %v2038
  %v2040 = vpop.f32.mrb[0].mxu0
  %2041 = vmatprep.mubr.bf16.mxu0 0
  %2042 = vmatmul.mubr.bf16.gmra.mrb[0].mxu0 %v1791
  %v2043 = vpop.f32.mrb[0].mxu0
  %v2044 = vadd.f32 0.0, %v2043
  %v2045 = vpop.f32.mrb[0].mxu0
  %v2046 = vpop.f32.mrb[0].mxu0
  %v2047 = vadd.f32 0.0, %v2046
  %v2048 = vpop.f32.mrb[0].mxu0
  %2049 = vmatprep.mubr.bf16.mxu0 0
  %2050 = vmatmul.mubr.bf16.gmra.mrb[0].mxu0 %v1794
  %v2051 = vpop.f32.mrb[0].mxu0
  %v2052 = vadd.f32 0.0, %v2051
  %v2053 = vpop.f32.mrb[0].mxu0
  %v2054 = vpop.f32.mrb[0].mxu0
  %v2055 = vadd.f32 0.0, %v2054
  %v2056 = vpop.f32.mrb[0].mxu0
  %2057 = vmatprep.mubr.bf16.mxu0 0
  %2058 = vmatmul.mubr.bf16.gmra.mrb[0].mxu0 %v1797
  %v2059 = vpop.f32.mrb[0].mxu0
  %v2060 = vadd.f32 0.0, %v2059
  %v2061 = vpop.f32.mrb[0].mxu0
  %v2062 = vpop.f32.mrb[0].mxu0
  %v2063 = vadd.f32 0.0, %v2062
  %v2064 = vpop.f32.mrb[0].mxu0
  %2065 = vmatprep.mubr.bf16.mxu0 0
  %2066 = vmatmul.mubr.bf16.gmra.mrb[0].mxu0 %v1800
  %v2067 = vpop.f32.mrb[0].mxu0
  %v2068 = vadd.f32 0.0, %v2067
  %v2069 = vpop.f32.mrb[0].mxu0
  %v2070 = vpop.f32.mrb[0].mxu0
  %v2071 = vadd.f32 0.0, %v2070
  %v2072 = vpop.f32.mrb[0].mxu0
  %2073 = vmatprep.mubr.bf16.mxu0 0
  %2074 = vmatmul.mubr.bf16.gmra.mrb[0].mxu0 %v1803
  %v2075 = vpop.f32.mrb[0].mxu0
  %v2076 = vadd.f32 0.0, %v2075
  %v2077 = vpop.f32.mrb[0].mxu0
  %v2078 = vpop.f32.mrb[0].mxu0
  %v2079 = vadd.f32 0.0, %v2078
  %v2080 = vpop.f32.mrb[0].mxu0
  %2081 = vmatprep.mubr.bf16.mxu0 0
  %2082 = vmatmul.mubr.bf16.gmra.mrb[0].mxu0 %v1806
  %v2083 = vpop.f32.mrb[0].mxu0
  %v2084 = vadd.f32 0.0, %v2083
  %v2085 = vpop.f32.mrb[0].mxu0
  %v2086 = vpop.f32.mrb[0].mxu0
  %v2087 = vadd.f32 0.0, %v2086
  %v2088 = vpop.f32.mrb[0].mxu0
  %2089 = vmatprep.mubr.bf16.mxu0 0
  %2090 = vmatmul.mubr.bf16.gmra.mrb[0].mxu0 %v1809
  %v2091 = vpop.f32.mrb[0].mxu0
  %v2092 = vadd.f32 0.0, %v2091
  %v2093 = vpop.f32.mrb[0].mxu0
  %v2094 = vpop.f32.mrb[0].mxu0
  %v2095 = vadd.f32 0.0, %v2094
  %v2096 = vpop.f32.mrb[0].mxu0
  %2097 = vmatprep.mubr.bf16.mxu0 0
  %2098 = vmatmul.mubr.bf16.gmra.mrb[0].mxu0 %v1812
  %v2099 = vpop.f32.mrb[0].mxu0
  %v2100 = vadd.f32 0.0, %v2099
  %v2101 = vpop.f32.mrb[0].mxu0
  %v2102 = vpop.f32.mrb[0].mxu0
  %v2103 = vadd.f32 0.0, %v2102
  %v2104 = vpop.f32.mrb[0].mxu0
  %2105 = vdwg.mxu0
  %v2106 = vadd.f32 %v670, %v1852
  %v2107 = vadd.f32 %v671, %v1855
  %v2108 = vadd.f32 %v672, %v1860
  %v2109 = vadd.f32 %v673, %v1863
  %v2110 = vadd.f32 %v674, %v1868
  %v2111 = vadd.f32 %v675, %v1871
  %v2112 = vadd.f32 %v676, %v1876
  %v2113 = vadd.f32 %v677, %v1879
  %v2114 = vadd.f32 %v678, %v1884
  %v2115 = vadd.f32 %v679, %v1887
  %v2116 = vadd.f32 %v680, %v1892
  %v2117 = vadd.f32 %v681, %v1895
  %v2118 = vadd.f32 %v682, %v1900
  %v2119 = vadd.f32 %v683, %v1903
  %v2120 = vadd.f32 %v684, %v1908
  %v2121 = vadd.f32 %v685, %v1911
  %v2122 = vadd.f32 %v686, %v1916
  %v2123 = vadd.f32 %v687, %v1919
  %v2124 = vadd.f32 %v688, %v1924
  %v2125 = vadd.f32 %v689, %v1927
  %v2126 = vadd.f32 %v690, %v1932
  %v2127 = vadd.f32 %v691, %v1935
  %v2128 = vadd.f32 %v692, %v1940
  %v2129 = vadd.f32 %v693, %v1943
  %v2130 = vadd.f32 %v694, %v1948
  %v2131 = vadd.f32 %v695, %v1951
  %v2132 = vadd.f32 %v696, %v1956
  %v2133 = vadd.f32 %v697, %v1959
  %v2134 = vadd.f32 %v698, %v1964
  %v2135 = vadd.f32 %v699, %v1967
  %v2136 = vadd.f32 %v700, %v1972
  %v2137 = vadd.f32 %v701, %v1975
  %v2138 = vadd.f32 %v702, %v1980
  %v2139 = vadd.f32 %v703, %v1983
  %v2140 = vadd.f32 %v704, %v1988
  %v2141 = vadd.f32 %v705, %v1991
  %v2142 = vadd.f32 %v706, %v1996
  %v2143 = vadd.f32 %v707, %v1999
  %v2144 = vadd.f32 %v708, %v2004
  %v2145 = vadd.f32 %v709, %v2007
  %v2146 = vadd.f32 %v710, %v2012
  %v2147 = vadd.f32 %v711, %v2015
  %v2148 = vadd.f32 %v712, %v2020
  %v2149 = vadd.f32 %v713, %v2023
  %v2150 = vadd.f32 %v714, %v2028
  %v2151 = vadd.f32 %v715, %v2031
  %v2152 = vadd.f32 %v716, %v2036
  %v2153 = vadd.f32 %v717, %v2039
  %v2154 = vadd.f32 %v718, %v2044
  %v2155 = vadd.f32 %v719, %v2047
  %v2156 = vadd.f32 %v720, %v2052
  %v2157 = vadd.f32 %v721, %v2055
  %v2158 = vadd.f32 %v722, %v2060
  %v2159 = vadd.f32 %v723, %v2063
  %v2160 = vadd.f32 %v724, %v2068
  %v2161 = vadd.f32 %v725, %v2071
  %v2162 = vadd.f32 %v726, %v2076
  %v2163 = vadd.f32 %v727, %v2079
  %v2164 = vadd.f32 %v728, %v2084
  %v2165 = vadd.f32 %v729, %v2087
  %v2166 = vadd.f32 %v730, %v2092
  %v2167 = vadd.f32 %v731, %v2095
  %v2168 = vadd.f32 %v732, %v2100
  %v2169 = vadd.f32 %v733, %v2103
  %v2170 = vld [vmem:[%s0] sm:$0xe]
  %v2171 = vld [vmem:[%s0 + $0xc] sm:$0xe]
  %v2172 = vld [vmem:[%s0 + $0x18] sm:$0xe]
  %v2173 = vld [vmem:[%s0 + $0x24] sm:$0xe]
  %v2174 = vld [vmem:[%s0 + $0x30] sm:$0xe]
  %v2175 = vld [vmem:[%s0 + $0x3c] sm:$0xe]
  %v2176 = vld [vmem:[%s0 + $0x48] sm:$0xe]
  %v2177 = vld [vmem:[%s0 + $0x54] sm:$0xe]
  %v2178 = vld [vmem:[%s0 + $0x60] sm:$0xe]
  %v2179 = vld [vmem:[%s0 + $0x6c] sm:$0xe]
  %v2180 = vld [vmem:[%s0 + $0x78] sm:$0xe]
  %v2181 = vld [vmem:[%s0 + $0x84] sm:$0xe]
  %v2182 = vld [vmem:[%s0 + $0x90] sm:$0xe]
  %v2183 = vld [vmem:[%s0 + $0x9c] sm:$0xe]
  %v2184 = vld [vmem:[%s0 + $0xa8] sm:$0xe]
  %v2185 = vld [vmem:[%s0 + $0xb4] sm:$0xe]
  %v2186 = vld [vmem:[%s0 + $0xd8] sm:$0xe]
  %v2187 = vld [vmem:[%s0 + $0xe4] sm:$0xe]
  %v2188 = vld [vmem:[%s0 + $0xf0] sm:$0xe]
  %v2189 = vld [vmem:[%s0 + $0xfc] sm:$0xe]
  %v2190 = vld [vmem:[%s0 + $0x108] sm:$0xe]
  %v2191 = vld [vmem:[%s0 + $0x114] sm:$0xe]
  %v2192 = vld [vmem:[%s0 + $0x120] sm:$0xe]
  %v2193 = vld [vmem:[%s0 + $0x12c] sm:$0xe]
  %v2194 = vld [vmem:[%s0 + $0x138] sm:$0xe]
  %v2195 = vld [vmem:[%s0 + $0x144] sm:$0xe]
  %v2196 = vld [vmem:[%s0 + $0x150] sm:$0xe]
  %v2197 = vld [vmem:[%s0 + $0x15c] sm:$0xe]
  %v2198 = vld [vmem:[%s0 + $0x168] sm:$0xe]
  %v2199 = vld [vmem:[%s0 + $0x174] sm:$0xe]
  %v2200 = vld [vmem:[%s0 + $0x180] sm:$0xe]
  %v2201 = vld [vmem:[%s0 + $0x18c] sm:$0xe]
  %vm2298 = vcmask 1042432
  %vm2299 = vcmask 1046532
  %vm2300 = vmor %vm2298, %vm2299
  %v2301 = vrot.slane %v2170, 5
  %v2302 = vrot.slane %v2301, 4
  %v2303 = vrot.slane %v735, 5
  %v2304 = vsel %vm2300, %v2302, %v2303
  %v2305 = vrot.slane %v2303, 4
  %v2306 = vrot.slane %v736, 5
  %v2307 = vsel %vm2300, %v2305, %v2306
  %v2308 = vrot.slane %v2171, 5
  %v2309 = vrot.slane %v2308, 4
  %v2310 = vrot.slane %v738, 5
  %v2311 = vsel %vm2300, %v2309, %v2310
  %v2312 = vrot.slane %v2310, 4
  %v2313 = vrot.slane %v739, 5
  %v2314 = vsel %vm2300, %v2312, %v2313
  %v2315 = vrot.slane %v2172, 5
  %v2316 = vrot.slane %v2315, 4
  %v2317 = vrot.slane %v741, 5
  %v2318 = vsel %vm2300, %v2316, %v2317
  %v2319 = vrot.slane %v2317, 4
  %v2320 = vrot.slane %v742, 5
  %v2321 = vsel %vm2300, %v2319, %v2320
  %v2322 = vrot.slane %v2173, 5
  %v2323 = vrot.slane %v2322, 4
  %v2324 = vrot.slane %v744, 5
  %v2325 = vsel %vm2300, %v2323, %v2324
  %v2326 = vrot.slane %v2324, 4
  %v2327 = vrot.slane %v745, 5
  %v2328 = vsel %vm2300, %v2326, %v2327
  %v2329 = vrot.slane %v2174, 5
  %v2330 = vrot.slane %v2329, 4
  %v2331 = vrot.slane %v747, 5
  %v2332 = vsel %vm2300, %v2330, %v2331
  %v2333 = vrot.slane %v2331, 4
  %v2334 = vrot.slane %v748, 5
  %v2335 = vsel %vm2300, %v2333, %v2334
  %v2336 = vrot.slane %v2175, 5
  %v2337 = vrot.slane %v2336, 4
  %v2338 = vrot.slane %v750, 5
  %v2339 = vsel %vm2300, %v2337, %v2338
  %v2340 = vrot.slane %v2338, 4
  %v2341 = vrot.slane %v751, 5
  %v2342 = vsel %vm2300, %v2340, %v2341
  %v2343 = vrot.slane %v2176, 5
  %v2344 = vrot.slane %v2343, 4
  %v2345 = vrot.slane %v753, 5
  %v2346 = vsel %vm2300, %v2344, %v2345
  %v2347 = vrot.slane %v2345, 4
  %v2348 = vrot.slane %v754, 5
  %v2349 = vsel %vm2300, %v2347, %v2348
  %v2350 = vrot.slane %v2177, 5
  %v2351 = vrot.slane %v2350, 4
  %v2352 = vrot.slane %v756, 5
  %v2353 = vsel %vm2300, %v2351, %v2352
  %v2354 = vrot.slane %v2352, 4
  %v2355 = vrot.slane %v757, 5
  %v2356 = vsel %vm2300, %v2354, %v2355
  %v2357 = vrot.slane %v2178, 5
  %v2358 = vrot.slane %v2357, 4
  %v2359 = vrot.slane %v759, 5
  %v2360 = vsel %vm2300, %v2358, %v2359
  %v2361 = vrot.slane %v2359, 4
  %v2362 = vrot.slane %v760, 5
  %v2363 = vsel %vm2300, %v2361, %v2362
  %v2364 = vrot.slane %v2179, 5
  %v2365 = vrot.slane %v2364, 4
  %v2366 = vrot.slane %v762, 5
  %v2367 = vsel %vm2300, %v2365, %v2366
  %v2368 = vrot.slane %v2366, 4
  %v2369 = vrot.slane %v763, 5
  %v2370 = vsel %vm2300, %v2368, %v2369
  %v2371 = vrot.slane %v2180, 5
  %v2372 = vrot.slane %v2371, 4
  %v2373 = vrot.slane %v765, 5
  %v2374 = vsel %vm2300, %v2372, %v2373
  %v2375 = vrot.slane %v2373, 4
  %v2376 = vrot.slane %v766, 5
  %v2377 = vsel %vm2300, %v2375, %v2376
  %v2378 = vrot.slane %v2181, 5
  %v2379 = vrot.slane %v2378, 4
  %v2380 = vrot.slane %v768, 5
  %v2381 = vsel %vm2300, %v2379, %v2380
  %v2382 = vrot.slane %v2380, 4
  %v2383 = vrot.slane %v769, 5
  %v2384 = vsel %vm2300, %v2382, %v2383
  %v2385 = vrot.slane %v2182, 5
  %v2386 = vrot.slane %v2385, 4
  %v2387 = vrot.slane %v771, 5
  %v2388 = vsel %vm2300, %v2386, %v2387
  %v2389 = vrot.slane %v2387, 4
  %v2390 = vrot.slane %v772, 5
  %v2391 = vsel %vm2300, %v2389, %v2390
  %v2392 = vrot.slane %v2183, 5
  %v2393 = vrot.slane %v2392, 4
  %v2394 = vrot.slane %v774, 5
  %v2395 = vsel %vm2300, %v2393, %v2394
  %v2396 = vrot.slane %v2394, 4
  %v2397 = vrot.slane %v775, 5
  %v2398 = vsel %vm2300, %v2396, %v2397
  %v2399 = vrot.slane %v2184, 5
  %v2400 = vrot.slane %v2399, 4
  %v2401 = vrot.slane %v777, 5
  %v2402 = vsel %vm2300, %v2400, %v2401
  %v2403 = vrot.slane %v2401, 4
  %v2404 = vrot.slane %v778, 5
  %v2405 = vsel %vm2300, %v2403, %v2404
  %v2406 = vrot.slane %v2185, 5
  %v2407 = vrot.slane %v2406, 4
  %v2408 = vrot.slane %v780, 5
  %v2409 = vsel %vm2300, %v2407, %v2408
  %v2410 = vrot.slane %v2408, 4
  %v2411 = vrot.slane %v781, 5
  %v2412 = vsel %vm2300, %v2410, %v2411
  %v2413 = vrot.slane %v2186, 5
  %v2414 = vrot.slane %v2413, 4
  %v2415 = vrot.slane %v783, 5
  %v2416 = vsel %vm2300, %v2414, %v2415
  %v2417 = vrot.slane %v2415, 4
  %v2418 = vrot.slane %v784, 5
  %v2419 = vsel %vm2300, %v2417, %v2418
  %v2420 = vrot.slane %v2187, 5
  %v2421 = vrot.slane %v2420, 4
  %v2422 = vrot.slane %v786, 5
  %v2423 = vsel %vm2300, %v2421, %v2422
  %v2424 = vrot.slane %v2422, 4
  %v2425 = vrot.slane %v787, 5
  %v2426 = vsel %vm2300, %v2424, %v2425
  %v2427 = vrot.slane %v2188, 5
  %v2428 = vrot.slane %v2427, 4
  %v2429 = vrot.slane %v789, 5
  %v2430 = vsel %vm2300, %v2428, %v2429
  %v2431 = vrot.slane %v2429, 4
  %v2432 = vrot.slane %v790, 5
  %v2433 = vsel %vm2300, %v2431, %v2432
  %v2434 = vrot.slane %v2189, 5
  %v2435 = vrot.slane %v2434, 4
  %v2436 = vrot.slane %v792, 5
  %v2437 = vsel %vm2300, %v2435, %v2436
  %v2438 = vrot.slane %v2436, 4
  %v2439 = vrot.slane %v793, 5
  %v2440 = vsel %vm2300, %v2438, %v2439
  %v2441 = vrot.slane %v2190, 5
  %v2442 = vrot.slane %v2441, 4
  %v2443 = vrot.slane %v795, 5
  %v2444 = vsel %vm2300, %v2442, %v2443
  %v2445 = vrot.slane %v2443, 4
  %v2446 = vrot.slane %v796, 5
  %v2447 = vsel %vm2300, %v2445, %v2446
  %v2448 = vrot.slane %v2191, 5
  %v2449 = vrot.slane %v2448, 4
  %v2450 = vrot.slane %v798, 5
  %v2451 = vsel %vm2300, %v2449, %v2450
  %v2452 = vrot.slane %v2450, 4
  %v2453 = vrot.slane %v799, 5
  %v2454 = vsel %vm2300, %v2452, %v2453
  %v2455 = vrot.slane %v2192, 5
  %v2456 = vrot.slane %v2455, 4
  %v2457 = vrot.slane %v801, 5
  %v2458 = vsel %vm2300, %v2456, %v2457
  %v2459 = vrot.slane %v2457, 4
  %v2460 = vrot.slane %v802, 5
  %v2461 = vsel %vm2300, %v2459, %v2460
  %v2462 = vrot.slane %v2193, 5
  %v2463 = vrot.slane %v2462, 4
  %v2464 = vrot.slane %v804, 5
  %v2465 = vsel %vm2300, %v2463, %v2464
  %v2466 = vrot.slane %v2464, 4
  %v2467 = vrot.slane %v805, 5
  %v2468 = vsel %vm2300, %v2466, %v2467
  %v2469 = vrot.slane %v2194, 5
  %v2470 = vrot.slane %v2469, 4
  %v2471 = vrot.slane %v807, 5
  %v2472 = vsel %vm2300, %v2470, %v2471
  %v2473 = vrot.slane %v2471, 4
  %v2474 = vrot.slane %v808, 5
  %v2475 = vsel %vm2300, %v2473, %v2474
  %v2476 = vrot.slane %v2195, 5
  %v2477 = vrot.slane %v2476, 4
  %v2478 = vrot.slane %v810, 5
  %v2479 = vsel %vm2300, %v2477, %v2478
  %v2480 = vrot.slane %v2478, 4
  %v2481 = vrot.slane %v811, 5
  %v2482 = vsel %vm2300, %v2480, %v2481
  %v2483 = vrot.slane %v2196, 5
  %v2484 = vrot.slane %v2483, 4
  %v2485 = vrot.slane %v813, 5
  %v2486 = vsel %vm2300, %v2484, %v2485
  %v2487 = vrot.slane %v2485, 4
  %v2488 = vrot.slane %v814, 5
  %v2489 = vsel %vm2300, %v2487, %v2488
  %v2490 = vrot.slane %v2197, 5
  %v2491 = vrot.slane %v2490, 4
  %v2492 = vrot.slane %v816, 5
  %v2493 = vsel %vm2300, %v2491, %v2492
  %v2494 = vrot.slane %v2492, 4
  %v2495 = vrot.slane %v817, 5
  %v2496 = vsel %vm2300, %v2494, %v2495
  %v2497 = vrot.slane %v2198, 5
  %v2498 = vrot.slane %v2497, 4
  %v2499 = vrot.slane %v819, 5
  %v2500 = vsel %vm2300, %v2498, %v2499
  %v2501 = vrot.slane %v2499, 4
  %v2502 = vrot.slane %v820, 5
  %v2503 = vsel %vm2300, %v2501, %v2502
  %v2504 = vrot.slane %v2199, 5
  %v2505 = vrot.slane %v2504, 4
  %v2506 = vrot.slane %v822, 5
  %v2507 = vsel %vm2300, %v2505, %v2506
  %v2508 = vrot.slane %v2506, 4
  %v2509 = vrot.slane %v823, 5
  %v2510 = vsel %vm2300, %v2508, %v2509
  %v2511 = vrot.slane %v2200, 5
  %v2512 = vrot.slane %v2511, 4
  %v2513 = vrot.slane %v825, 5
  %v2514 = vsel %vm2300, %v2512, %v2513
  %v2515 = vrot.slane %v2513, 4
  %v2516 = vrot.slane %v826, 5
  %v2517 = vsel %vm2300, %v2515, %v2516
  %v2518 = vrot.slane %v2201, 5
  %v2519 = vrot.slane %v2518, 4
  %v2520 = vrot.slane %v828, 5
  %v2521 = vsel %vm2300, %v2519, %v2520
  %v2522 = vrot.slane %v2520, 4
  %v2523 = vrot.slane %v829, 5
  %v2524 = vsel %vm2300, %v2522, %v2523
  %s2525 = scalar_lea.vmem %s1, 40
  %v2526 = vld [vmem:[%s2525] sm:$0xf]
  %v2527 = vld [vmem:[%s2525 + $0x4] sm:$0xf]
  %v2528 = vld [vmem:[%s2525 + $0x8] sm:$0xf]
  %v2529 = vld [vmem:[%s2525 + $0xc] sm:$0xf]
  %v2530 = vld [vmem:[%s2525 + $0x10] sm:$0x3]
  %v2531 = vunpack.c.l.b16 %v2304
  %v2532 = vunpack.c.l.b16 %v2307
  %v2533 = vunpack.c.l.b16 %v2311
  %v2534 = vunpack.c.l.b16 %v2314
  %v2535 = vunpack.c.l.b16 %v2318
  %v2536 = vunpack.c.l.b16 %v2321
  %v2537 = vunpack.c.l.b16 %v2325
  %v2538 = vunpack.c.l.b16 %v2328
  %v2539 = vunpack.c.l.b16 %v2332
  %v2540 = vunpack.c.l.b16 %v2335
  %v2541 = vunpack.c.l.b16 %v2339
  %v2542 = vunpack.c.l.b16 %v2342
  %v2543 = vunpack.c.l.b16 %v2346
  %v2544 = vunpack.c.l.b16 %v2349
  %v2545 = vunpack.c.l.b16 %v2353
  %v2546 = vunpack.c.l.b16 %v2356
  %v2547 = vunpack.c.l.b16 %v2360
  %v2548 = vunpack.c.l.b16 %v2363
  %v2549 = vunpack.c.l.b16 %v2367
  %v2550 = vunpack.c.l.b16 %v2370
  %v2551 = vunpack.c.l.b16 %v2374
  %v2552 = vunpack.c.l.b16 %v2377
  %v2553 = vunpack.c.l.b16 %v2381
  %v2554 = vunpack.c.l.b16 %v2384
  %v2555 = vunpack.c.l.b16 %v2388
  %v2556 = vunpack.c.l.b16 %v2391
  %v2557 = vunpack.c.l.b16 %v2395
  %v2558 = vunpack.c.l.b16 %v2398
  %v2559 = vunpack.c.l.b16 %v2402
  %v2560 = vunpack.c.l.b16 %v2405
  %v2561 = vunpack.c.l.b16 %v2409
  %v2562 = vunpack.c.l.b16 %v2412
  %v2563 = vunpack.c.l.b16 %v2416
  %v2564 = vunpack.c.l.b16 %v2419
  %v2565 = vunpack.c.l.b16 %v2423
  %v2566 = vunpack.c.l.b16 %v2426
  %v2567 = vunpack.c.l.b16 %v2430
  %v2568 = vunpack.c.l.b16 %v2433
  %v2569 = vunpack.c.l.b16 %v2437
  %v2570 = vunpack.c.l.b16 %v2440
  %v2571 = vunpack.c.l.b16 %v2444
  %v2572 = vunpack.c.l.b16 %v2447
  %v2573 = vunpack.c.l.b16 %v2451
  %v2574 = vunpack.c.l.b16 %v2454
  %v2575 = vunpack.c.l.b16 %v2458
  %v2576 = vunpack.c.l.b16 %v2461
  %v2577 = vunpack.c.l.b16 %v2465
  %v2578 = vunpack.c.l.b16 %v2468
  %v2579 = vunpack.c.l.b16 %v2472
  %v2580 = vunpack.c.l.b16 %v2475
  %v2581 = vunpack.c.l.b16 %v2479
  %v2582 = vunpack.c.l.b16 %v2482
  %v2583 = vunpack.c.l.b16 %v2486
  %v2584 = vunpack.c.l.b16 %v2489
  %v2585 = vunpack.c.l.b16 %v2493
  %v2586 = vunpack.c.l.b16 %v2496
  %v2587 = vunpack.c.l.b16 %v2500
  %v2588 = vunpack.c.l.b16 %v2503
  %v2589 = vunpack.c.l.b16 %v2507
  %v2590 = vunpack.c.l.b16 %v2510
  %v2591 = vunpack.c.l.b16 %v2514
  %v2592 = vunpack.c.l.b16 %v2517
  %v2593 = vunpack.c.l.b16 %v2521
  %v2594 = vunpack.c.l.b16 %v2524
  %v2595 = vpack.c.b16 %v2532, %v2531
  %v2596 = vpack.c.b16 %v2534, %v2533
  %v2597 = vpack.c.b16 %v2536, %v2535
  %v2598 = vpack.c.b16 %v2538, %v2537
  %v2599 = vpack.c.b16 %v2540, %v2539
  %v2600 = vpack.c.b16 %v2542, %v2541
  %v2601 = vpack.c.b16 %v2544, %v2543
  %v2602 = vpack.c.b16 %v2546, %v2545
  %v2603 = vpack.c.b16 %v2548, %v2547
  %v2604 = vpack.c.b16 %v2550, %v2549
  %v2605 = vpack.c.b16 %v2552, %v2551
  %v2606 = vpack.c.b16 %v2554, %v2553
  %v2607 = vpack.c.b16 %v2556, %v2555
  %v2608 = vpack.c.b16 %v2558, %v2557
  %v2609 = vpack.c.b16 %v2560, %v2559
  %v2610 = vpack.c.b16 %v2562, %v2561
  %v2611 = vpack.c.b16 %v2564, %v2563
  %v2612 = vpack.c.b16 %v2566, %v2565
  %v2613 = vpack.c.b16 %v2568, %v2567
  %v2614 = vpack.c.b16 %v2570, %v2569
  %v2615 = vpack.c.b16 %v2572, %v2571
  %v2616 = vpack.c.b16 %v2574, %v2573
  %v2617 = vpack.c.b16 %v2576, %v2575
  %v2618 = vpack.c.b16 %v2578, %v2577
  %v2619 = vpack.c.b16 %v2580, %v2579
  %v2620 = vpack.c.b16 %v2582, %v2581
  %v2621 = vpack.c.b16 %v2584, %v2583
  %v2622 = vpack.c.b16 %v2586, %v2585
  %v2623 = vpack.c.b16 %v2588, %v2587
  %v2624 = vpack.c.b16 %v2590, %v2589
  %v2625 = vpack.c.b16 %v2592, %v2591
  %v2626 = vpack.c.b16 %v2594, %v2593
  %v2632 = vunpack.c.l.b16 %v2526
  %v2633 = vunpack.c.l.b16 %v2527
  %v2634 = vunpack.c.l.b16 %v2528
  %v2635 = vunpack.c.l.b16 %v2529
  %v2636 = vunpack.c.l.b16 %v2530
  %v2637 = vpack.c.b16 %v2633, %v2632
  %v2638 = vpack.c.b16 %v2635, %v2634
  %v2639 = vpack.c.b16 %v2636, %v2636
  %v2643 = vsel %vm280, %v2595, 0
  %v2646 = vsel %vm280, %v2596, 0
  %v2649 = vsel %vm280, %v2597, 0
  %v2652 = vsel %vm280, %v2598, 0
  %v2655 = vsel %vm280, %v2599, 0
  %v2658 = vsel %vm280, %v2600, 0
  %v2661 = vsel %vm280, %v2601, 0
  %v2664 = vsel %vm280, %v2602, 0
  %v2667 = vsel %vm280, %v2603, 0
  %v2670 = vsel %vm280, %v2604, 0
  %v2673 = vsel %vm280, %v2605, 0
  %v2676 = vsel %vm280, %v2606, 0
  %v2679 = vsel %vm280, %v2607, 0
  %v2682 = vsel %vm280, %v2608, 0
  %v2685 = vsel %vm280, %v2609, 0
  %v2688 = vsel %vm280, %v2610, 0
  %v2691 = vsel %vm280, %v2611, 0
  %v2694 = vsel %vm280, %v2612, 0
  %v2697 = vsel %vm280, %v2613, 0
  %v2700 = vsel %vm280, %v2614, 0
  %v2703 = vsel %vm280, %v2615, 0
  %v2706 = vsel %vm280, %v2616, 0
  %v2709 = vsel %vm280, %v2617, 0
  %v2712 = vsel %vm280, %v2618, 0
  %v2715 = vsel %vm280, %v2619, 0
  %v2718 = vsel %vm280, %v2620, 0
  %v2721 = vsel %vm280, %v2621, 0
  %v2724 = vsel %vm280, %v2622, 0
  %v2727 = vsel %vm280, %v2623, 0
  %v2730 = vsel %vm280, %v2624, 0
  %v2733 = vsel %vm280, %v2625, 0
  %v2736 = vsel %vm280, %v2626, 0
  %v2739 = vsel %vm377, %v2639, 0
  %2741 = vmatprep.subr.bf16.mxu0 0
  %2742 = vmatpush1.bf16.msra.mxu0 %v2637
  %2743 = vmatprep.subr.bf16.mxu0 0
  %2744 = vmatpush1.bf16.msra.mxu0 %v2638
  %2745 = vmatprep.subr.bf16.mxu0 0
  %2746 = vmatpush1.bf16.msra.mxu0 %v2739
  %2747 = vmatprep.subr.bf16.mxu0 0
  %2748 = vmatpush1.bf16.msra.mxu0 0
  %2749 = vmatprep.subr.bf16.mxu0 0
  %2750 = vmatpush1.bf16.msra.mxu0 0
  %2751 = vmatprep.subr.bf16.mxu0 0
  %2752 = vmatpush1.bf16.msra.mxu0 0
  %2753 = vmatprep.subr.bf16.mxu0 0
  %2754 = vmatpush1.bf16.msra.mxu0 0
  %2755 = vmatprep.subr.bf16.mxu0 0
  %2756 = vmatpush1.bf16.msra.mxu0 0
  %2757 = vmatprep.subr.bf16.mxu0 0
  %2758 = vmatpush1.bf16.msra.mxu0 0
  %2759 = vmatprep.subr.bf16.mxu0 0
  %2760 = vmatpush1.bf16.msra.mxu0 0
  %2761 = vmatprep.subr.bf16.mxu0 0
  %2762 = vmatpush1.bf16.msra.mxu0 0
  %2763 = vmatprep.subr.bf16.mxu0 0
  %2764 = vmatpush1.bf16.msra.mxu0 0
  %2765 = vmatprep.subr.bf16.mxu0 0
  %2766 = vmatpush1.bf16.msra.mxu0 0
  %2767 = vmatprep.subr.bf16.mxu0 0
  %2768 = vmatpush1.bf16.msra.mxu0 0
  %2769 = vmatprep.subr.bf16.mxu0 0
  %2770 = vmatpush1.bf16.msra.mxu0 0
  %2771 = vmatprep.subr.bf16.mxu0 0
  %2772 = vmatpush1.bf16.msra.mxu0 0
  %2773 = vmatprep.mubr.bf16.mxu0 0
  %2774 = vmatmul.mubr.bf16.gmra.mrb[0].mxu0 %v2643
  %v2775 = vpop.f32.mrb[0].mxu0
  %v2776 = vadd.f32 0.0, %v2775
  %v2777 = vpop.f32.mrb[0].mxu0
  %v2778 = vpop.f32.mrb[0].mxu0
  %v2779 = vadd.f32 0.0, %v2778
  %v2780 = vpop.f32.mrb[0].mxu0
  %2781 = vmatprep.mubr.bf16.mxu0 0
  %2782 = vmatmul.mubr.bf16.gmra.mrb[0].mxu0 %v2646
  %v2783 = vpop.f32.mrb[0].mxu0
  %v2784 = vadd.f32 0.0, %v2783
  %v2785 = vpop.f32.mrb[0].mxu0
  %v2786 = vpop.f32.mrb[0].mxu0
  %v2787 = vadd.f32 0.0, %v2786
  %v2788 = vpop.f32.mrb[0].mxu0
  %2789 = vmatprep.mubr.bf16.mxu0 0
  %2790 = vmatmul.mubr.bf16.gmra.mrb[0].mxu0 %v2649
  %v2791 = vpop.f32.mrb[0].mxu0
  %v2792 = vadd.f32 0.0, %v2791
  %v2793 = vpop.f32.mrb[0].mxu0
  %v2794 = vpop.f32.mrb[0].mxu0
  %v2795 = vadd.f32 0.0, %v2794
  %v2796 = vpop.f32.mrb[0].mxu0
  %2797 = vmatprep.mubr.bf16.mxu0 0
  %2798 = vmatmul.mubr.bf16.gmra.mrb[0].mxu0 %v2652
  %v2799 = vpop.f32.mrb[0].mxu0
  %v2800 = vadd.f32 0.0, %v2799
  %v2801 = vpop.f32.mrb[0].mxu0
  %v2802 = vpop.f32.mrb[0].mxu0
  %v2803 = vadd.f32 0.0, %v2802
  %v2804 = vpop.f32.mrb[0].mxu0
  %2805 = vmatprep.mubr.bf16.mxu0 0
  %2806 = vmatmul.mubr.bf16.gmra.mrb[0].mxu0 %v2655
  %v2807 = vpop.f32.mrb[0].mxu0
  %v2808 = vadd.f32 0.0, %v2807
  %v2809 = vpop.f32.mrb[0].mxu0
  %v2810 = vpop.f32.mrb[0].mxu0
  %v2811 = vadd.f32 0.0, %v2810
  %v2812 = vpop.f32.mrb[0].mxu0
  %2813 = vmatprep.mubr.bf16.mxu0 0
  %2814 = vmatmul.mubr.bf16.gmra.mrb[0].mxu0 %v2658
  %v2815 = vpop.f32.mrb[0].mxu0
  %v2816 = vadd.f32 0.0, %v2815
  %v2817 = vpop.f32.mrb[0].mxu0
  %v2818 = vpop.f32.mrb[0].mxu0
  %v2819 = vadd.f32 0.0, %v2818
  %v2820 = vpop.f32.mrb[0].mxu0
  %2821 = vmatprep.mubr.bf16.mxu0 0
  %2822 = vmatmul.mubr.bf16.gmra.mrb[0].mxu0 %v2661
  %v2823 = vpop.f32.mrb[0].mxu0
  %v2824 = vadd.f32 0.0, %v2823
  %v2825 = vpop.f32.mrb[0].mxu0
  %v2826 = vpop.f32.mrb[0].mxu0
  %v2827 = vadd.f32 0.0, %v2826
  %v2828 = vpop.f32.mrb[0].mxu0
  %2829 = vmatprep.mubr.bf16.mxu0 0
  %2830 = vmatmul.mubr.bf16.gmra.mrb[0].mxu0 %v2664
  %v2831 = vpop.f32.mrb[0].mxu0
  %v2832 = vadd.f32 0.0, %v2831
  %v2833 = vpop.f32.mrb[0].mxu0
  %v2834 = vpop.f32.mrb[0].mxu0
  %v2835 = vadd.f32 0.0, %v2834
  %v2836 = vpop.f32.mrb[0].mxu0
  %2837 = vmatprep.mubr.bf16.mxu0 0
  %2838 = vmatmul.mubr.bf16.gmra.mrb[0].mxu0 %v2667
  %v2839 = vpop.f32.mrb[0].mxu0
  %v2840 = vadd.f32 0.0, %v2839
  %v2841 = vpop.f32.mrb[0].mxu0
  %v2842 = vpop.f32.mrb[0].mxu0
  %v2843 = vadd.f32 0.0, %v2842
  %v2844 = vpop.f32.mrb[0].mxu0
  %2845 = vmatprep.mubr.bf16.mxu0 0
  %2846 = vmatmul.mubr.bf16.gmra.mrb[0].mxu0 %v2670
  %v2847 = vpop.f32.mrb[0].mxu0
  %v2848 = vadd.f32 0.0, %v2847
  %v2849 = vpop.f32.mrb[0].mxu0
  %v2850 = vpop.f32.mrb[0].mxu0
  %v2851 = vadd.f32 0.0, %v2850
  %v2852 = vpop.f32.mrb[0].mxu0
  %2853 = vmatprep.mubr.bf16.mxu0 0
  %2854 = vmatmul.mubr.bf16.gmra.mrb[0].mxu0 %v2673
  %v2855 = vpop.f32.mrb[0].mxu0
  %v2856 = vadd.f32 0.0, %v2855
  %v2857 = vpop.f32.mrb[0].mxu0
  %v2858 = vpop.f32.mrb[0].mxu0
  %v2859 = vadd.f32 0.0, %v2858
  %v2860 = vpop.f32.mrb[0].mxu0
  %2861 = vmatprep.mubr.bf16.mxu0 0
  %2862 = vmatmul.mubr.bf16.gmra.mrb[0].mxu0 %v2676
  %v2863 = vpop.f32.mrb[0].mxu0
  %v2864 = vadd.f32 0.0, %v2863
  %v2865 = vpop.f32.mrb[0].mxu0
  %v2866 = vpop.f32.mrb[0].mxu0
  %v2867 = vadd.f32 0.0, %v2866
  %v2868 = vpop.f32.mrb[0].mxu0
  %2869 = vmatprep.mubr.bf16.mxu0 0
  %2870 = vmatmul.mubr.bf16.gmra.mrb[0].mxu0 %v2679
  %v2871 = vpop.f32.mrb[0].mxu0
  %v2872 = vadd.f32 0.0, %v2871
  %v2873 = vpop.f32.mrb[0].mxu0
  %v2874 = vpop.f32.mrb[0].mxu0
  %v2875 = vadd.f32 0.0, %v2874
  %v2876 = vpop.f32.mrb[0].mxu0
  %2877 = vmatprep.mubr.bf16.mxu0 0
  %2878 = vmatmul.mubr.bf16.gmra.mrb[0].mxu0 %v2682
  %v2879 = vpop.f32.mrb[0].mxu0
  %v2880 = vadd.f32 0.0, %v2879
  %v2881 = vpop.f32.mrb[0].mxu0
  %v2882 = vpop.f32.mrb[0].mxu0
  %v2883 = vadd.f32 0.0, %v2882
  %v2884 = vpop.f32.mrb[0].mxu0
  %2885 = vmatprep.mubr.bf16.mxu0 0
  %2886 = vmatmul.mubr.bf16.gmra.mrb[0].mxu0 %v2685
  %v2887 = vpop.f32.mrb[0].mxu0
  %v2888 = vadd.f32 0.0, %v2887
  %v2889 = vpop.f32.mrb[0].mxu0
  %v2890 = vpop.f32.mrb[0].mxu0
  %v2891 = vadd.f32 0.0, %v2890
  %v2892 = vpop.f32.mrb[0].mxu0
  %2893 = vmatprep.mubr.bf16.mxu0 0
  %2894 = vmatmul.mubr.bf16.gmra.mrb[0].mxu0 %v2688
  %v2895 = vpop.f32.mrb[0].mxu0
  %v2896 = vadd.f32 0.0, %v2895
  %v2897 = vpop.f32.mrb[0].mxu0
  %v2898 = vpop.f32.mrb[0].mxu0
  %v2899 = vadd.f32 0.0, %v2898
  %v2900 = vpop.f32.mrb[0].mxu0
  %2901 = vmatprep.mubr.bf16.mxu0 0
  %2902 = vmatmul.mubr.bf16.gmra.mrb[0].mxu0 %v2691
  %v2903 = vpop.f32.mrb[0].mxu0
  %v2904 = vadd.f32 0.0, %v2903
  %v2905 = vpop.f32.mrb[0].mxu0
  %v2906 = vpop.f32.mrb[0].mxu0
  %v2907 = vadd.f32 0.0, %v2906
  %v2908 = vpop.f32.mrb[0].mxu0
  %2909 = vmatprep.mubr.bf16.mxu0 0
  %2910 = vmatmul.mubr.bf16.gmra.mrb[0].mxu0 %v2694
  %v2911 = vpop.f32.mrb[0].mxu0
  %v2912 = vadd.f32 0.0, %v2911
  %v2913 = vpop.f32.mrb[0].mxu0
  %v2914 = vpop.f32.mrb[0].mxu0
  %v2915 = vadd.f32 0.0, %v2914
  %v2916 = vpop.f32.mrb[0].mxu0
  %2917 = vmatprep.mubr.bf16.mxu0 0
  %2918 = vmatmul.mubr.bf16.gmra.mrb[0].mxu0 %v2697
  %v2919 = vpop.f32.mrb[0].mxu0
  %v2920 = vadd.f32 0.0, %v2919
  %v2921 = vpop.f32.mrb[0].mxu0
  %v2922 = vpop.f32.mrb[0].mxu0
  %v2923 = vadd.f32 0.0, %v2922
  %v2924 = vpop.f32.mrb[0].mxu0
  %2925 = vmatprep.mubr.bf16.mxu0 0
  %2926 = vmatmul.mubr.bf16.gmra.mrb[0].mxu0 %v2700
  %v2927 = vpop.f32.mrb[0].mxu0
  %v2928 = vadd.f32 0.0, %v2927
  %v2929 = vpop.f32.mrb[0].mxu0
  %v2930 = vpop.f32.mrb[0].mxu0
  %v2931 = vadd.f32 0.0, %v2930
  %v2932 = vpop.f32.mrb[0].mxu0
  %2933 = vmatprep.mubr.bf16.mxu0 0
  %2934 = vmatmul.mubr.bf16.gmra.mrb[0].mxu0 %v2703
  %v2935 = vpop.f32.mrb[0].mxu0
  %v2936 = vadd.f32 0.0, %v2935
  %v2937 = vpop.f32.mrb[0].mxu0
  %v2938 = vpop.f32.mrb[0].mxu0
  %v2939 = vadd.f32 0.0, %v2938
  %v2940 = vpop.f32.mrb[0].mxu0
  %2941 = vmatprep.mubr.bf16.mxu0 0
  %2942 = vmatmul.mubr.bf16.gmra.mrb[0].mxu0 %v2706
  %v2943 = vpop.f32.mrb[0].mxu0
  %v2944 = vadd.f32 0.0, %v2943
  %v2945 = vpop.f32.mrb[0].mxu0
  %v2946 = vpop.f32.mrb[0].mxu0
  %v2947 = vadd.f32 0.0, %v2946
  %v2948 = vpop.f32.mrb[0].mxu0
  %2949 = vmatprep.mubr.bf16.mxu0 0
  %2950 = vmatmul.mubr.bf16.gmra.mrb[0].mxu0 %v2709
  %v2951 = vpop.f32.mrb[0].mxu0
  %v2952 = vadd.f32 0.0, %v2951
  %v2953 = vpop.f32.mrb[0].mxu0
  %v2954 = vpop.f32.mrb[0].mxu0
  %v2955 = vadd.f32 0.0, %v2954
  %v2956 = vpop.f32.mrb[0].mxu0
  %2957 = vmatprep.mubr.bf16.mxu0 0
  %2958 = vmatmul.mubr.bf16.gmra.mrb[0].mxu0 %v2712
  %v2959 = vpop.f32.mrb[0].mxu0
  %v2960 = vadd.f32 0.0, %v2959
  %v2961 = vpop.f32.mrb[0].mxu0
  %v2962 = vpop.f32.mrb[0].mxu0
  %v2963 = vadd.f32 0.0, %v2962
  %v2964 = vpop.f32.mrb[0].mxu0
  %2965 = vmatprep.mubr.bf16.mxu0 0
  %2966 = vmatmul.mubr.bf16.gmra.mrb[0].mxu0 %v2715
  %v2967 = vpop.f32.mrb[0].mxu0
  %v2968 = vadd.f32 0.0, %v2967
  %v2969 = vpop.f32.mrb[0].mxu0
  %v2970 = vpop.f32.mrb[0].mxu0
  %v2971 = vadd.f32 0.0, %v2970
  %v2972 = vpop.f32.mrb[0].mxu0
  %2973 = vmatprep.mubr.bf16.mxu0 0
  %2974 = vmatmul.mubr.bf16.gmra.mrb[0].mxu0 %v2718
  %v2975 = vpop.f32.mrb[0].mxu0
  %v2976 = vadd.f32 0.0, %v2975
  %v2977 = vpop.f32.mrb[0].mxu0
  %v2978 = vpop.f32.mrb[0].mxu0
  %v2979 = vadd.f32 0.0, %v2978
  %v2980 = vpop.f32.mrb[0].mxu0
  %2981 = vmatprep.mubr.bf16.mxu0 0
  %2982 = vmatmul.mubr.bf16.gmra.mrb[0].mxu0 %v2721
  %v2983 = vpop.f32.mrb[0].mxu0
  %v2984 = vadd.f32 0.0, %v2983
  %v2985 = vpop.f32.mrb[0].mxu0
  %v2986 = vpop.f32.mrb[0].mxu0
  %v2987 = vadd.f32 0.0, %v2986
  %v2988 = vpop.f32.mrb[0].mxu0
  %2989 = vmatprep.mubr.bf16.mxu0 0
  %2990 = vmatmul.mubr.bf16.gmra.mrb[0].mxu0 %v2724
  %v2991 = vpop.f32.mrb[0].mxu0
  %v2992 = vadd.f32 0.0, %v2991
  %v2993 = vpop.f32.mrb[0].mxu0
  %v2994 = vpop.f32.mrb[0].mxu0
  %v2995 = vadd.f32 0.0, %v2994
  %v2996 = vpop.f32.mrb[0].mxu0
  %2997 = vmatprep.mubr.bf16.mxu0 0
  %2998 = vmatmul.mubr.bf16.gmra.mrb[0].mxu0 %v2727
  %v2999 = vpop.f32.mrb[0].mxu0
  %v3000 = vadd.f32 0.0, %v2999
  %v3001 = vpop.f32.mrb[0].mxu0
  %v3002 = vpop.f32.mrb[0].mxu0
  %v3003 = vadd.f32 0.0, %v3002
  %v3004 = vpop.f32.mrb[0].mxu0
  %3005 = vmatprep.mubr.bf16.mxu0 0
  %3006 = vmatmul.mubr.bf16.gmra.mrb[0].mxu0 %v2730
  %v3007 = vpop.f32.mrb[0].mxu0
  %v3008 = vadd.f32 0.0, %v3007
  %v3009 = vpop.f32.mrb[0].mxu0
  %v3010 = vpop.f32.mrb[0].mxu0
  %v3011 = vadd.f32 0.0, %v3010
  %v3012 = vpop.f32.mrb[0].mxu0
  %3013 = vmatprep.mubr.bf16.mxu0 0
  %3014 = vmatmul.mubr.bf16.gmra.mrb[0].mxu0 %v2733
  %v3015 = vpop.f32.mrb[0].mxu0
  %v3016 = vadd.f32 0.0, %v3015
  %v3017 = vpop.f32.mrb[0].mxu0
  %v3018 = vpop.f32.mrb[0].mxu0
  %v3019 = vadd.f32 0.0, %v3018
  %v3020 = vpop.f32.mrb[0].mxu0
  %3021 = vmatprep.mubr.bf16.mxu0 0
  %3022 = vmatmul.mubr.bf16.gmra.mrb[0].mxu0 %v2736
  %v3023 = vpop.f32.mrb[0].mxu0
  %v3024 = vadd.f32 0.0, %v3023
  %v3025 = vpop.f32.mrb[0].mxu0
  %v3026 = vpop.f32.mrb[0].mxu0
  %v3027 = vadd.f32 0.0, %v3026
  %v3028 = vpop.f32.mrb[0].mxu0
  %3029 = vdwg.mxu0
  %v3030 = vadd.f32 %v2106, %v2776
  %v3031 = vadd.f32 %v2107, %v2779
  %v3032 = vadd.f32 %v2108, %v2784
  %v3033 = vadd.f32 %v2109, %v2787
  %v3034 = vadd.f32 %v2110, %v2792
  %v3035 = vadd.f32 %v2111, %v2795
  %v3036 = vadd.f32 %v2112, %v2800
  %v3037 = vadd.f32 %v2113, %v2803
  %v3038 = vadd.f32 %v2114, %v2808
  %v3039 = vadd.f32 %v2115, %v2811
  %v3040 = vadd.f32 %v2116, %v2816
  %v3041 = vadd.f32 %v2117, %v2819
  %v3042 = vadd.f32 %v2118, %v2824
  %v3043 = vadd.f32 %v2119, %v2827
  %v3044 = vadd.f32 %v2120, %v2832
  %v3045 = vadd.f32 %v2121, %v2835
  %v3046 = vadd.f32 %v2122, %v2840
  %v3047 = vadd.f32 %v2123, %v2843
  %v3048 = vadd.f32 %v2124, %v2848
  %v3049 = vadd.f32 %v2125, %v2851
  %v3050 = vadd.f32 %v2126, %v2856
  %v3051 = vadd.f32 %v2127, %v2859
  %v3052 = vadd.f32 %v2128, %v2864
  %v3053 = vadd.f32 %v2129, %v2867
  %v3054 = vadd.f32 %v2130, %v2872
  %v3055 = vadd.f32 %v2131, %v2875
  %v3056 = vadd.f32 %v2132, %v2880
  %v3057 = vadd.f32 %v2133, %v2883
  %v3058 = vadd.f32 %v2134, %v2888
  %v3059 = vadd.f32 %v2135, %v2891
  %v3060 = vadd.f32 %v2136, %v2896
  %v3061 = vadd.f32 %v2137, %v2899
  %v3062 = vadd.f32 %v2138, %v2904
  %v3063 = vadd.f32 %v2139, %v2907
  %v3064 = vadd.f32 %v2140, %v2912
  %v3065 = vadd.f32 %v2141, %v2915
  %v3066 = vadd.f32 %v2142, %v2920
  %v3067 = vadd.f32 %v2143, %v2923
  %v3068 = vadd.f32 %v2144, %v2928
  %v3069 = vadd.f32 %v2145, %v2931
  %v3070 = vadd.f32 %v2146, %v2936
  %v3071 = vadd.f32 %v2147, %v2939
  %v3072 = vadd.f32 %v2148, %v2944
  %v3073 = vadd.f32 %v2149, %v2947
  %v3074 = vadd.f32 %v2150, %v2952
  %v3075 = vadd.f32 %v2151, %v2955
  %v3076 = vadd.f32 %v2152, %v2960
  %v3077 = vadd.f32 %v2153, %v2963
  %v3078 = vadd.f32 %v2154, %v2968
  %v3079 = vadd.f32 %v2155, %v2971
  %v3080 = vadd.f32 %v2156, %v2976
  %v3081 = vadd.f32 %v2157, %v2979
  %v3082 = vadd.f32 %v2158, %v2984
  %v3083 = vadd.f32 %v2159, %v2987
  %v3084 = vadd.f32 %v2160, %v2992
  %v3085 = vadd.f32 %v2161, %v2995
  %v3086 = vadd.f32 %v2162, %v3000
  %v3087 = vadd.f32 %v2163, %v3003
  %v3088 = vadd.f32 %v2164, %v3008
  %v3089 = vadd.f32 %v2165, %v3011
  %v3090 = vadd.f32 %v2166, %v3016
  %v3091 = vadd.f32 %v2167, %v3019
  %v3092 = vadd.f32 %v2168, %v3024
  %v3093 = vadd.f32 %v2169, %v3027
  %s3094 = scalar_lea.vmem %s0, 12
  %v3095 = vld [vmem:[%s3094] sm:$0xf]
  %v3096 = vld [vmem:[%s3094 + $0x4] sm:$0xf]
  %v3097 = vld [vmem:[%s3094 + $0xc] sm:$0xf]
  %v3098 = vld [vmem:[%s3094 + $0x10] sm:$0xf]
  %v3099 = vld [vmem:[%s3094 + $0x18] sm:$0xf]
  %v3100 = vld [vmem:[%s3094 + $0x1c] sm:$0xf]
  %v3101 = vld [vmem:[%s3094 + $0x24] sm:$0xf]
  %v3102 = vld [vmem:[%s3094 + $0x28] sm:$0xf]
  %v3103 = vld [vmem:[%s3094 + $0x30] sm:$0xf]
  %v3104 = vld [vmem:[%s3094 + $0x34] sm:$0xf]
  %v3105 = vld [vmem:[%s3094 + $0x3c] sm:$0xf]
  %v3106 = vld [vmem:[%s3094 + $0x40] sm:$0xf]
  %v3107 = vld [vmem:[%s3094 + $0x48] sm:$0xf]
  %v3108 = vld [vmem:[%s3094 + $0x4c] sm:$0xf]
  %v3109 = vld [vmem:[%s3094 + $0x54] sm:$0xf]
  %v3110 = vld [vmem:[%s3094 + $0x58] sm:$0xf]
  %v3111 = vld [vmem:[%s3094 + $0x60] sm:$0xf]
  %v3112 = vld [vmem:[%s3094 + $0x64] sm:$0xf]
  %v3113 = vld [vmem:[%s3094 + $0x6c] sm:$0xf]
  %v3114 = vld [vmem:[%s3094 + $0x70] sm:$0xf]
  %v3115 = vld [vmem:[%s3094 + $0x78] sm:$0xf]
  %v3116 = vld [vmem:[%s3094 + $0x7c] sm:$0xf]
  %v3117 = vld [vmem:[%s3094 + $0x84] sm:$0xf]
  %v3118 = vld [vmem:[%s3094 + $0x88] sm:$0xf]
  %v3119 = vld [vmem:[%s3094 + $0x90] sm:$0xf]
  %v3120 = vld [vmem:[%s3094 + $0x94] sm:$0xf]
  %v3121 = vld [vmem:[%s3094 + $0x9c] sm:$0xf]
  %v3122 = vld [vmem:[%s3094 + $0xa0] sm:$0xf]
  %v3123 = vld [vmem:[%s3094 + $0xa8] sm:$0xf]
  %v3124 = vld [vmem:[%s3094 + $0xac] sm:$0xf]
  %v3125 = vld [vmem:[%s3094 + $0xb4] sm:$0xf]
  %v3126 = vld [vmem:[%s3094 + $0xb8] sm:$0xf]
  %v3127 = vld [vmem:[%s3094 + $0xd8] sm:$0xf]
  %v3128 = vld [vmem:[%s3094 + $0xdc] sm:$0xf]
  %v3129 = vld [vmem:[%s3094 + $0xe4] sm:$0xf]
  %v3130 = vld [vmem:[%s3094 + $0xe8] sm:$0xf]
  %v3131 = vld [vmem:[%s3094 + $0xf0] sm:$0xf]
  %v3132 = vld [vmem:[%s3094 + $0xf4] sm:$0xf]
  %v3133 = vld [vmem:[%s3094 + $0xfc] sm:$0xf]
  %v3134 = vld [vmem:[%s3094 + $0x100] sm:$0xf]
  %v3135 = vld [vmem:[%s3094 + $0x108] sm:$0xf]
  %v3136 = vld [vmem:[%s3094 + $0x10c] sm:$0xf]
  %v3137 = vld [vmem:[%s3094 + $0x114] sm:$0xf]
  %v3138 = vld [vmem:[%s3094 + $0x118] sm:$0xf]
  %v3139 = vld [vmem:[%s3094 + $0x120] sm:$0xf]
  %v3140 = vld [vmem:[%s3094 + $0x124] sm:$0xf]
  %v3141 = vld [vmem:[%s3094 + $0x12c] sm:$0xf]
  %v3142 = vld [vmem:[%s3094 + $0x130] sm:$0xf]
  %v3143 = vld [vmem:[%s3094 + $0x138] sm:$0xf]
  %v3144 = vld [vmem:[%s3094 + $0x13c] sm:$0xf]
  %v3145 = vld [vmem:[%s3094 + $0x144] sm:$0xf]
  %v3146 = vld [vmem:[%s3094 + $0x148] sm:$0xf]
  %v3147 = vld [vmem:[%s3094 + $0x150] sm:$0xf]
  %v3148 = vld [vmem:[%s3094 + $0x154] sm:$0xf]
  %v3149 = vld [vmem:[%s3094 + $0x15c] sm:$0xf]
  %v3150 = vld [vmem:[%s3094 + $0x160] sm:$0xf]
  %v3151 = vld [vmem:[%s3094 + $0x168] sm:$0xf]
  %v3152 = vld [vmem:[%s3094 + $0x16c] sm:$0xf]
  %v3153 = vld [vmem:[%s3094 + $0x174] sm:$0xf]
  %v3154 = vld [vmem:[%s3094 + $0x178] sm:$0xf]
  %v3155 = vld [vmem:[%s3094 + $0x180] sm:$0xf]
  %v3156 = vld [vmem:[%s3094 + $0x184] sm:$0xf]
  %v3157 = vld [vmem:[%s3094 + $0x18c] sm:$0xf]
  %v3158 = vld [vmem:[%s3094 + $0x190] sm:$0xf]
  %s3159 = scalar_lea.vmem %s1, 60
  %v3160 = vld [vmem:[%s3159] sm:$0xf]
  %v3161 = vld [vmem:[%s3159 + $0x4] sm:$0xf]
  %v3162 = vld [vmem:[%s3159 + $0x8] sm:$0xf]
  %v3163 = vld [vmem:[%s3159 + $0xc] sm:$0xf]
  %v3164 = vld [vmem:[%s3159 + $0x10] sm:$0x3]
  %v3229 = vunpack.c.l.b16 %v3095
  %v3230 = vunpack.c.l.b16 %v3096
  %v3231 = vunpack.c.l.b16 %v3097
  %v3232 = vunpack.c.l.b16 %v3098
  %v3233 = vunpack.c.l.b16 %v3099
  %v3234 = vunpack.c.l.b16 %v3100
  %v3235 = vunpack.c.l.b16 %v3101
  %v3236 = vunpack.c.l.b16 %v3102
  %v3237 = vunpack.c.l.b16 %v3103
  %v3238 = vunpack.c.l.b16 %v3104
  %v3239 = vunpack.c.l.b16 %v3105
  %v3240 = vunpack.c.l.b16 %v3106
  %v3241 = vunpack.c.l.b16 %v3107
  %v3242 = vunpack.c.l.b16 %v3108
  %v3243 = vunpack.c.l.b16 %v3109
  %v3244 = vunpack.c.l.b16 %v3110
  %v3245 = vunpack.c.l.b16 %v3111
  %v3246 = vunpack.c.l.b16 %v3112
  %v3247 = vunpack.c.l.b16 %v3113
  %v3248 = vunpack.c.l.b16 %v3114
  %v3249 = vunpack.c.l.b16 %v3115
  %v3250 = vunpack.c.l.b16 %v3116
  %v3251 = vunpack.c.l.b16 %v3117
  %v3252 = vunpack.c.l.b16 %v3118
  %v3253 = vunpack.c.l.b16 %v3119
  %v3254 = vunpack.c.l.b16 %v3120
  %v3255 = vunpack.c.l.b16 %v3121
  %v3256 = vunpack.c.l.b16 %v3122
  %v3257 = vunpack.c.l.b16 %v3123
  %v3258 = vunpack.c.l.b16 %v3124
  %v3259 = vunpack.c.l.b16 %v3125
  %v3260 = vunpack.c.l.b16 %v3126
  %v3261 = vunpack.c.l.b16 %v3127
  %v3262 = vunpack.c.l.b16 %v3128
  %v3263 = vunpack.c.l.b16 %v3129
  %v3264 = vunpack.c.l.b16 %v3130
  %v3265 = vunpack.c.l.b16 %v3131
  %v3266 = vunpack.c.l.b16 %v3132
  %v3267 = vunpack.c.l.b16 %v3133
  %v3268 = vunpack.c.l.b16 %v3134
  %v3269 = vunpack.c.l.b16 %v3135
  %v3270 = vunpack.c.l.b16 %v3136
  %v3271 = vunpack.c.l.b16 %v3137
  %v3272 = vunpack.c.l.b16 %v3138
  %v3273 = vunpack.c.l.b16 %v3139
  %v3274 = vunpack.c.l.b16 %v3140
  %v3275 = vunpack.c.l.b16 %v3141
  %v3276 = vunpack.c.l.b16 %v3142
  %v3277 = vunpack.c.l.b16 %v3143
  %v3278 = vunpack.c.l.b16 %v3144
  %v3279 = vunpack.c.l.b16 %v3145
  %v3280 = vunpack.c.l.b16 %v3146
  %v3281 = vunpack.c.l.b16 %v3147
  %v3282 = vunpack.c.l.b16 %v3148
  %v3283 = vunpack.c.l.b16 %v3149
  %v3284 = vunpack.c.l.b16 %v3150
  %v3285 = vunpack.c.l.b16 %v3151
  %v3286 = vunpack.c.l.b16 %v3152
  %v3287 = vunpack.c.l.b16 %v3153
  %v3288 = vunpack.c.l.b16 %v3154
  %v3289 = vunpack.c.l.b16 %v3155
  %v3290 = vunpack.c.l.b16 %v3156
  %v3291 = vunpack.c.l.b16 %v3157
  %v3292 = vunpack.c.l.b16 %v3158
  %v3293 = vpack.c.b16 %v3230, %v3229
  %v3294 = vpack.c.b16 %v3232, %v3231
  %v3295 = vpack.c.b16 %v3234, %v3233
  %v3296 = vpack.c.b16 %v3236, %v3235
  %v3297 = vpack.c.b16 %v3238, %v3237
  %v3298 = vpack.c.b16 %v3240, %v3239
  %v3299 = vpack.c.b16 %v3242, %v3241
  %v3300 = vpack.c.b16 %v3244, %v3243
  %v3301 = vpack.c.b16 %v3246, %v3245
  %v3302 = vpack.c.b16 %v3248, %v3247
  %v3303 = vpack.c.b16 %v3250, %v3249
  %v3304 = vpack.c.b16 %v3252, %v3251
  %v3305 = vpack.c.b16 %v3254, %v3253
  %v3306 = vpack.c.b16 %v3256, %v3255
  %v3307 = vpack.c.b16 %v3258, %v3257
  %v3308 = vpack.c.b16 %v3260, %v3259
  %v3309 = vpack.c.b16 %v3262, %v3261
  %v3310 = vpack.c.b16 %v3264, %v3263
  %v3311 = vpack.c.b16 %v3266, %v3265
  %v3312 = vpack.c.b16 %v3268, %v3267
  %v3313 = vpack.c.b16 %v3270, %v3269
  %v3314 = vpack.c.b16 %v3272, %v3271
  %v3315 = vpack.c.b16 %v3274, %v3273
  %v3316 = vpack.c.b16 %v3276, %v3275
  %v3317 = vpack.c.b16 %v3278, %v3277
  %v3318 = vpack.c.b16 %v3280, %v3279
  %v3319 = vpack.c.b16 %v3282, %v3281
  %v3320 = vpack.c.b16 %v3284, %v3283
  %v3321 = vpack.c.b16 %v3286, %v3285
  %v3322 = vpack.c.b16 %v3288, %v3287
  %v3323 = vpack.c.b16 %v3290, %v3289
  %v3324 = vpack.c.b16 %v3292, %v3291
  %v3330 = vunpack.c.l.b16 %v3160
  %v3331 = vunpack.c.l.b16 %v3161
  %v3332 = vunpack.c.l.b16 %v3162
  %v3333 = vunpack.c.l.b16 %v3163
  %v3334 = vunpack.c.l.b16 %v3164
  %v3335 = vpack.c.b16 %v3331, %v3330
  %v3336 = vpack.c.b16 %v3333, %v3332
  %v3337 = vpack.c.b16 %v3334, %v3334
  %v3341 = vsel %vm280, %v3293, 0
  %v3344 = vsel %vm280, %v3294, 0
  %v3347 = vsel %vm280, %v3295, 0
  %v3350 = vsel %vm280, %v3296, 0
  %v3353 = vsel %vm280, %v3297, 0
  %v3356 = vsel %vm280, %v3298, 0
  %v3359 = vsel %vm280, %v3299, 0
  %v3362 = vsel %vm280, %v3300, 0
  %v3365 = vsel %vm280, %v3301, 0
  %v3368 = vsel %vm280, %v3302, 0
  %v3371 = vsel %vm280, %v3303, 0
  %v3374 = vsel %vm280, %v3304, 0
  %v3377 = vsel %vm280, %v3305, 0
  %v3380 = vsel %vm280, %v3306, 0
  %v3383 = vsel %vm280, %v3307, 0
  %v3386 = vsel %vm280, %v3308, 0
  %v3389 = vsel %vm280, %v3309, 0
  %v3392 = vsel %vm280, %v3310, 0
  %v3395 = vsel %vm280, %v3311, 0
  %v3398 = vsel %vm280, %v3312, 0
  %v3401 = vsel %vm280, %v3313, 0
  %v3404 = vsel %vm280, %v3314, 0
  %v3407 = vsel %vm280, %v3315, 0
  %v3410 = vsel %vm280, %v3316, 0
  %v3413 = vsel %vm280, %v3317, 0
  %v3416 = vsel %vm280, %v3318, 0
  %v3419 = vsel %vm280, %v3319, 0
  %v3422 = vsel %vm280, %v3320, 0
  %v3425 = vsel %vm280, %v3321, 0
  %v3428 = vsel %vm280, %v3322, 0
  %v3431 = vsel %vm280, %v3323, 0
  %v3434 = vsel %vm280, %v3324, 0
  %v3437 = vsel %vm377, %v3337, 0
  %3439 = vmatprep.subr.bf16.mxu0 0
  %3440 = vmatpush1.bf16.msra.mxu0 %v3335
  %3441 = vmatprep.subr.bf16.mxu0 0
  %3442 = vmatpush1.bf16.msra.mxu0 %v3336
  %3443 = vmatprep.subr.bf16.mxu0 0
  %3444 = vmatpush1.bf16.msra.mxu0 %v3437
  %3445 = vmatprep.subr.bf16.mxu0 0
  %3446 = vmatpush1.bf16.msra.mxu0 0
  %3447 = vmatprep.subr.bf16.mxu0 0
  %3448 = vmatpush1.bf16.msra.mxu0 0
  %3449 = vmatprep.subr.bf16.mxu0 0
  %3450 = vmatpush1.bf16.msra.mxu0 0
  %3451 = vmatprep.subr.bf16.mxu0 0
  %3452 = vmatpush1.bf16.msra.mxu0 0
  %3453 = vmatprep.subr.bf16.mxu0 0
  %3454 = vmatpush1.bf16.msra.mxu0 0
  %3455 = vmatprep.subr.bf16.mxu0 0
  %3456 = vmatpush1.bf16.msra.mxu0 0
  %3457 = vmatprep.subr.bf16.mxu0 0
  %3458 = vmatpush1.bf16.msra.mxu0 0
  %3459 = vmatprep.subr.bf16.mxu0 0
  %3460 = vmatpush1.bf16.msra.mxu0 0
  %3461 = vmatprep.subr.bf16.mxu0 0
  %3462 = vmatpush1.bf16.msra.mxu0 0
  %3463 = vmatprep.subr.bf16.mxu0 0
  %3464 = vmatpush1.bf16.msra.mxu0 0
  %3465 = vmatprep.subr.bf16.mxu0 0
  %3466 = vmatpush1.bf16.msra.mxu0 0
  %3467 = vmatprep.subr.bf16.mxu0 0
  %3468 = vmatpush1.bf16.msra.mxu0 0
  %3469 = vmatprep.subr.bf16.mxu0 0
  %3470 = vmatpush1.bf16.msra.mxu0 0
  %3471 = vmatprep.mubr.bf16.mxu0 0
  %3472 = vmatmul.mubr.bf16.gmra.mrb[0].mxu0 %v3341
  %v3473 = vpop.f32.mrb[0].mxu0
  %v3474 = vadd.f32 0.0, %v3473
  %v3475 = vpop.f32.mrb[0].mxu0
  %v3476 = vpop.f32.mrb[0].mxu0
  %v3477 = vadd.f32 0.0, %v3476
  %v3478 = vpop.f32.mrb[0].mxu0
  %3479 = vmatprep.mubr.bf16.mxu0 0
  %3480 = vmatmul.mubr.bf16.gmra.mrb[0].mxu0 %v3344
  %v3481 = vpop.f32.mrb[0].mxu0
  %v3482 = vadd.f32 0.0, %v3481
  %v3483 = vpop.f32.mrb[0].mxu0
  %v3484 = vpop.f32.mrb[0].mxu0
  %v3485 = vadd.f32 0.0, %v3484
  %v3486 = vpop.f32.mrb[0].mxu0
  %3487 = vmatprep.mubr.bf16.mxu0 0
  %3488 = vmatmul.mubr.bf16.gmra.mrb[0].mxu0 %v3347
  %v3489 = vpop.f32.mrb[0].mxu0
  %v3490 = vadd.f32 0.0, %v3489
  %v3491 = vpop.f32.mrb[0].mxu0
  %v3492 = vpop.f32.mrb[0].mxu0
  %v3493 = vadd.f32 0.0, %v3492
  %v3494 = vpop.f32.mrb[0].mxu0
  %3495 = vmatprep.mubr.bf16.mxu0 0
  %3496 = vmatmul.mubr.bf16.gmra.mrb[0].mxu0 %v3350
  %v3497 = vpop.f32.mrb[0].mxu0
  %v3498 = vadd.f32 0.0, %v3497
  %v3499 = vpop.f32.mrb[0].mxu0
  %v3500 = vpop.f32.mrb[0].mxu0
  %v3501 = vadd.f32 0.0, %v3500
  %v3502 = vpop.f32.mrb[0].mxu0
  %3503 = vmatprep.mubr.bf16.mxu0 0
  %3504 = vmatmul.mubr.bf16.gmra.mrb[0].mxu0 %v3353
  %v3505 = vpop.f32.mrb[0].mxu0
  %v3506 = vadd.f32 0.0, %v3505
  %v3507 = vpop.f32.mrb[0].mxu0
  %v3508 = vpop.f32.mrb[0].mxu0
  %v3509 = vadd.f32 0.0, %v3508
  %v3510 = vpop.f32.mrb[0].mxu0
  %3511 = vmatprep.mubr.bf16.mxu0 0
  %3512 = vmatmul.mubr.bf16.gmra.mrb[0].mxu0 %v3356
  %v3513 = vpop.f32.mrb[0].mxu0
  %v3514 = vadd.f32 0.0, %v3513
  %v3515 = vpop.f32.mrb[0].mxu0
  %v3516 = vpop.f32.mrb[0].mxu0
  %v3517 = vadd.f32 0.0, %v3516
  %v3518 = vpop.f32.mrb[0].mxu0
  %3519 = vmatprep.mubr.bf16.mxu0 0
  %3520 = vmatmul.mubr.bf16.gmra.mrb[0].mxu0 %v3359
  %v3521 = vpop.f32.mrb[0].mxu0
  %v3522 = vadd.f32 0.0, %v3521
  %v3523 = vpop.f32.mrb[0].mxu0
  %v3524 = vpop.f32.mrb[0].mxu0
  %v3525 = vadd.f32 0.0, %v3524
  %v3526 = vpop.f32.mrb[0].mxu0
  %3527 = vmatprep.mubr.bf16.mxu0 0
  %3528 = vmatmul.mubr.bf16.gmra.mrb[0].mxu0 %v3362
  %v3529 = vpop.f32.mrb[0].mxu0
  %v3530 = vadd.f32 0.0, %v3529
  %v3531 = vpop.f32.mrb[0].mxu0
  %v3532 = vpop.f32.mrb[0].mxu0
  %v3533 = vadd.f32 0.0, %v3532
  %v3534 = vpop.f32.mrb[0].mxu0
  %3535 = vmatprep.mubr.bf16.mxu0 0
  %3536 = vmatmul.mubr.bf16.gmra.mrb[0].mxu0 %v3365
  %v3537 = vpop.f32.mrb[0].mxu0
  %v3538 = vadd.f32 0.0, %v3537
  %v3539 = vpop.f32.mrb[0].mxu0
  %v3540 = vpop.f32.mrb[0].mxu0
  %v3541 = vadd.f32 0.0, %v3540
  %v3542 = vpop.f32.mrb[0].mxu0
  %3543 = vmatprep.mubr.bf16.mxu0 0
  %3544 = vmatmul.mubr.bf16.gmra.mrb[0].mxu0 %v3368
  %v3545 = vpop.f32.mrb[0].mxu0
  %v3546 = vadd.f32 0.0, %v3545
  %v3547 = vpop.f32.mrb[0].mxu0
  %v3548 = vpop.f32.mrb[0].mxu0
  %v3549 = vadd.f32 0.0, %v3548
  %v3550 = vpop.f32.mrb[0].mxu0
  %3551 = vmatprep.mubr.bf16.mxu0 0
  %3552 = vmatmul.mubr.bf16.gmra.mrb[0].mxu0 %v3371
  %v3553 = vpop.f32.mrb[0].mxu0
  %v3554 = vadd.f32 0.0, %v3553
  %v3555 = vpop.f32.mrb[0].mxu0
  %v3556 = vpop.f32.mrb[0].mxu0
  %v3557 = vadd.f32 0.0, %v3556
  %v3558 = vpop.f32.mrb[0].mxu0
  %3559 = vmatprep.mubr.bf16.mxu0 0
  %3560 = vmatmul.mubr.bf16.gmra.mrb[0].mxu0 %v3374
  %v3561 = vpop.f32.mrb[0].mxu0
  %v3562 = vadd.f32 0.0, %v3561
  %v3563 = vpop.f32.mrb[0].mxu0
  %v3564 = vpop.f32.mrb[0].mxu0
  %v3565 = vadd.f32 0.0, %v3564
  %v3566 = vpop.f32.mrb[0].mxu0
  %3567 = vmatprep.mubr.bf16.mxu0 0
  %3568 = vmatmul.mubr.bf16.gmra.mrb[0].mxu0 %v3377
  %v3569 = vpop.f32.mrb[0].mxu0
  %v3570 = vadd.f32 0.0, %v3569
  %v3571 = vpop.f32.mrb[0].mxu0
  %v3572 = vpop.f32.mrb[0].mxu0
  %v3573 = vadd.f32 0.0, %v3572
  %v3574 = vpop.f32.mrb[0].mxu0
  %3575 = vmatprep.mubr.bf16.mxu0 0
  %3576 = vmatmul.mubr.bf16.gmra.mrb[0].mxu0 %v3380
  %v3577 = vpop.f32.mrb[0].mxu0
  %v3578 = vadd.f32 0.0, %v3577
  %v3579 = vpop.f32.mrb[0].mxu0
  %v3580 = vpop.f32.mrb[0].mxu0
  %v3581 = vadd.f32 0.0, %v3580
  %v3582 = vpop.f32.mrb[0].mxu0
  %3583 = vmatprep.mubr.bf16.mxu0 0
  %3584 = vmatmul.mubr.bf16.gmra.mrb[0].mxu0 %v3383
  %v3585 = vpop.f32.mrb[0].mxu0
  %v3586 = vadd.f32 0.0, %v3585
  %v3587 = vpop.f32.mrb[0].mxu0
  %v3588 = vpop.f32.mrb[0].mxu0
  %v3589 = vadd.f32 0.0, %v3588
  %v3590 = vpop.f32.mrb[0].mxu0
  %3591 = vmatprep.mubr.bf16.mxu0 0
  %3592 = vmatmul.mubr.bf16.gmra.mrb[0].mxu0 %v3386
  %v3593 = vpop.f32.mrb[0].mxu0
  %v3594 = vadd.f32 0.0, %v3593
  %v3595 = vpop.f32.mrb[0].mxu0
  %v3596 = vpop.f32.mrb[0].mxu0
  %v3597 = vadd.f32 0.0, %v3596
  %v3598 = vpop.f32.mrb[0].mxu0
  %3599 = vmatprep.mubr.bf16.mxu0 0
  %3600 = vmatmul.mubr.bf16.gmra.mrb[0].mxu0 %v3389
  %v3601 = vpop.f32.mrb[0].mxu0
  %v3602 = vadd.f32 0.0, %v3601
  %v3603 = vpop.f32.mrb[0].mxu0
  %v3604 = vpop.f32.mrb[0].mxu0
  %v3605 = vadd.f32 0.0, %v3604
  %v3606 = vpop.f32.mrb[0].mxu0
  %3607 = vmatprep.mubr.bf16.mxu0 0
  %3608 = vmatmul.mubr.bf16.gmra.mrb[0].mxu0 %v3392
  %v3609 = vpop.f32.mrb[0].mxu0
  %v3610 = vadd.f32 0.0, %v3609
  %v3611 = vpop.f32.mrb[0].mxu0
  %v3612 = vpop.f32.mrb[0].mxu0
  %v3613 = vadd.f32 0.0, %v3612
  %v3614 = vpop.f32.mrb[0].mxu0
  %3615 = vmatprep.mubr.bf16.mxu0 0
  %3616 = vmatmul.mubr.bf16.gmra.mrb[0].mxu0 %v3395
  %v3617 = vpop.f32.mrb[0].mxu0
  %v3618 = vadd.f32 0.0, %v3617
  %v3619 = vpop.f32.mrb[0].mxu0
  %v3620 = vpop.f32.mrb[0].mxu0
  %v3621 = vadd.f32 0.0, %v3620
  %v3622 = vpop.f32.mrb[0].mxu0
  %3623 = vmatprep.mubr.bf16.mxu0 0
  %3624 = vmatmul.mubr.bf16.gmra.mrb[0].mxu0 %v3398
  %v3625 = vpop.f32.mrb[0].mxu0
  %v3626 = vadd.f32 0.0, %v3625
  %v3627 = vpop.f32.mrb[0].mxu0
  %v3628 = vpop.f32.mrb[0].mxu0
  %v3629 = vadd.f32 0.0, %v3628
  %v3630 = vpop.f32.mrb[0].mxu0
  %3631 = vmatprep.mubr.bf16.mxu0 0
  %3632 = vmatmul.mubr.bf16.gmra.mrb[0].mxu0 %v3401
  %v3633 = vpop.f32.mrb[0].mxu0
  %v3634 = vadd.f32 0.0, %v3633
  %v3635 = vpop.f32.mrb[0].mxu0
  %v3636 = vpop.f32.mrb[0].mxu0
  %v3637 = vadd.f32 0.0, %v3636
  %v3638 = vpop.f32.mrb[0].mxu0
  %3639 = vmatprep.mubr.bf16.mxu0 0
  %3640 = vmatmul.mubr.bf16.gmra.mrb[0].mxu0 %v3404
  %v3641 = vpop.f32.mrb[0].mxu0
  %v3642 = vadd.f32 0.0, %v3641
  %v3643 = vpop.f32.mrb[0].mxu0
  %v3644 = vpop.f32.mrb[0].mxu0
  %v3645 = vadd.f32 0.0, %v3644
  %v3646 = vpop.f32.mrb[0].mxu0
  %3647 = vmatprep.mubr.bf16.mxu0 0
  %3648 = vmatmul.mubr.bf16.gmra.mrb[0].mxu0 %v3407
  %v3649 = vpop.f32.mrb[0].mxu0
  %v3650 = vadd.f32 0.0, %v3649
  %v3651 = vpop.f32.mrb[0].mxu0
  %v3652 = vpop.f32.mrb[0].mxu0
  %v3653 = vadd.f32 0.0, %v3652
  %v3654 = vpop.f32.mrb[0].mxu0
  %3655 = vmatprep.mubr.bf16.mxu0 0
  %3656 = vmatmul.mubr.bf16.gmra.mrb[0].mxu0 %v3410
  %v3657 = vpop.f32.mrb[0].mxu0
  %v3658 = vadd.f32 0.0, %v3657
  %v3659 = vpop.f32.mrb[0].mxu0
  %v3660 = vpop.f32.mrb[0].mxu0
  %v3661 = vadd.f32 0.0, %v3660
  %v3662 = vpop.f32.mrb[0].mxu0
  %3663 = vmatprep.mubr.bf16.mxu0 0
  %3664 = vmatmul.mubr.bf16.gmra.mrb[0].mxu0 %v3413
  %v3665 = vpop.f32.mrb[0].mxu0
  %v3666 = vadd.f32 0.0, %v3665
  %v3667 = vpop.f32.mrb[0].mxu0
  %v3668 = vpop.f32.mrb[0].mxu0
  %v3669 = vadd.f32 0.0, %v3668
  %v3670 = vpop.f32.mrb[0].mxu0
  %3671 = vmatprep.mubr.bf16.mxu0 0
  %3672 = vmatmul.mubr.bf16.gmra.mrb[0].mxu0 %v3416
  %v3673 = vpop.f32.mrb[0].mxu0
  %v3674 = vadd.f32 0.0, %v3673
  %v3675 = vpop.f32.mrb[0].mxu0
  %v3676 = vpop.f32.mrb[0].mxu0
  %v3677 = vadd.f32 0.0, %v3676
  %v3678 = vpop.f32.mrb[0].mxu0
  %3679 = vmatprep.mubr.bf16.mxu0 0
  %3680 = vmatmul.mubr.bf16.gmra.mrb[0].mxu0 %v3419
  %v3681 = vpop.f32.mrb[0].mxu0
  %v3682 = vadd.f32 0.0, %v3681
  %v3683 = vpop.f32.mrb[0].mxu0
  %v3684 = vpop.f32.mrb[0].mxu0
  %v3685 = vadd.f32 0.0, %v3684
  %v3686 = vpop.f32.mrb[0].mxu0
  %3687 = vmatprep.mubr.bf16.mxu0 0
  %3688 = vmatmul.mubr.bf16.gmra.mrb[0].mxu0 %v3422
  %v3689 = vpop.f32.mrb[0].mxu0
  %v3690 = vadd.f32 0.0, %v3689
  %v3691 = vpop.f32.mrb[0].mxu0
  %v3692 = vpop.f32.mrb[0].mxu0
  %v3693 = vadd.f32 0.0, %v3692
  %v3694 = vpop.f32.mrb[0].mxu0
  %3695 = vmatprep.mubr.bf16.mxu0 0
  %3696 = vmatmul.mubr.bf16.gmra.mrb[0].mxu0 %v3425
  %v3697 = vpop.f32.mrb[0].mxu0
  %v3698 = vadd.f32 0.0, %v3697
  %v3699 = vpop.f32.mrb[0].mxu0
  %v3700 = vpop.f32.mrb[0].mxu0
  %v3701 = vadd.f32 0.0, %v3700
  %v3702 = vpop.f32.mrb[0].mxu0
  %3703 = vmatprep.mubr.bf16.mxu0 0
  %3704 = vmatmul.mubr.bf16.gmra.mrb[0].mxu0 %v3428
  %v3705 = vpop.f32.mrb[0].mxu0
  %v3706 = vadd.f32 0.0, %v3705
  %v3707 = vpop.f32.mrb[0].mxu0
  %v3708 = vpop.f32.mrb[0].mxu0
  %v3709 = vadd.f32 0.0, %v3708
  %v3710 = vpop.f32.mrb[0].mxu0
  %3711 = vmatprep.mubr.bf16.mxu0 0
  %3712 = vmatmul.mubr.bf16.gmra.mrb[0].mxu0 %v3431
  %v3713 = vpop.f32.mrb[0].mxu0
  %v3714 = vadd.f32 0.0, %v3713
  %v3715 = vpop.f32.mrb[0].mxu0
  %v3716 = vpop.f32.mrb[0].mxu0
  %v3717 = vadd.f32 0.0, %v3716
  %v3718 = vpop.f32.mrb[0].mxu0
  %3719 = vmatprep.mubr.bf16.mxu0 0
  %3720 = vmatmul.mubr.bf16.gmra.mrb[0].mxu0 %v3434
  %v3721 = vpop.f32.mrb[0].mxu0
  %v3722 = vadd.f32 0.0, %v3721
  %v3723 = vpop.f32.mrb[0].mxu0
  %v3724 = vpop.f32.mrb[0].mxu0
  %v3725 = vadd.f32 0.0, %v3724
  %v3726 = vpop.f32.mrb[0].mxu0
  %3727 = vdwg.mxu0
  %v3728 = vadd.f32 %v3030, %v3474
  %v3729 = vadd.f32 %v3031, %v3477
  %v3730 = vadd.f32 %v3032, %v3482
  %v3731 = vadd.f32 %v3033, %v3485
  %v3732 = vadd.f32 %v3034, %v3490
  %v3733 = vadd.f32 %v3035, %v3493
  %v3734 = vadd.f32 %v3036, %v3498
  %v3735 = vadd.f32 %v3037, %v3501
  %v3736 = vadd.f32 %v3038, %v3506
  %v3737 = vadd.f32 %v3039, %v3509
  %v3738 = vadd.f32 %v3040, %v3514
  %v3739 = vadd.f32 %v3041, %v3517
  %v3740 = vadd.f32 %v3042, %v3522
  %v3741 = vadd.f32 %v3043, %v3525
  %v3742 = vadd.f32 %v3044, %v3530
  %v3743 = vadd.f32 %v3045, %v3533
  %v3744 = vadd.f32 %v3046, %v3538
  %v3745 = vadd.f32 %v3047, %v3541
  %v3746 = vadd.f32 %v3048, %v3546
  %v3747 = vadd.f32 %v3049, %v3549
  %v3748 = vadd.f32 %v3050, %v3554
  %v3749 = vadd.f32 %v3051, %v3557
  %v3750 = vadd.f32 %v3052, %v3562
  %v3751 = vadd.f32 %v3053, %v3565
  %v3752 = vadd.f32 %v3054, %v3570
  %v3753 = vadd.f32 %v3055, %v3573
  %v3754 = vadd.f32 %v3056, %v3578
  %v3755 = vadd.f32 %v3057, %v3581
  %v3756 = vadd.f32 %v3058, %v3586
  %v3757 = vadd.f32 %v3059, %v3589
  %v3758 = vadd.f32 %v3060, %v3594
  %v3759 = vadd.f32 %v3061, %v3597
  %v3760 = vadd.f32 %v3062, %v3602
  %v3761 = vadd.f32 %v3063, %v3605
  %v3762 = vadd.f32 %v3064, %v3610
  %v3763 = vadd.f32 %v3065, %v3613
  %v3764 = vadd.f32 %v3066, %v3618
  %v3765 = vadd.f32 %v3067, %v3621
  %v3766 = vadd.f32 %v3068, %v3626
  %v3767 = vadd.f32 %v3069, %v3629
  %v3768 = vadd.f32 %v3070, %v3634
  %v3769 = vadd.f32 %v3071, %v3637
  %v3770 = vadd.f32 %v3072, %v3642
  %v3771 = vadd.f32 %v3073, %v3645
  %v3772 = vadd.f32 %v3074, %v3650
  %v3773 = vadd.f32 %v3075, %v3653
  %v3774 = vadd.f32 %v3076, %v3658
  %v3775 = vadd.f32 %v3077, %v3661
  %v3776 = vadd.f32 %v3078, %v3666
  %v3777 = vadd.f32 %v3079, %v3669
  %v3778 = vadd.f32 %v3080, %v3674
  %v3779 = vadd.f32 %v3081, %v3677
  %v3780 = vadd.f32 %v3082, %v3682
  %v3781 = vadd.f32 %v3083, %v3685
  %v3782 = vadd.f32 %v3084, %v3690
  %v3783 = vadd.f32 %v3085, %v3693
  %v3784 = vadd.f32 %v3086, %v3698
  %v3785 = vadd.f32 %v3087, %v3701
  %v3786 = vadd.f32 %v3088, %v3706
  %v3787 = vadd.f32 %v3089, %v3709
  %v3788 = vadd.f32 %v3090, %v3714
  %v3789 = vadd.f32 %v3091, %v3717
  %v3790 = vadd.f32 %v3092, %v3722
  %v3791 = vadd.f32 %v3093, %v3725
  %v3792 = vld [vmem:[%s3094] sm:$0xf]
  %v3793 = vld [vmem:[%s3094 + $0x4] sm:$0xf]
  %v3794 = vld [vmem:[%s3094 + $0x8] sm:$0x1]
  %v3795 = vld [vmem:[%s3094 + $0xc] sm:$0xf]
  %v3796 = vld [vmem:[%s3094 + $0x10] sm:$0xf]
  %v3797 = vld [vmem:[%s3094 + $0x14] sm:$0x1]
  %v3798 = vld [vmem:[%s3094 + $0x18] sm:$0xf]
  %v3799 = vld [vmem:[%s3094 + $0x1c] sm:$0xf]
  %v3800 = vld [vmem:[%s3094 + $0x20] sm:$0x1]
  %v3801 = vld [vmem:[%s3094 + $0x24] sm:$0xf]
  %v3802 = vld [vmem:[%s3094 + $0x28] sm:$0xf]
  %v3803 = vld [vmem:[%s3094 + $0x2c] sm:$0x1]
  %v3804 = vld [vmem:[%s3094 + $0x30] sm:$0xf]
  %v3805 = vld [vmem:[%s3094 + $0x34] sm:$0xf]
  %v3806 = vld [vmem:[%s3094 + $0x38] sm:$0x1]
  %v3807 = vld [vmem:[%s3094 + $0x3c] sm:$0xf]
  %v3808 = vld [vmem:[%s3094 + $0x40] sm:$0xf]
  %v3809 = vld [vmem:[%s3094 + $0x44] sm:$0x1]
  %v3810 = vld [vmem:[%s3094 + $0x48] sm:$0xf]
  %v3811 = vld [vmem:[%s3094 + $0x4c] sm:$0xf]
  %v3812 = vld [vmem:[%s3094 + $0x50] sm:$0x1]
  %v3813 = vld [vmem:[%s3094 + $0x54] sm:$0xf]
  %v3814 = vld [vmem:[%s3094 + $0x58] sm:$0xf]
  %v3815 = vld [vmem:[%s3094 + $0x5c] sm:$0x1]
  %v3816 = vld [vmem:[%s3094 + $0x60] sm:$0xf]
  %v3817 = vld [vmem:[%s3094 + $0x64] sm:$0xf]
  %v3818 = vld [vmem:[%s3094 + $0x68] sm:$0x1]
  %v3819 = vld [vmem:[%s3094 + $0x6c] sm:$0xf]
  %v3820 = vld [vmem:[%s3094 + $0x70] sm:$0xf]
  %v3821 = vld [vmem:[%s3094 + $0x74] sm:$0x1]
  %v3822 = vld [vmem:[%s3094 + $0x78] sm:$0xf]
  %v3823 = vld [vmem:[%s3094 + $0x7c] sm:$0xf]
  %v3824 = vld [vmem:[%s3094 + $0x80] sm:$0x1]
  %v3825 = vld [vmem:[%s3094 + $0x84] sm:$0xf]
  %v3826 = vld [vmem:[%s3094 + $0x88] sm:$0xf]
  %v3827 = vld [vmem:[%s3094 + $0x8c] sm:$0x1]
  %v3828 = vld [vmem:[%s3094 + $0x90] sm:$0xf]
  %v3829 = vld [vmem:[%s3094 + $0x94] sm:$0xf]
  %v3830 = vld [vmem:[%s3094 + $0x98] sm:$0x1]
  %v3831 = vld [vmem:[%s3094 + $0x9c] sm:$0xf]
  %v3832 = vld [vmem:[%s3094 + $0xa0] sm:$0xf]
  %v3833 = vld [vmem:[%s3094 + $0xa4] sm:$0x1]
  %v3834 = vld [vmem:[%s3094 + $0xa8] sm:$0xf]
  %v3835 = vld [vmem:[%s3094 + $0xac] sm:$0xf]
  %v3836 = vld [vmem:[%s3094 + $0xb0] sm:$0x1]
  %v3837 = vld [vmem:[%s3094 + $0xb4] sm:$0xf]
  %v3838 = vld [vmem:[%s3094 + $0xb8] sm:$0xf]
  %v3839 = vld [vmem:[%s3094 + $0xbc] sm:$0x1]
  %v3840 = vld [vmem:[%s3094 + $0xd8] sm:$0xf]
  %v3841 = vld [vmem:[%s3094 + $0xdc] sm:$0xf]
  %v3842 = vld [vmem:[%s3094 + $0xe0] sm:$0x1]
  %v3843 = vld [vmem:[%s3094 + $0xe4] sm:$0xf]
  %v3844 = vld [vmem:[%s3094 + $0xe8] sm:$0xf]
  %v3845 = vld [vmem:[%s3094 + $0xec] sm:$0x1]
  %v3846 = vld [vmem:[%s3094 + $0xf0] sm:$0xf]
  %v3847 = vld [vmem:[%s3094 + $0xf4] sm:$0xf]
  %v3848 = vld [vmem:[%s3094 + $0xf8] sm:$0x1]
  %v3849 = vld [vmem:[%s3094 + $0xfc] sm:$0xf]
  %v3850 = vld [vmem:[%s3094 + $0x100] sm:$0xf]
  %v3851 = vld [vmem:[%s3094 + $0x104] sm:$0x1]
  %v3852 = vld [vmem:[%s3094 + $0x108] sm:$0xf]
  %v3853 = vld [vmem:[%s3094 + $0x10c] sm:$0xf]
  %v3854 = vld [vmem:[%s3094 + $0x110] sm:$0x1]
  %v3855 = vld [vmem:[%s3094 + $0x114] sm:$0xf]
  %v3856 = vld [vmem:[%s3094 + $0x118] sm:$0xf]
  %v3857 = vld [vmem:[%s3094 + $0x11c] sm:$0x1]
  %v3858 = vld [vmem:[%s3094 + $0x120] sm:$0xf]
  %v3859 = vld [vmem:[%s3094 + $0x124] sm:$0xf]
  %v3860 = vld [vmem:[%s3094 + $0x128] sm:$0x1]
  %v3861 = vld [vmem:[%s3094 + $0x12c] sm:$0xf]
  %v3862 = vld [vmem:[%s3094 + $0x130] sm:$0xf]
  %v3863 = vld [vmem:[%s3094 + $0x134] sm:$0x1]
  %v3864 = vld [vmem:[%s3094 + $0x138] sm:$0xf]
  %v3865 = vld [vmem:[%s3094 + $0x13c] sm:$0xf]
  %v3866 = vld [vmem:[%s3094 + $0x140] sm:$0x1]
  %v3867 = vld [vmem:[%s3094 + $0x144] sm:$0xf]
  %v3868 = vld [vmem:[%s3094 + $0x148] sm:$0xf]
  %v3869 = vld [vmem:[%s3094 + $0x14c] sm:$0x1]
  %v3870 = vld [vmem:[%s3094 + $0x150] sm:$0xf]
  %v3871 = vld [vmem:[%s3094 + $0x154] sm:$0xf]
  %v3872 = vld [vmem:[%s3094 + $0x158] sm:$0x1]
  %v3873 = vld [vmem:[%s3094 + $0x15c] sm:$0xf]
  %v3874 = vld [vmem:[%s3094 + $0x160] sm:$0xf]
  %v3875 = vld [vmem:[%s3094 + $0x164] sm:$0x1]
  %v3876 = vld [vmem:[%s3094 + $0x168] sm:$0xf]
  %v3877 = vld [vmem:[%s3094 + $0x16c] sm:$0xf]
  %v3878 = vld [vmem:[%s3094 + $0x170] sm:$0x1]
  %v3879 = vld [vmem:[%s3094 + $0x174] sm:$0xf]
  %v3880 = vld [vmem:[%s3094 + $0x178] sm:$0xf]
  %v3881 = vld [vmem:[%s3094 + $0x17c] sm:$0x1]
  %v3882 = vld [vmem:[%s3094 + $0x180] sm:$0xf]
  %v3883 = vld [vmem:[%s3094 + $0x184] sm:$0xf]
  %v3884 = vld [vmem:[%s3094 + $0x188] sm:$0x1]
  %v3885 = vld [vmem:[%s3094 + $0x18c] sm:$0xf]
  %v3886 = vld [vmem:[%s3094 + $0x190] sm:$0xf]
  %v3887 = vld [vmem:[%s3094 + $0x194] sm:$0x1]
  %v3889 = vshrl.u32 %v3792, 16
  %v3891 = vrot.slane %v3889, 4
  %v3892 = vshll.u32 %v3792, 16
  %v3894 = vrot.slane %v3892, 5
  %v3895 = vor.u32 %v3891, %v3894
  %v3896 = vrot.slane %v3895, 4
  %v3898 = vshll.u32 %v3793, 16
  %v3900 = vrot.slane %v3898, 5
  %v3901 = vsel %vm832, %v3896, %v3900
  %v3902 = vshrl.u32 %v3793, 16
  %v3904 = vrot.slane %v3902, 4
  %v3905 = vor.u32 %v3904, %v3900
  %v3906 = vrot.slane %v3905, 4
  %v3908 = vshll.u32 %v3794, 16
  %v3910 = vrot.slane %v3908, 5
  %v3911 = vsel %vm832, %v3906, %v3910
  %v3913 = vshrl.u32 %v3795, 16
  %v3915 = vrot.slane %v3913, 4
  %v3916 = vshll.u32 %v3795, 16
  %v3918 = vrot.slane %v3916, 5
  %v3919 = vor.u32 %v3915, %v3918
  %v3920 = vrot.slane %v3919, 4
  %v3922 = vshll.u32 %v3796, 16
  %v3924 = vrot.slane %v3922, 5
  %v3925 = vsel %vm832, %v3920, %v3924
  %v3926 = vshrl.u32 %v3796, 16
  %v3928 = vrot.slane %v3926, 4
  %v3929 = vor.u32 %v3928, %v3924
  %v3930 = vrot.slane %v3929, 4
  %v3932 = vshll.u32 %v3797, 16
  %v3934 = vrot.slane %v3932, 5
  %v3935 = vsel %vm832, %v3930, %v3934
  %v3937 = vshrl.u32 %v3798, 16
  %v3939 = vrot.slane %v3937, 4
  %v3940 = vshll.u32 %v3798, 16
  %v3942 = vrot.slane %v3940, 5
  %v3943 = vor.u32 %v3939, %v3942
  %v3944 = vrot.slane %v3943, 4
  %v3946 = vshll.u32 %v3799, 16
  %v3948 = vrot.slane %v3946, 5
  %v3949 = vsel %vm832, %v3944, %v3948
  %v3950 = vshrl.u32 %v3799, 16
  %v3952 = vrot.slane %v3950, 4
  %v3953 = vor.u32 %v3952, %v3948
  %v3954 = vrot.slane %v3953, 4
  %v3956 = vshll.u32 %v3800, 16
  %v3958 = vrot.slane %v3956, 5
  %v3959 = vsel %vm832, %v3954, %v3958
  %v3961 = vshrl.u32 %v3801, 16
  %v3963 = vrot.slane %v3961, 4
  %v3964 = vshll.u32 %v3801, 16
  %v3966 = vrot.slane %v3964, 5
  %v3967 = vor.u32 %v3963, %v3966
  %v3968 = vrot.slane %v3967, 4
  %v3970 = vshll.u32 %v3802, 16
  %v3972 = vrot.slane %v3970, 5
  %v3973 = vsel %vm832, %v3968, %v3972
  %v3974 = vshrl.u32 %v3802, 16
  %v3976 = vrot.slane %v3974, 4
  %v3977 = vor.u32 %v3976, %v3972
  %v3978 = vrot.slane %v3977, 4
  %v3980 = vshll.u32 %v3803, 16
  %v3982 = vrot.slane %v3980, 5
  %v3983 = vsel %vm832, %v3978, %v3982
  %v3985 = vshrl.u32 %v3804, 16
  %v3987 = vrot.slane %v3985, 4
  %v3988 = vshll.u32 %v3804, 16
  %v3990 = vrot.slane %v3988, 5
  %v3991 = vor.u32 %v3987, %v3990
  %v3992 = vrot.slane %v3991, 4
  %v3994 = vshll.u32 %v3805, 16
  %v3996 = vrot.slane %v3994, 5
  %v3997 = vsel %vm832, %v3992, %v3996
  %v3998 = vshrl.u32 %v3805, 16
  %v4000 = vrot.slane %v3998, 4
  %v4001 = vor.u32 %v4000, %v3996
  %v4002 = vrot.slane %v4001, 4
  %v4004 = vshll.u32 %v3806, 16
  %v4006 = vrot.slane %v4004, 5
  %v4007 = vsel %vm832, %v4002, %v4006
  %v4009 = vshrl.u32 %v3807, 16
  %v4011 = vrot.slane %v4009, 4
  %v4012 = vshll.u32 %v3807, 16
  %v4014 = vrot.slane %v4012, 5
  %v4015 = vor.u32 %v4011, %v4014
  %v4016 = vrot.slane %v4015, 4
  %v4018 = vshll.u32 %v3808, 16
  %v4020 = vrot.slane %v4018, 5
  %v4021 = vsel %vm832, %v4016, %v4020
  %v4022 = vshrl.u32 %v3808, 16
  %v4024 = vrot.slane %v4022, 4
  %v4025 = vor.u32 %v4024, %v4020
  %v4026 = vrot.slane %v4025, 4
  %v4028 = vshll.u32 %v3809, 16
  %v4030 = vrot.slane %v4028, 5
  %v4031 = vsel %vm832, %v4026, %v4030
  %v4033 = vshrl.u32 %v3810, 16
  %v4035 = vrot.slane %v4033, 4
  %v4036 = vshll.u32 %v3810, 16
  %v4038 = vrot.slane %v4036, 5
  %v4039 = vor.u32 %v4035, %v4038
  %v4040 = vrot.slane %v4039, 4
  %v4042 = vshll.u32 %v3811, 16
  %v4044 = vrot.slane %v4042, 5
  %v4045 = vsel %vm832, %v4040, %v4044
  %v4046 = vshrl.u32 %v3811, 16
  %v4048 = vrot.slane %v4046, 4
  %v4049 = vor.u32 %v4048, %v4044
  %v4050 = vrot.slane %v4049, 4
  %v4052 = vshll.u32 %v3812, 16
  %v4054 = vrot.slane %v4052, 5
  %v4055 = vsel %vm832, %v4050, %v4054
  %v4057 = vshrl.u32 %v3813, 16
  %v4059 = vrot.slane %v4057, 4
  %v4060 = vshll.u32 %v3813, 16
  %v4062 = vrot.slane %v4060, 5
  %v4063 = vor.u32 %v4059, %v4062
  %v4064 = vrot.slane %v4063, 4
  %v4066 = vshll.u32 %v3814, 16
  %v4068 = vrot.slane %v4066, 5
  %v4069 = vsel %vm832, %v4064, %v4068
  %v4070 = vshrl.u32 %v3814, 16
  %v4072 = vrot.slane %v4070, 4
  %v4073 = vor.u32 %v4072, %v4068
  %v4074 = vrot.slane %v4073, 4
  %v4076 = vshll.u32 %v3815, 16
  %v4078 = vrot.slane %v4076, 5
  %v4079 = vsel %vm832, %v4074, %v4078
  %v4081 = vshrl.u32 %v3816, 16
  %v4083 = vrot.slane %v4081, 4
  %v4084 = vshll.u32 %v3816, 16
  %v4086 = vrot.slane %v4084, 5
  %v4087 = vor.u32 %v4083, %v4086
  %v4088 = vrot.slane %v4087, 4
  %v4090 = vshll.u32 %v3817, 16
  %v4092 = vrot.slane %v4090, 5
  %v4093 = vsel %vm832, %v4088, %v4092
  %v4094 = vshrl.u32 %v3817, 16
  %v4096 = vrot.slane %v4094, 4
  %v4097 = vor.u32 %v4096, %v4092
  %v4098 = vrot.slane %v4097, 4
  %v4100 = vshll.u32 %v3818, 16
  %v4102 = vrot.slane %v4100, 5
  %v4103 = vsel %vm832, %v4098, %v4102
  %v4105 = vshrl.u32 %v3819, 16
  %v4107 = vrot.slane %v4105, 4
  %v4108 = vshll.u32 %v3819, 16
  %v4110 = vrot.slane %v4108, 5
  %v4111 = vor.u32 %v4107, %v4110
  %v4112 = vrot.slane %v4111, 4
  %v4114 = vshll.u32 %v3820, 16
  %v4116 = vrot.slane %v4114, 5
  %v4117 = vsel %vm832, %v4112, %v4116
  %v4118 = vshrl.u32 %v3820, 16
  %v4120 = vrot.slane %v4118, 4
  %v4121 = vor.u32 %v4120, %v4116
  %v4122 = vrot.slane %v4121, 4
  %v4124 = vshll.u32 %v3821, 16
  %v4126 = vrot.slane %v4124, 5
  %v4127 = vsel %vm832, %v4122, %v4126
  %v4129 = vshrl.u32 %v3822, 16
  %v4131 = vrot.slane %v4129, 4
  %v4132 = vshll.u32 %v3822, 16
  %v4134 = vrot.slane %v4132, 5
  %v4135 = vor.u32 %v4131, %v4134
  %v4136 = vrot.slane %v4135, 4
  %v4138 = vshll.u32 %v3823, 16
  %v4140 = vrot.slane %v4138, 5
  %v4141 = vsel %vm832, %v4136, %v4140
  %v4142 = vshrl.u32 %v3823, 16
  %v4144 = vrot.slane %v4142, 4
  %v4145 = vor.u32 %v4144, %v4140
  %v4146 = vrot.slane %v4145, 4
  %v4148 = vshll.u32 %v3824, 16
  %v4150 = vrot.slane %v4148, 5
  %v4151 = vsel %vm832, %v4146, %v4150
  %v4153 = vshrl.u32 %v3825, 16
  %v4155 = vrot.slane %v4153, 4
  %v4156 = vshll.u32 %v3825, 16
  %v4158 = vrot.slane %v4156, 5
  %v4159 = vor.u32 %v4155, %v4158
  %v4160 = vrot.slane %v4159, 4
  %v4162 = vshll.u32 %v3826, 16
  %v4164 = vrot.slane %v4162, 5
  %v4165 = vsel %vm832, %v4160, %v4164
  %v4166 = vshrl.u32 %v3826, 16
  %v4168 = vrot.slane %v4166, 4
  %v4169 = vor.u32 %v4168, %v4164
  %v4170 = vrot.slane %v4169, 4
  %v4172 = vshll.u32 %v3827, 16
  %v4174 = vrot.slane %v4172, 5
  %v4175 = vsel %vm832, %v4170, %v4174
  %v4177 = vshrl.u32 %v3828, 16
  %v4179 = vrot.slane %v4177, 4
  %v4180 = vshll.u32 %v3828, 16
  %v4182 = vrot.slane %v4180, 5
  %v4183 = vor.u32 %v4179, %v4182
  %v4184 = vrot.slane %v4183, 4
  %v4186 = vshll.u32 %v3829, 16
  %v4188 = vrot.slane %v4186, 5
  %v4189 = vsel %vm832, %v4184, %v4188
  %v4190 = vshrl.u32 %v3829, 16
  %v4192 = vrot.slane %v4190, 4
  %v4193 = vor.u32 %v4192, %v4188
  %v4194 = vrot.slane %v4193, 4
  %v4196 = vshll.u32 %v3830, 16
  %v4198 = vrot.slane %v4196, 5
  %v4199 = vsel %vm832, %v4194, %v4198
  %v4201 = vshrl.u32 %v3831, 16
  %v4203 = vrot.slane %v4201, 4
  %v4204 = vshll.u32 %v3831, 16
  %v4206 = vrot.slane %v4204, 5
  %v4207 = vor.u32 %v4203, %v4206
  %v4208 = vrot.slane %v4207, 4
  %v4210 = vshll.u32 %v3832, 16
  %v4212 = vrot.slane %v4210, 5
  %v4213 = vsel %vm832, %v4208, %v4212
  %v4214 = vshrl.u32 %v3832, 16
  %v4216 = vrot.slane %v4214, 4
  %v4217 = vor.u32 %v4216, %v4212
  %v4218 = vrot.slane %v4217, 4
  %v4220 = vshll.u32 %v3833, 16
  %v4222 = vrot.slane %v4220, 5
  %v4223 = vsel %vm832, %v4218, %v4222
  %v4225 = vshrl.u32 %v3834, 16
  %v4227 = vrot.slane %v4225, 4
  %v4228 = vshll.u32 %v3834, 16
  %v4230 = vrot.slane %v4228, 5
  %v4231 = vor.u32 %v4227, %v4230
  %v4232 = vrot.slane %v4231, 4
  %v4234 = vshll.u32 %v3835, 16
  %v4236 = vrot.slane %v4234, 5
  %v4237 = vsel %vm832, %v4232, %v4236
  %v4238 = vshrl.u32 %v3835, 16
  %v4240 = vrot.slane %v4238, 4
  %v4241 = vor.u32 %v4240, %v4236
  %v4242 = vrot.slane %v4241, 4
  %v4244 = vshll.u32 %v3836, 16
  %v4246 = vrot.slane %v4244, 5
  %v4247 = vsel %vm832, %v4242, %v4246
  %v4249 = vshrl.u32 %v3837, 16
  %v4251 = vrot.slane %v4249, 4
  %v4252 = vshll.u32 %v3837, 16
  %v4254 = vrot.slane %v4252, 5
  %v4255 = vor.u32 %v4251, %v4254
  %v4256 = vrot.slane %v4255, 4
  %v4258 = vshll.u32 %v3838, 16
  %v4260 = vrot.slane %v4258, 5
  %v4261 = vsel %vm832, %v4256, %v4260
  %v4262 = vshrl.u32 %v3838, 16
  %v4264 = vrot.slane %v4262, 4
  %v4265 = vor.u32 %v4264, %v4260
  %v4266 = vrot.slane %v4265, 4
  %v4268 = vshll.u32 %v3839, 16
  %v4270 = vrot.slane %v4268, 5
  %v4271 = vsel %vm832, %v4266, %v4270
  %v4273 = vshrl.u32 %v3840, 16
  %v4275 = vrot.slane %v4273, 4
  %v4276 = vshll.u32 %v3840, 16
  %v4278 = vrot.slane %v4276, 5
  %v4279 = vor.u32 %v4275, %v4278
  %v4280 = vrot.slane %v4279, 4
  %v4282 = vshll.u32 %v3841, 16
  %v4284 = vrot.slane %v4282, 5
  %v4285 = vsel %vm832, %v4280, %v4284
  %v4286 = vshrl.u32 %v3841, 16
  %v4288 = vrot.slane %v4286, 4
  %v4289 = vor.u32 %v4288, %v4284
  %v4290 = vrot.slane %v4289, 4
  %v4292 = vshll.u32 %v3842, 16
  %v4294 = vrot.slane %v4292, 5
  %v4295 = vsel %vm832, %v4290, %v4294
  %v4297 = vshrl.u32 %v3843, 16
  %v4299 = vrot.slane %v4297, 4
  %v4300 = vshll.u32 %v3843, 16
  %v4302 = vrot.slane %v4300, 5
  %v4303 = vor.u32 %v4299, %v4302
  %v4304 = vrot.slane %v4303, 4
  %v4306 = vshll.u32 %v3844, 16
  %v4308 = vrot.slane %v4306, 5
  %v4309 = vsel %vm832, %v4304, %v4308
  %v4310 = vshrl.u32 %v3844, 16
  %v4312 = vrot.slane %v4310, 4
  %v4313 = vor.u32 %v4312, %v4308
  %v4314 = vrot.slane %v4313, 4
  %v4316 = vshll.u32 %v3845, 16
  %v4318 = vrot.slane %v4316, 5
  %v4319 = vsel %vm832, %v4314, %v4318
  %v4321 = vshrl.u32 %v3846, 16
  %v4323 = vrot.slane %v4321, 4
  %v4324 = vshll.u32 %v3846, 16
  %v4326 = vrot.slane %v4324, 5
  %v4327 = vor.u32 %v4323, %v4326
  %v4328 = vrot.slane %v4327, 4
  %v4330 = vshll.u32 %v3847, 16
  %v4332 = vrot.slane %v4330, 5
  %v4333 = vsel %vm832, %v4328, %v4332
  %v4334 = vshrl.u32 %v3847, 16
  %v4336 = vrot.slane %v4334, 4
  %v4337 = vor.u32 %v4336, %v4332
  %v4338 = vrot.slane %v4337, 4
  %v4340 = vshll.u32 %v3848, 16
  %v4342 = vrot.slane %v4340, 5
  %v4343 = vsel %vm832, %v4338, %v4342
  %v4345 = vshrl.u32 %v3849, 16
  %v4347 = vrot.slane %v4345, 4
  %v4348 = vshll.u32 %v3849, 16
  %v4350 = vrot.slane %v4348, 5
  %v4351 = vor.u32 %v4347, %v4350
  %v4352 = vrot.slane %v4351, 4
  %v4354 = vshll.u32 %v3850, 16
  %v4356 = vrot.slane %v4354, 5
  %v4357 = vsel %vm832, %v4352, %v4356
  %v4358 = vshrl.u32 %v3850, 16
  %v4360 = vrot.slane %v4358, 4
  %v4361 = vor.u32 %v4360, %v4356
  %v4362 = vrot.slane %v4361, 4
  %v4364 = vshll.u32 %v3851, 16
  %v4366 = vrot.slane %v4364, 5
  %v4367 = vsel %vm832, %v4362, %v4366
  %v4369 = vshrl.u32 %v3852, 16
  %v4371 = vrot.slane %v4369, 4
  %v4372 = vshll.u32 %v3852, 16
  %v4374 = vrot.slane %v4372, 5
  %v4375 = vor.u32 %v4371, %v4374
  %v4376 = vrot.slane %v4375, 4
  %v4378 = vshll.u32 %v3853, 16
  %v4380 = vrot.slane %v4378, 5
  %v4381 = vsel %vm832, %v4376, %v4380
  %v4382 = vshrl.u32 %v3853, 16
  %v4384 = vrot.slane %v4382, 4
  %v4385 = vor.u32 %v4384, %v4380
  %v4386 = vrot.slane %v4385, 4
  %v4388 = vshll.u32 %v3854, 16
  %v4390 = vrot.slane %v4388, 5
  %v4391 = vsel %vm832, %v4386, %v4390
  %v4393 = vshrl.u32 %v3855, 16
  %v4395 = vrot.slane %v4393, 4
  %v4396 = vshll.u32 %v3855, 16
  %v4398 = vrot.slane %v4396, 5
  %v4399 = vor.u32 %v4395, %v4398
  %v4400 = vrot.slane %v4399, 4
  %v4402 = vshll.u32 %v3856, 16
  %v4404 = vrot.slane %v4402, 5
  %v4405 = vsel %vm832, %v4400, %v4404
  %v4406 = vshrl.u32 %v3856, 16
  %v4408 = vrot.slane %v4406, 4
  %v4409 = vor.u32 %v4408, %v4404
  %v4410 = vrot.slane %v4409, 4
  %v4412 = vshll.u32 %v3857, 16
  %v4414 = vrot.slane %v4412, 5
  %v4415 = vsel %vm832, %v4410, %v4414
  %v4417 = vshrl.u32 %v3858, 16
  %v4419 = vrot.slane %v4417, 4
  %v4420 = vshll.u32 %v3858, 16
  %v4422 = vrot.slane %v4420, 5
  %v4423 = vor.u32 %v4419, %v4422
  %v4424 = vrot.slane %v4423, 4
  %v4426 = vshll.u32 %v3859, 16
  %v4428 = vrot.slane %v4426, 5
  %v4429 = vsel %vm832, %v4424, %v4428
  %v4430 = vshrl.u32 %v3859, 16
  %v4432 = vrot.slane %v4430, 4
  %v4433 = vor.u32 %v4432, %v4428
  %v4434 = vrot.slane %v4433, 4
  %v4436 = vshll.u32 %v3860, 16
  %v4438 = vrot.slane %v4436, 5
  %v4439 = vsel %vm832, %v4434, %v4438
  %v4441 = vshrl.u32 %v3861, 16
  %v4443 = vrot.slane %v4441, 4
  %v4444 = vshll.u32 %v3861, 16
  %v4446 = vrot.slane %v4444, 5
  %v4447 = vor.u32 %v4443, %v4446
  %v4448 = vrot.slane %v4447, 4
  %v4450 = vshll.u32 %v3862, 16
  %v4452 = vrot.slane %v4450, 5
  %v4453 = vsel %vm832, %v4448, %v4452
  %v4454 = vshrl.u32 %v3862, 16
  %v4456 = vrot.slane %v4454, 4
  %v4457 = vor.u32 %v4456, %v4452
  %v4458 = vrot.slane %v4457, 4
  %v4460 = vshll.u32 %v3863, 16
  %v4462 = vrot.slane %v4460, 5
  %v4463 = vsel %vm832, %v4458, %v4462
  %v4465 = vshrl.u32 %v3864, 16
  %v4467 = vrot.slane %v4465, 4
  %v4468 = vshll.u32 %v3864, 16
  %v4470 = vrot.slane %v4468, 5
  %v4471 = vor.u32 %v4467, %v4470
  %v4472 = vrot.slane %v4471, 4
  %v4474 = vshll.u32 %v3865, 16
  %v4476 = vrot.slane %v4474, 5
  %v4477 = vsel %vm832, %v4472, %v4476
  %v4478 = vshrl.u32 %v3865, 16
  %v4480 = vrot.slane %v4478, 4
  %v4481 = vor.u32 %v4480, %v4476
  %v4482 = vrot.slane %v4481, 4
  %v4484 = vshll.u32 %v3866, 16
  %v4486 = vrot.slane %v4484, 5
  %v4487 = vsel %vm832, %v4482, %v4486
  %v4489 = vshrl.u32 %v3867, 16
  %v4491 = vrot.slane %v4489, 4
  %v4492 = vshll.u32 %v3867, 16
  %v4494 = vrot.slane %v4492, 5
  %v4495 = vor.u32 %v4491, %v4494
  %v4496 = vrot.slane %v4495, 4
  %v4498 = vshll.u32 %v3868, 16
  %v4500 = vrot.slane %v4498, 5
  %v4501 = vsel %vm832, %v4496, %v4500
  %v4502 = vshrl.u32 %v3868, 16
  %v4504 = vrot.slane %v4502, 4
  %v4505 = vor.u32 %v4504, %v4500
  %v4506 = vrot.slane %v4505, 4
  %v4508 = vshll.u32 %v3869, 16
  %v4510 = vrot.slane %v4508, 5
  %v4511 = vsel %vm832, %v4506, %v4510
  %v4513 = vshrl.u32 %v3870, 16
  %v4515 = vrot.slane %v4513, 4
  %v4516 = vshll.u32 %v3870, 16
  %v4518 = vrot.slane %v4516, 5
  %v4519 = vor.u32 %v4515, %v4518
  %v4520 = vrot.slane %v4519, 4
  %v4522 = vshll.u32 %v3871, 16
  %v4524 = vrot.slane %v4522, 5
  %v4525 = vsel %vm832, %v4520, %v4524
  %v4526 = vshrl.u32 %v3871, 16
  %v4528 = vrot.slane %v4526, 4
  %v4529 = vor.u32 %v4528, %v4524
  %v4530 = vrot.slane %v4529, 4
  %v4532 = vshll.u32 %v3872, 16
  %v4534 = vrot.slane %v4532, 5
  %v4535 = vsel %vm832, %v4530, %v4534
  %v4537 = vshrl.u32 %v3873, 16
  %v4539 = vrot.slane %v4537, 4
  %v4540 = vshll.u32 %v3873, 16
  %v4542 = vrot.slane %v4540, 5
  %v4543 = vor.u32 %v4539, %v4542
  %v4544 = vrot.slane %v4543, 4
  %v4546 = vshll.u32 %v3874, 16
  %v4548 = vrot.slane %v4546, 5
  %v4549 = vsel %vm832, %v4544, %v4548
  %v4550 = vshrl.u32 %v3874, 16
  %v4552 = vrot.slane %v4550, 4
  %v4553 = vor.u32 %v4552, %v4548
  %v4554 = vrot.slane %v4553, 4
  %v4556 = vshll.u32 %v3875, 16
  %v4558 = vrot.slane %v4556, 5
  %v4559 = vsel %vm832, %v4554, %v4558
  %v4561 = vshrl.u32 %v3876, 16
  %v4563 = vrot.slane %v4561, 4
  %v4564 = vshll.u32 %v3876, 16
  %v4566 = vrot.slane %v4564, 5
  %v4567 = vor.u32 %v4563, %v4566
  %v4568 = vrot.slane %v4567, 4
  %v4570 = vshll.u32 %v3877, 16
  %v4572 = vrot.slane %v4570, 5
  %v4573 = vsel %vm832, %v4568, %v4572
  %v4574 = vshrl.u32 %v3877, 16
  %v4576 = vrot.slane %v4574, 4
  %v4577 = vor.u32 %v4576, %v4572
  %v4578 = vrot.slane %v4577, 4
  %v4580 = vshll.u32 %v3878, 16
  %v4582 = vrot.slane %v4580, 5
  %v4583 = vsel %vm832, %v4578, %v4582
  %v4585 = vshrl.u32 %v3879, 16
  %v4587 = vrot.slane %v4585, 4
  %v4588 = vshll.u32 %v3879, 16
  %v4590 = vrot.slane %v4588, 5
  %v4591 = vor.u32 %v4587, %v4590
  %v4592 = vrot.slane %v4591, 4
  %v4594 = vshll.u32 %v3880, 16
  %v4596 = vrot.slane %v4594, 5
  %v4597 = vsel %vm832, %v4592, %v4596
  %v4598 = vshrl.u32 %v3880, 16
  %v4600 = vrot.slane %v4598, 4
  %v4601 = vor.u32 %v4600, %v4596
  %v4602 = vrot.slane %v4601, 4
  %v4604 = vshll.u32 %v3881, 16
  %v4606 = vrot.slane %v4604, 5
  %v4607 = vsel %vm832, %v4602, %v4606
  %v4609 = vshrl.u32 %v3882, 16
  %v4611 = vrot.slane %v4609, 4
  %v4612 = vshll.u32 %v3882, 16
  %v4614 = vrot.slane %v4612, 5
  %v4615 = vor.u32 %v4611, %v4614
  %v4616 = vrot.slane %v4615, 4
  %v4618 = vshll.u32 %v3883, 16
  %v4620 = vrot.slane %v4618, 5
  %v4621 = vsel %vm832, %v4616, %v4620
  %v4622 = vshrl.u32 %v3883, 16
  %v4624 = vrot.slane %v4622, 4
  %v4625 = vor.u32 %v4624, %v4620
  %v4626 = vrot.slane %v4625, 4
  %v4628 = vshll.u32 %v3884, 16
  %v4630 = vrot.slane %v4628, 5
  %v4631 = vsel %vm832, %v4626, %v4630
  %v4633 = vshrl.u32 %v3885, 16
  %v4635 = vrot.slane %v4633, 4
  %v4636 = vshll.u32 %v3885, 16
  %v4638 = vrot.slane %v4636, 5
  %v4639 = vor.u32 %v4635, %v4638
  %v4640 = vrot.slane %v4639, 4
  %v4642 = vshll.u32 %v3886, 16
  %v4644 = vrot.slane %v4642, 5
  %v4645 = vsel %vm832, %v4640, %v4644
  %v4646 = vshrl.u32 %v3886, 16
  %v4648 = vrot.slane %v4646, 4
  %v4649 = vor.u32 %v4648, %v4644
  %v4650 = vrot.slane %v4649, 4
  %v4652 = vshll.u32 %v3887, 16
  %v4654 = vrot.slane %v4652, 5
  %v4655 = vsel %vm832, %v4650, %v4654
  %s4656 = scalar_lea.vmem %s1, 80
  %v4657 = vld [vmem:[%s4656] sm:$0xf]
  %v4658 = vld [vmem:[%s4656 + $0x4] sm:$0xf]
  %v4659 = vld [vmem:[%s4656 + $0x8] sm:$0xf]
  %v4660 = vld [vmem:[%s4656 + $0xc] sm:$0xf]
  %v4661 = vld [vmem:[%s4656 + $0x10] sm:$0x3]
  %v4662 = vunpack.c.l.b16 %v3901
  %v4663 = vunpack.c.l.b16 %v3911
  %v4664 = vunpack.c.l.b16 %v3925
  %v4665 = vunpack.c.l.b16 %v3935
  %v4666 = vunpack.c.l.b16 %v3949
  %v4667 = vunpack.c.l.b16 %v3959
  %v4668 = vunpack.c.l.b16 %v3973
  %v4669 = vunpack.c.l.b16 %v3983
  %v4670 = vunpack.c.l.b16 %v3997
  %v4671 = vunpack.c.l.b16 %v4007
  %v4672 = vunpack.c.l.b16 %v4021
  %v4673 = vunpack.c.l.b16 %v4031
  %v4674 = vunpack.c.l.b16 %v4045
  %v4675 = vunpack.c.l.b16 %v4055
  %v4676 = vunpack.c.l.b16 %v4069
  %v4677 = vunpack.c.l.b16 %v4079
  %v4678 = vunpack.c.l.b16 %v4093
  %v4679 = vunpack.c.l.b16 %v4103
  %v4680 = vunpack.c.l.b16 %v4117
  %v4681 = vunpack.c.l.b16 %v4127
  %v4682 = vunpack.c.l.b16 %v4141
  %v4683 = vunpack.c.l.b16 %v4151
  %v4684 = vunpack.c.l.b16 %v4165
  %v4685 = vunpack.c.l.b16 %v4175
  %v4686 = vunpack.c.l.b16 %v4189
  %v4687 = vunpack.c.l.b16 %v4199
  %v4688 = vunpack.c.l.b16 %v4213
  %v4689 = vunpack.c.l.b16 %v4223
  %v4690 = vunpack.c.l.b16 %v4237
  %v4691 = vunpack.c.l.b16 %v4247
  %v4692 = vunpack.c.l.b16 %v4261
  %v4693 = vunpack.c.l.b16 %v4271
  %v4694 = vunpack.c.l.b16 %v4285
  %v4695 = vunpack.c.l.b16 %v4295
  %v4696 = vunpack.c.l.b16 %v4309
  %v4697 = vunpack.c.l.b16 %v4319
  %v4698 = vunpack.c.l.b16 %v4333
  %v4699 = vunpack.c.l.b16 %v4343
  %v4700 = vunpack.c.l.b16 %v4357
  %v4701 = vunpack.c.l.b16 %v4367
  %v4702 = vunpack.c.l.b16 %v4381
  %v4703 = vunpack.c.l.b16 %v4391
  %v4704 = vunpack.c.l.b16 %v4405
  %v4705 = vunpack.c.l.b16 %v4415
  %v4706 = vunpack.c.l.b16 %v4429
  %v4707 = vunpack.c.l.b16 %v4439
  %v4708 = vunpack.c.l.b16 %v4453
  %v4709 = vunpack.c.l.b16 %v4463
  %v4710 = vunpack.c.l.b16 %v4477
  %v4711 = vunpack.c.l.b16 %v4487
  %v4712 = vunpack.c.l.b16 %v4501
  %v4713 = vunpack.c.l.b16 %v4511
  %v4714 = vunpack.c.l.b16 %v4525
  %v4715 = vunpack.c.l.b16 %v4535
  %v4716 = vunpack.c.l.b16 %v4549
  %v4717 = vunpack.c.l.b16 %v4559
  %v4718 = vunpack.c.l.b16 %v4573
  %v4719 = vunpack.c.l.b16 %v4583
  %v4720 = vunpack.c.l.b16 %v4597
  %v4721 = vunpack.c.l.b16 %v4607
  %v4722 = vunpack.c.l.b16 %v4621
  %v4723 = vunpack.c.l.b16 %v4631
  %v4724 = vunpack.c.l.b16 %v4645
  %v4725 = vunpack.c.l.b16 %v4655
  %v4726 = vpack.c.b16 %v4663, %v4662
  %v4727 = vpack.c.b16 %v4665, %v4664
  %v4728 = vpack.c.b16 %v4667, %v4666
  %v4729 = vpack.c.b16 %v4669, %v4668
  %v4730 = vpack.c.b16 %v4671, %v4670
  %v4731 = vpack.c.b16 %v4673, %v4672
  %v4732 = vpack.c.b16 %v4675, %v4674
  %v4733 = vpack.c.b16 %v4677, %v4676
  %v4734 = vpack.c.b16 %v4679, %v4678
  %v4735 = vpack.c.b16 %v4681, %v4680
  %v4736 = vpack.c.b16 %v4683, %v4682
  %v4737 = vpack.c.b16 %v4685, %v4684
  %v4738 = vpack.c.b16 %v4687, %v4686
  %v4739 = vpack.c.b16 %v4689, %v4688
  %v4740 = vpack.c.b16 %v4691, %v4690
  %v4741 = vpack.c.b16 %v4693, %v4692
  %v4742 = vpack.c.b16 %v4695, %v4694
  %v4743 = vpack.c.b16 %v4697, %v4696
  %v4744 = vpack.c.b16 %v4699, %v4698
  %v4745 = vpack.c.b16 %v4701, %v4700
  %v4746 = vpack.c.b16 %v4703, %v4702
  %v4747 = vpack.c.b16 %v4705, %v4704
  %v4748 = vpack.c.b16 %v4707, %v4706
  %v4749 = vpack.c.b16 %v4709, %v4708
  %v4750 = vpack.c.b16 %v4711, %v4710
  %v4751 = vpack.c.b16 %v4713, %v4712
  %v4752 = vpack.c.b16 %v4715, %v4714
  %v4753 = vpack.c.b16 %v4717, %v4716
  %v4754 = vpack.c.b16 %v4719, %v4718
  %v4755 = vpack.c.b16 %v4721, %v4720
  %v4756 = vpack.c.b16 %v4723, %v4722
  %v4757 = vpack.c.b16 %v4725, %v4724
  %v4763 = vunpack.c.l.b16 %v4657
  %v4764 = vunpack.c.l.b16 %v4658
  %v4765 = vunpack.c.l.b16 %v4659
  %v4766 = vunpack.c.l.b16 %v4660
  %v4767 = vunpack.c.l.b16 %v4661
  %v4768 = vpack.c.b16 %v4764, %v4763
  %v4769 = vpack.c.b16 %v4766, %v4765
  %v4770 = vpack.c.b16 %v4767, %v4767
  %v4774 = vsel %vm280, %v4726, 0
  %v4777 = vsel %vm280, %v4727, 0
  %v4780 = vsel %vm280, %v4728, 0
  %v4783 = vsel %vm280, %v4729, 0
  %v4786 = vsel %vm280, %v4730, 0
  %v4789 = vsel %vm280, %v4731, 0
  %v4792 = vsel %vm280, %v4732, 0
  %v4795 = vsel %vm280, %v4733, 0
  %v4798 = vsel %vm280, %v4734, 0
  %v4801 = vsel %vm280, %v4735, 0
  %v4804 = vsel %vm280, %v4736, 0
  %v4807 = vsel %vm280, %v4737, 0
  %v4810 = vsel %vm280, %v4738, 0
  %v4813 = vsel %vm280, %v4739, 0
  %v4816 = vsel %vm280, %v4740, 0
  %v4819 = vsel %vm280, %v4741, 0
  %v4822 = vsel %vm280, %v4742, 0
  %v4825 = vsel %vm280, %v4743, 0
  %v4828 = vsel %vm280, %v4744, 0
  %v4831 = vsel %vm280, %v4745, 0
  %v4834 = vsel %vm280, %v4746, 0
  %v4837 = vsel %vm280, %v4747, 0
  %v4840 = vsel %vm280, %v4748, 0
  %v4843 = vsel %vm280, %v4749, 0
  %v4846 = vsel %vm280, %v4750, 0
  %v4849 = vsel %vm280, %v4751, 0
  %v4852 = vsel %vm280, %v4752, 0
  %v4855 = vsel %vm280, %v4753, 0
  %v4858 = vsel %vm280, %v4754, 0
  %v4861 = vsel %vm280, %v4755, 0
  %v4864 = vsel %vm280, %v4756, 0
  %v4867 = vsel %vm280, %v4757, 0
  %v4870 = vsel %vm377, %v4770, 0
  %4872 = vmatprep.subr.bf16.mxu0 0
  %4873 = vmatpush1.bf16.msra.mxu0 %v4768
  %4874 = vmatprep.subr.bf16.mxu0 0
  %4875 = vmatpush1.bf16.msra.mxu0 %v4769
  %4876 = vmatprep.subr.bf16.mxu0 0
  %4877 = vmatpush1.bf16.msra.mxu0 %v4870
  %4878 = vmatprep.subr.bf16.mxu0 0
  %4879 = vmatpush1.bf16.msra.mxu0 0
  %4880 = vmatprep.subr.bf16.mxu0 0
  %4881 = vmatpush1.bf16.msra.mxu0 0
  %4882 = vmatprep.subr.bf16.mxu0 0
  %4883 = vmatpush1.bf16.msra.mxu0 0
  %4884 = vmatprep.subr.bf16.mxu0 0
  %4885 = vmatpush1.bf16.msra.mxu0 0
  %4886 = vmatprep.subr.bf16.mxu0 0
  %4887 = vmatpush1.bf16.msra.mxu0 0
  %4888 = vmatprep.subr.bf16.mxu0 0
  %4889 = vmatpush1.bf16.msra.mxu0 0
  %4890 = vmatprep.subr.bf16.mxu0 0
  %4891 = vmatpush1.bf16.msra.mxu0 0
  %4892 = vmatprep.subr.bf16.mxu0 0
  %4893 = vmatpush1.bf16.msra.mxu0 0
  %4894 = vmatprep.subr.bf16.mxu0 0
  %4895 = vmatpush1.bf16.msra.mxu0 0
  %4896 = vmatprep.subr.bf16.mxu0 0
  %4897 = vmatpush1.bf16.msra.mxu0 0
  %4898 = vmatprep.subr.bf16.mxu0 0
  %4899 = vmatpush1.bf16.msra.mxu0 0
  %4900 = vmatprep.subr.bf16.mxu0 0
  %4901 = vmatpush1.bf16.msra.mxu0 0
  %4902 = vmatprep.subr.bf16.mxu0 0
  %4903 = vmatpush1.bf16.msra.mxu0 0
  %4904 = vmatprep.mubr.bf16.mxu0 0
  %4905 = vmatmul.mubr.bf16.gmra.mrb[0].mxu0 %v4774
  %v4906 = vpop.f32.mrb[0].mxu0
  %v4907 = vadd.f32 0.0, %v4906
  %v4908 = vpop.f32.mrb[0].mxu0
  %v4909 = vpop.f32.mrb[0].mxu0
  %v4910 = vadd.f32 0.0, %v4909
  %v4911 = vpop.f32.mrb[0].mxu0
  %4912 = vmatprep.mubr.bf16.mxu0 0
  %4913 = vmatmul.mubr.bf16.gmra.mrb[0].mxu0 %v4777
  %v4914 = vpop.f32.mrb[0].mxu0
  %v4915 = vadd.f32 0.0, %v4914
  %v4916 = vpop.f32.mrb[0].mxu0
  %v4917 = vpop.f32.mrb[0].mxu0
  %v4918 = vadd.f32 0.0, %v4917
  %v4919 = vpop.f32.mrb[0].mxu0
  %4920 = vmatprep.mubr.bf16.mxu0 0
  %4921 = vmatmul.mubr.bf16.gmra.mrb[0].mxu0 %v4780
  %v4922 = vpop.f32.mrb[0].mxu0
  %v4923 = vadd.f32 0.0, %v4922
  %v4924 = vpop.f32.mrb[0].mxu0
  %v4925 = vpop.f32.mrb[0].mxu0
  %v4926 = vadd.f32 0.0, %v4925
  %v4927 = vpop.f32.mrb[0].mxu0
  %4928 = vmatprep.mubr.bf16.mxu0 0
  %4929 = vmatmul.mubr.bf16.gmra.mrb[0].mxu0 %v4783
  %v4930 = vpop.f32.mrb[0].mxu0
  %v4931 = vadd.f32 0.0, %v4930
  %v4932 = vpop.f32.mrb[0].mxu0
  %v4933 = vpop.f32.mrb[0].mxu0
  %v4934 = vadd.f32 0.0, %v4933
  %v4935 = vpop.f32.mrb[0].mxu0
  %4936 = vmatprep.mubr.bf16.mxu0 0
  %4937 = vmatmul.mubr.bf16.gmra.mrb[0].mxu0 %v4786
  %v4938 = vpop.f32.mrb[0].mxu0
  %v4939 = vadd.f32 0.0, %v4938
  %v4940 = vpop.f32.mrb[0].mxu0
  %v4941 = vpop.f32.mrb[0].mxu0
  %v4942 = vadd.f32 0.0, %v4941
  %v4943 = vpop.f32.mrb[0].mxu0
  %4944 = vmatprep.mubr.bf16.mxu0 0
  %4945 = vmatmul.mubr.bf16.gmra.mrb[0].mxu0 %v4789
  %v4946 = vpop.f32.mrb[0].mxu0
  %v4947 = vadd.f32 0.0, %v4946
  %v4948 = vpop.f32.mrb[0].mxu0
  %v4949 = vpop.f32.mrb[0].mxu0
  %v4950 = vadd.f32 0.0, %v4949
  %v4951 = vpop.f32.mrb[0].mxu0
  %4952 = vmatprep.mubr.bf16.mxu0 0
  %4953 = vmatmul.mubr.bf16.gmra.mrb[0].mxu0 %v4792
  %v4954 = vpop.f32.mrb[0].mxu0
  %v4955 = vadd.f32 0.0, %v4954
  %v4956 = vpop.f32.mrb[0].mxu0
  %v4957 = vpop.f32.mrb[0].mxu0
  %v4958 = vadd.f32 0.0, %v4957
  %v4959 = vpop.f32.mrb[0].mxu0
  %4960 = vmatprep.mubr.bf16.mxu0 0
  %4961 = vmatmul.mubr.bf16.gmra.mrb[0].mxu0 %v4795
  %v4962 = vpop.f32.mrb[0].mxu0
  %v4963 = vadd.f32 0.0, %v4962
  %v4964 = vpop.f32.mrb[0].mxu0
  %v4965 = vpop.f32.mrb[0].mxu0
  %v4966 = vadd.f32 0.0, %v4965
  %v4967 = vpop.f32.mrb[0].mxu0
  %4968 = vmatprep.mubr.bf16.mxu0 0
  %4969 = vmatmul.mubr.bf16.gmra.mrb[0].mxu0 %v4798
  %v4970 = vpop.f32.mrb[0].mxu0
  %v4971 = vadd.f32 0.0, %v4970
  %v4972 = vpop.f32.mrb[0].mxu0
  %v4973 = vpop.f32.mrb[0].mxu0
  %v4974 = vadd.f32 0.0, %v4973
  %v4975 = vpop.f32.mrb[0].mxu0
  %4976 = vmatprep.mubr.bf16.mxu0 0
  %4977 = vmatmul.mubr.bf16.gmra.mrb[0].mxu0 %v4801
  %v4978 = vpop.f32.mrb[0].mxu0
  %v4979 = vadd.f32 0.0, %v4978
  %v4980 = vpop.f32.mrb[0].mxu0
  %v4981 = vpop.f32.mrb[0].mxu0
  %v4982 = vadd.f32 0.0, %v4981
  %v4983 = vpop.f32.mrb[0].mxu0
  %4984 = vmatprep.mubr.bf16.mxu0 0
  %4985 = vmatmul.mubr.bf16.gmra.mrb[0].mxu0 %v4804
  %v4986 = vpop.f32.mrb[0].mxu0
  %v4987 = vadd.f32 0.0, %v4986
  %v4988 = vpop.f32.mrb[0].mxu0
  %v4989 = vpop.f32.mrb[0].mxu0
  %v4990 = vadd.f32 0.0, %v4989
  %v4991 = vpop.f32.mrb[0].mxu0
  %4992 = vmatprep.mubr.bf16.mxu0 0
  %4993 = vmatmul.mubr.bf16.gmra.mrb[0].mxu0 %v4807
  %v4994 = vpop.f32.mrb[0].mxu0
  %v4995 = vadd.f32 0.0, %v4994
  %v4996 = vpop.f32.mrb[0].mxu0
  %v4997 = vpop.f32.mrb[0].mxu0
  %v4998 = vadd.f32 0.0, %v4997
  %v4999 = vpop.f32.mrb[0].mxu0
  %5000 = vmatprep.mubr.bf16.mxu0 0
  %5001 = vmatmul.mubr.bf16.gmra.mrb[0].mxu0 %v4810
  %v5002 = vpop.f32.mrb[0].mxu0
  %v5003 = vadd.f32 0.0, %v5002
  %v5004 = vpop.f32.mrb[0].mxu0
  %v5005 = vpop.f32.mrb[0].mxu0
  %v5006 = vadd.f32 0.0, %v5005
  %v5007 = vpop.f32.mrb[0].mxu0
  %5008 = vmatprep.mubr.bf16.mxu0 0
  %5009 = vmatmul.mubr.bf16.gmra.mrb[0].mxu0 %v4813
  %v5010 = vpop.f32.mrb[0].mxu0
  %v5011 = vadd.f32 0.0, %v5010
  %v5012 = vpop.f32.mrb[0].mxu0
  %v5013 = vpop.f32.mrb[0].mxu0
  %v5014 = vadd.f32 0.0, %v5013
  %v5015 = vpop.f32.mrb[0].mxu0
  %5016 = vmatprep.mubr.bf16.mxu0 0
  %5017 = vmatmul.mubr.bf16.gmra.mrb[0].mxu0 %v4816
  %v5018 = vpop.f32.mrb[0].mxu0
  %v5019 = vadd.f32 0.0, %v5018
  %v5020 = vpop.f32.mrb[0].mxu0
  %v5021 = vpop.f32.mrb[0].mxu0
  %v5022 = vadd.f32 0.0, %v5021
  %v5023 = vpop.f32.mrb[0].mxu0
  %5024 = vmatprep.mubr.bf16.mxu0 0
  %5025 = vmatmul.mubr.bf16.gmra.mrb[0].mxu0 %v4819
  %v5026 = vpop.f32.mrb[0].mxu0
  %v5027 = vadd.f32 0.0, %v5026
  %v5028 = vpop.f32.mrb[0].mxu0
  %v5029 = vpop.f32.mrb[0].mxu0
  %v5030 = vadd.f32 0.0, %v5029
  %v5031 = vpop.f32.mrb[0].mxu0
  %5032 = vmatprep.mubr.bf16.mxu0 0
  %5033 = vmatmul.mubr.bf16.gmra.mrb[0].mxu0 %v4822
  %v5034 = vpop.f32.mrb[0].mxu0
  %v5035 = vadd.f32 0.0, %v5034
  %v5036 = vpop.f32.mrb[0].mxu0
  %v5037 = vpop.f32.mrb[0].mxu0
  %v5038 = vadd.f32 0.0, %v5037
  %v5039 = vpop.f32.mrb[0].mxu0
  %5040 = vmatprep.mubr.bf16.mxu0 0
  %5041 = vmatmul.mubr.bf16.gmra.mrb[0].mxu0 %v4825
  %v5042 = vpop.f32.mrb[0].mxu0
  %v5043 = vadd.f32 0.0, %v5042
  %v5044 = vpop.f32.mrb[0].mxu0
  %v5045 = vpop.f32.mrb[0].mxu0
  %v5046 = vadd.f32 0.0, %v5045
  %v5047 = vpop.f32.mrb[0].mxu0
  %5048 = vmatprep.mubr.bf16.mxu0 0
  %5049 = vmatmul.mubr.bf16.gmra.mrb[0].mxu0 %v4828
  %v5050 = vpop.f32.mrb[0].mxu0
  %v5051 = vadd.f32 0.0, %v5050
  %v5052 = vpop.f32.mrb[0].mxu0
  %v5053 = vpop.f32.mrb[0].mxu0
  %v5054 = vadd.f32 0.0, %v5053
  %v5055 = vpop.f32.mrb[0].mxu0
  %5056 = vmatprep.mubr.bf16.mxu0 0
  %5057 = vmatmul.mubr.bf16.gmra.mrb[0].mxu0 %v4831
  %v5058 = vpop.f32.mrb[0].mxu0
  %v5059 = vadd.f32 0.0, %v5058
  %v5060 = vpop.f32.mrb[0].mxu0
  %v5061 = vpop.f32.mrb[0].mxu0
  %v5062 = vadd.f32 0.0, %v5061
  %v5063 = vpop.f32.mrb[0].mxu0
  %5064 = vmatprep.mubr.bf16.mxu0 0
  %5065 = vmatmul.mubr.bf16.gmra.mrb[0].mxu0 %v4834
  %v5066 = vpop.f32.mrb[0].mxu0
  %v5067 = vadd.f32 0.0, %v5066
  %v5068 = vpop.f32.mrb[0].mxu0
  %v5069 = vpop.f32.mrb[0].mxu0
  %v5070 = vadd.f32 0.0, %v5069
  %v5071 = vpop.f32.mrb[0].mxu0
  %5072 = vmatprep.mubr.bf16.mxu0 0
  %5073 = vmatmul.mubr.bf16.gmra.mrb[0].mxu0 %v4837
  %v5074 = vpop.f32.mrb[0].mxu0
  %v5075 = vadd.f32 0.0, %v5074
  %v5076 = vpop.f32.mrb[0].mxu0
  %v5077 = vpop.f32.mrb[0].mxu0
  %v5078 = vadd.f32 0.0, %v5077
  %v5079 = vpop.f32.mrb[0].mxu0
  %5080 = vmatprep.mubr.bf16.mxu0 0
  %5081 = vmatmul.mubr.bf16.gmra.mrb[0].mxu0 %v4840
  %v5082 = vpop.f32.mrb[0].mxu0
  %v5083 = vadd.f32 0.0, %v5082
  %v5084 = vpop.f32.mrb[0].mxu0
  %v5085 = vpop.f32.mrb[0].mxu0
  %v5086 = vadd.f32 0.0, %v5085
  %v5087 = vpop.f32.mrb[0].mxu0
  %5088 = vmatprep.mubr.bf16.mxu0 0
  %5089 = vmatmul.mubr.bf16.gmra.mrb[0].mxu0 %v4843
  %v5090 = vpop.f32.mrb[0].mxu0
  %v5091 = vadd.f32 0.0, %v5090
  %v5092 = vpop.f32.mrb[0].mxu0
  %v5093 = vpop.f32.mrb[0].mxu0
  %v5094 = vadd.f32 0.0, %v5093
  %v5095 = vpop.f32.mrb[0].mxu0
  %5096 = vmatprep.mubr.bf16.mxu0 0
  %5097 = vmatmul.mubr.bf16.gmra.mrb[0].mxu0 %v4846
  %v5098 = vpop.f32.mrb[0].mxu0
  %v5099 = vadd.f32 0.0, %v5098
  %v5100 = vpop.f32.mrb[0].mxu0
  %v5101 = vpop.f32.mrb[0].mxu0
  %v5102 = vadd.f32 0.0, %v5101
  %v5103 = vpop.f32.mrb[0].mxu0
  %5104 = vmatprep.mubr.bf16.mxu0 0
  %5105 = vmatmul.mubr.bf16.gmra.mrb[0].mxu0 %v4849
  %v5106 = vpop.f32.mrb[0].mxu0
  %v5107 = vadd.f32 0.0, %v5106
  %v5108 = vpop.f32.mrb[0].mxu0
  %v5109 = vpop.f32.mrb[0].mxu0
  %v5110 = vadd.f32 0.0, %v5109
  %v5111 = vpop.f32.mrb[0].mxu0
  %5112 = vmatprep.mubr.bf16.mxu0 0
  %5113 = vmatmul.mubr.bf16.gmra.mrb[0].mxu0 %v4852
  %v5114 = vpop.f32.mrb[0].mxu0
  %v5115 = vadd.f32 0.0, %v5114
  %v5116 = vpop.f32.mrb[0].mxu0
  %v5117 = vpop.f32.mrb[0].mxu0
  %v5118 = vadd.f32 0.0, %v5117
  %v5119 = vpop.f32.mrb[0].mxu0
  %5120 = vmatprep.mubr.bf16.mxu0 0
  %5121 = vmatmul.mubr.bf16.gmra.mrb[0].mxu0 %v4855
  %v5122 = vpop.f32.mrb[0].mxu0
  %v5123 = vadd.f32 0.0, %v5122
  %v5124 = vpop.f32.mrb[0].mxu0
  %v5125 = vpop.f32.mrb[0].mxu0
  %v5126 = vadd.f32 0.0, %v5125
  %v5127 = vpop.f32.mrb[0].mxu0
  %5128 = vmatprep.mubr.bf16.mxu0 0
  %5129 = vmatmul.mubr.bf16.gmra.mrb[0].mxu0 %v4858
  %v5130 = vpop.f32.mrb[0].mxu0
  %v5131 = vadd.f32 0.0, %v5130
  %v5132 = vpop.f32.mrb[0].mxu0
  %v5133 = vpop.f32.mrb[0].mxu0
  %v5134 = vadd.f32 0.0, %v5133
  %v5135 = vpop.f32.mrb[0].mxu0
  %5136 = vmatprep.mubr.bf16.mxu0 0
  %5137 = vmatmul.mubr.bf16.gmra.mrb[0].mxu0 %v4861
  %v5138 = vpop.f32.mrb[0].mxu0
  %v5139 = vadd.f32 0.0, %v5138
  %v5140 = vpop.f32.mrb[0].mxu0
  %v5141 = vpop.f32.mrb[0].mxu0
  %v5142 = vadd.f32 0.0, %v5141
  %v5143 = vpop.f32.mrb[0].mxu0
  %5144 = vmatprep.mubr.bf16.mxu0 0
  %5145 = vmatmul.mubr.bf16.gmra.mrb[0].mxu0 %v4864
  %v5146 = vpop.f32.mrb[0].mxu0
  %v5147 = vadd.f32 0.0, %v5146
  %v5148 = vpop.f32.mrb[0].mxu0
  %v5149 = vpop.f32.mrb[0].mxu0
  %v5150 = vadd.f32 0.0, %v5149
  %v5151 = vpop.f32.mrb[0].mxu0
  %5152 = vmatprep.mubr.bf16.mxu0 0
  %5153 = vmatmul.mubr.bf16.gmra.mrb[0].mxu0 %v4867
  %v5154 = vpop.f32.mrb[0].mxu0
  %v5155 = vadd.f32 0.0, %v5154
  %v5156 = vpop.f32.mrb[0].mxu0
  %v5157 = vpop.f32.mrb[0].mxu0
  %v5158 = vadd.f32 0.0, %v5157
  %v5159 = vpop.f32.mrb[0].mxu0
  %5160 = vdwg.mxu0
  %v5161 = vadd.f32 %v3728, %v4907
  %v5162 = vadd.f32 %v3729, %v4910
  %v5163 = vadd.f32 %v3730, %v4915
  %v5164 = vadd.f32 %v3731, %v4918
  %v5165 = vadd.f32 %v3732, %v4923
  %v5166 = vadd.f32 %v3733, %v4926
  %v5167 = vadd.f32 %v3734, %v4931
  %v5168 = vadd.f32 %v3735, %v4934
  %v5169 = vadd.f32 %v3736, %v4939
  %v5170 = vadd.f32 %v3737, %v4942
  %v5171 = vadd.f32 %v3738, %v4947
  %v5172 = vadd.f32 %v3739, %v4950
  %v5173 = vadd.f32 %v3740, %v4955
  %v5174 = vadd.f32 %v3741, %v4958
  %v5175 = vadd.f32 %v3742, %v4963
  %v5176 = vadd.f32 %v3743, %v4966
  %v5177 = vadd.f32 %v3744, %v4971
  %v5178 = vadd.f32 %v3745, %v4974
  %v5179 = vadd.f32 %v3746, %v4979
  %v5180 = vadd.f32 %v3747, %v4982
  %v5181 = vadd.f32 %v3748, %v4987
  %v5182 = vadd.f32 %v3749, %v4990
  %v5183 = vadd.f32 %v3750, %v4995
  %v5184 = vadd.f32 %v3751, %v4998
  %v5185 = vadd.f32 %v3752, %v5003
  %v5186 = vadd.f32 %v3753, %v5006
  %v5187 = vadd.f32 %v3754, %v5011
  %v5188 = vadd.f32 %v3755, %v5014
  %v5189 = vadd.f32 %v3756, %v5019
  %v5190 = vadd.f32 %v3757, %v5022
  %v5191 = vadd.f32 %v3758, %v5027
  %v5192 = vadd.f32 %v3759, %v5030
  %v5193 = vadd.f32 %v3760, %v5035
  %v5194 = vadd.f32 %v3761, %v5038
  %v5195 = vadd.f32 %v3762, %v5043
  %v5196 = vadd.f32 %v3763, %v5046
  %v5197 = vadd.f32 %v3764, %v5051
  %v5198 = vadd.f32 %v3765, %v5054
  %v5199 = vadd.f32 %v3766, %v5059
  %v5200 = vadd.f32 %v3767, %v5062
  %v5201 = vadd.f32 %v3768, %v5067
  %v5202 = vadd.f32 %v3769, %v5070
  %v5203 = vadd.f32 %v3770, %v5075
  %v5204 = vadd.f32 %v3771, %v5078
  %v5205 = vadd.f32 %v3772, %v5083
  %v5206 = vadd.f32 %v3773, %v5086
  %v5207 = vadd.f32 %v3774, %v5091
  %v5208 = vadd.f32 %v3775, %v5094
  %v5209 = vadd.f32 %v3776, %v5099
  %v5210 = vadd.f32 %v3777, %v5102
  %v5211 = vadd.f32 %v3778, %v5107
  %v5212 = vadd.f32 %v3779, %v5110
  %v5213 = vadd.f32 %v3780, %v5115
  %v5214 = vadd.f32 %v3781, %v5118
  %v5215 = vadd.f32 %v3782, %v5123
  %v5216 = vadd.f32 %v3783, %v5126
  %v5217 = vadd.f32 %v3784, %v5131
  %v5218 = vadd.f32 %v3785, %v5134
  %v5219 = vadd.f32 %v3786, %v5139
  %v5220 = vadd.f32 %v3787, %v5142
  %v5221 = vadd.f32 %v3788, %v5147
  %v5222 = vadd.f32 %v3789, %v5150
  %v5223 = vadd.f32 %v3790, %v5155
  %v5224 = vadd.f32 %v3791, %v5158
  %v5225 = vld [vmem:[%s3094] sm:$0xe]
  %v5226 = vld [vmem:[%s3094 + $0xc] sm:$0xe]
  %v5227 = vld [vmem:[%s3094 + $0x18] sm:$0xe]
  %v5228 = vld [vmem:[%s3094 + $0x24] sm:$0xe]
  %v5229 = vld [vmem:[%s3094 + $0x30] sm:$0xe]
  %v5230 = vld [vmem:[%s3094 + $0x3c] sm:$0xe]
  %v5231 = vld [vmem:[%s3094 + $0x48] sm:$0xe]
  %v5232 = vld [vmem:[%s3094 + $0x54] sm:$0xe]
  %v5233 = vld [vmem:[%s3094 + $0x60] sm:$0xe]
  %v5234 = vld [vmem:[%s3094 + $0x6c] sm:$0xe]
  %v5235 = vld [vmem:[%s3094 + $0x78] sm:$0xe]
  %v5236 = vld [vmem:[%s3094 + $0x84] sm:$0xe]
  %v5237 = vld [vmem:[%s3094 + $0x90] sm:$0xe]
  %v5238 = vld [vmem:[%s3094 + $0x9c] sm:$0xe]
  %v5239 = vld [vmem:[%s3094 + $0xa8] sm:$0xe]
  %v5240 = vld [vmem:[%s3094 + $0xb4] sm:$0xe]
  %v5241 = vld [vmem:[%s3094 + $0xd8] sm:$0xe]
  %v5242 = vld [vmem:[%s3094 + $0xe4] sm:$0xe]
  %v5243 = vld [vmem:[%s3094 + $0xf0] sm:$0xe]
  %v5244 = vld [vmem:[%s3094 + $0xfc] sm:$0xe]
  %v5245 = vld [vmem:[%s3094 + $0x108] sm:$0xe]
  %v5246 = vld [vmem:[%s3094 + $0x114] sm:$0xe]
  %v5247 = vld [vmem:[%s3094 + $0x120] sm:$0xe]
  %v5248 = vld [vmem:[%s3094 + $0x12c] sm:$0xe]
  %v5249 = vld [vmem:[%s3094 + $0x138] sm:$0xe]
  %v5250 = vld [vmem:[%s3094 + $0x144] sm:$0xe]
  %v5251 = vld [vmem:[%s3094 + $0x150] sm:$0xe]
  %v5252 = vld [vmem:[%s3094 + $0x15c] sm:$0xe]
  %v5253 = vld [vmem:[%s3094 + $0x168] sm:$0xe]
  %v5254 = vld [vmem:[%s3094 + $0x174] sm:$0xe]
  %v5255 = vld [vmem:[%s3094 + $0x180] sm:$0xe]
  %v5256 = vld [vmem:[%s3094 + $0x18c] sm:$0xe]
  %v5353 = vrot.slane %v5225, 5
  %v5354 = vrot.slane %v5353, 4
  %v5355 = vrot.slane %v3793, 5
  %v5356 = vsel %vm2300, %v5354, %v5355
  %v5357 = vrot.slane %v5355, 4
  %v5358 = vrot.slane %v3794, 5
  %v5359 = vsel %vm2300, %v5357, %v5358
  %v5360 = vrot.slane %v5226, 5
  %v5361 = vrot.slane %v5360, 4
  %v5362 = vrot.slane %v3796, 5
  %v5363 = vsel %vm2300, %v5361, %v5362
  %v5364 = vrot.slane %v5362, 4
  %v5365 = vrot.slane %v3797, 5
  %v5366 = vsel %vm2300, %v5364, %v5365
  %v5367 = vrot.slane %v5227, 5
  %v5368 = vrot.slane %v5367, 4
  %v5369 = vrot.slane %v3799, 5
  %v5370 = vsel %vm2300, %v5368, %v5369
  %v5371 = vrot.slane %v5369, 4
  %v5372 = vrot.slane %v3800, 5
  %v5373 = vsel %vm2300, %v5371, %v5372
  %v5374 = vrot.slane %v5228, 5
  %v5375 = vrot.slane %v5374, 4
  %v5376 = vrot.slane %v3802, 5
  %v5377 = vsel %vm2300, %v5375, %v5376
  %v5378 = vrot.slane %v5376, 4
  %v5379 = vrot.slane %v3803, 5
  %v5380 = vsel %vm2300, %v5378, %v5379
  %v5381 = vrot.slane %v5229, 5
  %v5382 = vrot.slane %v5381, 4
  %v5383 = vrot.slane %v3805, 5
  %v5384 = vsel %vm2300, %v5382, %v5383
  %v5385 = vrot.slane %v5383, 4
  %v5386 = vrot.slane %v3806, 5
  %v5387 = vsel %vm2300, %v5385, %v5386
  %v5388 = vrot.slane %v5230, 5
  %v5389 = vrot.slane %v5388, 4
  %v5390 = vrot.slane %v3808, 5
  %v5391 = vsel %vm2300, %v5389, %v5390
  %v5392 = vrot.slane %v5390, 4
  %v5393 = vrot.slane %v3809, 5
  %v5394 = vsel %vm2300, %v5392, %v5393
  %v5395 = vrot.slane %v5231, 5
  %v5396 = vrot.slane %v5395, 4
  %v5397 = vrot.slane %v3811, 5
  %v5398 = vsel %vm2300, %v5396, %v5397
  %v5399 = vrot.slane %v5397, 4
  %v5400 = vrot.slane %v3812, 5
  %v5401 = vsel %vm2300, %v5399, %v5400
  %v5402 = vrot.slane %v5232, 5
  %v5403 = vrot.slane %v5402, 4
  %v5404 = vrot.slane %v3814, 5
  %v5405 = vsel %vm2300, %v5403, %v5404
  %v5406 = vrot.slane %v5404, 4
  %v5407 = vrot.slane %v3815, 5
  %v5408 = vsel %vm2300, %v5406, %v5407
  %v5409 = vrot.slane %v5233, 5
  %v5410 = vrot.slane %v5409, 4
  %v5411 = vrot.slane %v3817, 5
  %v5412 = vsel %vm2300, %v5410, %v5411
  %v5413 = vrot.slane %v5411, 4
  %v5414 = vrot.slane %v3818, 5
  %v5415 = vsel %vm2300, %v5413, %v5414
  %v5416 = vrot.slane %v5234, 5
  %v5417 = vrot.slane %v5416, 4
  %v5418 = vrot.slane %v3820, 5
  %v5419 = vsel %vm2300, %v5417, %v5418
  %v5420 = vrot.slane %v5418, 4
  %v5421 = vrot.slane %v3821, 5
  %v5422 = vsel %vm2300, %v5420, %v5421
  %v5423 = vrot.slane %v5235, 5
  %v5424 = vrot.slane %v5423, 4
  %v5425 = vrot.slane %v3823, 5
  %v5426 = vsel %vm2300, %v5424, %v5425
  %v5427 = vrot.slane %v5425, 4
  %v5428 = vrot.slane %v3824, 5
  %v5429 = vsel %vm2300, %v5427, %v5428
  %v5430 = vrot.slane %v5236, 5
  %v5431 = vrot.slane %v5430, 4
  %v5432 = vrot.slane %v3826, 5
  %v5433 = vsel %vm2300, %v5431, %v5432
  %v5434 = vrot.slane %v5432, 4
  %v5435 = vrot.slane %v3827, 5
  %v5436 = vsel %vm2300, %v5434, %v5435
  %v5437 = vrot.slane %v5237, 5
  %v5438 = vrot.slane %v5437, 4
  %v5439 = vrot.slane %v3829, 5
  %v5440 = vsel %vm2300, %v5438, %v5439
  %v5441 = vrot.slane %v5439, 4
  %v5442 = vrot.slane %v3830, 5
  %v5443 = vsel %vm2300, %v5441, %v5442
  %v5444 = vrot.slane %v5238, 5
  %v5445 = vrot.slane %v5444, 4
  %v5446 = vrot.slane %v3832, 5
  %v5447 = vsel %vm2300, %v5445, %v5446
  %v5448 = vrot.slane %v5446, 4
  %v5449 = vrot.slane %v3833, 5
  %v5450 = vsel %vm2300, %v5448, %v5449
  %v5451 = vrot.slane %v5239, 5
  %v5452 = vrot.slane %v5451, 4
  %v5453 = vrot.slane %v3835, 5
  %v5454 = vsel %vm2300, %v5452, %v5453
  %v5455 = vrot.slane %v5453, 4
  %v5456 = vrot.slane %v3836, 5
  %v5457 = vsel %vm2300, %v5455, %v5456
  %v5458 = vrot.slane %v5240, 5
  %v5459 = vrot.slane %v5458, 4
  %v5460 = vrot.slane %v3838, 5
  %v5461 = vsel %vm2300, %v5459, %v5460
  %v5462 = vrot.slane %v5460, 4
  %v5463 = vrot.slane %v3839, 5
  %v5464 = vsel %vm2300, %v5462, %v5463
  %v5465 = vrot.slane %v5241, 5
  %v5466 = vrot.slane %v5465, 4
  %v5467 = vrot.slane %v3841, 5
  %v5468 = vsel %vm2300, %v5466, %v5467
  %v5469 = vrot.slane %v5467, 4
  %v5470 = vrot.slane %v3842, 5
  %v5471 = vsel %vm2300, %v5469, %v5470
  %v5472 = vrot.slane %v5242, 5
  %v5473 = vrot.slane %v5472, 4
  %v5474 = vrot.slane %v3844, 5
  %v5475 = vsel %vm2300, %v5473, %v5474
  %v5476 = vrot.slane %v5474, 4
  %v5477 = vrot.slane %v3845, 5
  %v5478 = vsel %vm2300, %v5476, %v5477
  %v5479 = vrot.slane %v5243, 5
  %v5480 = vrot.slane %v5479, 4
  %v5481 = vrot.slane %v3847, 5
  %v5482 = vsel %vm2300, %v5480, %v5481
  %v5483 = vrot.slane %v5481, 4
  %v5484 = vrot.slane %v3848, 5
  %v5485 = vsel %vm2300, %v5483, %v5484
  %v5486 = vrot.slane %v5244, 5
  %v5487 = vrot.slane %v5486, 4
  %v5488 = vrot.slane %v3850, 5
  %v5489 = vsel %vm2300, %v5487, %v5488
  %v5490 = vrot.slane %v5488, 4
  %v5491 = vrot.slane %v3851, 5
  %v5492 = vsel %vm2300, %v5490, %v5491
  %v5493 = vrot.slane %v5245, 5
  %v5494 = vrot.slane %v5493, 4
  %v5495 = vrot.slane %v3853, 5
  %v5496 = vsel %vm2300, %v5494, %v5495
  %v5497 = vrot.slane %v5495, 4
  %v5498 = vrot.slane %v3854, 5
  %v5499 = vsel %vm2300, %v5497, %v5498
  %v5500 = vrot.slane %v5246, 5
  %v5501 = vrot.slane %v5500, 4
  %v5502 = vrot.slane %v3856, 5
  %v5503 = vsel %vm2300, %v5501, %v5502
  %v5504 = vrot.slane %v5502, 4
  %v5505 = vrot.slane %v3857, 5
  %v5506 = vsel %vm2300, %v5504, %v5505
  %v5507 = vrot.slane %v5247, 5
  %v5508 = vrot.slane %v5507, 4
  %v5509 = vrot.slane %v3859, 5
  %v5510 = vsel %vm2300, %v5508, %v5509
  %v5511 = vrot.slane %v5509, 4
  %v5512 = vrot.slane %v3860, 5
  %v5513 = vsel %vm2300, %v5511, %v5512
  %v5514 = vrot.slane %v5248, 5
  %v5515 = vrot.slane %v5514, 4
  %v5516 = vrot.slane %v3862, 5
  %v5517 = vsel %vm2300, %v5515, %v5516
  %v5518 = vrot.slane %v5516, 4
  %v5519 = vrot.slane %v3863, 5
  %v5520 = vsel %vm2300, %v5518, %v5519
  %v5521 = vrot.slane %v5249, 5
  %v5522 = vrot.slane %v5521, 4
  %v5523 = vrot.slane %v3865, 5
  %v5524 = vsel %vm2300, %v5522, %v5523
  %v5525 = vrot.slane %v5523, 4
  %v5526 = vrot.slane %v3866, 5
  %v5527 = vsel %vm2300, %v5525, %v5526
  %v5528 = vrot.slane %v5250, 5
  %v5529 = vrot.slane %v5528, 4
  %v5530 = vrot.slane %v3868, 5
  %v5531 = vsel %vm2300, %v5529, %v5530
  %v5532 = vrot.slane %v5530, 4
  %v5533 = vrot.slane %v3869, 5
  %v5534 = vsel %vm2300, %v5532, %v5533
  %v5535 = vrot.slane %v5251, 5
  %v5536 = vrot.slane %v5535, 4
  %v5537 = vrot.slane %v3871, 5
  %v5538 = vsel %vm2300, %v5536, %v5537
  %v5539 = vrot.slane %v5537, 4
  %v5540 = vrot.slane %v3872, 5
  %v5541 = vsel %vm2300, %v5539, %v5540
  %v5542 = vrot.slane %v5252, 5
  %v5543 = vrot.slane %v5542, 4
  %v5544 = vrot.slane %v3874, 5
  %v5545 = vsel %vm2300, %v5543, %v5544
  %v5546 = vrot.slane %v5544, 4
  %v5547 = vrot.slane %v3875, 5
  %v5548 = vsel %vm2300, %v5546, %v5547
  %v5549 = vrot.slane %v5253, 5
  %v5550 = vrot.slane %v5549, 4
  %v5551 = vrot.slane %v3877, 5
  %v5552 = vsel %vm2300, %v5550, %v5551
  %v5553 = vrot.slane %v5551, 4
  %v5554 = vrot.slane %v3878, 5
  %v5555 = vsel %vm2300, %v5553, %v5554
  %v5556 = vrot.slane %v5254, 5
  %v5557 = vrot.slane %v5556, 4
  %v5558 = vrot.slane %v3880, 5
  %v5559 = vsel %vm2300, %v5557, %v5558
  %v5560 = vrot.slane %v5558, 4
  %v5561 = vrot.slane %v3881, 5
  %v5562 = vsel %vm2300, %v5560, %v5561
  %v5563 = vrot.slane %v5255, 5
  %v5564 = vrot.slane %v5563, 4
  %v5565 = vrot.slane %v3883, 5
  %v5566 = vsel %vm2300, %v5564, %v5565
  %v5567 = vrot.slane %v5565, 4
  %v5568 = vrot.slane %v3884, 5
  %v5569 = vsel %vm2300, %v5567, %v5568
  %v5570 = vrot.slane %v5256, 5
  %v5571 = vrot.slane %v5570, 4
  %v5572 = vrot.slane %v3886, 5
  %v5573 = vsel %vm2300, %v5571, %v5572
  %v5574 = vrot.slane %v5572, 4
  %v5575 = vrot.slane %v3887, 5
  %v5576 = vsel %vm2300, %v5574, %v5575
  %s5577 = scalar_lea.vmem %s1, 100
  %v5578 = vld [vmem:[%s5577] sm:$0xf]
  %v5579 = vld [vmem:[%s5577 + $0x4] sm:$0xf]
  %v5580 = vld [vmem:[%s5577 + $0x8] sm:$0xf]
  %v5581 = vld [vmem:[%s5577 + $0xc] sm:$0xf]
  %v5582 = vld [vmem:[%s5577 + $0x10] sm:$0x3]
  %v5583 = vunpack.c.l.b16 %v5356
  %v5584 = vunpack.c.l.b16 %v5359
  %v5585 = vunpack.c.l.b16 %v5363
  %v5586 = vunpack.c.l.b16 %v5366
  %v5587 = vunpack.c.l.b16 %v5370
  %v5588 = vunpack.c.l.b16 %v5373
  %v5589 = vunpack.c.l.b16 %v5377
  %v5590 = vunpack.c.l.b16 %v5380
  %v5591 = vunpack.c.l.b16 %v5384
  %v5592 = vunpack.c.l.b16 %v5387
  %v5593 = vunpack.c.l.b16 %v5391
  %v5594 = vunpack.c.l.b16 %v5394
  %v5595 = vunpack.c.l.b16 %v5398
  %v5596 = vunpack.c.l.b16 %v5401
  %v5597 = vunpack.c.l.b16 %v5405
  %v5598 = vunpack.c.l.b16 %v5408
  %v5599 = vunpack.c.l.b16 %v5412
  %v5600 = vunpack.c.l.b16 %v5415
  %v5601 = vunpack.c.l.b16 %v5419
  %v5602 = vunpack.c.l.b16 %v5422
  %v5603 = vunpack.c.l.b16 %v5426
  %v5604 = vunpack.c.l.b16 %v5429
  %v5605 = vunpack.c.l.b16 %v5433
  %v5606 = vunpack.c.l.b16 %v5436
  %v5607 = vunpack.c.l.b16 %v5440
  %v5608 = vunpack.c.l.b16 %v5443
  %v5609 = vunpack.c.l.b16 %v5447
  %v5610 = vunpack.c.l.b16 %v5450
  %v5611 = vunpack.c.l.b16 %v5454
  %v5612 = vunpack.c.l.b16 %v5457
  %v5613 = vunpack.c.l.b16 %v5461
  %v5614 = vunpack.c.l.b16 %v5464
  %v5615 = vunpack.c.l.b16 %v5468
  %v5616 = vunpack.c.l.b16 %v5471
  %v5617 = vunpack.c.l.b16 %v5475
  %v5618 = vunpack.c.l.b16 %v5478
  %v5619 = vunpack.c.l.b16 %v5482
  %v5620 = vunpack.c.l.b16 %v5485
  %v5621 = vunpack.c.l.b16 %v5489
  %v5622 = vunpack.c.l.b16 %v5492
  %v5623 = vunpack.c.l.b16 %v5496
  %v5624 = vunpack.c.l.b16 %v5499
  %v5625 = vunpack.c.l.b16 %v5503
  %v5626 = vunpack.c.l.b16 %v5506
  %v5627 = vunpack.c.l.b16 %v5510
  %v5628 = vunpack.c.l.b16 %v5513
  %v5629 = vunpack.c.l.b16 %v5517
  %v5630 = vunpack.c.l.b16 %v5520
  %v5631 = vunpack.c.l.b16 %v5524
  %v5632 = vunpack.c.l.b16 %v5527
  %v5633 = vunpack.c.l.b16 %v5531
  %v5634 = vunpack.c.l.b16 %v5534
  %v5635 = vunpack.c.l.b16 %v5538
  %v5636 = vunpack.c.l.b16 %v5541
  %v5637 = vunpack.c.l.b16 %v5545
  %v5638 = vunpack.c.l.b16 %v5548
  %v5639 = vunpack.c.l.b16 %v5552
  %v5640 = vunpack.c.l.b16 %v5555
  %v5641 = vunpack.c.l.b16 %v5559
  %v5642 = vunpack.c.l.b16 %v5562
  %v5643 = vunpack.c.l.b16 %v5566
  %v5644 = vunpack.c.l.b16 %v5569
  %v5645 = vunpack.c.l.b16 %v5573
  %v5646 = vunpack.c.l.b16 %v5576
  %v5647 = vpack.c.b16 %v5584, %v5583
  %v5648 = vpack.c.b16 %v5586, %v5585
  %v5649 = vpack.c.b16 %v5588, %v5587
  %v5650 = vpack.c.b16 %v5590, %v5589
  %v5651 = vpack.c.b16 %v5592, %v5591
  %v5652 = vpack.c.b16 %v5594, %v5593
  %v5653 = vpack.c.b16 %v5596, %v5595
  %v5654 = vpack.c.b16 %v5598, %v5597
  %v5655 = vpack.c.b16 %v5600, %v5599
  %v5656 = vpack.c.b16 %v5602, %v5601
  %v5657 = vpack.c.b16 %v5604, %v5603
  %v5658 = vpack.c.b16 %v5606, %v5605
  %v5659 = vpack.c.b16 %v5608, %v5607
  %v5660 = vpack.c.b16 %v5610, %v5609
  %v5661 = vpack.c.b16 %v5612, %v5611
  %v5662 = vpack.c.b16 %v5614, %v5613
  %v5663 = vpack.c.b16 %v5616, %v5615
  %v5664 = vpack.c.b16 %v5618, %v5617
  %v5665 = vpack.c.b16 %v5620, %v5619
  %v5666 = vpack.c.b16 %v5622, %v5621
  %v5667 = vpack.c.b16 %v5624, %v5623
  %v5668 = vpack.c.b16 %v5626, %v5625
  %v5669 = vpack.c.b16 %v5628, %v5627
  %v5670 = vpack.c.b16 %v5630, %v5629
  %v5671 = vpack.c.b16 %v5632, %v5631
  %v5672 = vpack.c.b16 %v5634, %v5633
  %v5673 = vpack.c.b16 %v5636, %v5635
  %v5674 = vpack.c.b16 %v5638, %v5637
  %v5675 = vpack.c.b16 %v5640, %v5639
  %v5676 = vpack.c.b16 %v5642, %v5641
  %v5677 = vpack.c.b16 %v5644, %v5643
  %v5678 = vpack.c.b16 %v5646, %v5645
  %v5684 = vunpack.c.l.b16 %v5578
  %v5685 = vunpack.c.l.b16 %v5579
  %v5686 = vunpack.c.l.b16 %v5580
  %v5687 = vunpack.c.l.b16 %v5581
  %v5688 = vunpack.c.l.b16 %v5582
  %v5689 = vpack.c.b16 %v5685, %v5684
  %v5690 = vpack.c.b16 %v5687, %v5686
  %v5691 = vpack.c.b16 %v5688, %v5688
  %v5695 = vsel %vm280, %v5647, 0
  %v5698 = vsel %vm280, %v5648, 0
  %v5701 = vsel %vm280, %v5649, 0
  %v5704 = vsel %vm280, %v5650, 0
  %v5707 = vsel %vm280, %v5651, 0
  %v5710 = vsel %vm280, %v5652, 0
  %v5713 = vsel %vm280, %v5653, 0
  %v5716 = vsel %vm280, %v5654, 0
  %v5719 = vsel %vm280, %v5655, 0
  %v5722 = vsel %vm280, %v5656, 0
  %v5725 = vsel %vm280, %v5657, 0
  %v5728 = vsel %vm280, %v5658, 0
  %v5731 = vsel %vm280, %v5659, 0
  %v5734 = vsel %vm280, %v5660, 0
  %v5737 = vsel %vm280, %v5661, 0
  %v5740 = vsel %vm280, %v5662, 0
  %v5743 = vsel %vm280, %v5663, 0
  %v5746 = vsel %vm280, %v5664, 0
  %v5749 = vsel %vm280, %v5665, 0
  %v5752 = vsel %vm280, %v5666, 0
  %v5755 = vsel %vm280, %v5667, 0
  %v5758 = vsel %vm280, %v5668, 0
  %v5761 = vsel %vm280, %v5669, 0
  %v5764 = vsel %vm280, %v5670, 0
  %v5767 = vsel %vm280, %v5671, 0
  %v5770 = vsel %vm280, %v5672, 0
  %v5773 = vsel %vm280, %v5673, 0
  %v5776 = vsel %vm280, %v5674, 0
  %v5779 = vsel %vm280, %v5675, 0
  %v5782 = vsel %vm280, %v5676, 0
  %v5785 = vsel %vm280, %v5677, 0
  %v5788 = vsel %vm280, %v5678, 0
  %v5791 = vsel %vm377, %v5691, 0
  %5793 = vmatprep.subr.bf16.mxu0 0
  %5794 = vmatpush1.bf16.msra.mxu0 %v5689
  %5795 = vmatprep.subr.bf16.mxu0 0
  %5796 = vmatpush1.bf16.msra.mxu0 %v5690
  %5797 = vmatprep.subr.bf16.mxu0 0
  %5798 = vmatpush1.bf16.msra.mxu0 %v5791
  %5799 = vmatprep.subr.bf16.mxu0 0
  %5800 = vmatpush1.bf16.msra.mxu0 0
  %5801 = vmatprep.subr.bf16.mxu0 0
  %5802 = vmatpush1.bf16.msra.mxu0 0
  %5803 = vmatprep.subr.bf16.mxu0 0
  %5804 = vmatpush1.bf16.msra.mxu0 0
  %5805 = vmatprep.subr.bf16.mxu0 0
  %5806 = vmatpush1.bf16.msra.mxu0 0
  %5807 = vmatprep.subr.bf16.mxu0 0
  %5808 = vmatpush1.bf16.msra.mxu0 0
  %5809 = vmatprep.subr.bf16.mxu0 0
  %5810 = vmatpush1.bf16.msra.mxu0 0
  %5811 = vmatprep.subr.bf16.mxu0 0
  %5812 = vmatpush1.bf16.msra.mxu0 0
  %5813 = vmatprep.subr.bf16.mxu0 0
  %5814 = vmatpush1.bf16.msra.mxu0 0
  %5815 = vmatprep.subr.bf16.mxu0 0
  %5816 = vmatpush1.bf16.msra.mxu0 0
  %5817 = vmatprep.subr.bf16.mxu0 0
  %5818 = vmatpush1.bf16.msra.mxu0 0
  %5819 = vmatprep.subr.bf16.mxu0 0
  %5820 = vmatpush1.bf16.msra.mxu0 0
  %5821 = vmatprep.subr.bf16.mxu0 0
  %5822 = vmatpush1.bf16.msra.mxu0 0
  %5823 = vmatprep.subr.bf16.mxu0 0
  %5824 = vmatpush1.bf16.msra.mxu0 0
  %5825 = vmatprep.mubr.bf16.mxu0 0
  %5826 = vmatmul.mubr.bf16.gmra.mrb[0].mxu0 %v5695
  %v5827 = vpop.f32.mrb[0].mxu0
  %v5828 = vadd.f32 0.0, %v5827
  %v5829 = vpop.f32.mrb[0].mxu0
  %v5830 = vpop.f32.mrb[0].mxu0
  %v5831 = vadd.f32 0.0, %v5830
  %v5832 = vpop.f32.mrb[0].mxu0
  %5833 = vmatprep.mubr.bf16.mxu0 0
  %5834 = vmatmul.mubr.bf16.gmra.mrb[0].mxu0 %v5698
  %v5835 = vpop.f32.mrb[0].mxu0
  %v5836 = vadd.f32 0.0, %v5835
  %v5837 = vpop.f32.mrb[0].mxu0
  %v5838 = vpop.f32.mrb[0].mxu0
  %v5839 = vadd.f32 0.0, %v5838
  %v5840 = vpop.f32.mrb[0].mxu0
  %5841 = vmatprep.mubr.bf16.mxu0 0
  %5842 = vmatmul.mubr.bf16.gmra.mrb[0].mxu0 %v5701
  %v5843 = vpop.f32.mrb[0].mxu0
  %v5844 = vadd.f32 0.0, %v5843
  %v5845 = vpop.f32.mrb[0].mxu0
  %v5846 = vpop.f32.mrb[0].mxu0
  %v5847 = vadd.f32 0.0, %v5846
  %v5848 = vpop.f32.mrb[0].mxu0
  %5849 = vmatprep.mubr.bf16.mxu0 0
  %5850 = vmatmul.mubr.bf16.gmra.mrb[0].mxu0 %v5704
  %v5851 = vpop.f32.mrb[0].mxu0
  %v5852 = vadd.f32 0.0, %v5851
  %v5853 = vpop.f32.mrb[0].mxu0
  %v5854 = vpop.f32.mrb[0].mxu0
  %v5855 = vadd.f32 0.0, %v5854
  %v5856 = vpop.f32.mrb[0].mxu0
  %5857 = vmatprep.mubr.bf16.mxu0 0
  %5858 = vmatmul.mubr.bf16.gmra.mrb[0].mxu0 %v5707
  %v5859 = vpop.f32.mrb[0].mxu0
  %v5860 = vadd.f32 0.0, %v5859
  %v5861 = vpop.f32.mrb[0].mxu0
  %v5862 = vpop.f32.mrb[0].mxu0
  %v5863 = vadd.f32 0.0, %v5862
  %v5864 = vpop.f32.mrb[0].mxu0
  %5865 = vmatprep.mubr.bf16.mxu0 0
  %5866 = vmatmul.mubr.bf16.gmra.mrb[0].mxu0 %v5710
  %v5867 = vpop.f32.mrb[0].mxu0
  %v5868 = vadd.f32 0.0, %v5867
  %v5869 = vpop.f32.mrb[0].mxu0
  %v5870 = vpop.f32.mrb[0].mxu0
  %v5871 = vadd.f32 0.0, %v5870
  %v5872 = vpop.f32.mrb[0].mxu0
  %5873 = vmatprep.mubr.bf16.mxu0 0
  %5874 = vmatmul.mubr.bf16.gmra.mrb[0].mxu0 %v5713
  %v5875 = vpop.f32.mrb[0].mxu0
  %v5876 = vadd.f32 0.0, %v5875
  %v5877 = vpop.f32.mrb[0].mxu0
  %v5878 = vpop.f32.mrb[0].mxu0
  %v5879 = vadd.f32 0.0, %v5878
  %v5880 = vpop.f32.mrb[0].mxu0
  %5881 = vmatprep.mubr.bf16.mxu0 0
  %5882 = vmatmul.mubr.bf16.gmra.mrb[0].mxu0 %v5716
  %v5883 = vpop.f32.mrb[0].mxu0
  %v5884 = vadd.f32 0.0, %v5883
  %v5885 = vpop.f32.mrb[0].mxu0
  %v5886 = vpop.f32.mrb[0].mxu0
  %v5887 = vadd.f32 0.0, %v5886
  %v5888 = vpop.f32.mrb[0].mxu0
  %5889 = vmatprep.mubr.bf16.mxu0 0
  %5890 = vmatmul.mubr.bf16.gmra.mrb[0].mxu0 %v5719
  %v5891 = vpop.f32.mrb[0].mxu0
  %v5892 = vadd.f32 0.0, %v5891
  %v5893 = vpop.f32.mrb[0].mxu0
  %v5894 = vpop.f32.mrb[0].mxu0
  %v5895 = vadd.f32 0.0, %v5894
  %v5896 = vpop.f32.mrb[0].mxu0
  %5897 = vmatprep.mubr.bf16.mxu0 0
  %5898 = vmatmul.mubr.bf16.gmra.mrb[0].mxu0 %v5722
  %v5899 = vpop.f32.mrb[0].mxu0
  %v5900 = vadd.f32 0.0, %v5899
  %v5901 = vpop.f32.mrb[0].mxu0
  %v5902 = vpop.f32.mrb[0].mxu0
  %v5903 = vadd.f32 0.0, %v5902
  %v5904 = vpop.f32.mrb[0].mxu0
  %5905 = vmatprep.mubr.bf16.mxu0 0
  %5906 = vmatmul.mubr.bf16.gmra.mrb[0].mxu0 %v5725
  %v5907 = vpop.f32.mrb[0].mxu0
  %v5908 = vadd.f32 0.0, %v5907
  %v5909 = vpop.f32.mrb[0].mxu0
  %v5910 = vpop.f32.mrb[0].mxu0
  %v5911 = vadd.f32 0.0, %v5910
  %v5912 = vpop.f32.mrb[0].mxu0
  %5913 = vmatprep.mubr.bf16.mxu0 0
  %5914 = vmatmul.mubr.bf16.gmra.mrb[0].mxu0 %v5728
  %v5915 = vpop.f32.mrb[0].mxu0
  %v5916 = vadd.f32 0.0, %v5915
  %v5917 = vpop.f32.mrb[0].mxu0
  %v5918 = vpop.f32.mrb[0].mxu0
  %v5919 = vadd.f32 0.0, %v5918
  %v5920 = vpop.f32.mrb[0].mxu0
  %5921 = vmatprep.mubr.bf16.mxu0 0
  %5922 = vmatmul.mubr.bf16.gmra.mrb[0].mxu0 %v5731
  %v5923 = vpop.f32.mrb[0].mxu0
  %v5924 = vadd.f32 0.0, %v5923
  %v5925 = vpop.f32.mrb[0].mxu0
  %v5926 = vpop.f32.mrb[0].mxu0
  %v5927 = vadd.f32 0.0, %v5926
  %v5928 = vpop.f32.mrb[0].mxu0
  %5929 = vmatprep.mubr.bf16.mxu0 0
  %5930 = vmatmul.mubr.bf16.gmra.mrb[0].mxu0 %v5734
  %v5931 = vpop.f32.mrb[0].mxu0
  %v5932 = vadd.f32 0.0, %v5931
  %v5933 = vpop.f32.mrb[0].mxu0
  %v5934 = vpop.f32.mrb[0].mxu0
  %v5935 = vadd.f32 0.0, %v5934
  %v5936 = vpop.f32.mrb[0].mxu0
  %5937 = vmatprep.mubr.bf16.mxu0 0
  %5938 = vmatmul.mubr.bf16.gmra.mrb[0].mxu0 %v5737
  %v5939 = vpop.f32.mrb[0].mxu0
  %v5940 = vadd.f32 0.0, %v5939
  %v5941 = vpop.f32.mrb[0].mxu0
  %v5942 = vpop.f32.mrb[0].mxu0
  %v5943 = vadd.f32 0.0, %v5942
  %v5944 = vpop.f32.mrb[0].mxu0
  %5945 = vmatprep.mubr.bf16.mxu0 0
  %5946 = vmatmul.mubr.bf16.gmra.mrb[0].mxu0 %v5740
  %v5947 = vpop.f32.mrb[0].mxu0
  %v5948 = vadd.f32 0.0, %v5947
  %v5949 = vpop.f32.mrb[0].mxu0
  %v5950 = vpop.f32.mrb[0].mxu0
  %v5951 = vadd.f32 0.0, %v5950
  %v5952 = vpop.f32.mrb[0].mxu0
  %5953 = vmatprep.mubr.bf16.mxu0 0
  %5954 = vmatmul.mubr.bf16.gmra.mrb[0].mxu0 %v5743
  %v5955 = vpop.f32.mrb[0].mxu0
  %v5956 = vadd.f32 0.0, %v5955
  %v5957 = vpop.f32.mrb[0].mxu0
  %v5958 = vpop.f32.mrb[0].mxu0
  %v5959 = vadd.f32 0.0, %v5958
  %v5960 = vpop.f32.mrb[0].mxu0
  %5961 = vmatprep.mubr.bf16.mxu0 0
  %5962 = vmatmul.mubr.bf16.gmra.mrb[0].mxu0 %v5746
  %v5963 = vpop.f32.mrb[0].mxu0
  %v5964 = vadd.f32 0.0, %v5963
  %v5965 = vpop.f32.mrb[0].mxu0
  %v5966 = vpop.f32.mrb[0].mxu0
  %v5967 = vadd.f32 0.0, %v5966
  %v5968 = vpop.f32.mrb[0].mxu0
  %5969 = vmatprep.mubr.bf16.mxu0 0
  %5970 = vmatmul.mubr.bf16.gmra.mrb[0].mxu0 %v5749
  %v5971 = vpop.f32.mrb[0].mxu0
  %v5972 = vadd.f32 0.0, %v5971
  %v5973 = vpop.f32.mrb[0].mxu0
  %v5974 = vpop.f32.mrb[0].mxu0
  %v5975 = vadd.f32 0.0, %v5974
  %v5976 = vpop.f32.mrb[0].mxu0
  %5977 = vmatprep.mubr.bf16.mxu0 0
  %5978 = vmatmul.mubr.bf16.gmra.mrb[0].mxu0 %v5752
  %v5979 = vpop.f32.mrb[0].mxu0
  %v5980 = vadd.f32 0.0, %v5979
  %v5981 = vpop.f32.mrb[0].mxu0
  %v5982 = vpop.f32.mrb[0].mxu0
  %v5983 = vadd.f32 0.0, %v5982
  %v5984 = vpop.f32.mrb[0].mxu0
  %5985 = vmatprep.mubr.bf16.mxu0 0
  %5986 = vmatmul.mubr.bf16.gmra.mrb[0].mxu0 %v5755
  %v5987 = vpop.f32.mrb[0].mxu0
  %v5988 = vadd.f32 0.0, %v5987
  %v5989 = vpop.f32.mrb[0].mxu0
  %v5990 = vpop.f32.mrb[0].mxu0
  %v5991 = vadd.f32 0.0, %v5990
  %v5992 = vpop.f32.mrb[0].mxu0
  %5993 = vmatprep.mubr.bf16.mxu0 0
  %5994 = vmatmul.mubr.bf16.gmra.mrb[0].mxu0 %v5758
  %v5995 = vpop.f32.mrb[0].mxu0
  %v5996 = vadd.f32 0.0, %v5995
  %v5997 = vpop.f32.mrb[0].mxu0
  %v5998 = vpop.f32.mrb[0].mxu0
  %v5999 = vadd.f32 0.0, %v5998
  %v6000 = vpop.f32.mrb[0].mxu0
  %6001 = vmatprep.mubr.bf16.mxu0 0
  %6002 = vmatmul.mubr.bf16.gmra.mrb[0].mxu0 %v5761
  %v6003 = vpop.f32.mrb[0].mxu0
  %v6004 = vadd.f32 0.0, %v6003
  %v6005 = vpop.f32.mrb[0].mxu0
  %v6006 = vpop.f32.mrb[0].mxu0
  %v6007 = vadd.f32 0.0, %v6006
  %v6008 = vpop.f32.mrb[0].mxu0
  %6009 = vmatprep.mubr.bf16.mxu0 0
  %6010 = vmatmul.mubr.bf16.gmra.mrb[0].mxu0 %v5764
  %v6011 = vpop.f32.mrb[0].mxu0
  %v6012 = vadd.f32 0.0, %v6011
  %v6013 = vpop.f32.mrb[0].mxu0
  %v6014 = vpop.f32.mrb[0].mxu0
  %v6015 = vadd.f32 0.0, %v6014
  %v6016 = vpop.f32.mrb[0].mxu0
  %6017 = vmatprep.mubr.bf16.mxu0 0
  %6018 = vmatmul.mubr.bf16.gmra.mrb[0].mxu0 %v5767
  %v6019 = vpop.f32.mrb[0].mxu0
  %v6020 = vadd.f32 0.0, %v6019
  %v6021 = vpop.f32.mrb[0].mxu0
  %v6022 = vpop.f32.mrb[0].mxu0
  %v6023 = vadd.f32 0.0, %v6022
  %v6024 = vpop.f32.mrb[0].mxu0
  %6025 = vmatprep.mubr.bf16.mxu0 0
  %6026 = vmatmul.mubr.bf16.gmra.mrb[0].mxu0 %v5770
  %v6027 = vpop.f32.mrb[0].mxu0
  %v6028 = vadd.f32 0.0, %v6027
  %v6029 = vpop.f32.mrb[0].mxu0
  %v6030 = vpop.f32.mrb[0].mxu0
  %v6031 = vadd.f32 0.0, %v6030
  %v6032 = vpop.f32.mrb[0].mxu0
  %6033 = vmatprep.mubr.bf16.mxu0 0
  %6034 = vmatmul.mubr.bf16.gmra.mrb[0].mxu0 %v5773
  %v6035 = vpop.f32.mrb[0].mxu0
  %v6036 = vadd.f32 0.0, %v6035
  %v6037 = vpop.f32.mrb[0].mxu0
  %v6038 = vpop.f32.mrb[0].mxu0
  %v6039 = vadd.f32 0.0, %v6038
  %v6040 = vpop.f32.mrb[0].mxu0
  %6041 = vmatprep.mubr.bf16.mxu0 0
  %6042 = vmatmul.mubr.bf16.gmra.mrb[0].mxu0 %v5776
  %v6043 = vpop.f32.mrb[0].mxu0
  %v6044 = vadd.f32 0.0, %v6043
  %v6045 = vpop.f32.mrb[0].mxu0
  %v6046 = vpop.f32.mrb[0].mxu0
  %v6047 = vadd.f32 0.0, %v6046
  %v6048 = vpop.f32.mrb[0].mxu0
  %6049 = vmatprep.mubr.bf16.mxu0 0
  %6050 = vmatmul.mubr.bf16.gmra.mrb[0].mxu0 %v5779
  %v6051 = vpop.f32.mrb[0].mxu0
  %v6052 = vadd.f32 0.0, %v6051
  %v6053 = vpop.f32.mrb[0].mxu0
  %v6054 = vpop.f32.mrb[0].mxu0
  %v6055 = vadd.f32 0.0, %v6054
  %v6056 = vpop.f32.mrb[0].mxu0
  %6057 = vmatprep.mubr.bf16.mxu0 0
  %6058 = vmatmul.mubr.bf16.gmra.mrb[0].mxu0 %v5782
  %v6059 = vpop.f32.mrb[0].mxu0
  %v6060 = vadd.f32 0.0, %v6059
  %v6061 = vpop.f32.mrb[0].mxu0
  %v6062 = vpop.f32.mrb[0].mxu0
  %v6063 = vadd.f32 0.0, %v6062
  %v6064 = vpop.f32.mrb[0].mxu0
  %6065 = vmatprep.mubr.bf16.mxu0 0
  %6066 = vmatmul.mubr.bf16.gmra.mrb[0].mxu0 %v5785
  %v6067 = vpop.f32.mrb[0].mxu0
  %v6068 = vadd.f32 0.0, %v6067
  %v6069 = vpop.f32.mrb[0].mxu0
  %v6070 = vpop.f32.mrb[0].mxu0
  %v6071 = vadd.f32 0.0, %v6070
  %v6072 = vpop.f32.mrb[0].mxu0
  %6073 = vmatprep.mubr.bf16.mxu0 0
  %6074 = vmatmul.mubr.bf16.gmra.mrb[0].mxu0 %v5788
  %v6075 = vpop.f32.mrb[0].mxu0
  %v6076 = vadd.f32 0.0, %v6075
  %v6077 = vpop.f32.mrb[0].mxu0
  %v6078 = vpop.f32.mrb[0].mxu0
  %v6079 = vadd.f32 0.0, %v6078
  %v6080 = vpop.f32.mrb[0].mxu0
  %6081 = vdwg.mxu0
  %v6082 = vadd.f32 %v5161, %v5828
  %v6083 = vadd.f32 %v5162, %v5831
  %v6084 = vadd.f32 %v5163, %v5836
  %v6085 = vadd.f32 %v5164, %v5839
  %v6086 = vadd.f32 %v5165, %v5844
  %v6087 = vadd.f32 %v5166, %v5847
  %v6088 = vadd.f32 %v5167, %v5852
  %v6089 = vadd.f32 %v5168, %v5855
  %v6090 = vadd.f32 %v5169, %v5860
  %v6091 = vadd.f32 %v5170, %v5863
  %v6092 = vadd.f32 %v5171, %v5868
  %v6093 = vadd.f32 %v5172, %v5871
  %v6094 = vadd.f32 %v5173, %v5876
  %v6095 = vadd.f32 %v5174, %v5879
  %v6096 = vadd.f32 %v5175, %v5884
  %v6097 = vadd.f32 %v5176, %v5887
  %v6098 = vadd.f32 %v5177, %v5892
  %v6099 = vadd.f32 %v5178, %v5895
  %v6100 = vadd.f32 %v5179, %v5900
  %v6101 = vadd.f32 %v5180, %v5903
  %v6102 = vadd.f32 %v5181, %v5908
  %v6103 = vadd.f32 %v5182, %v5911
  %v6104 = vadd.f32 %v5183, %v5916
  %v6105 = vadd.f32 %v5184, %v5919
  %v6106 = vadd.f32 %v5185, %v5924
  %v6107 = vadd.f32 %v5186, %v5927
  %v6108 = vadd.f32 %v5187, %v5932
  %v6109 = vadd.f32 %v5188, %v5935
  %v6110 = vadd.f32 %v5189, %v5940
  %v6111 = vadd.f32 %v5190, %v5943
  %v6112 = vadd.f32 %v5191, %v5948
  %v6113 = vadd.f32 %v5192, %v5951
  %v6114 = vadd.f32 %v5193, %v5956
  %v6115 = vadd.f32 %v5194, %v5959
  %v6116 = vadd.f32 %v5195, %v5964
  %v6117 = vadd.f32 %v5196, %v5967
  %v6118 = vadd.f32 %v5197, %v5972
  %v6119 = vadd.f32 %v5198, %v5975
  %v6120 = vadd.f32 %v5199, %v5980
  %v6121 = vadd.f32 %v5200, %v5983
  %v6122 = vadd.f32 %v5201, %v5988
  %v6123 = vadd.f32 %v5202, %v5991
  %v6124 = vadd.f32 %v5203, %v5996
  %v6125 = vadd.f32 %v5204, %v5999
  %v6126 = vadd.f32 %v5205, %v6004
  %v6127 = vadd.f32 %v5206, %v6007
  %v6128 = vadd.f32 %v5207, %v6012
  %v6129 = vadd.f32 %v5208, %v6015
  %v6130 = vadd.f32 %v5209, %v6020
  %v6131 = vadd.f32 %v5210, %v6023
  %v6132 = vadd.f32 %v5211, %v6028
  %v6133 = vadd.f32 %v5212, %v6031
  %v6134 = vadd.f32 %v5213, %v6036
  %v6135 = vadd.f32 %v5214, %v6039
  %v6136 = vadd.f32 %v5215, %v6044
  %v6137 = vadd.f32 %v5216, %v6047
  %v6138 = vadd.f32 %v5217, %v6052
  %v6139 = vadd.f32 %v5218, %v6055
  %v6140 = vadd.f32 %v5219, %v6060
  %v6141 = vadd.f32 %v5220, %v6063
  %v6142 = vadd.f32 %v5221, %v6068
  %v6143 = vadd.f32 %v5222, %v6071
  %v6144 = vadd.f32 %v5223, %v6076
  %v6145 = vadd.f32 %v5224, %v6079
  %s6146 = scalar_lea.vmem %s0, 24
  %v6147 = vld [vmem:[%s6146] sm:$0xf]
  %v6148 = vld [vmem:[%s6146 + $0x4] sm:$0xf]
  %v6149 = vld [vmem:[%s6146 + $0xc] sm:$0xf]
  %v6150 = vld [vmem:[%s6146 + $0x10] sm:$0xf]
  %v6151 = vld [vmem:[%s6146 + $0x18] sm:$0xf]
  %v6152 = vld [vmem:[%s6146 + $0x1c] sm:$0xf]
  %v6153 = vld [vmem:[%s6146 + $0x24] sm:$0xf]
  %v6154 = vld [vmem:[%s6146 + $0x28] sm:$0xf]
  %v6155 = vld [vmem:[%s6146 + $0x30] sm:$0xf]
  %v6156 = vld [vmem:[%s6146 + $0x34] sm:$0xf]
  %v6157 = vld [vmem:[%s6146 + $0x3c] sm:$0xf]
  %v6158 = vld [vmem:[%s6146 + $0x40] sm:$0xf]
  %v6159 = vld [vmem:[%s6146 + $0x48] sm:$0xf]
  %v6160 = vld [vmem:[%s6146 + $0x4c] sm:$0xf]
  %v6161 = vld [vmem:[%s6146 + $0x54] sm:$0xf]
  %v6162 = vld [vmem:[%s6146 + $0x58] sm:$0xf]
  %v6163 = vld [vmem:[%s6146 + $0x60] sm:$0xf]
  %v6164 = vld [vmem:[%s6146 + $0x64] sm:$0xf]
  %v6165 = vld [vmem:[%s6146 + $0x6c] sm:$0xf]
  %v6166 = vld [vmem:[%s6146 + $0x70] sm:$0xf]
  %v6167 = vld [vmem:[%s6146 + $0x78] sm:$0xf]
  %v6168 = vld [vmem:[%s6146 + $0x7c] sm:$0xf]
  %v6169 = vld [vmem:[%s6146 + $0x84] sm:$0xf]
  %v6170 = vld [vmem:[%s6146 + $0x88] sm:$0xf]
  %v6171 = vld [vmem:[%s6146 + $0x90] sm:$0xf]
  %v6172 = vld [vmem:[%s6146 + $0x94] sm:$0xf]
  %v6173 = vld [vmem:[%s6146 + $0x9c] sm:$0xf]
  %v6174 = vld [vmem:[%s6146 + $0xa0] sm:$0xf]
  %v6175 = vld [vmem:[%s6146 + $0xa8] sm:$0xf]
  %v6176 = vld [vmem:[%s6146 + $0xac] sm:$0xf]
  %v6177 = vld [vmem:[%s6146 + $0xb4] sm:$0xf]
  %v6178 = vld [vmem:[%s6146 + $0xb8] sm:$0xf]
  %v6179 = vld [vmem:[%s6146 + $0xd8] sm:$0xf]
  %v6180 = vld [vmem:[%s6146 + $0xdc] sm:$0xf]
  %v6181 = vld [vmem:[%s6146 + $0xe4] sm:$0xf]
  %v6182 = vld [vmem:[%s6146 + $0xe8] sm:$0xf]
  %v6183 = vld [vmem:[%s6146 + $0xf0] sm:$0xf]
  %v6184 = vld [vmem:[%s6146 + $0xf4] sm:$0xf]
  %v6185 = vld [vmem:[%s6146 + $0xfc] sm:$0xf]
  %v6186 = vld [vmem:[%s6146 + $0x100] sm:$0xf]
  %v6187 = vld [vmem:[%s6146 + $0x108] sm:$0xf]
  %v6188 = vld [vmem:[%s6146 + $0x10c] sm:$0xf]
  %v6189 = vld [vmem:[%s6146 + $0x114] sm:$0xf]
  %v6190 = vld [vmem:[%s6146 + $0x118] sm:$0xf]
  %v6191 = vld [vmem:[%s6146 + $0x120] sm:$0xf]
  %v6192 = vld [vmem:[%s6146 + $0x124] sm:$0xf]
  %v6193 = vld [vmem:[%s6146 + $0x12c] sm:$0xf]
  %v6194 = vld [vmem:[%s6146 + $0x130] sm:$0xf]
  %v6195 = vld [vmem:[%s6146 + $0x138] sm:$0xf]
  %v6196 = vld [vmem:[%s6146 + $0x13c] sm:$0xf]
  %v6197 = vld [vmem:[%s6146 + $0x144] sm:$0xf]
  %v6198 = vld [vmem:[%s6146 + $0x148] sm:$0xf]
  %v6199 = vld [vmem:[%s6146 + $0x150] sm:$0xf]
  %v6200 = vld [vmem:[%s6146 + $0x154] sm:$0xf]
  %v6201 = vld [vmem:[%s6146 + $0x15c] sm:$0xf]
  %v6202 = vld [vmem:[%s6146 + $0x160] sm:$0xf]
  %v6203 = vld [vmem:[%s6146 + $0x168] sm:$0xf]
  %v6204 = vld [vmem:[%s6146 + $0x16c] sm:$0xf]
  %v6205 = vld [vmem:[%s6146 + $0x174] sm:$0xf]
  %v6206 = vld [vmem:[%s6146 + $0x178] sm:$0xf]
  %v6207 = vld [vmem:[%s6146 + $0x180] sm:$0xf]
  %v6208 = vld [vmem:[%s6146 + $0x184] sm:$0xf]
  %v6209 = vld [vmem:[%s6146 + $0x18c] sm:$0xf]
  %v6210 = vld [vmem:[%s6146 + $0x190] sm:$0xf]
  %s6211 = scalar_lea.vmem %s1, 120
  %v6212 = vld [vmem:[%s6211] sm:$0xf]
  %v6213 = vld [vmem:[%s6211 + $0x4] sm:$0xf]
  %v6214 = vld [vmem:[%s6211 + $0x8] sm:$0xf]
  %v6215 = vld [vmem:[%s6211 + $0xc] sm:$0xf]
  %v6216 = vld [vmem:[%s6211 + $0x10] sm:$0x3]
  %v6281 = vunpack.c.l.b16 %v6147
  %v6282 = vunpack.c.l.b16 %v6148
  %v6283 = vunpack.c.l.b16 %v6149
  %v6284 = vunpack.c.l.b16 %v6150
  %v6285 = vunpack.c.l.b16 %v6151
  %v6286 = vunpack.c.l.b16 %v6152
  %v6287 = vunpack.c.l.b16 %v6153
  %v6288 = vunpack.c.l.b16 %v6154
  %v6289 = vunpack.c.l.b16 %v6155
  %v6290 = vunpack.c.l.b16 %v6156
  %v6291 = vunpack.c.l.b16 %v6157
  %v6292 = vunpack.c.l.b16 %v6158
  %v6293 = vunpack.c.l.b16 %v6159
  %v6294 = vunpack.c.l.b16 %v6160
  %v6295 = vunpack.c.l.b16 %v6161
  %v6296 = vunpack.c.l.b16 %v6162
  %v6297 = vunpack.c.l.b16 %v6163
  %v6298 = vunpack.c.l.b16 %v6164
  %v6299 = vunpack.c.l.b16 %v6165
  %v6300 = vunpack.c.l.b16 %v6166
  %v6301 = vunpack.c.l.b16 %v6167
  %v6302 = vunpack.c.l.b16 %v6168
  %v6303 = vunpack.c.l.b16 %v6169
  %v6304 = vunpack.c.l.b16 %v6170
  %v6305 = vunpack.c.l.b16 %v6171
  %v6306 = vunpack.c.l.b16 %v6172
  %v6307 = vunpack.c.l.b16 %v6173
  %v6308 = vunpack.c.l.b16 %v6174
  %v6309 = vunpack.c.l.b16 %v6175
  %v6310 = vunpack.c.l.b16 %v6176
  %v6311 = vunpack.c.l.b16 %v6177
  %v6312 = vunpack.c.l.b16 %v6178
  %v6313 = vunpack.c.l.b16 %v6179
  %v6314 = vunpack.c.l.b16 %v6180
  %v6315 = vunpack.c.l.b16 %v6181
  %v6316 = vunpack.c.l.b16 %v6182
  %v6317 = vunpack.c.l.b16 %v6183
  %v6318 = vunpack.c.l.b16 %v6184
  %v6319 = vunpack.c.l.b16 %v6185
  %v6320 = vunpack.c.l.b16 %v6186
  %v6321 = vunpack.c.l.b16 %v6187
  %v6322 = vunpack.c.l.b16 %v6188
  %v6323 = vunpack.c.l.b16 %v6189
  %v6324 = vunpack.c.l.b16 %v6190
  %v6325 = vunpack.c.l.b16 %v6191
  %v6326 = vunpack.c.l.b16 %v6192
  %v6327 = vunpack.c.l.b16 %v6193
  %v6328 = vunpack.c.l.b16 %v6194
  %v6329 = vunpack.c.l.b16 %v6195
  %v6330 = vunpack.c.l.b16 %v6196
  %v6331 = vunpack.c.l.b16 %v6197
  %v6332 = vunpack.c.l.b16 %v6198
  %v6333 = vunpack.c.l.b16 %v6199
  %v6334 = vunpack.c.l.b16 %v6200
  %v6335 = vunpack.c.l.b16 %v6201
  %v6336 = vunpack.c.l.b16 %v6202
  %v6337 = vunpack.c.l.b16 %v6203
  %v6338 = vunpack.c.l.b16 %v6204
  %v6339 = vunpack.c.l.b16 %v6205
  %v6340 = vunpack.c.l.b16 %v6206
  %v6341 = vunpack.c.l.b16 %v6207
  %v6342 = vunpack.c.l.b16 %v6208
  %v6343 = vunpack.c.l.b16 %v6209
  %v6344 = vunpack.c.l.b16 %v6210
  %v6345 = vpack.c.b16 %v6282, %v6281
  %v6346 = vpack.c.b16 %v6284, %v6283
  %v6347 = vpack.c.b16 %v6286, %v6285
  %v6348 = vpack.c.b16 %v6288, %v6287
  %v6349 = vpack.c.b16 %v6290, %v6289
  %v6350 = vpack.c.b16 %v6292, %v6291
  %v6351 = vpack.c.b16 %v6294, %v6293
  %v6352 = vpack.c.b16 %v6296, %v6295
  %v6353 = vpack.c.b16 %v6298, %v6297
  %v6354 = vpack.c.b16 %v6300, %v6299
  %v6355 = vpack.c.b16 %v6302, %v6301
  %v6356 = vpack.c.b16 %v6304, %v6303
  %v6357 = vpack.c.b16 %v6306, %v6305
  %v6358 = vpack.c.b16 %v6308, %v6307
  %v6359 = vpack.c.b16 %v6310, %v6309
  %v6360 = vpack.c.b16 %v6312, %v6311
  %v6361 = vpack.c.b16 %v6314, %v6313
  %v6362 = vpack.c.b16 %v6316, %v6315
  %v6363 = vpack.c.b16 %v6318, %v6317
  %v6364 = vpack.c.b16 %v6320, %v6319
  %v6365 = vpack.c.b16 %v6322, %v6321
  %v6366 = vpack.c.b16 %v6324, %v6323
  %v6367 = vpack.c.b16 %v6326, %v6325
  %v6368 = vpack.c.b16 %v6328, %v6327
  %v6369 = vpack.c.b16 %v6330, %v6329
  %v6370 = vpack.c.b16 %v6332, %v6331
  %v6371 = vpack.c.b16 %v6334, %v6333
  %v6372 = vpack.c.b16 %v6336, %v6335
  %v6373 = vpack.c.b16 %v6338, %v6337
  %v6374 = vpack.c.b16 %v6340, %v6339
  %v6375 = vpack.c.b16 %v6342, %v6341
  %v6376 = vpack.c.b16 %v6344, %v6343
  %v6382 = vunpack.c.l.b16 %v6212
  %v6383 = vunpack.c.l.b16 %v6213
  %v6384 = vunpack.c.l.b16 %v6214
  %v6385 = vunpack.c.l.b16 %v6215
  %v6386 = vunpack.c.l.b16 %v6216
  %v6387 = vpack.c.b16 %v6383, %v6382
  %v6388 = vpack.c.b16 %v6385, %v6384
  %v6389 = vpack.c.b16 %v6386, %v6386
  %v6393 = vsel %vm280, %v6345, 0
  %v6396 = vsel %vm280, %v6346, 0
  %v6399 = vsel %vm280, %v6347, 0
  %v6402 = vsel %vm280, %v6348, 0
  %v6405 = vsel %vm280, %v6349, 0
  %v6408 = vsel %vm280, %v6350, 0
  %v6411 = vsel %vm280, %v6351, 0
  %v6414 = vsel %vm280, %v6352, 0
  %v6417 = vsel %vm280, %v6353, 0
  %v6420 = vsel %vm280, %v6354, 0
  %v6423 = vsel %vm280, %v6355, 0
  %v6426 = vsel %vm280, %v6356, 0
  %v6429 = vsel %vm280, %v6357, 0
  %v6432 = vsel %vm280, %v6358, 0
  %v6435 = vsel %vm280, %v6359, 0
  %v6438 = vsel %vm280, %v6360, 0
  %v6441 = vsel %vm280, %v6361, 0
  %v6444 = vsel %vm280, %v6362, 0
  %v6447 = vsel %vm280, %v6363, 0
  %v6450 = vsel %vm280, %v6364, 0
  %v6453 = vsel %vm280, %v6365, 0
  %v6456 = vsel %vm280, %v6366, 0
  %v6459 = vsel %vm280, %v6367, 0
  %v6462 = vsel %vm280, %v6368, 0
  %v6465 = vsel %vm280, %v6369, 0
  %v6468 = vsel %vm280, %v6370, 0
  %v6471 = vsel %vm280, %v6371, 0
  %v6474 = vsel %vm280, %v6372, 0
  %v6477 = vsel %vm280, %v6373, 0
  %v6480 = vsel %vm280, %v6374, 0
  %v6483 = vsel %vm280, %v6375, 0
  %v6486 = vsel %vm280, %v6376, 0
  %v6489 = vsel %vm377, %v6389, 0
  %6491 = vmatprep.subr.bf16.mxu0 0
  %6492 = vmatpush1.bf16.msra.mxu0 %v6387
  %6493 = vmatprep.subr.bf16.mxu0 0
  %6494 = vmatpush1.bf16.msra.mxu0 %v6388
  %6495 = vmatprep.subr.bf16.mxu0 0
  %6496 = vmatpush1.bf16.msra.mxu0 %v6489
  %6497 = vmatprep.subr.bf16.mxu0 0
  %6498 = vmatpush1.bf16.msra.mxu0 0
  %6499 = vmatprep.subr.bf16.mxu0 0
  %6500 = vmatpush1.bf16.msra.mxu0 0
  %6501 = vmatprep.subr.bf16.mxu0 0
  %6502 = vmatpush1.bf16.msra.mxu0 0
  %6503 = vmatprep.subr.bf16.mxu0 0
  %6504 = vmatpush1.bf16.msra.mxu0 0
  %6505 = vmatprep.subr.bf16.mxu0 0
  %6506 = vmatpush1.bf16.msra.mxu0 0
  %6507 = vmatprep.subr.bf16.mxu0 0
  %6508 = vmatpush1.bf16.msra.mxu0 0
  %6509 = vmatprep.subr.bf16.mxu0 0
  %6510 = vmatpush1.bf16.msra.mxu0 0
  %6511 = vmatprep.subr.bf16.mxu0 0
  %6512 = vmatpush1.bf16.msra.mxu0 0
  %6513 = vmatprep.subr.bf16.mxu0 0
  %6514 = vmatpush1.bf16.msra.mxu0 0
  %6515 = vmatprep.subr.bf16.mxu0 0
  %6516 = vmatpush1.bf16.msra.mxu0 0
  %6517 = vmatprep.subr.bf16.mxu0 0
  %6518 = vmatpush1.bf16.msra.mxu0 0
  %6519 = vmatprep.subr.bf16.mxu0 0
  %6520 = vmatpush1.bf16.msra.mxu0 0
  %6521 = vmatprep.subr.bf16.mxu0 0
  %6522 = vmatpush1.bf16.msra.mxu0 0
  %6523 = vmatprep.mubr.bf16.mxu0 0
  %6524 = vmatmul.mubr.bf16.gmra.mrb[0].mxu0 %v6393
  %v6525 = vpop.f32.mrb[0].mxu0
  %v6526 = vadd.f32 0.0, %v6525
  %v6527 = vpop.f32.mrb[0].mxu0
  %v6528 = vpop.f32.mrb[0].mxu0
  %v6529 = vadd.f32 0.0, %v6528
  %v6530 = vpop.f32.mrb[0].mxu0
  %6531 = vmatprep.mubr.bf16.mxu0 0
  %6532 = vmatmul.mubr.bf16.gmra.mrb[0].mxu0 %v6396
  %v6533 = vpop.f32.mrb[0].mxu0
  %v6534 = vadd.f32 0.0, %v6533
  %v6535 = vpop.f32.mrb[0].mxu0
  %v6536 = vpop.f32.mrb[0].mxu0
  %v6537 = vadd.f32 0.0, %v6536
  %v6538 = vpop.f32.mrb[0].mxu0
  %6539 = vmatprep.mubr.bf16.mxu0 0
  %6540 = vmatmul.mubr.bf16.gmra.mrb[0].mxu0 %v6399
  %v6541 = vpop.f32.mrb[0].mxu0
  %v6542 = vadd.f32 0.0, %v6541
  %v6543 = vpop.f32.mrb[0].mxu0
  %v6544 = vpop.f32.mrb[0].mxu0
  %v6545 = vadd.f32 0.0, %v6544
  %v6546 = vpop.f32.mrb[0].mxu0
  %6547 = vmatprep.mubr.bf16.mxu0 0
  %6548 = vmatmul.mubr.bf16.gmra.mrb[0].mxu0 %v6402
  %v6549 = vpop.f32.mrb[0].mxu0
  %v6550 = vadd.f32 0.0, %v6549
  %v6551 = vpop.f32.mrb[0].mxu0
  %v6552 = vpop.f32.mrb[0].mxu0
  %v6553 = vadd.f32 0.0, %v6552
  %v6554 = vpop.f32.mrb[0].mxu0
  %6555 = vmatprep.mubr.bf16.mxu0 0
  %6556 = vmatmul.mubr.bf16.gmra.mrb[0].mxu0 %v6405
  %v6557 = vpop.f32.mrb[0].mxu0
  %v6558 = vadd.f32 0.0, %v6557
  %v6559 = vpop.f32.mrb[0].mxu0
  %v6560 = vpop.f32.mrb[0].mxu0
  %v6561 = vadd.f32 0.0, %v6560
  %v6562 = vpop.f32.mrb[0].mxu0
  %6563 = vmatprep.mubr.bf16.mxu0 0
  %6564 = vmatmul.mubr.bf16.gmra.mrb[0].mxu0 %v6408
  %v6565 = vpop.f32.mrb[0].mxu0
  %v6566 = vadd.f32 0.0, %v6565
  %v6567 = vpop.f32.mrb[0].mxu0
  %v6568 = vpop.f32.mrb[0].mxu0
  %v6569 = vadd.f32 0.0, %v6568
  %v6570 = vpop.f32.mrb[0].mxu0
  %6571 = vmatprep.mubr.bf16.mxu0 0
  %6572 = vmatmul.mubr.bf16.gmra.mrb[0].mxu0 %v6411
  %v6573 = vpop.f32.mrb[0].mxu0
  %v6574 = vadd.f32 0.0, %v6573
  %v6575 = vpop.f32.mrb[0].mxu0
  %v6576 = vpop.f32.mrb[0].mxu0
  %v6577 = vadd.f32 0.0, %v6576
  %v6578 = vpop.f32.mrb[0].mxu0
  %6579 = vmatprep.mubr.bf16.mxu0 0
  %6580 = vmatmul.mubr.bf16.gmra.mrb[0].mxu0 %v6414
  %v6581 = vpop.f32.mrb[0].mxu0
  %v6582 = vadd.f32 0.0, %v6581
  %v6583 = vpop.f32.mrb[0].mxu0
  %v6584 = vpop.f32.mrb[0].mxu0
  %v6585 = vadd.f32 0.0, %v6584
  %v6586 = vpop.f32.mrb[0].mxu0
  %6587 = vmatprep.mubr.bf16.mxu0 0
  %6588 = vmatmul.mubr.bf16.gmra.mrb[0].mxu0 %v6417
  %v6589 = vpop.f32.mrb[0].mxu0
  %v6590 = vadd.f32 0.0, %v6589
  %v6591 = vpop.f32.mrb[0].mxu0
  %v6592 = vpop.f32.mrb[0].mxu0
  %v6593 = vadd.f32 0.0, %v6592
  %v6594 = vpop.f32.mrb[0].mxu0
  %6595 = vmatprep.mubr.bf16.mxu0 0
  %6596 = vmatmul.mubr.bf16.gmra.mrb[0].mxu0 %v6420
  %v6597 = vpop.f32.mrb[0].mxu0
  %v6598 = vadd.f32 0.0, %v6597
  %v6599 = vpop.f32.mrb[0].mxu0
  %v6600 = vpop.f32.mrb[0].mxu0
  %v6601 = vadd.f32 0.0, %v6600
  %v6602 = vpop.f32.mrb[0].mxu0
  %6603 = vmatprep.mubr.bf16.mxu0 0
  %6604 = vmatmul.mubr.bf16.gmra.mrb[0].mxu0 %v6423
  %v6605 = vpop.f32.mrb[0].mxu0
  %v6606 = vadd.f32 0.0, %v6605
  %v6607 = vpop.f32.mrb[0].mxu0
  %v6608 = vpop.f32.mrb[0].mxu0
  %v6609 = vadd.f32 0.0, %v6608
  %v6610 = vpop.f32.mrb[0].mxu0
  %6611 = vmatprep.mubr.bf16.mxu0 0
  %6612 = vmatmul.mubr.bf16.gmra.mrb[0].mxu0 %v6426
  %v6613 = vpop.f32.mrb[0].mxu0
  %v6614 = vadd.f32 0.0, %v6613
  %v6615 = vpop.f32.mrb[0].mxu0
  %v6616 = vpop.f32.mrb[0].mxu0
  %v6617 = vadd.f32 0.0, %v6616
  %v6618 = vpop.f32.mrb[0].mxu0
  %6619 = vmatprep.mubr.bf16.mxu0 0
  %6620 = vmatmul.mubr.bf16.gmra.mrb[0].mxu0 %v6429
  %v6621 = vpop.f32.mrb[0].mxu0
  %v6622 = vadd.f32 0.0, %v6621
  %v6623 = vpop.f32.mrb[0].mxu0
  %v6624 = vpop.f32.mrb[0].mxu0
  %v6625 = vadd.f32 0.0, %v6624
  %v6626 = vpop.f32.mrb[0].mxu0
  %6627 = vmatprep.mubr.bf16.mxu0 0
  %6628 = vmatmul.mubr.bf16.gmra.mrb[0].mxu0 %v6432
  %v6629 = vpop.f32.mrb[0].mxu0
  %v6630 = vadd.f32 0.0, %v6629
  %v6631 = vpop.f32.mrb[0].mxu0
  %v6632 = vpop.f32.mrb[0].mxu0
  %v6633 = vadd.f32 0.0, %v6632
  %v6634 = vpop.f32.mrb[0].mxu0
  %6635 = vmatprep.mubr.bf16.mxu0 0
  %6636 = vmatmul.mubr.bf16.gmra.mrb[0].mxu0 %v6435
  %v6637 = vpop.f32.mrb[0].mxu0
  %v6638 = vadd.f32 0.0, %v6637
  %v6639 = vpop.f32.mrb[0].mxu0
  %v6640 = vpop.f32.mrb[0].mxu0
  %v6641 = vadd.f32 0.0, %v6640
  %v6642 = vpop.f32.mrb[0].mxu0
  %6643 = vmatprep.mubr.bf16.mxu0 0
  %6644 = vmatmul.mubr.bf16.gmra.mrb[0].mxu0 %v6438
  %v6645 = vpop.f32.mrb[0].mxu0
  %v6646 = vadd.f32 0.0, %v6645
  %v6647 = vpop.f32.mrb[0].mxu0
  %v6648 = vpop.f32.mrb[0].mxu0
  %v6649 = vadd.f32 0.0, %v6648
  %v6650 = vpop.f32.mrb[0].mxu0
  %6651 = vmatprep.mubr.bf16.mxu0 0
  %6652 = vmatmul.mubr.bf16.gmra.mrb[0].mxu0 %v6441
  %v6653 = vpop.f32.mrb[0].mxu0
  %v6654 = vadd.f32 0.0, %v6653
  %v6655 = vpop.f32.mrb[0].mxu0
  %v6656 = vpop.f32.mrb[0].mxu0
  %v6657 = vadd.f32 0.0, %v6656
  %v6658 = vpop.f32.mrb[0].mxu0
  %6659 = vmatprep.mubr.bf16.mxu0 0
  %6660 = vmatmul.mubr.bf16.gmra.mrb[0].mxu0 %v6444
  %v6661 = vpop.f32.mrb[0].mxu0
  %v6662 = vadd.f32 0.0, %v6661
  %v6663 = vpop.f32.mrb[0].mxu0
  %v6664 = vpop.f32.mrb[0].mxu0
  %v6665 = vadd.f32 0.0, %v6664
  %v6666 = vpop.f32.mrb[0].mxu0
  %6667 = vmatprep.mubr.bf16.mxu0 0
  %6668 = vmatmul.mubr.bf16.gmra.mrb[0].mxu0 %v6447
  %v6669 = vpop.f32.mrb[0].mxu0
  %v6670 = vadd.f32 0.0, %v6669
  %v6671 = vpop.f32.mrb[0].mxu0
  %v6672 = vpop.f32.mrb[0].mxu0
  %v6673 = vadd.f32 0.0, %v6672
  %v6674 = vpop.f32.mrb[0].mxu0
  %6675 = vmatprep.mubr.bf16.mxu0 0
  %6676 = vmatmul.mubr.bf16.gmra.mrb[0].mxu0 %v6450
  %v6677 = vpop.f32.mrb[0].mxu0
  %v6678 = vadd.f32 0.0, %v6677
  %v6679 = vpop.f32.mrb[0].mxu0
  %v6680 = vpop.f32.mrb[0].mxu0
  %v6681 = vadd.f32 0.0, %v6680
  %v6682 = vpop.f32.mrb[0].mxu0
  %6683 = vmatprep.mubr.bf16.mxu0 0
  %6684 = vmatmul.mubr.bf16.gmra.mrb[0].mxu0 %v6453
  %v6685 = vpop.f32.mrb[0].mxu0
  %v6686 = vadd.f32 0.0, %v6685
  %v6687 = vpop.f32.mrb[0].mxu0
  %v6688 = vpop.f32.mrb[0].mxu0
  %v6689 = vadd.f32 0.0, %v6688
  %v6690 = vpop.f32.mrb[0].mxu0
  %6691 = vmatprep.mubr.bf16.mxu0 0
  %6692 = vmatmul.mubr.bf16.gmra.mrb[0].mxu0 %v6456
  %v6693 = vpop.f32.mrb[0].mxu0
  %v6694 = vadd.f32 0.0, %v6693
  %v6695 = vpop.f32.mrb[0].mxu0
  %v6696 = vpop.f32.mrb[0].mxu0
  %v6697 = vadd.f32 0.0, %v6696
  %v6698 = vpop.f32.mrb[0].mxu0
  %6699 = vmatprep.mubr.bf16.mxu0 0
  %6700 = vmatmul.mubr.bf16.gmra.mrb[0].mxu0 %v6459
  %v6701 = vpop.f32.mrb[0].mxu0
  %v6702 = vadd.f32 0.0, %v6701
  %v6703 = vpop.f32.mrb[0].mxu0
  %v6704 = vpop.f32.mrb[0].mxu0
  %v6705 = vadd.f32 0.0, %v6704
  %v6706 = vpop.f32.mrb[0].mxu0
  %6707 = vmatprep.mubr.bf16.mxu0 0
  %6708 = vmatmul.mubr.bf16.gmra.mrb[0].mxu0 %v6462
  %v6709 = vpop.f32.mrb[0].mxu0
  %v6710 = vadd.f32 0.0, %v6709
  %v6711 = vpop.f32.mrb[0].mxu0
  %v6712 = vpop.f32.mrb[0].mxu0
  %v6713 = vadd.f32 0.0, %v6712
  %v6714 = vpop.f32.mrb[0].mxu0
  %6715 = vmatprep.mubr.bf16.mxu0 0
  %6716 = vmatmul.mubr.bf16.gmra.mrb[0].mxu0 %v6465
  %v6717 = vpop.f32.mrb[0].mxu0
  %v6718 = vadd.f32 0.0, %v6717
  %v6719 = vpop.f32.mrb[0].mxu0
  %v6720 = vpop.f32.mrb[0].mxu0
  %v6721 = vadd.f32 0.0, %v6720
  %v6722 = vpop.f32.mrb[0].mxu0
  %6723 = vmatprep.mubr.bf16.mxu0 0
  %6724 = vmatmul.mubr.bf16.gmra.mrb[0].mxu0 %v6468
  %v6725 = vpop.f32.mrb[0].mxu0
  %v6726 = vadd.f32 0.0, %v6725
  %v6727 = vpop.f32.mrb[0].mxu0
  %v6728 = vpop.f32.mrb[0].mxu0
  %v6729 = vadd.f32 0.0, %v6728
  %v6730 = vpop.f32.mrb[0].mxu0
  %6731 = vmatprep.mubr.bf16.mxu0 0
  %6732 = vmatmul.mubr.bf16.gmra.mrb[0].mxu0 %v6471
  %v6733 = vpop.f32.mrb[0].mxu0
  %v6734 = vadd.f32 0.0, %v6733
  %v6735 = vpop.f32.mrb[0].mxu0
  %v6736 = vpop.f32.mrb[0].mxu0
  %v6737 = vadd.f32 0.0, %v6736
  %v6738 = vpop.f32.mrb[0].mxu0
  %6739 = vmatprep.mubr.bf16.mxu0 0
  %6740 = vmatmul.mubr.bf16.gmra.mrb[0].mxu0 %v6474
  %v6741 = vpop.f32.mrb[0].mxu0
  %v6742 = vadd.f32 0.0, %v6741
  %v6743 = vpop.f32.mrb[0].mxu0
  %v6744 = vpop.f32.mrb[0].mxu0
  %v6745 = vadd.f32 0.0, %v6744
  %v6746 = vpop.f32.mrb[0].mxu0
  %6747 = vmatprep.mubr.bf16.mxu0 0
  %6748 = vmatmul.mubr.bf16.gmra.mrb[0].mxu0 %v6477
  %v6749 = vpop.f32.mrb[0].mxu0
  %v6750 = vadd.f32 0.0, %v6749
  %v6751 = vpop.f32.mrb[0].mxu0
  %v6752 = vpop.f32.mrb[0].mxu0
  %v6753 = vadd.f32 0.0, %v6752
  %v6754 = vpop.f32.mrb[0].mxu0
  %6755 = vmatprep.mubr.bf16.mxu0 0
  %6756 = vmatmul.mubr.bf16.gmra.mrb[0].mxu0 %v6480
  %v6757 = vpop.f32.mrb[0].mxu0
  %v6758 = vadd.f32 0.0, %v6757
  %v6759 = vpop.f32.mrb[0].mxu0
  %v6760 = vpop.f32.mrb[0].mxu0
  %v6761 = vadd.f32 0.0, %v6760
  %v6762 = vpop.f32.mrb[0].mxu0
  %6763 = vmatprep.mubr.bf16.mxu0 0
  %6764 = vmatmul.mubr.bf16.gmra.mrb[0].mxu0 %v6483
  %v6765 = vpop.f32.mrb[0].mxu0
  %v6766 = vadd.f32 0.0, %v6765
  %v6767 = vpop.f32.mrb[0].mxu0
  %v6768 = vpop.f32.mrb[0].mxu0
  %v6769 = vadd.f32 0.0, %v6768
  %v6770 = vpop.f32.mrb[0].mxu0
  %6771 = vmatprep.mubr.bf16.mxu0 0
  %6772 = vmatmul.mubr.bf16.gmra.mrb[0].mxu0 %v6486
  %v6773 = vpop.f32.mrb[0].mxu0
  %v6774 = vadd.f32 0.0, %v6773
  %v6775 = vpop.f32.mrb[0].mxu0
  %v6776 = vpop.f32.mrb[0].mxu0
  %v6777 = vadd.f32 0.0, %v6776
  %v6778 = vpop.f32.mrb[0].mxu0
  %6779 = vdwg.mxu0
  %v6780 = vadd.f32 %v6082, %v6526
  %v6781 = vadd.f32 %v6083, %v6529
  %v6782 = vadd.f32 %v6084, %v6534
  %v6783 = vadd.f32 %v6085, %v6537
  %v6784 = vadd.f32 %v6086, %v6542
  %v6785 = vadd.f32 %v6087, %v6545
  %v6786 = vadd.f32 %v6088, %v6550
  %v6787 = vadd.f32 %v6089, %v6553
  %v6788 = vadd.f32 %v6090, %v6558
  %v6789 = vadd.f32 %v6091, %v6561
  %v6790 = vadd.f32 %v6092, %v6566
  %v6791 = vadd.f32 %v6093, %v6569
  %v6792 = vadd.f32 %v6094, %v6574
  %v6793 = vadd.f32 %v6095, %v6577
  %v6794 = vadd.f32 %v6096, %v6582
  %v6795 = vadd.f32 %v6097, %v6585
  %v6796 = vadd.f32 %v6098, %v6590
  %v6797 = vadd.f32 %v6099, %v6593
  %v6798 = vadd.f32 %v6100, %v6598
  %v6799 = vadd.f32 %v6101, %v6601
  %v6800 = vadd.f32 %v6102, %v6606
  %v6801 = vadd.f32 %v6103, %v6609
  %v6802 = vadd.f32 %v6104, %v6614
  %v6803 = vadd.f32 %v6105, %v6617
  %v6804 = vadd.f32 %v6106, %v6622
  %v6805 = vadd.f32 %v6107, %v6625
  %v6806 = vadd.f32 %v6108, %v6630
  %v6807 = vadd.f32 %v6109, %v6633
  %v6808 = vadd.f32 %v6110, %v6638
  %v6809 = vadd.f32 %v6111, %v6641
  %v6810 = vadd.f32 %v6112, %v6646
  %v6811 = vadd.f32 %v6113, %v6649
  %v6812 = vadd.f32 %v6114, %v6654
  %v6813 = vadd.f32 %v6115, %v6657
  %v6814 = vadd.f32 %v6116, %v6662
  %v6815 = vadd.f32 %v6117, %v6665
  %v6816 = vadd.f32 %v6118, %v6670
  %v6817 = vadd.f32 %v6119, %v6673
  %v6818 = vadd.f32 %v6120, %v6678
  %v6819 = vadd.f32 %v6121, %v6681
  %v6820 = vadd.f32 %v6122, %v6686
  %v6821 = vadd.f32 %v6123, %v6689
  %v6822 = vadd.f32 %v6124, %v6694
  %v6823 = vadd.f32 %v6125, %v6697
  %v6824 = vadd.f32 %v6126, %v6702
  %v6825 = vadd.f32 %v6127, %v6705
  %v6826 = vadd.f32 %v6128, %v6710
  %v6827 = vadd.f32 %v6129, %v6713
  %v6828 = vadd.f32 %v6130, %v6718
  %v6829 = vadd.f32 %v6131, %v6721
  %v6830 = vadd.f32 %v6132, %v6726
  %v6831 = vadd.f32 %v6133, %v6729
  %v6832 = vadd.f32 %v6134, %v6734
  %v6833 = vadd.f32 %v6135, %v6737
  %v6834 = vadd.f32 %v6136, %v6742
  %v6835 = vadd.f32 %v6137, %v6745
  %v6836 = vadd.f32 %v6138, %v6750
  %v6837 = vadd.f32 %v6139, %v6753
  %v6838 = vadd.f32 %v6140, %v6758
  %v6839 = vadd.f32 %v6141, %v6761
  %v6840 = vadd.f32 %v6142, %v6766
  %v6841 = vadd.f32 %v6143, %v6769
  %v6842 = vadd.f32 %v6144, %v6774
  %v6843 = vadd.f32 %v6145, %v6777
  %v6844 = vld [vmem:[%s6146] sm:$0xf]
  %v6845 = vld [vmem:[%s6146 + $0x4] sm:$0xf]
  %v6846 = vld [vmem:[%s6146 + $0x8] sm:$0x1]
  %v6847 = vld [vmem:[%s6146 + $0xc] sm:$0xf]
  %v6848 = vld [vmem:[%s6146 + $0x10] sm:$0xf]
  %v6849 = vld [vmem:[%s6146 + $0x14] sm:$0x1]
  %v6850 = vld [vmem:[%s6146 + $0x18] sm:$0xf]
  %v6851 = vld [vmem:[%s6146 + $0x1c] sm:$0xf]
  %v6852 = vld [vmem:[%s6146 + $0x20] sm:$0x1]
  %v6853 = vld [vmem:[%s6146 + $0x24] sm:$0xf]
  %v6854 = vld [vmem:[%s6146 + $0x28] sm:$0xf]
  %v6855 = vld [vmem:[%s6146 + $0x2c] sm:$0x1]
  %v6856 = vld [vmem:[%s6146 + $0x30] sm:$0xf]
  %v6857 = vld [vmem:[%s6146 + $0x34] sm:$0xf]
  %v6858 = vld [vmem:[%s6146 + $0x38] sm:$0x1]
  %v6859 = vld [vmem:[%s6146 + $0x3c] sm:$0xf]
  %v6860 = vld [vmem:[%s6146 + $0x40] sm:$0xf]
  %v6861 = vld [vmem:[%s6146 + $0x44] sm:$0x1]
  %v6862 = vld [vmem:[%s6146 + $0x48] sm:$0xf]
  %v6863 = vld [vmem:[%s6146 + $0x4c] sm:$0xf]
  %v6864 = vld [vmem:[%s6146 + $0x50] sm:$0x1]
  %v6865 = vld [vmem:[%s6146 + $0x54] sm:$0xf]
  %v6866 = vld [vmem:[%s6146 + $0x58] sm:$0xf]
  %v6867 = vld [vmem:[%s6146 + $0x5c] sm:$0x1]
  %v6868 = vld [vmem:[%s6146 + $0x60] sm:$0xf]
  %v6869 = vld [vmem:[%s6146 + $0x64] sm:$0xf]
  %v6870 = vld [vmem:[%s6146 + $0x68] sm:$0x1]
  %v6871 = vld [vmem:[%s6146 + $0x6c] sm:$0xf]
  %v6872 = vld [vmem:[%s6146 + $0x70] sm:$0xf]
  %v6873 = vld [vmem:[%s6146 + $0x74] sm:$0x1]
  %v6874 = vld [vmem:[%s6146 + $0x78] sm:$0xf]
  %v6875 = vld [vmem:[%s6146 + $0x7c] sm:$0xf]
  %v6876 = vld [vmem:[%s6146 + $0x80] sm:$0x1]
  %v6877 = vld [vmem:[%s6146 + $0x84] sm:$0xf]
  %v6878 = vld [vmem:[%s6146 + $0x88] sm:$0xf]
  %v6879 = vld [vmem:[%s6146 + $0x8c] sm:$0x1]
  %v6880 = vld [vmem:[%s6146 + $0x90] sm:$0xf]
  %v6881 = vld [vmem:[%s6146 + $0x94] sm:$0xf]
  %v6882 = vld [vmem:[%s6146 + $0x98] sm:$0x1]
  %v6883 = vld [vmem:[%s6146 + $0x9c] sm:$0xf]
  %v6884 = vld [vmem:[%s6146 + $0xa0] sm:$0xf]
  %v6885 = vld [vmem:[%s6146 + $0xa4] sm:$0x1]
  %v6886 = vld [vmem:[%s6146 + $0xa8] sm:$0xf]
  %v6887 = vld [vmem:[%s6146 + $0xac] sm:$0xf]
  %v6888 = vld [vmem:[%s6146 + $0xb0] sm:$0x1]
  %v6889 = vld [vmem:[%s6146 + $0xb4] sm:$0xf]
  %v6890 = vld [vmem:[%s6146 + $0xb8] sm:$0xf]
  %v6891 = vld [vmem:[%s6146 + $0xbc] sm:$0x1]
  %v6892 = vld [vmem:[%s6146 + $0xd8] sm:$0xf]
  %v6893 = vld [vmem:[%s6146 + $0xdc] sm:$0xf]
  %v6894 = vld [vmem:[%s6146 + $0xe0] sm:$0x1]
  %v6895 = vld [vmem:[%s6146 + $0xe4] sm:$0xf]
  %v6896 = vld [vmem:[%s6146 + $0xe8] sm:$0xf]
  %v6897 = vld [vmem:[%s6146 + $0xec] sm:$0x1]
  %v6898 = vld [vmem:[%s6146 + $0xf0] sm:$0xf]
  %v6899 = vld [vmem:[%s6146 + $0xf4] sm:$0xf]
  %v6900 = vld [vmem:[%s6146 + $0xf8] sm:$0x1]
  %v6901 = vld [vmem:[%s6146 + $0xfc] sm:$0xf]
  %v6902 = vld [vmem:[%s6146 + $0x100] sm:$0xf]
  %v6903 = vld [vmem:[%s6146 + $0x104] sm:$0x1]
  %v6904 = vld [vmem:[%s6146 + $0x108] sm:$0xf]
  %v6905 = vld [vmem:[%s6146 + $0x10c] sm:$0xf]
  %v6906 = vld [vmem:[%s6146 + $0x110] sm:$0x1]
  %v6907 = vld [vmem:[%s6146 + $0x114] sm:$0xf]
  %v6908 = vld [vmem:[%s6146 + $0x118] sm:$0xf]
  %v6909 = vld [vmem:[%s6146 + $0x11c] sm:$0x1]
  %v6910 = vld [vmem:[%s6146 + $0x120] sm:$0xf]
  %v6911 = vld [vmem:[%s6146 + $0x124] sm:$0xf]
  %v6912 = vld [vmem:[%s6146 + $0x128] sm:$0x1]
  %v6913 = vld [vmem:[%s6146 + $0x12c] sm:$0xf]
  %v6914 = vld [vmem:[%s6146 + $0x130] sm:$0xf]
  %v6915 = vld [vmem:[%s6146 + $0x134] sm:$0x1]
  %v6916 = vld [vmem:[%s6146 + $0x138] sm:$0xf]
  %v6917 = vld [vmem:[%s6146 + $0x13c] sm:$0xf]
  %v6918 = vld [vmem:[%s6146 + $0x140] sm:$0x1]
  %v6919 = vld [vmem:[%s6146 + $0x144] sm:$0xf]
  %v6920 = vld [vmem:[%s6146 + $0x148] sm:$0xf]
  %v6921 = vld [vmem:[%s6146 + $0x14c] sm:$0x1]
  %v6922 = vld [vmem:[%s6146 + $0x150] sm:$0xf]
  %v6923 = vld [vmem:[%s6146 + $0x154] sm:$0xf]
  %v6924 = vld [vmem:[%s6146 + $0x158] sm:$0x1]
  %v6925 = vld [vmem:[%s6146 + $0x15c] sm:$0xf]
  %v6926 = vld [vmem:[%s6146 + $0x160] sm:$0xf]
  %v6927 = vld [vmem:[%s6146 + $0x164] sm:$0x1]
  %v6928 = vld [vmem:[%s6146 + $0x168] sm:$0xf]
  %v6929 = vld [vmem:[%s6146 + $0x16c] sm:$0xf]
  %v6930 = vld [vmem:[%s6146 + $0x170] sm:$0x1]
  %v6931 = vld [vmem:[%s6146 + $0x174] sm:$0xf]
  %v6932 = vld [vmem:[%s6146 + $0x178] sm:$0xf]
  %v6933 = vld [vmem:[%s6146 + $0x17c] sm:$0x1]
  %v6934 = vld [vmem:[%s6146 + $0x180] sm:$0xf]
  %v6935 = vld [vmem:[%s6146 + $0x184] sm:$0xf]
  %v6936 = vld [vmem:[%s6146 + $0x188] sm:$0x1]
  %v6937 = vld [vmem:[%s6146 + $0x18c] sm:$0xf]
  %v6938 = vld [vmem:[%s6146 + $0x190] sm:$0xf]
  %v6939 = vld [vmem:[%s6146 + $0x194] sm:$0x1]
  %v6941 = vshrl.u32 %v6844, 16
  %v6943 = vrot.slane %v6941, 4
  %v6944 = vshll.u32 %v6844, 16
  %v6946 = vrot.slane %v6944, 5
  %v6947 = vor.u32 %v6943, %v6946
  %v6948 = vrot.slane %v6947, 4
  %v6950 = vshll.u32 %v6845, 16
  %v6952 = vrot.slane %v6950, 5
  %v6953 = vsel %vm832, %v6948, %v6952
  %v6954 = vshrl.u32 %v6845, 16
  %v6956 = vrot.slane %v6954, 4
  %v6957 = vor.u32 %v6956, %v6952
  %v6958 = vrot.slane %v6957, 4
  %v6960 = vshll.u32 %v6846, 16
  %v6962 = vrot.slane %v6960, 5
  %v6963 = vsel %vm832, %v6958, %v6962
  %v6965 = vshrl.u32 %v6847, 16
  %v6967 = vrot.slane %v6965, 4
  %v6968 = vshll.u32 %v6847, 16
  %v6970 = vrot.slane %v6968, 5
  %v6971 = vor.u32 %v6967, %v6970
  %v6972 = vrot.slane %v6971, 4
  %v6974 = vshll.u32 %v6848, 16
  %v6976 = vrot.slane %v6974, 5
  %v6977 = vsel %vm832, %v6972, %v6976
  %v6978 = vshrl.u32 %v6848, 16
  %v6980 = vrot.slane %v6978, 4
  %v6981 = vor.u32 %v6980, %v6976
  %v6982 = vrot.slane %v6981, 4
  %v6984 = vshll.u32 %v6849, 16
  %v6986 = vrot.slane %v6984, 5
  %v6987 = vsel %vm832, %v6982, %v6986
  %v6989 = vshrl.u32 %v6850, 16
  %v6991 = vrot.slane %v6989, 4
  %v6992 = vshll.u32 %v6850, 16
  %v6994 = vrot.slane %v6992, 5
  %v6995 = vor.u32 %v6991, %v6994
  %v6996 = vrot.slane %v6995, 4
  %v6998 = vshll.u32 %v6851, 16
  %v7000 = vrot.slane %v6998, 5
  %v7001 = vsel %vm832, %v6996, %v7000
  %v7002 = vshrl.u32 %v6851, 16
  %v7004 = vrot.slane %v7002, 4
  %v7005 = vor.u32 %v7004, %v7000
  %v7006 = vrot.slane %v7005, 4
  %v7008 = vshll.u32 %v6852, 16
  %v7010 = vrot.slane %v7008, 5
  %v7011 = vsel %vm832, %v7006, %v7010
  %v7013 = vshrl.u32 %v6853, 16
  %v7015 = vrot.slane %v7013, 4
  %v7016 = vshll.u32 %v6853, 16
  %v7018 = vrot.slane %v7016, 5
  %v7019 = vor.u32 %v7015, %v7018
  %v7020 = vrot.slane %v7019, 4
  %v7022 = vshll.u32 %v6854, 16
  %v7024 = vrot.slane %v7022, 5
  %v7025 = vsel %vm832, %v7020, %v7024
  %v7026 = vshrl.u32 %v6854, 16
  %v7028 = vrot.slane %v7026, 4
  %v7029 = vor.u32 %v7028, %v7024
  %v7030 = vrot.slane %v7029, 4
  %v7032 = vshll.u32 %v6855, 16
  %v7034 = vrot.slane %v7032, 5
  %v7035 = vsel %vm832, %v7030, %v7034
  %v7037 = vshrl.u32 %v6856, 16
  %v7039 = vrot.slane %v7037, 4
  %v7040 = vshll.u32 %v6856, 16
  %v7042 = vrot.slane %v7040, 5
  %v7043 = vor.u32 %v7039, %v7042
  %v7044 = vrot.slane %v7043, 4
  %v7046 = vshll.u32 %v6857, 16
  %v7048 = vrot.slane %v7046, 5
  %v7049 = vsel %vm832, %v7044, %v7048
  %v7050 = vshrl.u32 %v6857, 16
  %v7052 = vrot.slane %v7050, 4
  %v7053 = vor.u32 %v7052, %v7048
  %v7054 = vrot.slane %v7053, 4
  %v7056 = vshll.u32 %v6858, 16
  %v7058 = vrot.slane %v7056, 5
  %v7059 = vsel %vm832, %v7054, %v7058
  %v7061 = vshrl.u32 %v6859, 16
  %v7063 = vrot.slane %v7061, 4
  %v7064 = vshll.u32 %v6859, 16
  %v7066 = vrot.slane %v7064, 5
  %v7067 = vor.u32 %v7063, %v7066
  %v7068 = vrot.slane %v7067, 4
  %v7070 = vshll.u32 %v6860, 16
  %v7072 = vrot.slane %v7070, 5
  %v7073 = vsel %vm832, %v7068, %v7072
  %v7074 = vshrl.u32 %v6860, 16
  %v7076 = vrot.slane %v7074, 4
  %v7077 = vor.u32 %v7076, %v7072
  %v7078 = vrot.slane %v7077, 4
  %v7080 = vshll.u32 %v6861, 16
  %v7082 = vrot.slane %v7080, 5
  %v7083 = vsel %vm832, %v7078, %v7082
  %v7085 = vshrl.u32 %v6862, 16
  %v7087 = vrot.slane %v7085, 4
  %v7088 = vshll.u32 %v6862, 16
  %v7090 = vrot.slane %v7088, 5
  %v7091 = vor.u32 %v7087, %v7090
  %v7092 = vrot.slane %v7091, 4
  %v7094 = vshll.u32 %v6863, 16
  %v7096 = vrot.slane %v7094, 5
  %v7097 = vsel %vm832, %v7092, %v7096
  %v7098 = vshrl.u32 %v6863, 16
  %v7100 = vrot.slane %v7098, 4
  %v7101 = vor.u32 %v7100, %v7096
  %v7102 = vrot.slane %v7101, 4
  %v7104 = vshll.u32 %v6864, 16
  %v7106 = vrot.slane %v7104, 5
  %v7107 = vsel %vm832, %v7102, %v7106
  %v7109 = vshrl.u32 %v6865, 16
  %v7111 = vrot.slane %v7109, 4
  %v7112 = vshll.u32 %v6865, 16
  %v7114 = vrot.slane %v7112, 5
  %v7115 = vor.u32 %v7111, %v7114
  %v7116 = vrot.slane %v7115, 4
  %v7118 = vshll.u32 %v6866, 16
  %v7120 = vrot.slane %v7118, 5
  %v7121 = vsel %vm832, %v7116, %v7120
  %v7122 = vshrl.u32 %v6866, 16
  %v7124 = vrot.slane %v7122, 4
  %v7125 = vor.u32 %v7124, %v7120
  %v7126 = vrot.slane %v7125, 4
  %v7128 = vshll.u32 %v6867, 16
  %v7130 = vrot.slane %v7128, 5
  %v7131 = vsel %vm832, %v7126, %v7130
  %v7133 = vshrl.u32 %v6868, 16
  %v7135 = vrot.slane %v7133, 4
  %v7136 = vshll.u32 %v6868, 16
  %v7138 = vrot.slane %v7136, 5
  %v7139 = vor.u32 %v7135, %v7138
  %v7140 = vrot.slane %v7139, 4
  %v7142 = vshll.u32 %v6869, 16
  %v7144 = vrot.slane %v7142, 5
  %v7145 = vsel %vm832, %v7140, %v7144
  %v7146 = vshrl.u32 %v6869, 16
  %v7148 = vrot.slane %v7146, 4
  %v7149 = vor.u32 %v7148, %v7144
  %v7150 = vrot.slane %v7149, 4
  %v7152 = vshll.u32 %v6870, 16
  %v7154 = vrot.slane %v7152, 5
  %v7155 = vsel %vm832, %v7150, %v7154
  %v7157 = vshrl.u32 %v6871, 16
  %v7159 = vrot.slane %v7157, 4
  %v7160 = vshll.u32 %v6871, 16
  %v7162 = vrot.slane %v7160, 5
  %v7163 = vor.u32 %v7159, %v7162
  %v7164 = vrot.slane %v7163, 4
  %v7166 = vshll.u32 %v6872, 16
  %v7168 = vrot.slane %v7166, 5
  %v7169 = vsel %vm832, %v7164, %v7168
  %v7170 = vshrl.u32 %v6872, 16
  %v7172 = vrot.slane %v7170, 4
  %v7173 = vor.u32 %v7172, %v7168
  %v7174 = vrot.slane %v7173, 4
  %v7176 = vshll.u32 %v6873, 16
  %v7178 = vrot.slane %v7176, 5
  %v7179 = vsel %vm832, %v7174, %v7178
  %v7181 = vshrl.u32 %v6874, 16
  %v7183 = vrot.slane %v7181, 4
  %v7184 = vshll.u32 %v6874, 16
  %v7186 = vrot.slane %v7184, 5
  %v7187 = vor.u32 %v7183, %v7186
  %v7188 = vrot.slane %v7187, 4
  %v7190 = vshll.u32 %v6875, 16
  %v7192 = vrot.slane %v7190, 5
  %v7193 = vsel %vm832, %v7188, %v7192
  %v7194 = vshrl.u32 %v6875, 16
  %v7196 = vrot.slane %v7194, 4
  %v7197 = vor.u32 %v7196, %v7192
  %v7198 = vrot.slane %v7197, 4
  %v7200 = vshll.u32 %v6876, 16
  %v7202 = vrot.slane %v7200, 5
  %v7203 = vsel %vm832, %v7198, %v7202
  %v7205 = vshrl.u32 %v6877, 16
  %v7207 = vrot.slane %v7205, 4
  %v7208 = vshll.u32 %v6877, 16
  %v7210 = vrot.slane %v7208, 5
  %v7211 = vor.u32 %v7207, %v7210
  %v7212 = vrot.slane %v7211, 4
  %v7214 = vshll.u32 %v6878, 16
  %v7216 = vrot.slane %v7214, 5
  %v7217 = vsel %vm832, %v7212, %v7216
  %v7218 = vshrl.u32 %v6878, 16
  %v7220 = vrot.slane %v7218, 4
  %v7221 = vor.u32 %v7220, %v7216
  %v7222 = vrot.slane %v7221, 4
  %v7224 = vshll.u32 %v6879, 16
  %v7226 = vrot.slane %v7224, 5
  %v7227 = vsel %vm832, %v7222, %v7226
  %v7229 = vshrl.u32 %v6880, 16
  %v7231 = vrot.slane %v7229, 4
  %v7232 = vshll.u32 %v6880, 16
  %v7234 = vrot.slane %v7232, 5
  %v7235 = vor.u32 %v7231, %v7234
  %v7236 = vrot.slane %v7235, 4
  %v7238 = vshll.u32 %v6881, 16
  %v7240 = vrot.slane %v7238, 5
  %v7241 = vsel %vm832, %v7236, %v7240
  %v7242 = vshrl.u32 %v6881, 16
  %v7244 = vrot.slane %v7242, 4
  %v7245 = vor.u32 %v7244, %v7240
  %v7246 = vrot.slane %v7245, 4
  %v7248 = vshll.u32 %v6882, 16
  %v7250 = vrot.slane %v7248, 5
  %v7251 = vsel %vm832, %v7246, %v7250
  %v7253 = vshrl.u32 %v6883, 16
  %v7255 = vrot.slane %v7253, 4
  %v7256 = vshll.u32 %v6883, 16
  %v7258 = vrot.slane %v7256, 5
  %v7259 = vor.u32 %v7255, %v7258
  %v7260 = vrot.slane %v7259, 4
  %v7262 = vshll.u32 %v6884, 16
  %v7264 = vrot.slane %v7262, 5
  %v7265 = vsel %vm832, %v7260, %v7264
  %v7266 = vshrl.u32 %v6884, 16
  %v7268 = vrot.slane %v7266, 4
  %v7269 = vor.u32 %v7268, %v7264
  %v7270 = vrot.slane %v7269, 4
  %v7272 = vshll.u32 %v6885, 16
  %v7274 = vrot.slane %v7272, 5
  %v7275 = vsel %vm832, %v7270, %v7274
  %v7277 = vshrl.u32 %v6886, 16
  %v7279 = vrot.slane %v7277, 4
  %v7280 = vshll.u32 %v6886, 16
  %v7282 = vrot.slane %v7280, 5
  %v7283 = vor.u32 %v7279, %v7282
  %v7284 = vrot.slane %v7283, 4
  %v7286 = vshll.u32 %v6887, 16
  %v7288 = vrot.slane %v7286, 5
  %v7289 = vsel %vm832, %v7284, %v7288
  %v7290 = vshrl.u32 %v6887, 16
  %v7292 = vrot.slane %v7290, 4
  %v7293 = vor.u32 %v7292, %v7288
  %v7294 = vrot.slane %v7293, 4
  %v7296 = vshll.u32 %v6888, 16
  %v7298 = vrot.slane %v7296, 5
  %v7299 = vsel %vm832, %v7294, %v7298
  %v7301 = vshrl.u32 %v6889, 16
  %v7303 = vrot.slane %v7301, 4
  %v7304 = vshll.u32 %v6889, 16
  %v7306 = vrot.slane %v7304, 5
  %v7307 = vor.u32 %v7303, %v7306
  %v7308 = vrot.slane %v7307, 4
  %v7310 = vshll.u32 %v6890, 16
  %v7312 = vrot.slane %v7310, 5
  %v7313 = vsel %vm832, %v7308, %v7312
  %v7314 = vshrl.u32 %v6890, 16
  %v7316 = vrot.slane %v7314, 4
  %v7317 = vor.u32 %v7316, %v7312
  %v7318 = vrot.slane %v7317, 4
  %v7320 = vshll.u32 %v6891, 16
  %v7322 = vrot.slane %v7320, 5
  %v7323 = vsel %vm832, %v7318, %v7322
  %v7325 = vshrl.u32 %v6892, 16
  %v7327 = vrot.slane %v7325, 4
  %v7328 = vshll.u32 %v6892, 16
  %v7330 = vrot.slane %v7328, 5
  %v7331 = vor.u32 %v7327, %v7330
  %v7332 = vrot.slane %v7331, 4
  %v7334 = vshll.u32 %v6893, 16
  %v7336 = vrot.slane %v7334, 5
  %v7337 = vsel %vm832, %v7332, %v7336
  %v7338 = vshrl.u32 %v6893, 16
  %v7340 = vrot.slane %v7338, 4
  %v7341 = vor.u32 %v7340, %v7336
  %v7342 = vrot.slane %v7341, 4
  %v7344 = vshll.u32 %v6894, 16
  %v7346 = vrot.slane %v7344, 5
  %v7347 = vsel %vm832, %v7342, %v7346
  %v7349 = vshrl.u32 %v6895, 16
  %v7351 = vrot.slane %v7349, 4
  %v7352 = vshll.u32 %v6895, 16
  %v7354 = vrot.slane %v7352, 5
  %v7355 = vor.u32 %v7351, %v7354
  %v7356 = vrot.slane %v7355, 4
  %v7358 = vshll.u32 %v6896, 16
  %v7360 = vrot.slane %v7358, 5
  %v7361 = vsel %vm832, %v7356, %v7360
  %v7362 = vshrl.u32 %v6896, 16
  %v7364 = vrot.slane %v7362, 4
  %v7365 = vor.u32 %v7364, %v7360
  %v7366 = vrot.slane %v7365, 4
  %v7368 = vshll.u32 %v6897, 16
  %v7370 = vrot.slane %v7368, 5
  %v7371 = vsel %vm832, %v7366, %v7370
  %v7373 = vshrl.u32 %v6898, 16
  %v7375 = vrot.slane %v7373, 4
  %v7376 = vshll.u32 %v6898, 16
  %v7378 = vrot.slane %v7376, 5
  %v7379 = vor.u32 %v7375, %v7378
  %v7380 = vrot.slane %v7379, 4
  %v7382 = vshll.u32 %v6899, 16
  %v7384 = vrot.slane %v7382, 5
  %v7385 = vsel %vm832, %v7380, %v7384
  %v7386 = vshrl.u32 %v6899, 16
  %v7388 = vrot.slane %v7386, 4
  %v7389 = vor.u32 %v7388, %v7384
  %v7390 = vrot.slane %v7389, 4
  %v7392 = vshll.u32 %v6900, 16
  %v7394 = vrot.slane %v7392, 5
  %v7395 = vsel %vm832, %v7390, %v7394
  %v7397 = vshrl.u32 %v6901, 16
  %v7399 = vrot.slane %v7397, 4
  %v7400 = vshll.u32 %v6901, 16
  %v7402 = vrot.slane %v7400, 5
  %v7403 = vor.u32 %v7399, %v7402
  %v7404 = vrot.slane %v7403, 4
  %v7406 = vshll.u32 %v6902, 16
  %v7408 = vrot.slane %v7406, 5
  %v7409 = vsel %vm832, %v7404, %v7408
  %v7410 = vshrl.u32 %v6902, 16
  %v7412 = vrot.slane %v7410, 4
  %v7413 = vor.u32 %v7412, %v7408
  %v7414 = vrot.slane %v7413, 4
  %v7416 = vshll.u32 %v6903, 16
  %v7418 = vrot.slane %v7416, 5
  %v7419 = vsel %vm832, %v7414, %v7418
  %v7421 = vshrl.u32 %v6904, 16
  %v7423 = vrot.slane %v7421, 4
  %v7424 = vshll.u32 %v6904, 16
  %v7426 = vrot.slane %v7424, 5
  %v7427 = vor.u32 %v7423, %v7426
  %v7428 = vrot.slane %v7427, 4
  %v7430 = vshll.u32 %v6905, 16
  %v7432 = vrot.slane %v7430, 5
  %v7433 = vsel %vm832, %v7428, %v7432
  %v7434 = vshrl.u32 %v6905, 16
  %v7436 = vrot.slane %v7434, 4
  %v7437 = vor.u32 %v7436, %v7432
  %v7438 = vrot.slane %v7437, 4
  %v7440 = vshll.u32 %v6906, 16
  %v7442 = vrot.slane %v7440, 5
  %v7443 = vsel %vm832, %v7438, %v7442
  %v7445 = vshrl.u32 %v6907, 16
  %v7447 = vrot.slane %v7445, 4
  %v7448 = vshll.u32 %v6907, 16
  %v7450 = vrot.slane %v7448, 5
  %v7451 = vor.u32 %v7447, %v7450
  %v7452 = vrot.slane %v7451, 4
  %v7454 = vshll.u32 %v6908, 16
  %v7456 = vrot.slane %v7454, 5
  %v7457 = vsel %vm832, %v7452, %v7456
  %v7458 = vshrl.u32 %v6908, 16
  %v7460 = vrot.slane %v7458, 4
  %v7461 = vor.u32 %v7460, %v7456
  %v7462 = vrot.slane %v7461, 4
  %v7464 = vshll.u32 %v6909, 16
  %v7466 = vrot.slane %v7464, 5
  %v7467 = vsel %vm832, %v7462, %v7466
  %v7469 = vshrl.u32 %v6910, 16
  %v7471 = vrot.slane %v7469, 4
  %v7472 = vshll.u32 %v6910, 16
  %v7474 = vrot.slane %v7472, 5
  %v7475 = vor.u32 %v7471, %v7474
  %v7476 = vrot.slane %v7475, 4
  %v7478 = vshll.u32 %v6911, 16
  %v7480 = vrot.slane %v7478, 5
  %v7481 = vsel %vm832, %v7476, %v7480
  %v7482 = vshrl.u32 %v6911, 16
  %v7484 = vrot.slane %v7482, 4
  %v7485 = vor.u32 %v7484, %v7480
  %v7486 = vrot.slane %v7485, 4
  %v7488 = vshll.u32 %v6912, 16
  %v7490 = vrot.slane %v7488, 5
  %v7491 = vsel %vm832, %v7486, %v7490
  %v7493 = vshrl.u32 %v6913, 16
  %v7495 = vrot.slane %v7493, 4
  %v7496 = vshll.u32 %v6913, 16
  %v7498 = vrot.slane %v7496, 5
  %v7499 = vor.u32 %v7495, %v7498
  %v7500 = vrot.slane %v7499, 4
  %v7502 = vshll.u32 %v6914, 16
  %v7504 = vrot.slane %v7502, 5
  %v7505 = vsel %vm832, %v7500, %v7504
  %v7506 = vshrl.u32 %v6914, 16
  %v7508 = vrot.slane %v7506, 4
  %v7509 = vor.u32 %v7508, %v7504
  %v7510 = vrot.slane %v7509, 4
  %v7512 = vshll.u32 %v6915, 16
  %v7514 = vrot.slane %v7512, 5
  %v7515 = vsel %vm832, %v7510, %v7514
  %v7517 = vshrl.u32 %v6916, 16
  %v7519 = vrot.slane %v7517, 4
  %v7520 = vshll.u32 %v6916, 16
  %v7522 = vrot.slane %v7520, 5
  %v7523 = vor.u32 %v7519, %v7522
  %v7524 = vrot.slane %v7523, 4
  %v7526 = vshll.u32 %v6917, 16
  %v7528 = vrot.slane %v7526, 5
  %v7529 = vsel %vm832, %v7524, %v7528
  %v7530 = vshrl.u32 %v6917, 16
  %v7532 = vrot.slane %v7530, 4
  %v7533 = vor.u32 %v7532, %v7528
  %v7534 = vrot.slane %v7533, 4
  %v7536 = vshll.u32 %v6918, 16
  %v7538 = vrot.slane %v7536, 5
  %v7539 = vsel %vm832, %v7534, %v7538
  %v7541 = vshrl.u32 %v6919, 16
  %v7543 = vrot.slane %v7541, 4
  %v7544 = vshll.u32 %v6919, 16
  %v7546 = vrot.slane %v7544, 5
  %v7547 = vor.u32 %v7543, %v7546
  %v7548 = vrot.slane %v7547, 4
  %v7550 = vshll.u32 %v6920, 16
  %v7552 = vrot.slane %v7550, 5
  %v7553 = vsel %vm832, %v7548, %v7552
  %v7554 = vshrl.u32 %v6920, 16
  %v7556 = vrot.slane %v7554, 4
  %v7557 = vor.u32 %v7556, %v7552
  %v7558 = vrot.slane %v7557, 4
  %v7560 = vshll.u32 %v6921, 16
  %v7562 = vrot.slane %v7560, 5
  %v7563 = vsel %vm832, %v7558, %v7562
  %v7565 = vshrl.u32 %v6922, 16
  %v7567 = vrot.slane %v7565, 4
  %v7568 = vshll.u32 %v6922, 16
  %v7570 = vrot.slane %v7568, 5
  %v7571 = vor.u32 %v7567, %v7570
  %v7572 = vrot.slane %v7571, 4
  %v7574 = vshll.u32 %v6923, 16
  %v7576 = vrot.slane %v7574, 5
  %v7577 = vsel %vm832, %v7572, %v7576
  %v7578 = vshrl.u32 %v6923, 16
  %v7580 = vrot.slane %v7578, 4
  %v7581 = vor.u32 %v7580, %v7576
  %v7582 = vrot.slane %v7581, 4
  %v7584 = vshll.u32 %v6924, 16
  %v7586 = vrot.slane %v7584, 5
  %v7587 = vsel %vm832, %v7582, %v7586
  %v7589 = vshrl.u32 %v6925, 16
  %v7591 = vrot.slane %v7589, 4
  %v7592 = vshll.u32 %v6925, 16
  %v7594 = vrot.slane %v7592, 5
  %v7595 = vor.u32 %v7591, %v7594
  %v7596 = vrot.slane %v7595, 4
  %v7598 = vshll.u32 %v6926, 16
  %v7600 = vrot.slane %v7598, 5
  %v7601 = vsel %vm832, %v7596, %v7600
  %v7602 = vshrl.u32 %v6926, 16
  %v7604 = vrot.slane %v7602, 4
  %v7605 = vor.u32 %v7604, %v7600
  %v7606 = vrot.slane %v7605, 4
  %v7608 = vshll.u32 %v6927, 16
  %v7610 = vrot.slane %v7608, 5
  %v7611 = vsel %vm832, %v7606, %v7610
  %v7613 = vshrl.u32 %v6928, 16
  %v7615 = vrot.slane %v7613, 4
  %v7616 = vshll.u32 %v6928, 16
  %v7618 = vrot.slane %v7616, 5
  %v7619 = vor.u32 %v7615, %v7618
  %v7620 = vrot.slane %v7619, 4
  %v7622 = vshll.u32 %v6929, 16
  %v7624 = vrot.slane %v7622, 5
  %v7625 = vsel %vm832, %v7620, %v7624
  %v7626 = vshrl.u32 %v6929, 16
  %v7628 = vrot.slane %v7626, 4
  %v7629 = vor.u32 %v7628, %v7624
  %v7630 = vrot.slane %v7629, 4
  %v7632 = vshll.u32 %v6930, 16
  %v7634 = vrot.slane %v7632, 5
  %v7635 = vsel %vm832, %v7630, %v7634
  %v7637 = vshrl.u32 %v6931, 16
  %v7639 = vrot.slane %v7637, 4
  %v7640 = vshll.u32 %v6931, 16
  %v7642 = vrot.slane %v7640, 5
  %v7643 = vor.u32 %v7639, %v7642
  %v7644 = vrot.slane %v7643, 4
  %v7646 = vshll.u32 %v6932, 16
  %v7648 = vrot.slane %v7646, 5
  %v7649 = vsel %vm832, %v7644, %v7648
  %v7650 = vshrl.u32 %v6932, 16
  %v7652 = vrot.slane %v7650, 4
  %v7653 = vor.u32 %v7652, %v7648
  %v7654 = vrot.slane %v7653, 4
  %v7656 = vshll.u32 %v6933, 16
  %v7658 = vrot.slane %v7656, 5
  %v7659 = vsel %vm832, %v7654, %v7658
  %v7661 = vshrl.u32 %v6934, 16
  %v7663 = vrot.slane %v7661, 4
  %v7664 = vshll.u32 %v6934, 16
  %v7666 = vrot.slane %v7664, 5
  %v7667 = vor.u32 %v7663, %v7666
  %v7668 = vrot.slane %v7667, 4
  %v7670 = vshll.u32 %v6935, 16
  %v7672 = vrot.slane %v7670, 5
  %v7673 = vsel %vm832, %v7668, %v7672
  %v7674 = vshrl.u32 %v6935, 16
  %v7676 = vrot.slane %v7674, 4
  %v7677 = vor.u32 %v7676, %v7672
  %v7678 = vrot.slane %v7677, 4
  %v7680 = vshll.u32 %v6936, 16
  %v7682 = vrot.slane %v7680, 5
  %v7683 = vsel %vm832, %v7678, %v7682
  %v7685 = vshrl.u32 %v6937, 16
  %v7687 = vrot.slane %v7685, 4
  %v7688 = vshll.u32 %v6937, 16
  %v7690 = vrot.slane %v7688, 5
  %v7691 = vor.u32 %v7687, %v7690
  %v7692 = vrot.slane %v7691, 4
  %v7694 = vshll.u32 %v6938, 16
  %v7696 = vrot.slane %v7694, 5
  %v7697 = vsel %vm832, %v7692, %v7696
  %v7698 = vshrl.u32 %v6938, 16
  %v7700 = vrot.slane %v7698, 4
  %v7701 = vor.u32 %v7700, %v7696
  %v7702 = vrot.slane %v7701, 4
  %v7704 = vshll.u32 %v6939, 16
  %v7706 = vrot.slane %v7704, 5
  %v7707 = vsel %vm832, %v7702, %v7706
  %s7708 = scalar_lea.vmem %s1, 140
  %v7709 = vld [vmem:[%s7708] sm:$0xf]
  %v7710 = vld [vmem:[%s7708 + $0x4] sm:$0xf]
  %v7711 = vld [vmem:[%s7708 + $0x8] sm:$0xf]
  %v7712 = vld [vmem:[%s7708 + $0xc] sm:$0xf]
  %v7713 = vld [vmem:[%s7708 + $0x10] sm:$0x3]
  %v7714 = vunpack.c.l.b16 %v6953
  %v7715 = vunpack.c.l.b16 %v6963
  %v7716 = vunpack.c.l.b16 %v6977
  %v7717 = vunpack.c.l.b16 %v6987
  %v7718 = vunpack.c.l.b16 %v7001
  %v7719 = vunpack.c.l.b16 %v7011
  %v7720 = vunpack.c.l.b16 %v7025
  %v7721 = vunpack.c.l.b16 %v7035
  %v7722 = vunpack.c.l.b16 %v7049
  %v7723 = vunpack.c.l.b16 %v7059
  %v7724 = vunpack.c.l.b16 %v7073
  %v7725 = vunpack.c.l.b16 %v7083
  %v7726 = vunpack.c.l.b16 %v7097
  %v7727 = vunpack.c.l.b16 %v7107
  %v7728 = vunpack.c.l.b16 %v7121
  %v7729 = vunpack.c.l.b16 %v7131
  %v7730 = vunpack.c.l.b16 %v7145
  %v7731 = vunpack.c.l.b16 %v7155
  %v7732 = vunpack.c.l.b16 %v7169
  %v7733 = vunpack.c.l.b16 %v7179
  %v7734 = vunpack.c.l.b16 %v7193
  %v7735 = vunpack.c.l.b16 %v7203
  %v7736 = vunpack.c.l.b16 %v7217
  %v7737 = vunpack.c.l.b16 %v7227
  %v7738 = vunpack.c.l.b16 %v7241
  %v7739 = vunpack.c.l.b16 %v7251
  %v7740 = vunpack.c.l.b16 %v7265
  %v7741 = vunpack.c.l.b16 %v7275
  %v7742 = vunpack.c.l.b16 %v7289
  %v7743 = vunpack.c.l.b16 %v7299
  %v7744 = vunpack.c.l.b16 %v7313
  %v7745 = vunpack.c.l.b16 %v7323
  %v7746 = vunpack.c.l.b16 %v7337
  %v7747 = vunpack.c.l.b16 %v7347
  %v7748 = vunpack.c.l.b16 %v7361
  %v7749 = vunpack.c.l.b16 %v7371
  %v7750 = vunpack.c.l.b16 %v7385
  %v7751 = vunpack.c.l.b16 %v7395
  %v7752 = vunpack.c.l.b16 %v7409
  %v7753 = vunpack.c.l.b16 %v7419
  %v7754 = vunpack.c.l.b16 %v7433
  %v7755 = vunpack.c.l.b16 %v7443
  %v7756 = vunpack.c.l.b16 %v7457
  %v7757 = vunpack.c.l.b16 %v7467
  %v7758 = vunpack.c.l.b16 %v7481
  %v7759 = vunpack.c.l.b16 %v7491
  %v7760 = vunpack.c.l.b16 %v7505
  %v7761 = vunpack.c.l.b16 %v7515
  %v7762 = vunpack.c.l.b16 %v7529
  %v7763 = vunpack.c.l.b16 %v7539
  %v7764 = vunpack.c.l.b16 %v7553
  %v7765 = vunpack.c.l.b16 %v7563
  %v7766 = vunpack.c.l.b16 %v7577
  %v7767 = vunpack.c.l.b16 %v7587
  %v7768 = vunpack.c.l.b16 %v7601
  %v7769 = vunpack.c.l.b16 %v7611
  %v7770 = vunpack.c.l.b16 %v7625
  %v7771 = vunpack.c.l.b16 %v7635
  %v7772 = vunpack.c.l.b16 %v7649
  %v7773 = vunpack.c.l.b16 %v7659
  %v7774 = vunpack.c.l.b16 %v7673
  %v7775 = vunpack.c.l.b16 %v7683
  %v7776 = vunpack.c.l.b16 %v7697
  %v7777 = vunpack.c.l.b16 %v7707
  %v7778 = vpack.c.b16 %v7715, %v7714
  %v7779 = vpack.c.b16 %v7717, %v7716
  %v7780 = vpack.c.b16 %v7719, %v7718
  %v7781 = vpack.c.b16 %v7721, %v7720
  %v7782 = vpack.c.b16 %v7723, %v7722
  %v7783 = vpack.c.b16 %v7725, %v7724
  %v7784 = vpack.c.b16 %v7727, %v7726
  %v7785 = vpack.c.b16 %v7729, %v7728
  %v7786 = vpack.c.b16 %v7731, %v7730
  %v7787 = vpack.c.b16 %v7733, %v7732
  %v7788 = vpack.c.b16 %v7735, %v7734
  %v7789 = vpack.c.b16 %v7737, %v7736
  %v7790 = vpack.c.b16 %v7739, %v7738
  %v7791 = vpack.c.b16 %v7741, %v7740
  %v7792 = vpack.c.b16 %v7743, %v7742
  %v7793 = vpack.c.b16 %v7745, %v7744
  %v7794 = vpack.c.b16 %v7747, %v7746
  %v7795 = vpack.c.b16 %v7749, %v7748
  %v7796 = vpack.c.b16 %v7751, %v7750
  %v7797 = vpack.c.b16 %v7753, %v7752
  %v7798 = vpack.c.b16 %v7755, %v7754
  %v7799 = vpack.c.b16 %v7757, %v7756
  %v7800 = vpack.c.b16 %v7759, %v7758
  %v7801 = vpack.c.b16 %v7761, %v7760
  %v7802 = vpack.c.b16 %v7763, %v7762
  %v7803 = vpack.c.b16 %v7765, %v7764
  %v7804 = vpack.c.b16 %v7767, %v7766
  %v7805 = vpack.c.b16 %v7769, %v7768
  %v7806 = vpack.c.b16 %v7771, %v7770
  %v7807 = vpack.c.b16 %v7773, %v7772
  %v7808 = vpack.c.b16 %v7775, %v7774
  %v7809 = vpack.c.b16 %v7777, %v7776
  %v7815 = vunpack.c.l.b16 %v7709
  %v7816 = vunpack.c.l.b16 %v7710
  %v7817 = vunpack.c.l.b16 %v7711
  %v7818 = vunpack.c.l.b16 %v7712
  %v7819 = vunpack.c.l.b16 %v7713
  %v7820 = vpack.c.b16 %v7816, %v7815
  %v7821 = vpack.c.b16 %v7818, %v7817
  %v7822 = vpack.c.b16 %v7819, %v7819
  %v7826 = vsel %vm280, %v7778, 0
  %v7829 = vsel %vm280, %v7779, 0
  %v7832 = vsel %vm280, %v7780, 0
  %v7835 = vsel %vm280, %v7781, 0
  %v7838 = vsel %vm280, %v7782, 0
  %v7841 = vsel %vm280, %v7783, 0
  %v7844 = vsel %vm280, %v7784, 0
  %v7847 = vsel %vm280, %v7785, 0
  %v7850 = vsel %vm280, %v7786, 0
  %v7853 = vsel %vm280, %v7787, 0
  %v7856 = vsel %vm280, %v7788, 0
  %v7859 = vsel %vm280, %v7789, 0
  %v7862 = vsel %vm280, %v7790, 0
  %v7865 = vsel %vm280, %v7791, 0
  %v7868 = vsel %vm280, %v7792, 0
  %v7871 = vsel %vm280, %v7793, 0
  %v7874 = vsel %vm280, %v7794, 0
  %v7877 = vsel %vm280, %v7795, 0
  %v7880 = vsel %vm280, %v7796, 0
  %v7883 = vsel %vm280, %v7797, 0
  %v7886 = vsel %vm280, %v7798, 0
  %v7889 = vsel %vm280, %v7799, 0
  %v7892 = vsel %vm280, %v7800, 0
  %v7895 = vsel %vm280, %v7801, 0
  %v7898 = vsel %vm280, %v7802, 0
  %v7901 = vsel %vm280, %v7803, 0
  %v7904 = vsel %vm280, %v7804, 0
  %v7907 = vsel %vm280, %v7805, 0
  %v7910 = vsel %vm280, %v7806, 0
  %v7913 = vsel %vm280, %v7807, 0
  %v7916 = vsel %vm280, %v7808, 0
  %v7919 = vsel %vm280, %v7809, 0
  %v7922 = vsel %vm377, %v7822, 0
  %7924 = vmatprep.subr.bf16.mxu0 0
  %7925 = vmatpush1.bf16.msra.mxu0 %v7820
  %7926 = vmatprep.subr.bf16.mxu0 0
  %7927 = vmatpush1.bf16.msra.mxu0 %v7821
  %7928 = vmatprep.subr.bf16.mxu0 0
  %7929 = vmatpush1.bf16.msra.mxu0 %v7922
  %7930 = vmatprep.subr.bf16.mxu0 0
  %7931 = vmatpush1.bf16.msra.mxu0 0
  %7932 = vmatprep.subr.bf16.mxu0 0
  %7933 = vmatpush1.bf16.msra.mxu0 0
  %7934 = vmatprep.subr.bf16.mxu0 0
  %7935 = vmatpush1.bf16.msra.mxu0 0
  %7936 = vmatprep.subr.bf16.mxu0 0
  %7937 = vmatpush1.bf16.msra.mxu0 0
  %7938 = vmatprep.subr.bf16.mxu0 0
  %7939 = vmatpush1.bf16.msra.mxu0 0
  %7940 = vmatprep.subr.bf16.mxu0 0
  %7941 = vmatpush1.bf16.msra.mxu0 0
  %7942 = vmatprep.subr.bf16.mxu0 0
  %7943 = vmatpush1.bf16.msra.mxu0 0
  %7944 = vmatprep.subr.bf16.mxu0 0
  %7945 = vmatpush1.bf16.msra.mxu0 0
  %7946 = vmatprep.subr.bf16.mxu0 0
  %7947 = vmatpush1.bf16.msra.mxu0 0
  %7948 = vmatprep.subr.bf16.mxu0 0
  %7949 = vmatpush1.bf16.msra.mxu0 0
  %7950 = vmatprep.subr.bf16.mxu0 0
  %7951 = vmatpush1.bf16.msra.mxu0 0
  %7952 = vmatprep.subr.bf16.mxu0 0
  %7953 = vmatpush1.bf16.msra.mxu0 0
  %7954 = vmatprep.subr.bf16.mxu0 0
  %7955 = vmatpush1.bf16.msra.mxu0 0
  %7956 = vmatprep.mubr.bf16.mxu0 0
  %7957 = vmatmul.mubr.bf16.gmra.mrb[0].mxu0 %v7826
  %v7958 = vpop.f32.mrb[0].mxu0
  %v7959 = vadd.f32 0.0, %v7958
  %v7960 = vpop.f32.mrb[0].mxu0
  %v7961 = vpop.f32.mrb[0].mxu0
  %v7962 = vadd.f32 0.0, %v7961
  %v7963 = vpop.f32.mrb[0].mxu0
  %7964 = vmatprep.mubr.bf16.mxu0 0
  %7965 = vmatmul.mubr.bf16.gmra.mrb[0].mxu0 %v7829
  %v7966 = vpop.f32.mrb[0].mxu0
  %v7967 = vadd.f32 0.0, %v7966
  %v7968 = vpop.f32.mrb[0].mxu0
  %v7969 = vpop.f32.mrb[0].mxu0
  %v7970 = vadd.f32 0.0, %v7969
  %v7971 = vpop.f32.mrb[0].mxu0
  %7972 = vmatprep.mubr.bf16.mxu0 0
  %7973 = vmatmul.mubr.bf16.gmra.mrb[0].mxu0 %v7832
  %v7974 = vpop.f32.mrb[0].mxu0
  %v7975 = vadd.f32 0.0, %v7974
  %v7976 = vpop.f32.mrb[0].mxu0
  %v7977 = vpop.f32.mrb[0].mxu0
  %v7978 = vadd.f32 0.0, %v7977
  %v7979 = vpop.f32.mrb[0].mxu0
  %7980 = vmatprep.mubr.bf16.mxu0 0
  %7981 = vmatmul.mubr.bf16.gmra.mrb[0].mxu0 %v7835
  %v7982 = vpop.f32.mrb[0].mxu0
  %v7983 = vadd.f32 0.0, %v7982
  %v7984 = vpop.f32.mrb[0].mxu0
  %v7985 = vpop.f32.mrb[0].mxu0
  %v7986 = vadd.f32 0.0, %v7985
  %v7987 = vpop.f32.mrb[0].mxu0
  %7988 = vmatprep.mubr.bf16.mxu0 0
  %7989 = vmatmul.mubr.bf16.gmra.mrb[0].mxu0 %v7838
  %v7990 = vpop.f32.mrb[0].mxu0
  %v7991 = vadd.f32 0.0, %v7990
  %v7992 = vpop.f32.mrb[0].mxu0
  %v7993 = vpop.f32.mrb[0].mxu0
  %v7994 = vadd.f32 0.0, %v7993
  %v7995 = vpop.f32.mrb[0].mxu0
  %7996 = vmatprep.mubr.bf16.mxu0 0
  %7997 = vmatmul.mubr.bf16.gmra.mrb[0].mxu0 %v7841
  %v7998 = vpop.f32.mrb[0].mxu0
  %v7999 = vadd.f32 0.0, %v7998
  %v8000 = vpop.f32.mrb[0].mxu0
  %v8001 = vpop.f32.mrb[0].mxu0
  %v8002 = vadd.f32 0.0, %v8001
  %v8003 = vpop.f32.mrb[0].mxu0
  %8004 = vmatprep.mubr.bf16.mxu0 0
  %8005 = vmatmul.mubr.bf16.gmra.mrb[0].mxu0 %v7844
  %v8006 = vpop.f32.mrb[0].mxu0
  %v8007 = vadd.f32 0.0, %v8006
  %v8008 = vpop.f32.mrb[0].mxu0
  %v8009 = vpop.f32.mrb[0].mxu0
  %v8010 = vadd.f32 0.0, %v8009
  %v8011 = vpop.f32.mrb[0].mxu0
  %8012 = vmatprep.mubr.bf16.mxu0 0
  %8013 = vmatmul.mubr.bf16.gmra.mrb[0].mxu0 %v7847
  %v8014 = vpop.f32.mrb[0].mxu0
  %v8015 = vadd.f32 0.0, %v8014
  %v8016 = vpop.f32.mrb[0].mxu0
  %v8017 = vpop.f32.mrb[0].mxu0
  %v8018 = vadd.f32 0.0, %v8017
  %v8019 = vpop.f32.mrb[0].mxu0
  %8020 = vmatprep.mubr.bf16.mxu0 0
  %8021 = vmatmul.mubr.bf16.gmra.mrb[0].mxu0 %v7850
  %v8022 = vpop.f32.mrb[0].mxu0
  %v8023 = vadd.f32 0.0, %v8022
  %v8024 = vpop.f32.mrb[0].mxu0
  %v8025 = vpop.f32.mrb[0].mxu0
  %v8026 = vadd.f32 0.0, %v8025
  %v8027 = vpop.f32.mrb[0].mxu0
  %8028 = vmatprep.mubr.bf16.mxu0 0
  %8029 = vmatmul.mubr.bf16.gmra.mrb[0].mxu0 %v7853
  %v8030 = vpop.f32.mrb[0].mxu0
  %v8031 = vadd.f32 0.0, %v8030
  %v8032 = vpop.f32.mrb[0].mxu0
  %v8033 = vpop.f32.mrb[0].mxu0
  %v8034 = vadd.f32 0.0, %v8033
  %v8035 = vpop.f32.mrb[0].mxu0
  %8036 = vmatprep.mubr.bf16.mxu0 0
  %8037 = vmatmul.mubr.bf16.gmra.mrb[0].mxu0 %v7856
  %v8038 = vpop.f32.mrb[0].mxu0
  %v8039 = vadd.f32 0.0, %v8038
  %v8040 = vpop.f32.mrb[0].mxu0
  %v8041 = vpop.f32.mrb[0].mxu0
  %v8042 = vadd.f32 0.0, %v8041
  %v8043 = vpop.f32.mrb[0].mxu0
  %8044 = vmatprep.mubr.bf16.mxu0 0
  %8045 = vmatmul.mubr.bf16.gmra.mrb[0].mxu0 %v7859
  %v8046 = vpop.f32.mrb[0].mxu0
  %v8047 = vadd.f32 0.0, %v8046
  %v8048 = vpop.f32.mrb[0].mxu0
  %v8049 = vpop.f32.mrb[0].mxu0
  %v8050 = vadd.f32 0.0, %v8049
  %v8051 = vpop.f32.mrb[0].mxu0
  %8052 = vmatprep.mubr.bf16.mxu0 0
  %8053 = vmatmul.mubr.bf16.gmra.mrb[0].mxu0 %v7862
  %v8054 = vpop.f32.mrb[0].mxu0
  %v8055 = vadd.f32 0.0, %v8054
  %v8056 = vpop.f32.mrb[0].mxu0
  %v8057 = vpop.f32.mrb[0].mxu0
  %v8058 = vadd.f32 0.0, %v8057
  %v8059 = vpop.f32.mrb[0].mxu0
  %8060 = vmatprep.mubr.bf16.mxu0 0
  %8061 = vmatmul.mubr.bf16.gmra.mrb[0].mxu0 %v7865
  %v8062 = vpop.f32.mrb[0].mxu0
  %v8063 = vadd.f32 0.0, %v8062
  %v8064 = vpop.f32.mrb[0].mxu0
  %v8065 = vpop.f32.mrb[0].mxu0
  %v8066 = vadd.f32 0.0, %v8065
  %v8067 = vpop.f32.mrb[0].mxu0
  %8068 = vmatprep.mubr.bf16.mxu0 0
  %8069 = vmatmul.mubr.bf16.gmra.mrb[0].mxu0 %v7868
  %v8070 = vpop.f32.mrb[0].mxu0
  %v8071 = vadd.f32 0.0, %v8070
  %v8072 = vpop.f32.mrb[0].mxu0
  %v8073 = vpop.f32.mrb[0].mxu0
  %v8074 = vadd.f32 0.0, %v8073
  %v8075 = vpop.f32.mrb[0].mxu0
  %8076 = vmatprep.mubr.bf16.mxu0 0
  %8077 = vmatmul.mubr.bf16.gmra.mrb[0].mxu0 %v7871
  %v8078 = vpop.f32.mrb[0].mxu0
  %v8079 = vadd.f32 0.0, %v8078
  %v8080 = vpop.f32.mrb[0].mxu0
  %v8081 = vpop.f32.mrb[0].mxu0
  %v8082 = vadd.f32 0.0, %v8081
  %v8083 = vpop.f32.mrb[0].mxu0
  %8084 = vmatprep.mubr.bf16.mxu0 0
  %8085 = vmatmul.mubr.bf16.gmra.mrb[0].mxu0 %v7874
  %v8086 = vpop.f32.mrb[0].mxu0
  %v8087 = vadd.f32 0.0, %v8086
  %v8088 = vpop.f32.mrb[0].mxu0
  %v8089 = vpop.f32.mrb[0].mxu0
  %v8090 = vadd.f32 0.0, %v8089
  %v8091 = vpop.f32.mrb[0].mxu0
  %8092 = vmatprep.mubr.bf16.mxu0 0
  %8093 = vmatmul.mubr.bf16.gmra.mrb[0].mxu0 %v7877
  %v8094 = vpop.f32.mrb[0].mxu0
  %v8095 = vadd.f32 0.0, %v8094
  %v8096 = vpop.f32.mrb[0].mxu0
  %v8097 = vpop.f32.mrb[0].mxu0
  %v8098 = vadd.f32 0.0, %v8097
  %v8099 = vpop.f32.mrb[0].mxu0
  %8100 = vmatprep.mubr.bf16.mxu0 0
  %8101 = vmatmul.mubr.bf16.gmra.mrb[0].mxu0 %v7880
  %v8102 = vpop.f32.mrb[0].mxu0
  %v8103 = vadd.f32 0.0, %v8102
  %v8104 = vpop.f32.mrb[0].mxu0
  %v8105 = vpop.f32.mrb[0].mxu0
  %v8106 = vadd.f32 0.0, %v8105
  %v8107 = vpop.f32.mrb[0].mxu0
  %8108 = vmatprep.mubr.bf16.mxu0 0
  %8109 = vmatmul.mubr.bf16.gmra.mrb[0].mxu0 %v7883
  %v8110 = vpop.f32.mrb[0].mxu0
  %v8111 = vadd.f32 0.0, %v8110
  %v8112 = vpop.f32.mrb[0].mxu0
  %v8113 = vpop.f32.mrb[0].mxu0
  %v8114 = vadd.f32 0.0, %v8113
  %v8115 = vpop.f32.mrb[0].mxu0
  %8116 = vmatprep.mubr.bf16.mxu0 0
  %8117 = vmatmul.mubr.bf16.gmra.mrb[0].mxu0 %v7886
  %v8118 = vpop.f32.mrb[0].mxu0
  %v8119 = vadd.f32 0.0, %v8118
  %v8120 = vpop.f32.mrb[0].mxu0
  %v8121 = vpop.f32.mrb[0].mxu0
  %v8122 = vadd.f32 0.0, %v8121
  %v8123 = vpop.f32.mrb[0].mxu0
  %8124 = vmatprep.mubr.bf16.mxu0 0
  %8125 = vmatmul.mubr.bf16.gmra.mrb[0].mxu0 %v7889
  %v8126 = vpop.f32.mrb[0].mxu0
  %v8127 = vadd.f32 0.0, %v8126
  %v8128 = vpop.f32.mrb[0].mxu0
  %v8129 = vpop.f32.mrb[0].mxu0
  %v8130 = vadd.f32 0.0, %v8129
  %v8131 = vpop.f32.mrb[0].mxu0
  %8132 = vmatprep.mubr.bf16.mxu0 0
  %8133 = vmatmul.mubr.bf16.gmra.mrb[0].mxu0 %v7892
  %v8134 = vpop.f32.mrb[0].mxu0
  %v8135 = vadd.f32 0.0, %v8134
  %v8136 = vpop.f32.mrb[0].mxu0
  %v8137 = vpop.f32.mrb[0].mxu0
  %v8138 = vadd.f32 0.0, %v8137
  %v8139 = vpop.f32.mrb[0].mxu0
  %8140 = vmatprep.mubr.bf16.mxu0 0
  %8141 = vmatmul.mubr.bf16.gmra.mrb[0].mxu0 %v7895
  %v8142 = vpop.f32.mrb[0].mxu0
  %v8143 = vadd.f32 0.0, %v8142
  %v8144 = vpop.f32.mrb[0].mxu0
  %v8145 = vpop.f32.mrb[0].mxu0
  %v8146 = vadd.f32 0.0, %v8145
  %v8147 = vpop.f32.mrb[0].mxu0
  %8148 = vmatprep.mubr.bf16.mxu0 0
  %8149 = vmatmul.mubr.bf16.gmra.mrb[0].mxu0 %v7898
  %v8150 = vpop.f32.mrb[0].mxu0
  %v8151 = vadd.f32 0.0, %v8150
  %v8152 = vpop.f32.mrb[0].mxu0
  %v8153 = vpop.f32.mrb[0].mxu0
  %v8154 = vadd.f32 0.0, %v8153
  %v8155 = vpop.f32.mrb[0].mxu0
  %8156 = vmatprep.mubr.bf16.mxu0 0
  %8157 = vmatmul.mubr.bf16.gmra.mrb[0].mxu0 %v7901
  %v8158 = vpop.f32.mrb[0].mxu0
  %v8159 = vadd.f32 0.0, %v8158
  %v8160 = vpop.f32.mrb[0].mxu0
  %v8161 = vpop.f32.mrb[0].mxu0
  %v8162 = vadd.f32 0.0, %v8161
  %v8163 = vpop.f32.mrb[0].mxu0
  %8164 = vmatprep.mubr.bf16.mxu0 0
  %8165 = vmatmul.mubr.bf16.gmra.mrb[0].mxu0 %v7904
  %v8166 = vpop.f32.mrb[0].mxu0
  %v8167 = vadd.f32 0.0, %v8166
  %v8168 = vpop.f32.mrb[0].mxu0
  %v8169 = vpop.f32.mrb[0].mxu0
  %v8170 = vadd.f32 0.0, %v8169
  %v8171 = vpop.f32.mrb[0].mxu0
  %8172 = vmatprep.mubr.bf16.mxu0 0
  %8173 = vmatmul.mubr.bf16.gmra.mrb[0].mxu0 %v7907
  %v8174 = vpop.f32.mrb[0].mxu0
  %v8175 = vadd.f32 0.0, %v8174
  %v8176 = vpop.f32.mrb[0].mxu0
  %v8177 = vpop.f32.mrb[0].mxu0
  %v8178 = vadd.f32 0.0, %v8177
  %v8179 = vpop.f32.mrb[0].mxu0
  %8180 = vmatprep.mubr.bf16.mxu0 0
  %8181 = vmatmul.mubr.bf16.gmra.mrb[0].mxu0 %v7910
  %v8182 = vpop.f32.mrb[0].mxu0
  %v8183 = vadd.f32 0.0, %v8182
  %v8184 = vpop.f32.mrb[0].mxu0
  %v8185 = vpop.f32.mrb[0].mxu0
  %v8186 = vadd.f32 0.0, %v8185
  %v8187 = vpop.f32.mrb[0].mxu0
  %8188 = vmatprep.mubr.bf16.mxu0 0
  %8189 = vmatmul.mubr.bf16.gmra.mrb[0].mxu0 %v7913
  %v8190 = vpop.f32.mrb[0].mxu0
  %v8191 = vadd.f32 0.0, %v8190
  %v8192 = vpop.f32.mrb[0].mxu0
  %v8193 = vpop.f32.mrb[0].mxu0
  %v8194 = vadd.f32 0.0, %v8193
  %v8195 = vpop.f32.mrb[0].mxu0
  %8196 = vmatprep.mubr.bf16.mxu0 0
  %8197 = vmatmul.mubr.bf16.gmra.mrb[0].mxu0 %v7916
  %v8198 = vpop.f32.mrb[0].mxu0
  %v8199 = vadd.f32 0.0, %v8198
  %v8200 = vpop.f32.mrb[0].mxu0
  %v8201 = vpop.f32.mrb[0].mxu0
  %v8202 = vadd.f32 0.0, %v8201
  %v8203 = vpop.f32.mrb[0].mxu0
  %8204 = vmatprep.mubr.bf16.mxu0 0
  %8205 = vmatmul.mubr.bf16.gmra.mrb[0].mxu0 %v7919
  %v8206 = vpop.f32.mrb[0].mxu0
  %v8207 = vadd.f32 0.0, %v8206
  %v8208 = vpop.f32.mrb[0].mxu0
  %v8209 = vpop.f32.mrb[0].mxu0
  %v8210 = vadd.f32 0.0, %v8209
  %v8211 = vpop.f32.mrb[0].mxu0
  %8212 = vdwg.mxu0
  %v8213 = vadd.f32 %v6780, %v7959
  %v8214 = vadd.f32 %v6781, %v7962
  %v8215 = vadd.f32 %v6782, %v7967
  %v8216 = vadd.f32 %v6783, %v7970
  %v8217 = vadd.f32 %v6784, %v7975
  %v8218 = vadd.f32 %v6785, %v7978
  %v8219 = vadd.f32 %v6786, %v7983
  %v8220 = vadd.f32 %v6787, %v7986
  %v8221 = vadd.f32 %v6788, %v7991
  %v8222 = vadd.f32 %v6789, %v7994
  %v8223 = vadd.f32 %v6790, %v7999
  %v8224 = vadd.f32 %v6791, %v8002
  %v8225 = vadd.f32 %v6792, %v8007
  %v8226 = vadd.f32 %v6793, %v8010
  %v8227 = vadd.f32 %v6794, %v8015
  %v8228 = vadd.f32 %v6795, %v8018
  %v8229 = vadd.f32 %v6796, %v8023
  %v8230 = vadd.f32 %v6797, %v8026
  %v8231 = vadd.f32 %v6798, %v8031
  %v8232 = vadd.f32 %v6799, %v8034
  %v8233 = vadd.f32 %v6800, %v8039
  %v8234 = vadd.f32 %v6801, %v8042
  %v8235 = vadd.f32 %v6802, %v8047
  %v8236 = vadd.f32 %v6803, %v8050
  %v8237 = vadd.f32 %v6804, %v8055
  %v8238 = vadd.f32 %v6805, %v8058
  %v8239 = vadd.f32 %v6806, %v8063
  %v8240 = vadd.f32 %v6807, %v8066
  %v8241 = vadd.f32 %v6808, %v8071
  %v8242 = vadd.f32 %v6809, %v8074
  %v8243 = vadd.f32 %v6810, %v8079
  %v8244 = vadd.f32 %v6811, %v8082
  %v8245 = vadd.f32 %v6812, %v8087
  %v8246 = vadd.f32 %v6813, %v8090
  %v8247 = vadd.f32 %v6814, %v8095
  %v8248 = vadd.f32 %v6815, %v8098
  %v8249 = vadd.f32 %v6816, %v8103
  %v8250 = vadd.f32 %v6817, %v8106
  %v8251 = vadd.f32 %v6818, %v8111
  %v8252 = vadd.f32 %v6819, %v8114
  %v8253 = vadd.f32 %v6820, %v8119
  %v8254 = vadd.f32 %v6821, %v8122
  %v8255 = vadd.f32 %v6822, %v8127
  %v8256 = vadd.f32 %v6823, %v8130
  %v8257 = vadd.f32 %v6824, %v8135
  %v8258 = vadd.f32 %v6825, %v8138
  %v8259 = vadd.f32 %v6826, %v8143
  %v8260 = vadd.f32 %v6827, %v8146
  %v8261 = vadd.f32 %v6828, %v8151
  %v8262 = vadd.f32 %v6829, %v8154
  %v8263 = vadd.f32 %v6830, %v8159
  %v8264 = vadd.f32 %v6831, %v8162
  %v8265 = vadd.f32 %v6832, %v8167
  %v8266 = vadd.f32 %v6833, %v8170
  %v8267 = vadd.f32 %v6834, %v8175
  %v8268 = vadd.f32 %v6835, %v8178
  %v8269 = vadd.f32 %v6836, %v8183
  %v8270 = vadd.f32 %v6837, %v8186
  %v8271 = vadd.f32 %v6838, %v8191
  %v8272 = vadd.f32 %v6839, %v8194
  %v8273 = vadd.f32 %v6840, %v8199
  %v8274 = vadd.f32 %v6841, %v8202
  %v8275 = vadd.f32 %v6842, %v8207
  %v8276 = vadd.f32 %v6843, %v8210
  %v8277 = vld [vmem:[%s6146] sm:$0xe]
  %v8278 = vld [vmem:[%s6146 + $0xc] sm:$0xe]
  %v8279 = vld [vmem:[%s6146 + $0x18] sm:$0xe]
  %v8280 = vld [vmem:[%s6146 + $0x24] sm:$0xe]
  %v8281 = vld [vmem:[%s6146 + $0x30] sm:$0xe]
  %v8282 = vld [vmem:[%s6146 + $0x3c] sm:$0xe]
  %v8283 = vld [vmem:[%s6146 + $0x48] sm:$0xe]
  %v8284 = vld [vmem:[%s6146 + $0x54] sm:$0xe]
  %v8285 = vld [vmem:[%s6146 + $0x60] sm:$0xe]
  %v8286 = vld [vmem:[%s6146 + $0x6c] sm:$0xe]
  %v8287 = vld [vmem:[%s6146 + $0x78] sm:$0xe]
  %v8288 = vld [vmem:[%s6146 + $0x84] sm:$0xe]
  %v8289 = vld [vmem:[%s6146 + $0x90] sm:$0xe]
  %v8290 = vld [vmem:[%s6146 + $0x9c] sm:$0xe]
  %v8291 = vld [vmem:[%s6146 + $0xa8] sm:$0xe]
  %v8292 = vld [vmem:[%s6146 + $0xb4] sm:$0xe]
  %v8293 = vld [vmem:[%s6146 + $0xd8] sm:$0xe]
  %v8294 = vld [vmem:[%s6146 + $0xe4] sm:$0xe]
  %v8295 = vld [vmem:[%s6146 + $0xf0] sm:$0xe]
  %v8296 = vld [vmem:[%s6146 + $0xfc] sm:$0xe]
  %v8297 = vld [vmem:[%s6146 + $0x108] sm:$0xe]
  %v8298 = vld [vmem:[%s6146 + $0x114] sm:$0xe]
  %v8299 = vld [vmem:[%s6146 + $0x120] sm:$0xe]
  %v8300 = vld [vmem:[%s6146 + $0x12c] sm:$0xe]
  %v8301 = vld [vmem:[%s6146 + $0x138] sm:$0xe]
  %v8302 = vld [vmem:[%s6146 + $0x144] sm:$0xe]
  %v8303 = vld [vmem:[%s6146 + $0x150] sm:$0xe]
  %v8304 = vld [vmem:[%s6146 + $0x15c] sm:$0xe]
  %v8305 = vld [vmem:[%s6146 + $0x168] sm:$0xe]
  %v8306 = vld [vmem:[%s6146 + $0x174] sm:$0xe]
  %v8307 = vld [vmem:[%s6146 + $0x180] sm:$0xe]
  %v8308 = vld [vmem:[%s6146 + $0x18c] sm:$0xe]
  %v8405 = vrot.slane %v8277, 5
  %v8406 = vrot.slane %v8405, 4
  %v8407 = vrot.slane %v6845, 5
  %v8408 = vsel %vm2300, %v8406, %v8407
  %v8409 = vrot.slane %v8407, 4
  %v8410 = vrot.slane %v6846, 5
  %v8411 = vsel %vm2300, %v8409, %v8410
  %v8412 = vrot.slane %v8278, 5
  %v8413 = vrot.slane %v8412, 4
  %v8414 = vrot.slane %v6848, 5
  %v8415 = vsel %vm2300, %v8413, %v8414
  %v8416 = vrot.slane %v8414, 4
  %v8417 = vrot.slane %v6849, 5
  %v8418 = vsel %vm2300, %v8416, %v8417
  %v8419 = vrot.slane %v8279, 5
  %v8420 = vrot.slane %v8419, 4
  %v8421 = vrot.slane %v6851, 5
  %v8422 = vsel %vm2300, %v8420, %v8421
  %v8423 = vrot.slane %v8421, 4
  %v8424 = vrot.slane %v6852, 5
  %v8425 = vsel %vm2300, %v8423, %v8424
  %v8426 = vrot.slane %v8280, 5
  %v8427 = vrot.slane %v8426, 4
  %v8428 = vrot.slane %v6854, 5
  %v8429 = vsel %vm2300, %v8427, %v8428
  %v8430 = vrot.slane %v8428, 4
  %v8431 = vrot.slane %v6855, 5
  %v8432 = vsel %vm2300, %v8430, %v8431
  %v8433 = vrot.slane %v8281, 5
  %v8434 = vrot.slane %v8433, 4
  %v8435 = vrot.slane %v6857, 5
  %v8436 = vsel %vm2300, %v8434, %v8435
  %v8437 = vrot.slane %v8435, 4
  %v8438 = vrot.slane %v6858, 5
  %v8439 = vsel %vm2300, %v8437, %v8438
  %v8440 = vrot.slane %v8282, 5
  %v8441 = vrot.slane %v8440, 4
  %v8442 = vrot.slane %v6860, 5
  %v8443 = vsel %vm2300, %v8441, %v8442
  %v8444 = vrot.slane %v8442, 4
  %v8445 = vrot.slane %v6861, 5
  %v8446 = vsel %vm2300, %v8444, %v8445
  %v8447 = vrot.slane %v8283, 5
  %v8448 = vrot.slane %v8447, 4
  %v8449 = vrot.slane %v6863, 5
  %v8450 = vsel %vm2300, %v8448, %v8449
  %v8451 = vrot.slane %v8449, 4
  %v8452 = vrot.slane %v6864, 5
  %v8453 = vsel %vm2300, %v8451, %v8452
  %v8454 = vrot.slane %v8284, 5
  %v8455 = vrot.slane %v8454, 4
  %v8456 = vrot.slane %v6866, 5
  %v8457 = vsel %vm2300, %v8455, %v8456
  %v8458 = vrot.slane %v8456, 4
  %v8459 = vrot.slane %v6867, 5
  %v8460 = vsel %vm2300, %v8458, %v8459
  %v8461 = vrot.slane %v8285, 5
  %v8462 = vrot.slane %v8461, 4
  %v8463 = vrot.slane %v6869, 5
  %v8464 = vsel %vm2300, %v8462, %v8463
  %v8465 = vrot.slane %v8463, 4
  %v8466 = vrot.slane %v6870, 5
  %v8467 = vsel %vm2300, %v8465, %v8466
  %v8468 = vrot.slane %v8286, 5
  %v8469 = vrot.slane %v8468, 4
  %v8470 = vrot.slane %v6872, 5
  %v8471 = vsel %vm2300, %v8469, %v8470
  %v8472 = vrot.slane %v8470, 4
  %v8473 = vrot.slane %v6873, 5
  %v8474 = vsel %vm2300, %v8472, %v8473
  %v8475 = vrot.slane %v8287, 5
  %v8476 = vrot.slane %v8475, 4
  %v8477 = vrot.slane %v6875, 5
  %v8478 = vsel %vm2300, %v8476, %v8477
  %v8479 = vrot.slane %v8477, 4
  %v8480 = vrot.slane %v6876, 5
  %v8481 = vsel %vm2300, %v8479, %v8480
  %v8482 = vrot.slane %v8288, 5
  %v8483 = vrot.slane %v8482, 4
  %v8484 = vrot.slane %v6878, 5
  %v8485 = vsel %vm2300, %v8483, %v8484
  %v8486 = vrot.slane %v8484, 4
  %v8487 = vrot.slane %v6879, 5
  %v8488 = vsel %vm2300, %v8486, %v8487
  %v8489 = vrot.slane %v8289, 5
  %v8490 = vrot.slane %v8489, 4
  %v8491 = vrot.slane %v6881, 5
  %v8492 = vsel %vm2300, %v8490, %v8491
  %v8493 = vrot.slane %v8491, 4
  %v8494 = vrot.slane %v6882, 5
  %v8495 = vsel %vm2300, %v8493, %v8494
  %v8496 = vrot.slane %v8290, 5
  %v8497 = vrot.slane %v8496, 4
  %v8498 = vrot.slane %v6884, 5
  %v8499 = vsel %vm2300, %v8497, %v8498
  %v8500 = vrot.slane %v8498, 4
  %v8501 = vrot.slane %v6885, 5
  %v8502 = vsel %vm2300, %v8500, %v8501
  %v8503 = vrot.slane %v8291, 5
  %v8504 = vrot.slane %v8503, 4
  %v8505 = vrot.slane %v6887, 5
  %v8506 = vsel %vm2300, %v8504, %v8505
  %v8507 = vrot.slane %v8505, 4
  %v8508 = vrot.slane %v6888, 5
  %v8509 = vsel %vm2300, %v8507, %v8508
  %v8510 = vrot.slane %v8292, 5
  %v8511 = vrot.slane %v8510, 4
  %v8512 = vrot.slane %v6890, 5
  %v8513 = vsel %vm2300, %v8511, %v8512
  %v8514 = vrot.slane %v8512, 4
  %v8515 = vrot.slane %v6891, 5
  %v8516 = vsel %vm2300, %v8514, %v8515
  %v8517 = vrot.slane %v8293, 5
  %v8518 = vrot.slane %v8517, 4
  %v8519 = vrot.slane %v6893, 5
  %v8520 = vsel %vm2300, %v8518, %v8519
  %v8521 = vrot.slane %v8519, 4
  %v8522 = vrot.slane %v6894, 5
  %v8523 = vsel %vm2300, %v8521, %v8522
  %v8524 = vrot.slane %v8294, 5
  %v8525 = vrot.slane %v8524, 4
  %v8526 = vrot.slane %v6896, 5
  %v8527 = vsel %vm2300, %v8525, %v8526
  %v8528 = vrot.slane %v8526, 4
  %v8529 = vrot.slane %v6897, 5
  %v8530 = vsel %vm2300, %v8528, %v8529
  %v8531 = vrot.slane %v8295, 5
  %v8532 = vrot.slane %v8531, 4
  %v8533 = vrot.slane %v6899, 5
  %v8534 = vsel %vm2300, %v8532, %v8533
  %v8535 = vrot.slane %v8533, 4
  %v8536 = vrot.slane %v6900, 5
  %v8537 = vsel %vm2300, %v8535, %v8536
  %v8538 = vrot.slane %v8296, 5
  %v8539 = vrot.slane %v8538, 4
  %v8540 = vrot.slane %v6902, 5
  %v8541 = vsel %vm2300, %v8539, %v8540
  %v8542 = vrot.slane %v8540, 4
  %v8543 = vrot.slane %v6903, 5
  %v8544 = vsel %vm2300, %v8542, %v8543
  %v8545 = vrot.slane %v8297, 5
  %v8546 = vrot.slane %v8545, 4
  %v8547 = vrot.slane %v6905, 5
  %v8548 = vsel %vm2300, %v8546, %v8547
  %v8549 = vrot.slane %v8547, 4
  %v8550 = vrot.slane %v6906, 5
  %v8551 = vsel %vm2300, %v8549, %v8550
  %v8552 = vrot.slane %v8298, 5
  %v8553 = vrot.slane %v8552, 4
  %v8554 = vrot.slane %v6908, 5
  %v8555 = vsel %vm2300, %v8553, %v8554
  %v8556 = vrot.slane %v8554, 4
  %v8557 = vrot.slane %v6909, 5
  %v8558 = vsel %vm2300, %v8556, %v8557
  %v8559 = vrot.slane %v8299, 5
  %v8560 = vrot.slane %v8559, 4
  %v8561 = vrot.slane %v6911, 5
  %v8562 = vsel %vm2300, %v8560, %v8561
  %v8563 = vrot.slane %v8561, 4
  %v8564 = vrot.slane %v6912, 5
  %v8565 = vsel %vm2300, %v8563, %v8564
  %v8566 = vrot.slane %v8300, 5
  %v8567 = vrot.slane %v8566, 4
  %v8568 = vrot.slane %v6914, 5
  %v8569 = vsel %vm2300, %v8567, %v8568
  %v8570 = vrot.slane %v8568, 4
  %v8571 = vrot.slane %v6915, 5
  %v8572 = vsel %vm2300, %v8570, %v8571
  %v8573 = vrot.slane %v8301, 5
  %v8574 = vrot.slane %v8573, 4
  %v8575 = vrot.slane %v6917, 5
  %v8576 = vsel %vm2300, %v8574, %v8575
  %v8577 = vrot.slane %v8575, 4
  %v8578 = vrot.slane %v6918, 5
  %v8579 = vsel %vm2300, %v8577, %v8578
  %v8580 = vrot.slane %v8302, 5
  %v8581 = vrot.slane %v8580, 4
  %v8582 = vrot.slane %v6920, 5
  %v8583 = vsel %vm2300, %v8581, %v8582
  %v8584 = vrot.slane %v8582, 4
  %v8585 = vrot.slane %v6921, 5
  %v8586 = vsel %vm2300, %v8584, %v8585
  %v8587 = vrot.slane %v8303, 5
  %v8588 = vrot.slane %v8587, 4
  %v8589 = vrot.slane %v6923, 5
  %v8590 = vsel %vm2300, %v8588, %v8589
  %v8591 = vrot.slane %v8589, 4
  %v8592 = vrot.slane %v6924, 5
  %v8593 = vsel %vm2300, %v8591, %v8592
  %v8594 = vrot.slane %v8304, 5
  %v8595 = vrot.slane %v8594, 4
  %v8596 = vrot.slane %v6926, 5
  %v8597 = vsel %vm2300, %v8595, %v8596
  %v8598 = vrot.slane %v8596, 4
  %v8599 = vrot.slane %v6927, 5
  %v8600 = vsel %vm2300, %v8598, %v8599
  %v8601 = vrot.slane %v8305, 5
  %v8602 = vrot.slane %v8601, 4
  %v8603 = vrot.slane %v6929, 5
  %v8604 = vsel %vm2300, %v8602, %v8603
  %v8605 = vrot.slane %v8603, 4
  %v8606 = vrot.slane %v6930, 5
  %v8607 = vsel %vm2300, %v8605, %v8606
  %v8608 = vrot.slane %v8306, 5
  %v8609 = vrot.slane %v8608, 4
  %v8610 = vrot.slane %v6932, 5
  %v8611 = vsel %vm2300, %v8609, %v8610
  %v8612 = vrot.slane %v8610, 4
  %v8613 = vrot.slane %v6933, 5
  %v8614 = vsel %vm2300, %v8612, %v8613
  %v8615 = vrot.slane %v8307, 5
  %v8616 = vrot.slane %v8615, 4
  %v8617 = vrot.slane %v6935, 5
  %v8618 = vsel %vm2300, %v8616, %v8617
  %v8619 = vrot.slane %v8617, 4
  %v8620 = vrot.slane %v6936, 5
  %v8621 = vsel %vm2300, %v8619, %v8620
  %v8622 = vrot.slane %v8308, 5
  %v8623 = vrot.slane %v8622, 4
  %v8624 = vrot.slane %v6938, 5
  %v8625 = vsel %vm2300, %v8623, %v8624
  %v8626 = vrot.slane %v8624, 4
  %v8627 = vrot.slane %v6939, 5
  %v8628 = vsel %vm2300, %v8626, %v8627
  %s8629 = scalar_lea.vmem %s1, 160
  %v8630 = vld [vmem:[%s8629] sm:$0xf]
  %v8631 = vld [vmem:[%s8629 + $0x4] sm:$0xf]
  %v8632 = vld [vmem:[%s8629 + $0x8] sm:$0xf]
  %v8633 = vld [vmem:[%s8629 + $0xc] sm:$0xf]
  %v8634 = vld [vmem:[%s8629 + $0x10] sm:$0x3]
  %v8635 = vunpack.c.l.b16 %v8408
  %v8636 = vunpack.c.l.b16 %v8411
  %v8637 = vunpack.c.l.b16 %v8415
  %v8638 = vunpack.c.l.b16 %v8418
  %v8639 = vunpack.c.l.b16 %v8422
  %v8640 = vunpack.c.l.b16 %v8425
  %v8641 = vunpack.c.l.b16 %v8429
  %v8642 = vunpack.c.l.b16 %v8432
  %v8643 = vunpack.c.l.b16 %v8436
  %v8644 = vunpack.c.l.b16 %v8439
  %v8645 = vunpack.c.l.b16 %v8443
  %v8646 = vunpack.c.l.b16 %v8446
  %v8647 = vunpack.c.l.b16 %v8450
  %v8648 = vunpack.c.l.b16 %v8453
  %v8649 = vunpack.c.l.b16 %v8457
  %v8650 = vunpack.c.l.b16 %v8460
  %v8651 = vunpack.c.l.b16 %v8464
  %v8652 = vunpack.c.l.b16 %v8467
  %v8653 = vunpack.c.l.b16 %v8471
  %v8654 = vunpack.c.l.b16 %v8474
  %v8655 = vunpack.c.l.b16 %v8478
  %v8656 = vunpack.c.l.b16 %v8481
  %v8657 = vunpack.c.l.b16 %v8485
  %v8658 = vunpack.c.l.b16 %v8488
  %v8659 = vunpack.c.l.b16 %v8492
  %v8660 = vunpack.c.l.b16 %v8495
  %v8661 = vunpack.c.l.b16 %v8499
  %v8662 = vunpack.c.l.b16 %v8502
  %v8663 = vunpack.c.l.b16 %v8506
  %v8664 = vunpack.c.l.b16 %v8509
  %v8665 = vunpack.c.l.b16 %v8513
  %v8666 = vunpack.c.l.b16 %v8516
  %v8667 = vunpack.c.l.b16 %v8520
  %v8668 = vunpack.c.l.b16 %v8523
  %v8669 = vunpack.c.l.b16 %v8527
  %v8670 = vunpack.c.l.b16 %v8530
  %v8671 = vunpack.c.l.b16 %v8534
  %v8672 = vunpack.c.l.b16 %v8537
  %v8673 = vunpack.c.l.b16 %v8541
  %v8674 = vunpack.c.l.b16 %v8544
  %v8675 = vunpack.c.l.b16 %v8548
  %v8676 = vunpack.c.l.b16 %v8551
  %v8677 = vunpack.c.l.b16 %v8555
  %v8678 = vunpack.c.l.b16 %v8558
  %v8679 = vunpack.c.l.b16 %v8562
  %v8680 = vunpack.c.l.b16 %v8565
  %v8681 = vunpack.c.l.b16 %v8569
  %v8682 = vunpack.c.l.b16 %v8572
  %v8683 = vunpack.c.l.b16 %v8576
  %v8684 = vunpack.c.l.b16 %v8579
  %v8685 = vunpack.c.l.b16 %v8583
  %v8686 = vunpack.c.l.b16 %v8586
  %v8687 = vunpack.c.l.b16 %v8590
  %v8688 = vunpack.c.l.b16 %v8593
  %v8689 = vunpack.c.l.b16 %v8597
  %v8690 = vunpack.c.l.b16 %v8600
  %v8691 = vunpack.c.l.b16 %v8604
  %v8692 = vunpack.c.l.b16 %v8607
  %v8693 = vunpack.c.l.b16 %v8611
  %v8694 = vunpack.c.l.b16 %v8614
  %v8695 = vunpack.c.l.b16 %v8618
  %v8696 = vunpack.c.l.b16 %v8621
  %v8697 = vunpack.c.l.b16 %v8625
  %v8698 = vunpack.c.l.b16 %v8628
  %v8699 = vpack.c.b16 %v8636, %v8635
  %v8700 = vpack.c.b16 %v8638, %v8637
  %v8701 = vpack.c.b16 %v8640, %v8639
  %v8702 = vpack.c.b16 %v8642, %v8641
  %v8703 = vpack.c.b16 %v8644, %v8643
  %v8704 = vpack.c.b16 %v8646, %v8645
  %v8705 = vpack.c.b16 %v8648, %v8647
  %v8706 = vpack.c.b16 %v8650, %v8649
  %v8707 = vpack.c.b16 %v8652, %v8651
  %v8708 = vpack.c.b16 %v8654, %v8653
  %v8709 = vpack.c.b16 %v8656, %v8655
  %v8710 = vpack.c.b16 %v8658, %v8657
  %v8711 = vpack.c.b16 %v8660, %v8659
  %v8712 = vpack.c.b16 %v8662, %v8661
  %v8713 = vpack.c.b16 %v8664, %v8663
  %v8714 = vpack.c.b16 %v8666, %v8665
  %v8715 = vpack.c.b16 %v8668, %v8667
  %v8716 = vpack.c.b16 %v8670, %v8669
  %v8717 = vpack.c.b16 %v8672, %v8671
  %v8718 = vpack.c.b16 %v8674, %v8673
  %v8719 = vpack.c.b16 %v8676, %v8675
  %v8720 = vpack.c.b16 %v8678, %v8677
  %v8721 = vpack.c.b16 %v8680, %v8679
  %v8722 = vpack.c.b16 %v8682, %v8681
  %v8723 = vpack.c.b16 %v8684, %v8683
  %v8724 = vpack.c.b16 %v8686, %v8685
  %v8725 = vpack.c.b16 %v8688, %v8687
  %v8726 = vpack.c.b16 %v8690, %v8689
  %v8727 = vpack.c.b16 %v8692, %v8691
  %v8728 = vpack.c.b16 %v8694, %v8693
  %v8729 = vpack.c.b16 %v8696, %v8695
  %v8730 = vpack.c.b16 %v8698, %v8697
  %v8736 = vunpack.c.l.b16 %v8630
  %v8737 = vunpack.c.l.b16 %v8631
  %v8738 = vunpack.c.l.b16 %v8632
  %v8739 = vunpack.c.l.b16 %v8633
  %v8740 = vunpack.c.l.b16 %v8634
  %v8741 = vpack.c.b16 %v8737, %v8736
  %v8742 = vpack.c.b16 %v8739, %v8738
  %v8743 = vpack.c.b16 %v8740, %v8740
  %v8747 = vsel %vm280, %v8699, 0
  %v8750 = vsel %vm280, %v8700, 0
  %v8753 = vsel %vm280, %v8701, 0
  %v8756 = vsel %vm280, %v8702, 0
  %v8759 = vsel %vm280, %v8703, 0
  %v8762 = vsel %vm280, %v8704, 0
  %v8765 = vsel %vm280, %v8705, 0
  %v8768 = vsel %vm280, %v8706, 0
  %v8771 = vsel %vm280, %v8707, 0
  %v8774 = vsel %vm280, %v8708, 0
  %v8777 = vsel %vm280, %v8709, 0
  %v8780 = vsel %vm280, %v8710, 0
  %v8783 = vsel %vm280, %v8711, 0
  %v8786 = vsel %vm280, %v8712, 0
  %v8789 = vsel %vm280, %v8713, 0
  %v8792 = vsel %vm280, %v8714, 0
  %v8795 = vsel %vm280, %v8715, 0
  %v8798 = vsel %vm280, %v8716, 0
  %v8801 = vsel %vm280, %v8717, 0
  %v8804 = vsel %vm280, %v8718, 0
  %v8807 = vsel %vm280, %v8719, 0
  %v8810 = vsel %vm280, %v8720, 0
  %v8813 = vsel %vm280, %v8721, 0
  %v8816 = vsel %vm280, %v8722, 0
  %v8819 = vsel %vm280, %v8723, 0
  %v8822 = vsel %vm280, %v8724, 0
  %v8825 = vsel %vm280, %v8725, 0
  %v8828 = vsel %vm280, %v8726, 0
  %v8831 = vsel %vm280, %v8727, 0
  %v8834 = vsel %vm280, %v8728, 0
  %v8837 = vsel %vm280, %v8729, 0
  %v8840 = vsel %vm280, %v8730, 0
  %v8843 = vsel %vm377, %v8743, 0
  %8845 = vmatprep.subr.bf16.mxu0 0
  %8846 = vmatpush1.bf16.msra.mxu0 %v8741
  %8847 = vmatprep.subr.bf16.mxu0 0
  %8848 = vmatpush1.bf16.msra.mxu0 %v8742
  %8849 = vmatprep.subr.bf16.mxu0 0
  %8850 = vmatpush1.bf16.msra.mxu0 %v8843
  %8851 = vmatprep.subr.bf16.mxu0 0
  %8852 = vmatpush1.bf16.msra.mxu0 0
  %8853 = vmatprep.subr.bf16.mxu0 0
  %8854 = vmatpush1.bf16.msra.mxu0 0
  %8855 = vmatprep.subr.bf16.mxu0 0
  %8856 = vmatpush1.bf16.msra.mxu0 0
  %8857 = vmatprep.subr.bf16.mxu0 0
  %8858 = vmatpush1.bf16.msra.mxu0 0
  %8859 = vmatprep.subr.bf16.mxu0 0
  %8860 = vmatpush1.bf16.msra.mxu0 0
  %8861 = vmatprep.subr.bf16.mxu0 0
  %8862 = vmatpush1.bf16.msra.mxu0 0
  %8863 = vmatprep.subr.bf16.mxu0 0
  %8864 = vmatpush1.bf16.msra.mxu0 0
  %8865 = vmatprep.subr.bf16.mxu0 0
  %8866 = vmatpush1.bf16.msra.mxu0 0
  %8867 = vmatprep.subr.bf16.mxu0 0
  %8868 = vmatpush1.bf16.msra.mxu0 0
  %8869 = vmatprep.subr.bf16.mxu0 0
  %8870 = vmatpush1.bf16.msra.mxu0 0
  %8871 = vmatprep.subr.bf16.mxu0 0
  %8872 = vmatpush1.bf16.msra.mxu0 0
  %8873 = vmatprep.subr.bf16.mxu0 0
  %8874 = vmatpush1.bf16.msra.mxu0 0
  %8875 = vmatprep.subr.bf16.mxu0 0
  %8876 = vmatpush1.bf16.msra.mxu0 0
  %8877 = vmatprep.mubr.bf16.mxu0 0
  %8878 = vmatmul.mubr.bf16.gmra.mrb[0].mxu0 %v8747
  %v8879 = vpop.f32.mrb[0].mxu0
  %v8880 = vadd.f32 0.0, %v8879
  %v8881 = vpop.f32.mrb[0].mxu0
  %v8882 = vpop.f32.mrb[0].mxu0
  %v8883 = vadd.f32 0.0, %v8882
  %v8884 = vpop.f32.mrb[0].mxu0
  %8885 = vmatprep.mubr.bf16.mxu0 0
  %8886 = vmatmul.mubr.bf16.gmra.mrb[0].mxu0 %v8750
  %v8887 = vpop.f32.mrb[0].mxu0
  %v8888 = vadd.f32 0.0, %v8887
  %v8889 = vpop.f32.mrb[0].mxu0
  %v8890 = vpop.f32.mrb[0].mxu0
  %v8891 = vadd.f32 0.0, %v8890
  %v8892 = vpop.f32.mrb[0].mxu0
  %8893 = vmatprep.mubr.bf16.mxu0 0
  %8894 = vmatmul.mubr.bf16.gmra.mrb[0].mxu0 %v8753
  %v8895 = vpop.f32.mrb[0].mxu0
  %v8896 = vadd.f32 0.0, %v8895
  %v8897 = vpop.f32.mrb[0].mxu0
  %v8898 = vpop.f32.mrb[0].mxu0
  %v8899 = vadd.f32 0.0, %v8898
  %v8900 = vpop.f32.mrb[0].mxu0
  %8901 = vmatprep.mubr.bf16.mxu0 0
  %8902 = vmatmul.mubr.bf16.gmra.mrb[0].mxu0 %v8756
  %v8903 = vpop.f32.mrb[0].mxu0
  %v8904 = vadd.f32 0.0, %v8903
  %v8905 = vpop.f32.mrb[0].mxu0
  %v8906 = vpop.f32.mrb[0].mxu0
  %v8907 = vadd.f32 0.0, %v8906
  %v8908 = vpop.f32.mrb[0].mxu0
  %8909 = vmatprep.mubr.bf16.mxu0 0
  %8910 = vmatmul.mubr.bf16.gmra.mrb[0].mxu0 %v8759
  %v8911 = vpop.f32.mrb[0].mxu0
  %v8912 = vadd.f32 0.0, %v8911
  %v8913 = vpop.f32.mrb[0].mxu0
  %v8914 = vpop.f32.mrb[0].mxu0
  %v8915 = vadd.f32 0.0, %v8914
  %v8916 = vpop.f32.mrb[0].mxu0
  %8917 = vmatprep.mubr.bf16.mxu0 0
  %8918 = vmatmul.mubr.bf16.gmra.mrb[0].mxu0 %v8762
  %v8919 = vpop.f32.mrb[0].mxu0
  %v8920 = vadd.f32 0.0, %v8919
  %v8921 = vpop.f32.mrb[0].mxu0
  %v8922 = vpop.f32.mrb[0].mxu0
  %v8923 = vadd.f32 0.0, %v8922
  %v8924 = vpop.f32.mrb[0].mxu0
  %8925 = vmatprep.mubr.bf16.mxu0 0
  %8926 = vmatmul.mubr.bf16.gmra.mrb[0].mxu0 %v8765
  %v8927 = vpop.f32.mrb[0].mxu0
  %v8928 = vadd.f32 0.0, %v8927
  %v8929 = vpop.f32.mrb[0].mxu0
  %v8930 = vpop.f32.mrb[0].mxu0
  %v8931 = vadd.f32 0.0, %v8930
  %v8932 = vpop.f32.mrb[0].mxu0
  %8933 = vmatprep.mubr.bf16.mxu0 0
  %8934 = vmatmul.mubr.bf16.gmra.mrb[0].mxu0 %v8768
  %v8935 = vpop.f32.mrb[0].mxu0
  %v8936 = vadd.f32 0.0, %v8935
  %v8937 = vpop.f32.mrb[0].mxu0
  %v8938 = vpop.f32.mrb[0].mxu0
  %v8939 = vadd.f32 0.0, %v8938
  %v8940 = vpop.f32.mrb[0].mxu0
  %8941 = vmatprep.mubr.bf16.mxu0 0
  %8942 = vmatmul.mubr.bf16.gmra.mrb[0].mxu0 %v8771
  %v8943 = vpop.f32.mrb[0].mxu0
  %v8944 = vadd.f32 0.0, %v8943
  %v8945 = vpop.f32.mrb[0].mxu0
  %v8946 = vpop.f32.mrb[0].mxu0
  %v8947 = vadd.f32 0.0, %v8946
  %v8948 = vpop.f32.mrb[0].mxu0
  %8949 = vmatprep.mubr.bf16.mxu0 0
  %8950 = vmatmul.mubr.bf16.gmra.mrb[0].mxu0 %v8774
  %v8951 = vpop.f32.mrb[0].mxu0
  %v8952 = vadd.f32 0.0, %v8951
  %v8953 = vpop.f32.mrb[0].mxu0
  %v8954 = vpop.f32.mrb[0].mxu0
  %v8955 = vadd.f32 0.0, %v8954
  %v8956 = vpop.f32.mrb[0].mxu0
  %8957 = vmatprep.mubr.bf16.mxu0 0
  %8958 = vmatmul.mubr.bf16.gmra.mrb[0].mxu0 %v8777
  %v8959 = vpop.f32.mrb[0].mxu0
  %v8960 = vadd.f32 0.0, %v8959
  %v8961 = vpop.f32.mrb[0].mxu0
  %v8962 = vpop.f32.mrb[0].mxu0
  %v8963 = vadd.f32 0.0, %v8962
  %v8964 = vpop.f32.mrb[0].mxu0
  %8965 = vmatprep.mubr.bf16.mxu0 0
  %8966 = vmatmul.mubr.bf16.gmra.mrb[0].mxu0 %v8780
  %v8967 = vpop.f32.mrb[0].mxu0
  %v8968 = vadd.f32 0.0, %v8967
  %v8969 = vpop.f32.mrb[0].mxu0
  %v8970 = vpop.f32.mrb[0].mxu0
  %v8971 = vadd.f32 0.0, %v8970
  %v8972 = vpop.f32.mrb[0].mxu0
  %8973 = vmatprep.mubr.bf16.mxu0 0
  %8974 = vmatmul.mubr.bf16.gmra.mrb[0].mxu0 %v8783
  %v8975 = vpop.f32.mrb[0].mxu0
  %v8976 = vadd.f32 0.0, %v8975
  %v8977 = vpop.f32.mrb[0].mxu0
  %v8978 = vpop.f32.mrb[0].mxu0
  %v8979 = vadd.f32 0.0, %v8978
  %v8980 = vpop.f32.mrb[0].mxu0
  %8981 = vmatprep.mubr.bf16.mxu0 0
  %8982 = vmatmul.mubr.bf16.gmra.mrb[0].mxu0 %v8786
  %v8983 = vpop.f32.mrb[0].mxu0
  %v8984 = vadd.f32 0.0, %v8983
  %v8985 = vpop.f32.mrb[0].mxu0
  %v8986 = vpop.f32.mrb[0].mxu0
  %v8987 = vadd.f32 0.0, %v8986
  %v8988 = vpop.f32.mrb[0].mxu0
  %8989 = vmatprep.mubr.bf16.mxu0 0
  %8990 = vmatmul.mubr.bf16.gmra.mrb[0].mxu0 %v8789
  %v8991 = vpop.f32.mrb[0].mxu0
  %v8992 = vadd.f32 0.0, %v8991
  %v8993 = vpop.f32.mrb[0].mxu0
  %v8994 = vpop.f32.mrb[0].mxu0
  %v8995 = vadd.f32 0.0, %v8994
  %v8996 = vpop.f32.mrb[0].mxu0
  %8997 = vmatprep.mubr.bf16.mxu0 0
  %8998 = vmatmul.mubr.bf16.gmra.mrb[0].mxu0 %v8792
  %v8999 = vpop.f32.mrb[0].mxu0
  %v9000 = vadd.f32 0.0, %v8999
  %v9001 = vpop.f32.mrb[0].mxu0
  %v9002 = vpop.f32.mrb[0].mxu0
  %v9003 = vadd.f32 0.0, %v9002
  %v9004 = vpop.f32.mrb[0].mxu0
  %9005 = vmatprep.mubr.bf16.mxu0 0
  %9006 = vmatmul.mubr.bf16.gmra.mrb[0].mxu0 %v8795
  %v9007 = vpop.f32.mrb[0].mxu0
  %v9008 = vadd.f32 0.0, %v9007
  %v9009 = vpop.f32.mrb[0].mxu0
  %v9010 = vpop.f32.mrb[0].mxu0
  %v9011 = vadd.f32 0.0, %v9010
  %v9012 = vpop.f32.mrb[0].mxu0
  %9013 = vmatprep.mubr.bf16.mxu0 0
  %9014 = vmatmul.mubr.bf16.gmra.mrb[0].mxu0 %v8798
  %v9015 = vpop.f32.mrb[0].mxu0
  %v9016 = vadd.f32 0.0, %v9015
  %v9017 = vpop.f32.mrb[0].mxu0
  %v9018 = vpop.f32.mrb[0].mxu0
  %v9019 = vadd.f32 0.0, %v9018
  %v9020 = vpop.f32.mrb[0].mxu0
  %9021 = vmatprep.mubr.bf16.mxu0 0
  %9022 = vmatmul.mubr.bf16.gmra.mrb[0].mxu0 %v8801
  %v9023 = vpop.f32.mrb[0].mxu0
  %v9024 = vadd.f32 0.0, %v9023
  %v9025 = vpop.f32.mrb[0].mxu0
  %v9026 = vpop.f32.mrb[0].mxu0
  %v9027 = vadd.f32 0.0, %v9026
  %v9028 = vpop.f32.mrb[0].mxu0
  %9029 = vmatprep.mubr.bf16.mxu0 0
  %9030 = vmatmul.mubr.bf16.gmra.mrb[0].mxu0 %v8804
  %v9031 = vpop.f32.mrb[0].mxu0
  %v9032 = vadd.f32 0.0, %v9031
  %v9033 = vpop.f32.mrb[0].mxu0
  %v9034 = vpop.f32.mrb[0].mxu0
  %v9035 = vadd.f32 0.0, %v9034
  %v9036 = vpop.f32.mrb[0].mxu0
  %9037 = vmatprep.mubr.bf16.mxu0 0
  %9038 = vmatmul.mubr.bf16.gmra.mrb[0].mxu0 %v8807
  %v9039 = vpop.f32.mrb[0].mxu0
  %v9040 = vadd.f32 0.0, %v9039
  %v9041 = vpop.f32.mrb[0].mxu0
  %v9042 = vpop.f32.mrb[0].mxu0
  %v9043 = vadd.f32 0.0, %v9042
  %v9044 = vpop.f32.mrb[0].mxu0
  %9045 = vmatprep.mubr.bf16.mxu0 0
  %9046 = vmatmul.mubr.bf16.gmra.mrb[0].mxu0 %v8810
  %v9047 = vpop.f32.mrb[0].mxu0
  %v9048 = vadd.f32 0.0, %v9047
  %v9049 = vpop.f32.mrb[0].mxu0
  %v9050 = vpop.f32.mrb[0].mxu0
  %v9051 = vadd.f32 0.0, %v9050
  %v9052 = vpop.f32.mrb[0].mxu0
  %9053 = vmatprep.mubr.bf16.mxu0 0
  %9054 = vmatmul.mubr.bf16.gmra.mrb[0].mxu0 %v8813
  %v9055 = vpop.f32.mrb[0].mxu0
  %v9056 = vadd.f32 0.0, %v9055
  %v9057 = vpop.f32.mrb[0].mxu0
  %v9058 = vpop.f32.mrb[0].mxu0
  %v9059 = vadd.f32 0.0, %v9058
  %v9060 = vpop.f32.mrb[0].mxu0
  %9061 = vmatprep.mubr.bf16.mxu0 0
  %9062 = vmatmul.mubr.bf16.gmra.mrb[0].mxu0 %v8816
  %v9063 = vpop.f32.mrb[0].mxu0
  %v9064 = vadd.f32 0.0, %v9063
  %v9065 = vpop.f32.mrb[0].mxu0
  %v9066 = vpop.f32.mrb[0].mxu0
  %v9067 = vadd.f32 0.0, %v9066
  %v9068 = vpop.f32.mrb[0].mxu0
  %9069 = vmatprep.mubr.bf16.mxu0 0
  %9070 = vmatmul.mubr.bf16.gmra.mrb[0].mxu0 %v8819
  %v9071 = vpop.f32.mrb[0].mxu0
  %v9072 = vadd.f32 0.0, %v9071
  %v9073 = vpop.f32.mrb[0].mxu0
  %v9074 = vpop.f32.mrb[0].mxu0
  %v9075 = vadd.f32 0.0, %v9074
  %v9076 = vpop.f32.mrb[0].mxu0
  %9077 = vmatprep.mubr.bf16.mxu0 0
  %9078 = vmatmul.mubr.bf16.gmra.mrb[0].mxu0 %v8822
  %v9079 = vpop.f32.mrb[0].mxu0
  %v9080 = vadd.f32 0.0, %v9079
  %v9081 = vpop.f32.mrb[0].mxu0
  %v9082 = vpop.f32.mrb[0].mxu0
  %v9083 = vadd.f32 0.0, %v9082
  %v9084 = vpop.f32.mrb[0].mxu0
  %9085 = vmatprep.mubr.bf16.mxu0 0
  %9086 = vmatmul.mubr.bf16.gmra.mrb[0].mxu0 %v8825
  %v9087 = vpop.f32.mrb[0].mxu0
  %v9088 = vadd.f32 0.0, %v9087
  %v9089 = vpop.f32.mrb[0].mxu0
  %v9090 = vpop.f32.mrb[0].mxu0
  %v9091 = vadd.f32 0.0, %v9090
  %v9092 = vpop.f32.mrb[0].mxu0
  %9093 = vmatprep.mubr.bf16.mxu0 0
  %9094 = vmatmul.mubr.bf16.gmra.mrb[0].mxu0 %v8828
  %v9095 = vpop.f32.mrb[0].mxu0
  %v9096 = vadd.f32 0.0, %v9095
  %v9097 = vpop.f32.mrb[0].mxu0
  %v9098 = vpop.f32.mrb[0].mxu0
  %v9099 = vadd.f32 0.0, %v9098
  %v9100 = vpop.f32.mrb[0].mxu0
  %9101 = vmatprep.mubr.bf16.mxu0 0
  %9102 = vmatmul.mubr.bf16.gmra.mrb[0].mxu0 %v8831
  %v9103 = vpop.f32.mrb[0].mxu0
  %v9104 = vadd.f32 0.0, %v9103
  %v9105 = vpop.f32.mrb[0].mxu0
  %v9106 = vpop.f32.mrb[0].mxu0
  %v9107 = vadd.f32 0.0, %v9106
  %v9108 = vpop.f32.mrb[0].mxu0
  %9109 = vmatprep.mubr.bf16.mxu0 0
  %9110 = vmatmul.mubr.bf16.gmra.mrb[0].mxu0 %v8834
  %v9111 = vpop.f32.mrb[0].mxu0
  %v9112 = vadd.f32 0.0, %v9111
  %v9113 = vpop.f32.mrb[0].mxu0
  %v9114 = vpop.f32.mrb[0].mxu0
  %v9115 = vadd.f32 0.0, %v9114
  %v9116 = vpop.f32.mrb[0].mxu0
  %9117 = vmatprep.mubr.bf16.mxu0 0
  %9118 = vmatmul.mubr.bf16.gmra.mrb[0].mxu0 %v8837
  %v9119 = vpop.f32.mrb[0].mxu0
  %v9120 = vadd.f32 0.0, %v9119
  %v9121 = vpop.f32.mrb[0].mxu0
  %v9122 = vpop.f32.mrb[0].mxu0
  %v9123 = vadd.f32 0.0, %v9122
  %v9124 = vpop.f32.mrb[0].mxu0
  %9125 = vmatprep.mubr.bf16.mxu0 0
  %9126 = vmatmul.mubr.bf16.gmra.mrb[0].mxu0 %v8840
  %v9127 = vpop.f32.mrb[0].mxu0
  %v9128 = vadd.f32 0.0, %v9127
  %v9129 = vpop.f32.mrb[0].mxu0
  %v9130 = vpop.f32.mrb[0].mxu0
  %v9131 = vadd.f32 0.0, %v9130
  %v9132 = vpop.f32.mrb[0].mxu0
  %9133 = vdwg.mxu0
  %v9134 = vadd.f32 %v8213, %v8880
  %v9135 = vadd.f32 %v8214, %v8883
  %v9136 = vadd.f32 %v8215, %v8888
  %v9137 = vadd.f32 %v8216, %v8891
  %v9138 = vadd.f32 %v8217, %v8896
  %v9139 = vadd.f32 %v8218, %v8899
  %v9140 = vadd.f32 %v8219, %v8904
  %v9141 = vadd.f32 %v8220, %v8907
  %v9142 = vadd.f32 %v8221, %v8912
  %v9143 = vadd.f32 %v8222, %v8915
  %v9144 = vadd.f32 %v8223, %v8920
  %v9145 = vadd.f32 %v8224, %v8923
  %v9146 = vadd.f32 %v8225, %v8928
  %v9147 = vadd.f32 %v8226, %v8931
  %v9148 = vadd.f32 %v8227, %v8936
  %v9149 = vadd.f32 %v8228, %v8939
  %v9150 = vadd.f32 %v8229, %v8944
  %v9151 = vadd.f32 %v8230, %v8947
  %v9152 = vadd.f32 %v8231, %v8952
  %v9153 = vadd.f32 %v8232, %v8955
  %v9154 = vadd.f32 %v8233, %v8960
  %v9155 = vadd.f32 %v8234, %v8963
  %v9156 = vadd.f32 %v8235, %v8968
  %v9157 = vadd.f32 %v8236, %v8971
  %v9158 = vadd.f32 %v8237, %v8976
  %v9159 = vadd.f32 %v8238, %v8979
  %v9160 = vadd.f32 %v8239, %v8984
  %v9161 = vadd.f32 %v8240, %v8987
  %v9162 = vadd.f32 %v8241, %v8992
  %v9163 = vadd.f32 %v8242, %v8995
  %v9164 = vadd.f32 %v8243, %v9000
  %v9165 = vadd.f32 %v8244, %v9003
  %v9166 = vadd.f32 %v8245, %v9008
  %v9167 = vadd.f32 %v8246, %v9011
  %v9168 = vadd.f32 %v8247, %v9016
  %v9169 = vadd.f32 %v8248, %v9019
  %v9170 = vadd.f32 %v8249, %v9024
  %v9171 = vadd.f32 %v8250, %v9027
  %v9172 = vadd.f32 %v8251, %v9032
  %v9173 = vadd.f32 %v8252, %v9035
  %v9174 = vadd.f32 %v8253, %v9040
  %v9175 = vadd.f32 %v8254, %v9043
  %v9176 = vadd.f32 %v8255, %v9048
  %v9177 = vadd.f32 %v8256, %v9051
  %v9178 = vadd.f32 %v8257, %v9056
  %v9179 = vadd.f32 %v8258, %v9059
  %v9180 = vadd.f32 %v8259, %v9064
  %v9181 = vadd.f32 %v8260, %v9067
  %v9182 = vadd.f32 %v8261, %v9072
  %v9183 = vadd.f32 %v8262, %v9075
  %v9184 = vadd.f32 %v8263, %v9080
  %v9185 = vadd.f32 %v8264, %v9083
  %v9186 = vadd.f32 %v8265, %v9088
  %v9187 = vadd.f32 %v8266, %v9091
  %v9188 = vadd.f32 %v8267, %v9096
  %v9189 = vadd.f32 %v8268, %v9099
  %v9190 = vadd.f32 %v8269, %v9104
  %v9191 = vadd.f32 %v8270, %v9107
  %v9192 = vadd.f32 %v8271, %v9112
  %v9193 = vadd.f32 %v8272, %v9115
  %v9194 = vadd.f32 %v8273, %v9120
  %v9195 = vadd.f32 %v8274, %v9123
  %v9196 = vadd.f32 %v8275, %v9128
  %v9197 = vadd.f32 %v8276, %v9131
  %v9198 = vld [vmem:[%s3] sm:$0xff]
  %v9199 = vld [vmem:[%s3 + $0x8] sm:$0xff]
  %v9200 = vld [vmem:[%s3 + $0x10] sm:$0xff]
  %v9201 = vld [vmem:[%s3 + $0x18] sm:$0xff]
  %v9202 = vld [vmem:[%s3 + $0x20] sm:$0xff]
  %v9203 = vld [vmem:[%s3 + $0x28] sm:$0xff]
  %v9204 = vld [vmem:[%s3 + $0x30] sm:$0xff]
  %v9205 = vld [vmem:[%s3 + $0x38] sm:$0xff]
  %v9206 = vld [vmem:[%s3 + $0x40] sm:$0xff]
  %v9207 = vld [vmem:[%s3 + $0x48] sm:$0xff]
  %v9208 = vld [vmem:[%s3 + $0x50] sm:$0xff]
  %v9209 = vld [vmem:[%s3 + $0x58] sm:$0xff]
  %v9210 = vld [vmem:[%s3 + $0x60] sm:$0xff]
  %v9211 = vld [vmem:[%s3 + $0x68] sm:$0xff]
  %v9212 = vld [vmem:[%s3 + $0x70] sm:$0xff]
  %v9213 = vld [vmem:[%s3 + $0x78] sm:$0xff]
  %v9214 = vld [vmem:[%s3 + $0x80] sm:$0xff]
  %v9215 = vld [vmem:[%s3 + $0x88] sm:$0xff]
  %v9216 = vld [vmem:[%s3 + $0x90] sm:$0xff]
  %v9217 = vld [vmem:[%s3 + $0x98] sm:$0xff]
  %v9218 = vld [vmem:[%s3 + $0xa0] sm:$0xff]
  %v9219 = vld [vmem:[%s3 + $0xa8] sm:$0xff]
  %v9220 = vld [vmem:[%s3 + $0xb0] sm:$0xff]
  %v9221 = vld [vmem:[%s3 + $0xb8] sm:$0xff]
  %v9222 = vld [vmem:[%s3 + $0xc0] sm:$0xff]
  %v9223 = vld [vmem:[%s3 + $0xc8] sm:$0xff]
  %v9224 = vld [vmem:[%s3 + $0xd0] sm:$0xff]
  %v9225 = vld [vmem:[%s3 + $0xd8] sm:$0xff]
  %v9226 = vld [vmem:[%s3 + $0xe0] sm:$0xff]
  %v9227 = vld [vmem:[%s3 + $0xe8] sm:$0xff]
  %v9228 = vld [vmem:[%s3 + $0xf0] sm:$0xff]
  %v9229 = vld [vmem:[%s3 + $0xf8] sm:$0xff]
  %v9230 = vld [vmem:[%s3 + $0x100] sm:$0xff]
  %v9231 = vld [vmem:[%s3 + $0x108] sm:$0xff]
  %v9232 = vld [vmem:[%s3 + $0x110] sm:$0xff]
  %v9233 = vld [vmem:[%s3 + $0x118] sm:$0xff]
  %v9234 = vld [vmem:[%s3 + $0x120] sm:$0xff]
  %v9235 = vld [vmem:[%s3 + $0x128] sm:$0xff]
  %v9236 = vld [vmem:[%s3 + $0x130] sm:$0xff]
  %v9237 = vld [vmem:[%s3 + $0x138] sm:$0xff]
  %v9238 = vld [vmem:[%s3 + $0x140] sm:$0xff]
  %v9239 = vld [vmem:[%s3 + $0x148] sm:$0xff]
  %v9240 = vld [vmem:[%s3 + $0x150] sm:$0xff]
  %v9241 = vld [vmem:[%s3 + $0x158] sm:$0xff]
  %v9242 = vld [vmem:[%s3 + $0x160] sm:$0xff]
  %v9243 = vld [vmem:[%s3 + $0x168] sm:$0xff]
  %v9244 = vld [vmem:[%s3 + $0x170] sm:$0xff]
  %v9245 = vld [vmem:[%s3 + $0x178] sm:$0xff]
  %v9246 = vld [vmem:[%s3 + $0x180] sm:$0xff]
  %v9247 = vld [vmem:[%s3 + $0x188] sm:$0xff]
  %v9248 = vld [vmem:[%s3 + $0x190] sm:$0xff]
  %v9249 = vld [vmem:[%s3 + $0x198] sm:$0xff]
  %v9250 = vld [vmem:[%s3 + $0x1a0] sm:$0xff]
  %v9251 = vld [vmem:[%s3 + $0x1a8] sm:$0xff]
  %v9252 = vld [vmem:[%s3 + $0x1b0] sm:$0xff]
  %v9253 = vld [vmem:[%s3 + $0x1b8] sm:$0xff]
  %v9254 = vld [vmem:[%s3 + $0x1c0] sm:$0xff]
  %v9255 = vld [vmem:[%s3 + $0x1c8] sm:$0xff]
  %v9256 = vld [vmem:[%s3 + $0x1d0] sm:$0xff]
  %v9257 = vld [vmem:[%s3 + $0x1d8] sm:$0xff]
  %v9258 = vld [vmem:[%s3 + $0x1e0] sm:$0xff]
  %v9259 = vld [vmem:[%s3 + $0x1e8] sm:$0xff]
  %v9260 = vld [vmem:[%s3 + $0x1f0] sm:$0xff]
  %v9261 = vld [vmem:[%s3 + $0x1f8] sm:$0xff]
  %v9262 = vld [vmem:[%s4] sm:$0xff]
  %v9263 = vld [vmem:[%s4 + $0x8] sm:$0xff]
  %v9264 = vld [vmem:[%s4 + $0x10] sm:$0xff]
  %v9265 = vld [vmem:[%s4 + $0x18] sm:$0xff]
  %v9266 = vld [vmem:[%s4 + $0x20] sm:$0xff]
  %v9267 = vld [vmem:[%s4 + $0x28] sm:$0xff]
  %v9268 = vld [vmem:[%s4 + $0x30] sm:$0xff]
  %v9269 = vld [vmem:[%s4 + $0x38] sm:$0xff]
  %v9270 = vld [vmem:[%s4 + $0x40] sm:$0xff]
  %v9271 = vld [vmem:[%s4 + $0x48] sm:$0xff]
  %v9272 = vld [vmem:[%s4 + $0x50] sm:$0xff]
  %v9273 = vld [vmem:[%s4 + $0x58] sm:$0xff]
  %v9274 = vld [vmem:[%s4 + $0x60] sm:$0xff]
  %v9275 = vld [vmem:[%s4 + $0x68] sm:$0xff]
  %v9276 = vld [vmem:[%s4 + $0x70] sm:$0xff]
  %v9277 = vld [vmem:[%s4 + $0x78] sm:$0xff]
  %v9278 = vld [vmem:[%s4 + $0x80] sm:$0xff]
  %v9279 = vld [vmem:[%s4 + $0x88] sm:$0xff]
  %v9280 = vld [vmem:[%s4 + $0x90] sm:$0xff]
  %v9281 = vld [vmem:[%s4 + $0x98] sm:$0xff]
  %v9282 = vld [vmem:[%s4 + $0xa0] sm:$0xff]
  %v9283 = vld [vmem:[%s4 + $0xa8] sm:$0xff]
  %v9284 = vld [vmem:[%s4 + $0xb0] sm:$0xff]
  %v9285 = vld [vmem:[%s4 + $0xb8] sm:$0xff]
  %v9286 = vld [vmem:[%s4 + $0xc0] sm:$0xff]
  %v9287 = vld [vmem:[%s4 + $0xc8] sm:$0xff]
  %v9288 = vld [vmem:[%s4 + $0xd0] sm:$0xff]
  %v9289 = vld [vmem:[%s4 + $0xd8] sm:$0xff]
  %v9290 = vld [vmem:[%s4 + $0xe0] sm:$0xff]
  %v9291 = vld [vmem:[%s4 + $0xe8] sm:$0xff]
  %v9292 = vld [vmem:[%s4 + $0xf0] sm:$0xff]
  %v9293 = vld [vmem:[%s4 + $0xf8] sm:$0xff]
  %v9294 = vmul.f32 %v9198, %v9262
  %v9295 = vmul.f32 %v9199, %v9263
  %v9296 = vmul.f32 %v9200, %v9264
  %v9297 = vmul.f32 %v9201, %v9265
  %v9298 = vmul.f32 %v9202, %v9266
  %v9299 = vmul.f32 %v9203, %v9267
  %v9300 = vmul.f32 %v9204, %v9268
  %v9301 = vmul.f32 %v9205, %v9269
  %v9302 = vmul.f32 %v9206, %v9270
  %v9303 = vmul.f32 %v9207, %v9271
  %v9304 = vmul.f32 %v9208, %v9272
  %v9305 = vmul.f32 %v9209, %v9273
  %v9306 = vmul.f32 %v9210, %v9274
  %v9307 = vmul.f32 %v9211, %v9275
  %v9308 = vmul.f32 %v9212, %v9276
  %v9309 = vmul.f32 %v9213, %v9277
  %v9310 = vmul.f32 %v9214, %v9278
  %v9311 = vmul.f32 %v9215, %v9279
  %v9312 = vmul.f32 %v9216, %v9280
  %v9313 = vmul.f32 %v9217, %v9281
  %v9314 = vmul.f32 %v9218, %v9282
  %v9315 = vmul.f32 %v9219, %v9283
  %v9316 = vmul.f32 %v9220, %v9284
  %v9317 = vmul.f32 %v9221, %v9285
  %v9318 = vmul.f32 %v9222, %v9286
  %v9319 = vmul.f32 %v9223, %v9287
  %v9320 = vmul.f32 %v9224, %v9288
  %v9321 = vmul.f32 %v9225, %v9289
  %v9322 = vmul.f32 %v9226, %v9290
  %v9323 = vmul.f32 %v9227, %v9291
  %v9324 = vmul.f32 %v9228, %v9292
  %v9325 = vmul.f32 %v9229, %v9293
  %v9326 = vmul.f32 %v9230, %v9262
  %v9327 = vmul.f32 %v9231, %v9263
  %v9328 = vmul.f32 %v9232, %v9264
  %v9329 = vmul.f32 %v9233, %v9265
  %v9330 = vmul.f32 %v9234, %v9266
  %v9331 = vmul.f32 %v9235, %v9267
  %v9332 = vmul.f32 %v9236, %v9268
  %v9333 = vmul.f32 %v9237, %v9269
  %v9334 = vmul.f32 %v9238, %v9270
  %v9335 = vmul.f32 %v9239, %v9271
  %v9336 = vmul.f32 %v9240, %v9272
  %v9337 = vmul.f32 %v9241, %v9273
  %v9338 = vmul.f32 %v9242, %v9274
  %v9339 = vmul.f32 %v9243, %v9275
  %v9340 = vmul.f32 %v9244, %v9276
  %v9341 = vmul.f32 %v9245, %v9277
  %v9342 = vmul.f32 %v9246, %v9278
  %v9343 = vmul.f32 %v9247, %v9279
  %v9344 = vmul.f32 %v9248, %v9280
  %v9345 = vmul.f32 %v9249, %v9281
  %v9346 = vmul.f32 %v9250, %v9282
  %v9347 = vmul.f32 %v9251, %v9283
  %v9348 = vmul.f32 %v9252, %v9284
  %v9349 = vmul.f32 %v9253, %v9285
  %v9350 = vmul.f32 %v9254, %v9286
  %v9351 = vmul.f32 %v9255, %v9287
  %v9352 = vmul.f32 %v9256, %v9288
  %v9353 = vmul.f32 %v9257, %v9289
  %v9354 = vmul.f32 %v9258, %v9290
  %v9355 = vmul.f32 %v9259, %v9291
  %v9356 = vmul.f32 %v9260, %v9292
  %v9357 = vmul.f32 %v9261, %v9293
  %v9358 = vadd.f32 %v9134, %v9294
  %v9359 = vadd.f32 %v9135, %v9295
  %v9360 = vadd.f32 %v9136, %v9296
  %v9361 = vadd.f32 %v9137, %v9297
  %v9362 = vadd.f32 %v9138, %v9298
  %v9363 = vadd.f32 %v9139, %v9299
  %v9364 = vadd.f32 %v9140, %v9300
  %v9365 = vadd.f32 %v9141, %v9301
  %v9366 = vadd.f32 %v9142, %v9302
  %v9367 = vadd.f32 %v9143, %v9303
  %v9368 = vadd.f32 %v9144, %v9304
  %v9369 = vadd.f32 %v9145, %v9305
  %v9370 = vadd.f32 %v9146, %v9306
  %v9371 = vadd.f32 %v9147, %v9307
  %v9372 = vadd.f32 %v9148, %v9308
  %v9373 = vadd.f32 %v9149, %v9309
  %v9374 = vadd.f32 %v9150, %v9310
  %v9375 = vadd.f32 %v9151, %v9311
  %v9376 = vadd.f32 %v9152, %v9312
  %v9377 = vadd.f32 %v9153, %v9313
  %v9378 = vadd.f32 %v9154, %v9314
  %v9379 = vadd.f32 %v9155, %v9315
  %v9380 = vadd.f32 %v9156, %v9316
  %v9381 = vadd.f32 %v9157, %v9317
  %v9382 = vadd.f32 %v9158, %v9318
  %v9383 = vadd.f32 %v9159, %v9319
  %v9384 = vadd.f32 %v9160, %v9320
  %v9385 = vadd.f32 %v9161, %v9321
  %v9386 = vadd.f32 %v9162, %v9322
  %v9387 = vadd.f32 %v9163, %v9323
  %v9388 = vadd.f32 %v9164, %v9324
  %v9389 = vadd.f32 %v9165, %v9325
  %v9390 = vadd.f32 %v9166, %v9326
  %v9391 = vadd.f32 %v9167, %v9327
  %v9392 = vadd.f32 %v9168, %v9328
  %v9393 = vadd.f32 %v9169, %v9329
  %v9394 = vadd.f32 %v9170, %v9330
  %v9395 = vadd.f32 %v9171, %v9331
  %v9396 = vadd.f32 %v9172, %v9332
  %v9397 = vadd.f32 %v9173, %v9333
  %v9398 = vadd.f32 %v9174, %v9334
  %v9399 = vadd.f32 %v9175, %v9335
  %v9400 = vadd.f32 %v9176, %v9336
  %v9401 = vadd.f32 %v9177, %v9337
  %v9402 = vadd.f32 %v9178, %v9338
  %v9403 = vadd.f32 %v9179, %v9339
  %v9404 = vadd.f32 %v9180, %v9340
  %v9405 = vadd.f32 %v9181, %v9341
  %v9406 = vadd.f32 %v9182, %v9342
  %v9407 = vadd.f32 %v9183, %v9343
  %v9408 = vadd.f32 %v9184, %v9344
  %v9409 = vadd.f32 %v9185, %v9345
  %v9410 = vadd.f32 %v9186, %v9346
  %v9411 = vadd.f32 %v9187, %v9347
  %v9412 = vadd.f32 %v9188, %v9348
  %v9413 = vadd.f32 %v9189, %v9349
  %v9414 = vadd.f32 %v9190, %v9350
  %v9415 = vadd.f32 %v9191, %v9351
  %v9416 = vadd.f32 %v9192, %v9352
  %v9417 = vadd.f32 %v9193, %v9353
  %v9418 = vadd.f32 %v9194, %v9354
  %v9419 = vadd.f32 %v9195, %v9355
  %v9420 = vadd.f32 %v9196, %v9356
  %v9421 = vadd.f32 %v9197, %v9357
  %v9422 = vxor.u32 %v9358, 2147483648
  %v9423 = vxor.u32 %v9359, 2147483648
  %v9424 = vxor.u32 %v9360, 2147483648
  %v9425 = vxor.u32 %v9361, 2147483648
  %v9426 = vxor.u32 %v9362, 2147483648
  %v9427 = vxor.u32 %v9363, 2147483648
  %v9428 = vxor.u32 %v9364, 2147483648
  %v9429 = vxor.u32 %v9365, 2147483648
  %v9430 = vxor.u32 %v9366, 2147483648
  %v9431 = vxor.u32 %v9367, 2147483648
  %v9432 = vxor.u32 %v9368, 2147483648
  %v9433 = vxor.u32 %v9369, 2147483648
  %v9434 = vxor.u32 %v9370, 2147483648
  %v9435 = vxor.u32 %v9371, 2147483648
  %v9436 = vxor.u32 %v9372, 2147483648
  %v9437 = vxor.u32 %v9373, 2147483648
  %v9438 = vxor.u32 %v9374, 2147483648
  %v9439 = vxor.u32 %v9375, 2147483648
  %v9440 = vxor.u32 %v9376, 2147483648
  %v9441 = vxor.u32 %v9377, 2147483648
  %v9442 = vxor.u32 %v9378, 2147483648
  %v9443 = vxor.u32 %v9379, 2147483648
  %v9444 = vxor.u32 %v9380, 2147483648
  %v9445 = vxor.u32 %v9381, 2147483648
  %v9446 = vxor.u32 %v9382, 2147483648
  %v9447 = vxor.u32 %v9383, 2147483648
  %v9448 = vxor.u32 %v9384, 2147483648
  %v9449 = vxor.u32 %v9385, 2147483648
  %v9450 = vxor.u32 %v9386, 2147483648
  %v9451 = vxor.u32 %v9387, 2147483648
  %v9452 = vxor.u32 %v9388, 2147483648
  %v9453 = vxor.u32 %v9389, 2147483648
  %v9454 = vxor.u32 %v9390, 2147483648
  %v9455 = vxor.u32 %v9391, 2147483648
  %v9456 = vxor.u32 %v9392, 2147483648
  %v9457 = vxor.u32 %v9393, 2147483648
  %v9458 = vxor.u32 %v9394, 2147483648
  %v9459 = vxor.u32 %v9395, 2147483648
  %v9460 = vxor.u32 %v9396, 2147483648
  %v9461 = vxor.u32 %v9397, 2147483648
  %v9462 = vxor.u32 %v9398, 2147483648
  %v9463 = vxor.u32 %v9399, 2147483648
  %v9464 = vxor.u32 %v9400, 2147483648
  %v9465 = vxor.u32 %v9401, 2147483648
  %v9466 = vxor.u32 %v9402, 2147483648
  %v9467 = vxor.u32 %v9403, 2147483648
  %v9468 = vxor.u32 %v9404, 2147483648
  %v9469 = vxor.u32 %v9405, 2147483648
  %v9470 = vxor.u32 %v9406, 2147483648
  %v9471 = vxor.u32 %v9407, 2147483648
  %v9472 = vxor.u32 %v9408, 2147483648
  %v9473 = vxor.u32 %v9409, 2147483648
  %v9474 = vxor.u32 %v9410, 2147483648
  %v9475 = vxor.u32 %v9411, 2147483648
  %v9476 = vxor.u32 %v9412, 2147483648
  %v9477 = vxor.u32 %v9413, 2147483648
  %v9478 = vxor.u32 %v9414, 2147483648
  %v9479 = vxor.u32 %v9415, 2147483648
  %v9480 = vxor.u32 %v9416, 2147483648
  %v9481 = vxor.u32 %v9417, 2147483648
  %v9482 = vxor.u32 %v9418, 2147483648
  %v9483 = vxor.u32 %v9419, 2147483648
  %v9484 = vxor.u32 %v9420, 2147483648
  %v9485 = vxor.u32 %v9421, 2147483648
  %v9486 = vmul.f32 %v9422, 1.442695
  %v9487 = vpow.pop %v9486
  %v9488 = vmul.f32 %v9423, 1.442695
  %v9489 = vpow.pop %v9488
  %v9490 = vmul.f32 %v9424, 1.442695
  %v9491 = vpow.pop %v9490
  %v9492 = vmul.f32 %v9425, 1.442695
  %v9493 = vpow.pop %v9492
  %v9494 = vmul.f32 %v9426, 1.442695
  %v9495 = vpow.pop %v9494
  %v9496 = vmul.f32 %v9427, 1.442695
  %v9497 = vpow.pop %v9496
  %v9498 = vmul.f32 %v9428, 1.442695
  %v9499 = vpow.pop %v9498
  %v9500 = vmul.f32 %v9429, 1.442695
  %v9501 = vpow.pop %v9500
  %v9502 = vmul.f32 %v9430, 1.442695
  %v9503 = vpow.pop %v9502
  %v9504 = vmul.f32 %v9431, 1.442695
  %v9505 = vpow.pop %v9504
  %v9506 = vmul.f32 %v9432, 1.442695
  %v9507 = vpow.pop %v9506
  %v9508 = vmul.f32 %v9433, 1.442695
  %v9509 = vpow.pop %v9508
  %v9510 = vmul.f32 %v9434, 1.442695
  %v9511 = vpow.pop %v9510
  %v9512 = vmul.f32 %v9435, 1.442695
  %v9513 = vpow.pop %v9512
  %v9514 = vmul.f32 %v9436, 1.442695
  %v9515 = vpow.pop %v9514
  %v9516 = vmul.f32 %v9437, 1.442695
  %v9517 = vpow.pop %v9516
  %v9518 = vmul.f32 %v9438, 1.442695
  %v9519 = vpow.pop %v9518
  %v9520 = vmul.f32 %v9439, 1.442695
  %v9521 = vpow.pop %v9520
  %v9522 = vmul.f32 %v9440, 1.442695
  %v9523 = vpow.pop %v9522
  %v9524 = vmul.f32 %v9441, 1.442695
  %v9525 = vpow.pop %v9524
  %v9526 = vmul.f32 %v9442, 1.442695
  %v9527 = vpow.pop %v9526
  %v9528 = vmul.f32 %v9443, 1.442695
  %v9529 = vpow.pop %v9528
  %v9530 = vmul.f32 %v9444, 1.442695
  %v9531 = vpow.pop %v9530
  %v9532 = vmul.f32 %v9445, 1.442695
  %v9533 = vpow.pop %v9532
  %v9534 = vmul.f32 %v9446, 1.442695
  %v9535 = vpow.pop %v9534
  %v9536 = vmul.f32 %v9447, 1.442695
  %v9537 = vpow.pop %v9536
  %v9538 = vmul.f32 %v9448, 1.442695
  %v9539 = vpow.pop %v9538
  %v9540 = vmul.f32 %v9449, 1.442695
  %v9541 = vpow.pop %v9540
  %v9542 = vmul.f32 %v9450, 1.442695
  %v9543 = vpow.pop %v9542
  %v9544 = vmul.f32 %v9451, 1.442695
  %v9545 = vpow.pop %v9544
  %v9546 = vmul.f32 %v9452, 1.442695
  %v9547 = vpow.pop %v9546
  %v9548 = vmul.f32 %v9453, 1.442695
  %v9549 = vpow.pop %v9548
  %v9550 = vmul.f32 %v9454, 1.442695
  %v9551 = vpow.pop %v9550
  %v9552 = vmul.f32 %v9455, 1.442695
  %v9553 = vpow.pop %v9552
  %v9554 = vmul.f32 %v9456, 1.442695
  %v9555 = vpow.pop %v9554
  %v9556 = vmul.f32 %v9457, 1.442695
  %v9557 = vpow.pop %v9556
  %v9558 = vmul.f32 %v9458, 1.442695
  %v9559 = vpow.pop %v9558
  %v9560 = vmul.f32 %v9459, 1.442695
  %v9561 = vpow.pop %v9560
  %v9562 = vmul.f32 %v9460, 1.442695
  %v9563 = vpow.pop %v9562
  %v9564 = vmul.f32 %v9461, 1.442695
  %v9565 = vpow.pop %v9564
  %v9566 = vmul.f32 %v9462, 1.442695
  %v9567 = vpow.pop %v9566
  %v9568 = vmul.f32 %v9463, 1.442695
  %v9569 = vpow.pop %v9568
  %v9570 = vmul.f32 %v9464, 1.442695
  %v9571 = vpow.pop %v9570
  %v9572 = vmul.f32 %v9465, 1.442695
  %v9573 = vpow.pop %v9572
  %v9574 = vmul.f32 %v9466, 1.442695
  %v9575 = vpow.pop %v9574
  %v9576 = vmul.f32 %v9467, 1.442695
  %v9577 = vpow.pop %v9576
  %v9578 = vmul.f32 %v9468, 1.442695
  %v9579 = vpow.pop %v9578
  %v9580 = vmul.f32 %v9469, 1.442695
  %v9581 = vpow.pop %v9580
  %v9582 = vmul.f32 %v9470, 1.442695
  %v9583 = vpow.pop %v9582
  %v9584 = vmul.f32 %v9471, 1.442695
  %v9585 = vpow.pop %v9584
  %v9586 = vmul.f32 %v9472, 1.442695
  %v9587 = vpow.pop %v9586
  %v9588 = vmul.f32 %v9473, 1.442695
  %v9589 = vpow.pop %v9588
  %v9590 = vmul.f32 %v9474, 1.442695
  %v9591 = vpow.pop %v9590
  %v9592 = vmul.f32 %v9475, 1.442695
  %v9593 = vpow.pop %v9592
  %v9594 = vmul.f32 %v9476, 1.442695
  %v9595 = vpow.pop %v9594
  %v9596 = vmul.f32 %v9477, 1.442695
  %v9597 = vpow.pop %v9596
  %v9598 = vmul.f32 %v9478, 1.442695
  %v9599 = vpow.pop %v9598
  %v9600 = vmul.f32 %v9479, 1.442695
  %v9601 = vpow.pop %v9600
  %v9602 = vmul.f32 %v9480, 1.442695
  %v9603 = vpow.pop %v9602
  %v9604 = vmul.f32 %v9481, 1.442695
  %v9605 = vpow.pop %v9604
  %v9606 = vmul.f32 %v9482, 1.442695
  %v9607 = vpow.pop %v9606
  %v9608 = vmul.f32 %v9483, 1.442695
  %v9609 = vpow.pop %v9608
  %v9610 = vmul.f32 %v9484, 1.442695
  %v9611 = vpow.pop %v9610
  %v9612 = vmul.f32 %v9485, 1.442695
  %v9613 = vpow.pop %v9612
  %v9614 = vadd.f32 %v9487, 1.0
  %v9615 = vadd.f32 %v9489, 1.0
  %v9616 = vadd.f32 %v9491, 1.0
  %v9617 = vadd.f32 %v9493, 1.0
  %v9618 = vadd.f32 %v9495, 1.0
  %v9619 = vadd.f32 %v9497, 1.0
  %v9620 = vadd.f32 %v9499, 1.0
  %v9621 = vadd.f32 %v9501, 1.0
  %v9622 = vadd.f32 %v9503, 1.0
  %v9623 = vadd.f32 %v9505, 1.0
  %v9624 = vadd.f32 %v9507, 1.0
  %v9625 = vadd.f32 %v9509, 1.0
  %v9626 = vadd.f32 %v9511, 1.0
  %v9627 = vadd.f32 %v9513, 1.0
  %v9628 = vadd.f32 %v9515, 1.0
  %v9629 = vadd.f32 %v9517, 1.0
  %v9630 = vadd.f32 %v9519, 1.0
  %v9631 = vadd.f32 %v9521, 1.0
  %v9632 = vadd.f32 %v9523, 1.0
  %v9633 = vadd.f32 %v9525, 1.0
  %v9634 = vadd.f32 %v9527, 1.0
  %v9635 = vadd.f32 %v9529, 1.0
  %v9636 = vadd.f32 %v9531, 1.0
  %v9637 = vadd.f32 %v9533, 1.0
  %v9638 = vadd.f32 %v9535, 1.0
  %v9639 = vadd.f32 %v9537, 1.0
  %v9640 = vadd.f32 %v9539, 1.0
  %v9641 = vadd.f32 %v9541, 1.0
  %v9642 = vadd.f32 %v9543, 1.0
  %v9643 = vadd.f32 %v9545, 1.0
  %v9644 = vadd.f32 %v9547, 1.0
  %v9645 = vadd.f32 %v9549, 1.0
  %v9646 = vadd.f32 %v9551, 1.0
  %v9647 = vadd.f32 %v9553, 1.0
  %v9648 = vadd.f32 %v9555, 1.0
  %v9649 = vadd.f32 %v9557, 1.0
  %v9650 = vadd.f32 %v9559, 1.0
  %v9651 = vadd.f32 %v9561, 1.0
  %v9652 = vadd.f32 %v9563, 1.0
  %v9653 = vadd.f32 %v9565, 1.0
  %v9654 = vadd.f32 %v9567, 1.0
  %v9655 = vadd.f32 %v9569, 1.0
  %v9656 = vadd.f32 %v9571, 1.0
  %v9657 = vadd.f32 %v9573, 1.0
  %v9658 = vadd.f32 %v9575, 1.0
  %v9659 = vadd.f32 %v9577, 1.0
  %v9660 = vadd.f32 %v9579, 1.0
  %v9661 = vadd.f32 %v9581, 1.0
  %v9662 = vadd.f32 %v9583, 1.0
  %v9663 = vadd.f32 %v9585, 1.0
  %v9664 = vadd.f32 %v9587, 1.0
  %v9665 = vadd.f32 %v9589, 1.0
  %v9666 = vadd.f32 %v9591, 1.0
  %v9667 = vadd.f32 %v9593, 1.0
  %v9668 = vadd.f32 %v9595, 1.0
  %v9669 = vadd.f32 %v9597, 1.0
  %v9670 = vadd.f32 %v9599, 1.0
  %v9671 = vadd.f32 %v9601, 1.0
  %v9672 = vadd.f32 %v9603, 1.0
  %v9673 = vadd.f32 %v9605, 1.0
  %v9674 = vadd.f32 %v9607, 1.0
  %v9675 = vadd.f32 %v9609, 1.0
  %v9676 = vadd.f32 %v9611, 1.0
  %v9677 = vadd.f32 %v9613, 1.0
  %v9678 = vrcp.pop %v9614
  %v9679 = vmul.f32 1.0, %v9678
  %v9680 = vrcp.pop %v9615
  %v9681 = vmul.f32 1.0, %v9680
  %v9682 = vrcp.pop %v9616
  %v9683 = vmul.f32 1.0, %v9682
  %v9684 = vrcp.pop %v9617
  %v9685 = vmul.f32 1.0, %v9684
  %v9686 = vrcp.pop %v9618
  %v9687 = vmul.f32 1.0, %v9686
  %v9688 = vrcp.pop %v9619
  %v9689 = vmul.f32 1.0, %v9688
  %v9690 = vrcp.pop %v9620
  %v9691 = vmul.f32 1.0, %v9690
  %v9692 = vrcp.pop %v9621
  %v9693 = vmul.f32 1.0, %v9692
  %v9694 = vrcp.pop %v9622
  %v9695 = vmul.f32 1.0, %v9694
  %v9696 = vrcp.pop %v9623
  %v9697 = vmul.f32 1.0, %v9696
  %v9698 = vrcp.pop %v9624
  %v9699 = vmul.f32 1.0, %v9698
  %v9700 = vrcp.pop %v9625
  %v9701 = vmul.f32 1.0, %v9700
  %v9702 = vrcp.pop %v9626
  %v9703 = vmul.f32 1.0, %v9702
  %v9704 = vrcp.pop %v9627
  %v9705 = vmul.f32 1.0, %v9704
  %v9706 = vrcp.pop %v9628
  %v9707 = vmul.f32 1.0, %v9706
  %v9708 = vrcp.pop %v9629
  %v9709 = vmul.f32 1.0, %v9708
  %v9710 = vrcp.pop %v9630
  %v9711 = vmul.f32 1.0, %v9710
  %v9712 = vrcp.pop %v9631
  %v9713 = vmul.f32 1.0, %v9712
  %v9714 = vrcp.pop %v9632
  %v9715 = vmul.f32 1.0, %v9714
  %v9716 = vrcp.pop %v9633
  %v9717 = vmul.f32 1.0, %v9716
  %v9718 = vrcp.pop %v9634
  %v9719 = vmul.f32 1.0, %v9718
  %v9720 = vrcp.pop %v9635
  %v9721 = vmul.f32 1.0, %v9720
  %v9722 = vrcp.pop %v9636
  %v9723 = vmul.f32 1.0, %v9722
  %v9724 = vrcp.pop %v9637
  %v9725 = vmul.f32 1.0, %v9724
  %v9726 = vrcp.pop %v9638
  %v9727 = vmul.f32 1.0, %v9726
  %v9728 = vrcp.pop %v9639
  %v9729 = vmul.f32 1.0, %v9728
  %v9730 = vrcp.pop %v9640
  %v9731 = vmul.f32 1.0, %v9730
  %v9732 = vrcp.pop %v9641
  %v9733 = vmul.f32 1.0, %v9732
  %v9734 = vrcp.pop %v9642
  %v9735 = vmul.f32 1.0, %v9734
  %v9736 = vrcp.pop %v9643
  %v9737 = vmul.f32 1.0, %v9736
  %v9738 = vrcp.pop %v9644
  %v9739 = vmul.f32 1.0, %v9738
  %v9740 = vrcp.pop %v9645
  %v9741 = vmul.f32 1.0, %v9740
  %v9742 = vrcp.pop %v9646
  %v9743 = vmul.f32 1.0, %v9742
  %v9744 = vrcp.pop %v9647
  %v9745 = vmul.f32 1.0, %v9744
  %v9746 = vrcp.pop %v9648
  %v9747 = vmul.f32 1.0, %v9746
  %v9748 = vrcp.pop %v9649
  %v9749 = vmul.f32 1.0, %v9748
  %v9750 = vrcp.pop %v9650
  %v9751 = vmul.f32 1.0, %v9750
  %v9752 = vrcp.pop %v9651
  %v9753 = vmul.f32 1.0, %v9752
  %v9754 = vrcp.pop %v9652
  %v9755 = vmul.f32 1.0, %v9754
  %v9756 = vrcp.pop %v9653
  %v9757 = vmul.f32 1.0, %v9756
  %v9758 = vrcp.pop %v9654
  %v9759 = vmul.f32 1.0, %v9758
  %v9760 = vrcp.pop %v9655
  %v9761 = vmul.f32 1.0, %v9760
  %v9762 = vrcp.pop %v9656
  %v9763 = vmul.f32 1.0, %v9762
  %v9764 = vrcp.pop %v9657
  %v9765 = vmul.f32 1.0, %v9764
  %v9766 = vrcp.pop %v9658
  %v9767 = vmul.f32 1.0, %v9766
  %v9768 = vrcp.pop %v9659
  %v9769 = vmul.f32 1.0, %v9768
  %v9770 = vrcp.pop %v9660
  %v9771 = vmul.f32 1.0, %v9770
  %v9772 = vrcp.pop %v9661
  %v9773 = vmul.f32 1.0, %v9772
  %v9774 = vrcp.pop %v9662
  %v9775 = vmul.f32 1.0, %v9774
  %v9776 = vrcp.pop %v9663
  %v9777 = vmul.f32 1.0, %v9776
  %v9778 = vrcp.pop %v9664
  %v9779 = vmul.f32 1.0, %v9778
  %v9780 = vrcp.pop %v9665
  %v9781 = vmul.f32 1.0, %v9780
  %v9782 = vrcp.pop %v9666
  %v9783 = vmul.f32 1.0, %v9782
  %v9784 = vrcp.pop %v9667
  %v9785 = vmul.f32 1.0, %v9784
  %v9786 = vrcp.pop %v9668
  %v9787 = vmul.f32 1.0, %v9786
  %v9788 = vrcp.pop %v9669
  %v9789 = vmul.f32 1.0, %v9788
  %v9790 = vrcp.pop %v9670
  %v9791 = vmul.f32 1.0, %v9790
  %v9792 = vrcp.pop %v9671
  %v9793 = vmul.f32 1.0, %v9792
  %v9794 = vrcp.pop %v9672
  %v9795 = vmul.f32 1.0, %v9794
  %v9796 = vrcp.pop %v9673
  %v9797 = vmul.f32 1.0, %v9796
  %v9798 = vrcp.pop %v9674
  %v9799 = vmul.f32 1.0, %v9798
  %v9800 = vrcp.pop %v9675
  %v9801 = vmul.f32 1.0, %v9800
  %v9802 = vrcp.pop %v9676
  %v9803 = vmul.f32 1.0, %v9802
  %v9804 = vrcp.pop %v9677
  %v9805 = vmul.f32 1.0, %v9804
  %v9806 = vld [vmem:[%s5] sm:$0xff]
  %v9807 = vld [vmem:[%s5 + $0x8] sm:$0xff]
  %v9808 = vld [vmem:[%s5 + $0x10] sm:$0xff]
  %v9809 = vld [vmem:[%s5 + $0x18] sm:$0xff]
  %v9810 = vld [vmem:[%s5 + $0x20] sm:$0xff]
  %v9811 = vld [vmem:[%s5 + $0x28] sm:$0xff]
  %v9812 = vld [vmem:[%s5 + $0x30] sm:$0xff]
  %v9813 = vld [vmem:[%s5 + $0x38] sm:$0xff]
  %v9814 = vld [vmem:[%s5 + $0x40] sm:$0xff]
  %v9815 = vld [vmem:[%s5 + $0x48] sm:$0xff]
  %v9816 = vld [vmem:[%s5 + $0x50] sm:$0xff]
  %v9817 = vld [vmem:[%s5 + $0x58] sm:$0xff]
  %v9818 = vld [vmem:[%s5 + $0x60] sm:$0xff]
  %v9819 = vld [vmem:[%s5 + $0x68] sm:$0xff]
  %v9820 = vld [vmem:[%s5 + $0x70] sm:$0xff]
  %v9821 = vld [vmem:[%s5 + $0x78] sm:$0xff]
  %v9822 = vld [vmem:[%s5 + $0x80] sm:$0xff]
  %v9823 = vld [vmem:[%s5 + $0x88] sm:$0xff]
  %v9824 = vld [vmem:[%s5 + $0x90] sm:$0xff]
  %v9825 = vld [vmem:[%s5 + $0x98] sm:$0xff]
  %v9826 = vld [vmem:[%s5 + $0xa0] sm:$0xff]
  %v9827 = vld [vmem:[%s5 + $0xa8] sm:$0xff]
  %v9828 = vld [vmem:[%s5 + $0xb0] sm:$0xff]
  %v9829 = vld [vmem:[%s5 + $0xb8] sm:$0xff]
  %v9830 = vld [vmem:[%s5 + $0xc0] sm:$0xff]
  %v9831 = vld [vmem:[%s5 + $0xc8] sm:$0xff]
  %v9832 = vld [vmem:[%s5 + $0xd0] sm:$0xff]
  %v9833 = vld [vmem:[%s5 + $0xd8] sm:$0xff]
  %v9834 = vld [vmem:[%s5 + $0xe0] sm:$0xff]
  %v9835 = vld [vmem:[%s5 + $0xe8] sm:$0xff]
  %v9836 = vld [vmem:[%s5 + $0xf0] sm:$0xff]
  %v9837 = vld [vmem:[%s5 + $0xf8] sm:$0xff]
  %v9838 = vmul.f32 %v9198, %v9806
  %v9839 = vmul.f32 %v9199, %v9807
  %v9840 = vmul.f32 %v9200, %v9808
  %v9841 = vmul.f32 %v9201, %v9809
  %v9842 = vmul.f32 %v9202, %v9810
  %v9843 = vmul.f32 %v9203, %v9811
  %v9844 = vmul.f32 %v9204, %v9812
  %v9845 = vmul.f32 %v9205, %v9813
  %v9846 = vmul.f32 %v9206, %v9814
  %v9847 = vmul.f32 %v9207, %v9815
  %v9848 = vmul.f32 %v9208, %v9816
  %v9849 = vmul.f32 %v9209, %v9817
  %v9850 = vmul.f32 %v9210, %v9818
  %v9851 = vmul.f32 %v9211, %v9819
  %v9852 = vmul.f32 %v9212, %v9820
  %v9853 = vmul.f32 %v9213, %v9821
  %v9854 = vmul.f32 %v9214, %v9822
  %v9855 = vmul.f32 %v9215, %v9823
  %v9856 = vmul.f32 %v9216, %v9824
  %v9857 = vmul.f32 %v9217, %v9825
  %v9858 = vmul.f32 %v9218, %v9826
  %v9859 = vmul.f32 %v9219, %v9827
  %v9860 = vmul.f32 %v9220, %v9828
  %v9861 = vmul.f32 %v9221, %v9829
  %v9862 = vmul.f32 %v9222, %v9830
  %v9863 = vmul.f32 %v9223, %v9831
  %v9864 = vmul.f32 %v9224, %v9832
  %v9865 = vmul.f32 %v9225, %v9833
  %v9866 = vmul.f32 %v9226, %v9834
  %v9867 = vmul.f32 %v9227, %v9835
  %v9868 = vmul.f32 %v9228, %v9836
  %v9869 = vmul.f32 %v9229, %v9837
  %v9870 = vmul.f32 %v9230, %v9806
  %v9871 = vmul.f32 %v9231, %v9807
  %v9872 = vmul.f32 %v9232, %v9808
  %v9873 = vmul.f32 %v9233, %v9809
  %v9874 = vmul.f32 %v9234, %v9810
  %v9875 = vmul.f32 %v9235, %v9811
  %v9876 = vmul.f32 %v9236, %v9812
  %v9877 = vmul.f32 %v9237, %v9813
  %v9878 = vmul.f32 %v9238, %v9814
  %v9879 = vmul.f32 %v9239, %v9815
  %v9880 = vmul.f32 %v9240, %v9816
  %v9881 = vmul.f32 %v9241, %v9817
  %v9882 = vmul.f32 %v9242, %v9818
  %v9883 = vmul.f32 %v9243, %v9819
  %v9884 = vmul.f32 %v9244, %v9820
  %v9885 = vmul.f32 %v9245, %v9821
  %v9886 = vmul.f32 %v9246, %v9822
  %v9887 = vmul.f32 %v9247, %v9823
  %v9888 = vmul.f32 %v9248, %v9824
  %v9889 = vmul.f32 %v9249, %v9825
  %v9890 = vmul.f32 %v9250, %v9826
  %v9891 = vmul.f32 %v9251, %v9827
  %v9892 = vmul.f32 %v9252, %v9828
  %v9893 = vmul.f32 %v9253, %v9829
  %v9894 = vmul.f32 %v9254, %v9830
  %v9895 = vmul.f32 %v9255, %v9831
  %v9896 = vmul.f32 %v9256, %v9832
  %v9897 = vmul.f32 %v9257, %v9833
  %v9898 = vmul.f32 %v9258, %v9834
  %v9899 = vmul.f32 %v9259, %v9835
  %v9900 = vmul.f32 %v9260, %v9836
  %v9901 = vmul.f32 %v9261, %v9837
  %9966 = vrot.lane.b32.xlu0 %v9838, 32
  %v9967 = vpop.permute.xlu0 %9966
  %9968 = vrot.lane.b32.xlu0 %v9839, 32
  %v9969 = vpop.permute.xlu0 %9968
  %9970 = vrot.lane.b32.xlu0 %v9840, 32
  %v9971 = vpop.permute.xlu0 %9970
  %9972 = vrot.lane.b32.xlu0 %v9841, 32
  %v9973 = vpop.permute.xlu0 %9972
  %9974 = vrot.lane.b32.xlu0 %v9842, 32
  %v9975 = vpop.permute.xlu0 %9974
  %9976 = vrot.lane.b32.xlu0 %v9843, 32
  %v9977 = vpop.permute.xlu0 %9976
  %9978 = vrot.lane.b32.xlu0 %v9844, 32
  %v9979 = vpop.permute.xlu0 %9978
  %9980 = vrot.lane.b32.xlu0 %v9845, 32
  %v9981 = vpop.permute.xlu0 %9980
  %9982 = vrot.lane.b32.xlu0 %v9846, 32
  %v9983 = vpop.permute.xlu0 %9982
  %9984 = vrot.lane.b32.xlu0 %v9847, 32
  %v9985 = vpop.permute.xlu0 %9984
  %9986 = vrot.lane.b32.xlu0 %v9848, 32
  %v9987 = vpop.permute.xlu0 %9986
  %9988 = vrot.lane.b32.xlu0 %v9849, 32
  %v9989 = vpop.permute.xlu0 %9988
  %9990 = vrot.lane.b32.xlu0 %v9850, 32
  %v9991 = vpop.permute.xlu0 %9990
  %9992 = vrot.lane.b32.xlu0 %v9851, 32
  %v9993 = vpop.permute.xlu0 %9992
  %9994 = vrot.lane.b32.xlu0 %v9852, 32
  %v9995 = vpop.permute.xlu0 %9994
  %9996 = vrot.lane.b32.xlu0 %v9853, 32
  %v9997 = vpop.permute.xlu0 %9996
  %9998 = vrot.lane.b32.xlu0 %v9854, 32
  %v9999 = vpop.permute.xlu0 %9998
  %10000 = vrot.lane.b32.xlu0 %v9855, 32
  %v10001 = vpop.permute.xlu0 %10000
  %10002 = vrot.lane.b32.xlu0 %v9856, 32
  %v10003 = vpop.permute.xlu0 %10002
  %10004 = vrot.lane.b32.xlu0 %v9857, 32
  %v10005 = vpop.permute.xlu0 %10004
  %10006 = vrot.lane.b32.xlu0 %v9858, 32
  %v10007 = vpop.permute.xlu0 %10006
  %10008 = vrot.lane.b32.xlu0 %v9859, 32
  %v10009 = vpop.permute.xlu0 %10008
  %10010 = vrot.lane.b32.xlu0 %v9860, 32
  %v10011 = vpop.permute.xlu0 %10010
  %10012 = vrot.lane.b32.xlu0 %v9861, 32
  %v10013 = vpop.permute.xlu0 %10012
  %10014 = vrot.lane.b32.xlu0 %v9862, 32
  %v10015 = vpop.permute.xlu0 %10014
  %10016 = vrot.lane.b32.xlu0 %v9863, 32
  %v10017 = vpop.permute.xlu0 %10016
  %10018 = vrot.lane.b32.xlu0 %v9864, 32
  %v10019 = vpop.permute.xlu0 %10018
  %10020 = vrot.lane.b32.xlu0 %v9865, 32
  %v10021 = vpop.permute.xlu0 %10020
  %10022 = vrot.lane.b32.xlu0 %v9866, 32
  %v10023 = vpop.permute.xlu0 %10022
  %10024 = vrot.lane.b32.xlu0 %v9867, 32
  %v10025 = vpop.permute.xlu0 %10024
  %10026 = vrot.lane.b32.xlu0 %v9868, 32
  %v10027 = vpop.permute.xlu0 %10026
  %10028 = vrot.lane.b32.xlu0 %v9869, 32
  %v10029 = vpop.permute.xlu0 %10028
  %10030 = vrot.lane.b32.xlu0 %v9870, 32
  %v10031 = vpop.permute.xlu0 %10030
  %10032 = vrot.lane.b32.xlu0 %v9871, 32
  %v10033 = vpop.permute.xlu0 %10032
  %10034 = vrot.lane.b32.xlu0 %v9872, 32
  %v10035 = vpop.permute.xlu0 %10034
  %10036 = vrot.lane.b32.xlu0 %v9873, 32
  %v10037 = vpop.permute.xlu0 %10036
  %10038 = vrot.lane.b32.xlu0 %v9874, 32
  %v10039 = vpop.permute.xlu0 %10038
  %10040 = vrot.lane.b32.xlu0 %v9875, 32
  %v10041 = vpop.permute.xlu0 %10040
  %10042 = vrot.lane.b32.xlu0 %v9876, 32
  %v10043 = vpop.permute.xlu0 %10042
  %10044 = vrot.lane.b32.xlu0 %v9877, 32
  %v10045 = vpop.permute.xlu0 %10044
  %10046 = vrot.lane.b32.xlu0 %v9878, 32
  %v10047 = vpop.permute.xlu0 %10046
  %10048 = vrot.lane.b32.xlu0 %v9879, 32
  %v10049 = vpop.permute.xlu0 %10048
  %10050 = vrot.lane.b32.xlu0 %v9880, 32
  %v10051 = vpop.permute.xlu0 %10050
  %10052 = vrot.lane.b32.xlu0 %v9881, 32
  %v10053 = vpop.permute.xlu0 %10052
  %10054 = vrot.lane.b32.xlu0 %v9882, 32
  %v10055 = vpop.permute.xlu0 %10054
  %10056 = vrot.lane.b32.xlu0 %v9883, 32
  %v10057 = vpop.permute.xlu0 %10056
  %10058 = vrot.lane.b32.xlu0 %v9884, 32
  %v10059 = vpop.permute.xlu0 %10058
  %10060 = vrot.lane.b32.xlu0 %v9885, 32
  %v10061 = vpop.permute.xlu0 %10060
  %10062 = vrot.lane.b32.xlu0 %v9886, 32
  %v10063 = vpop.permute.xlu0 %10062
  %10064 = vrot.lane.b32.xlu0 %v9887, 32
  %v10065 = vpop.permute.xlu0 %10064
  %10066 = vrot.lane.b32.xlu0 %v9888, 32
  %v10067 = vpop.permute.xlu0 %10066
  %10068 = vrot.lane.b32.xlu0 %v9889, 32
  %v10069 = vpop.permute.xlu0 %10068
  %10070 = vrot.lane.b32.xlu0 %v9890, 32
  %v10071 = vpop.permute.xlu0 %10070
  %10072 = vrot.lane.b32.xlu0 %v9891, 32
  %v10073 = vpop.permute.xlu0 %10072
  %10074 = vrot.lane.b32.xlu0 %v9892, 32
  %v10075 = vpop.permute.xlu0 %10074
  %10076 = vrot.lane.b32.xlu0 %v9893, 32
  %v10077 = vpop.permute.xlu0 %10076
  %10078 = vrot.lane.b32.xlu0 %v9894, 32
  %v10079 = vpop.permute.xlu0 %10078
  %10080 = vrot.lane.b32.xlu0 %v9895, 32
  %v10081 = vpop.permute.xlu0 %10080
  %10082 = vrot.lane.b32.xlu0 %v9896, 32
  %v10083 = vpop.permute.xlu0 %10082
  %10084 = vrot.lane.b32.xlu0 %v9897, 32
  %v10085 = vpop.permute.xlu0 %10084
  %10086 = vrot.lane.b32.xlu0 %v9898, 32
  %v10087 = vpop.permute.xlu0 %10086
  %10088 = vrot.lane.b32.xlu0 %v9899, 32
  %v10089 = vpop.permute.xlu0 %10088
  %10090 = vrot.lane.b32.xlu0 %v9900, 32
  %v10091 = vpop.permute.xlu0 %10090
  %10092 = vrot.lane.b32.xlu0 %v9901, 32
  %v10093 = vpop.permute.xlu0 %10092
  %v10158 = vadd.f32 %v9134, %v9967
  %v10159 = vadd.f32 %v9135, %v9969
  %v10160 = vadd.f32 %v9136, %v9971
  %v10161 = vadd.f32 %v9137, %v9973
  %v10162 = vadd.f32 %v9138, %v9975
  %v10163 = vadd.f32 %v9139, %v9977
  %v10164 = vadd.f32 %v9140, %v9979
  %v10165 = vadd.f32 %v9141, %v9981
  %v10166 = vadd.f32 %v9142, %v9983
  %v10167 = vadd.f32 %v9143, %v9985
  %v10168 = vadd.f32 %v9144, %v9987
  %v10169 = vadd.f32 %v9145, %v9989
  %v10170 = vadd.f32 %v9146, %v9991
  %v10171 = vadd.f32 %v9147, %v9993
  %v10172 = vadd.f32 %v9148, %v9995
  %v10173 = vadd.f32 %v9149, %v9997
  %v10174 = vadd.f32 %v9150, %v9999
  %v10175 = vadd.f32 %v9151, %v10001
  %v10176 = vadd.f32 %v9152, %v10003
  %v10177 = vadd.f32 %v9153, %v10005
  %v10178 = vadd.f32 %v9154, %v10007
  %v10179 = vadd.f32 %v9155, %v10009
  %v10180 = vadd.f32 %v9156, %v10011
  %v10181 = vadd.f32 %v9157, %v10013
  %v10182 = vadd.f32 %v9158, %v10015
  %v10183 = vadd.f32 %v9159, %v10017
  %v10184 = vadd.f32 %v9160, %v10019
  %v10185 = vadd.f32 %v9161, %v10021
  %v10186 = vadd.f32 %v9162, %v10023
  %v10187 = vadd.f32 %v9163, %v10025
  %v10188 = vadd.f32 %v9164, %v10027
  %v10189 = vadd.f32 %v9165, %v10029
  %v10190 = vadd.f32 %v9166, %v10031
  %v10191 = vadd.f32 %v9167, %v10033
  %v10192 = vadd.f32 %v9168, %v10035
  %v10193 = vadd.f32 %v9169, %v10037
  %v10194 = vadd.f32 %v9170, %v10039
  %v10195 = vadd.f32 %v9171, %v10041
  %v10196 = vadd.f32 %v9172, %v10043
  %v10197 = vadd.f32 %v9173, %v10045
  %v10198 = vadd.f32 %v9174, %v10047
  %v10199 = vadd.f32 %v9175, %v10049
  %v10200 = vadd.f32 %v9176, %v10051
  %v10201 = vadd.f32 %v9177, %v10053
  %v10202 = vadd.f32 %v9178, %v10055
  %v10203 = vadd.f32 %v9179, %v10057
  %v10204 = vadd.f32 %v9180, %v10059
  %v10205 = vadd.f32 %v9181, %v10061
  %v10206 = vadd.f32 %v9182, %v10063
  %v10207 = vadd.f32 %v9183, %v10065
  %v10208 = vadd.f32 %v9184, %v10067
  %v10209 = vadd.f32 %v9185, %v10069
  %v10210 = vadd.f32 %v9186, %v10071
  %v10211 = vadd.f32 %v9187, %v10073
  %v10212 = vadd.f32 %v9188, %v10075
  %v10213 = vadd.f32 %v9189, %v10077
  %v10214 = vadd.f32 %v9190, %v10079
  %v10215 = vadd.f32 %v9191, %v10081
  %v10216 = vadd.f32 %v9192, %v10083
  %v10217 = vadd.f32 %v9193, %v10085
  %v10218 = vadd.f32 %v9194, %v10087
  %v10219 = vadd.f32 %v9195, %v10089
  %v10220 = vadd.f32 %v9196, %v10091
  %v10221 = vadd.f32 %v9197, %v10093
  %v10222 = vxor.u32 %v10158, 2147483648
  %v10223 = vxor.u32 %v10159, 2147483648
  %v10224 = vxor.u32 %v10160, 2147483648
  %v10225 = vxor.u32 %v10161, 2147483648
  %v10226 = vxor.u32 %v10162, 2147483648
  %v10227 = vxor.u32 %v10163, 2147483648
  %v10228 = vxor.u32 %v10164, 2147483648
  %v10229 = vxor.u32 %v10165, 2147483648
  %v10230 = vxor.u32 %v10166, 2147483648
  %v10231 = vxor.u32 %v10167, 2147483648
  %v10232 = vxor.u32 %v10168, 2147483648
  %v10233 = vxor.u32 %v10169, 2147483648
  %v10234 = vxor.u32 %v10170, 2147483648
  %v10235 = vxor.u32 %v10171, 2147483648
  %v10236 = vxor.u32 %v10172, 2147483648
  %v10237 = vxor.u32 %v10173, 2147483648
  %v10238 = vxor.u32 %v10174, 2147483648
  %v10239 = vxor.u32 %v10175, 2147483648
  %v10240 = vxor.u32 %v10176, 2147483648
  %v10241 = vxor.u32 %v10177, 2147483648
  %v10242 = vxor.u32 %v10178, 2147483648
  %v10243 = vxor.u32 %v10179, 2147483648
  %v10244 = vxor.u32 %v10180, 2147483648
  %v10245 = vxor.u32 %v10181, 2147483648
  %v10246 = vxor.u32 %v10182, 2147483648
  %v10247 = vxor.u32 %v10183, 2147483648
  %v10248 = vxor.u32 %v10184, 2147483648
  %v10249 = vxor.u32 %v10185, 2147483648
  %v10250 = vxor.u32 %v10186, 2147483648
  %v10251 = vxor.u32 %v10187, 2147483648
  %v10252 = vxor.u32 %v10188, 2147483648
  %v10253 = vxor.u32 %v10189, 2147483648
  %v10254 = vxor.u32 %v10190, 2147483648
  %v10255 = vxor.u32 %v10191, 2147483648
  %v10256 = vxor.u32 %v10192, 2147483648
  %v10257 = vxor.u32 %v10193, 2147483648
  %v10258 = vxor.u32 %v10194, 2147483648
  %v10259 = vxor.u32 %v10195, 2147483648
  %v10260 = vxor.u32 %v10196, 2147483648
  %v10261 = vxor.u32 %v10197, 2147483648
  %v10262 = vxor.u32 %v10198, 2147483648
  %v10263 = vxor.u32 %v10199, 2147483648
  %v10264 = vxor.u32 %v10200, 2147483648
  %v10265 = vxor.u32 %v10201, 2147483648
  %v10266 = vxor.u32 %v10202, 2147483648
  %v10267 = vxor.u32 %v10203, 2147483648
  %v10268 = vxor.u32 %v10204, 2147483648
  %v10269 = vxor.u32 %v10205, 2147483648
  %v10270 = vxor.u32 %v10206, 2147483648
  %v10271 = vxor.u32 %v10207, 2147483648
  %v10272 = vxor.u32 %v10208, 2147483648
  %v10273 = vxor.u32 %v10209, 2147483648
  %v10274 = vxor.u32 %v10210, 2147483648
  %v10275 = vxor.u32 %v10211, 2147483648
  %v10276 = vxor.u32 %v10212, 2147483648
  %v10277 = vxor.u32 %v10213, 2147483648
  %v10278 = vxor.u32 %v10214, 2147483648
  %v10279 = vxor.u32 %v10215, 2147483648
  %v10280 = vxor.u32 %v10216, 2147483648
  %v10281 = vxor.u32 %v10217, 2147483648
  %v10282 = vxor.u32 %v10218, 2147483648
  %v10283 = vxor.u32 %v10219, 2147483648
  %v10284 = vxor.u32 %v10220, 2147483648
  %v10285 = vxor.u32 %v10221, 2147483648
  %v10286 = vmul.f32 %v10222, 1.442695
  %v10287 = vpow.pop %v10286
  %v10288 = vmul.f32 %v10223, 1.442695
  %v10289 = vpow.pop %v10288
  %v10290 = vmul.f32 %v10224, 1.442695
  %v10291 = vpow.pop %v10290
  %v10292 = vmul.f32 %v10225, 1.442695
  %v10293 = vpow.pop %v10292
  %v10294 = vmul.f32 %v10226, 1.442695
  %v10295 = vpow.pop %v10294
  %v10296 = vmul.f32 %v10227, 1.442695
  %v10297 = vpow.pop %v10296
  %v10298 = vmul.f32 %v10228, 1.442695
  %v10299 = vpow.pop %v10298
  %v10300 = vmul.f32 %v10229, 1.442695
  %v10301 = vpow.pop %v10300
  %v10302 = vmul.f32 %v10230, 1.442695
  %v10303 = vpow.pop %v10302
  %v10304 = vmul.f32 %v10231, 1.442695
  %v10305 = vpow.pop %v10304
  %v10306 = vmul.f32 %v10232, 1.442695
  %v10307 = vpow.pop %v10306
  %v10308 = vmul.f32 %v10233, 1.442695
  %v10309 = vpow.pop %v10308
  %v10310 = vmul.f32 %v10234, 1.442695
  %v10311 = vpow.pop %v10310
  %v10312 = vmul.f32 %v10235, 1.442695
  %v10313 = vpow.pop %v10312
  %v10314 = vmul.f32 %v10236, 1.442695
  %v10315 = vpow.pop %v10314
  %v10316 = vmul.f32 %v10237, 1.442695
  %v10317 = vpow.pop %v10316
  %v10318 = vmul.f32 %v10238, 1.442695
  %v10319 = vpow.pop %v10318
  %v10320 = vmul.f32 %v10239, 1.442695
  %v10321 = vpow.pop %v10320
  %v10322 = vmul.f32 %v10240, 1.442695
  %v10323 = vpow.pop %v10322
  %v10324 = vmul.f32 %v10241, 1.442695
  %v10325 = vpow.pop %v10324
  %v10326 = vmul.f32 %v10242, 1.442695
  %v10327 = vpow.pop %v10326
  %v10328 = vmul.f32 %v10243, 1.442695
  %v10329 = vpow.pop %v10328
  %v10330 = vmul.f32 %v10244, 1.442695
  %v10331 = vpow.pop %v10330
  %v10332 = vmul.f32 %v10245, 1.442695
  %v10333 = vpow.pop %v10332
  %v10334 = vmul.f32 %v10246, 1.442695
  %v10335 = vpow.pop %v10334
  %v10336 = vmul.f32 %v10247, 1.442695
  %v10337 = vpow.pop %v10336
  %v10338 = vmul.f32 %v10248, 1.442695
  %v10339 = vpow.pop %v10338
  %v10340 = vmul.f32 %v10249, 1.442695
  %v10341 = vpow.pop %v10340
  %v10342 = vmul.f32 %v10250, 1.442695
  %v10343 = vpow.pop %v10342
  %v10344 = vmul.f32 %v10251, 1.442695
  %v10345 = vpow.pop %v10344
  %v10346 = vmul.f32 %v10252, 1.442695
  %v10347 = vpow.pop %v10346
  %v10348 = vmul.f32 %v10253, 1.442695
  %v10349 = vpow.pop %v10348
  %v10350 = vmul.f32 %v10254, 1.442695
  %v10351 = vpow.pop %v10350
  %v10352 = vmul.f32 %v10255, 1.442695
  %v10353 = vpow.pop %v10352
  %v10354 = vmul.f32 %v10256, 1.442695
  %v10355 = vpow.pop %v10354
  %v10356 = vmul.f32 %v10257, 1.442695
  %v10357 = vpow.pop %v10356
  %v10358 = vmul.f32 %v10258, 1.442695
  %v10359 = vpow.pop %v10358
  %v10360 = vmul.f32 %v10259, 1.442695
  %v10361 = vpow.pop %v10360
  %v10362 = vmul.f32 %v10260, 1.442695
  %v10363 = vpow.pop %v10362
  %v10364 = vmul.f32 %v10261, 1.442695
  %v10365 = vpow.pop %v10364
  %v10366 = vmul.f32 %v10262, 1.442695
  %v10367 = vpow.pop %v10366
  %v10368 = vmul.f32 %v10263, 1.442695
  %v10369 = vpow.pop %v10368
  %v10370 = vmul.f32 %v10264, 1.442695
  %v10371 = vpow.pop %v10370
  %v10372 = vmul.f32 %v10265, 1.442695
  %v10373 = vpow.pop %v10372
  %v10374 = vmul.f32 %v10266, 1.442695
  %v10375 = vpow.pop %v10374
  %v10376 = vmul.f32 %v10267, 1.442695
  %v10377 = vpow.pop %v10376
  %v10378 = vmul.f32 %v10268, 1.442695
  %v10379 = vpow.pop %v10378
  %v10380 = vmul.f32 %v10269, 1.442695
  %v10381 = vpow.pop %v10380
  %v10382 = vmul.f32 %v10270, 1.442695
  %v10383 = vpow.pop %v10382
  %v10384 = vmul.f32 %v10271, 1.442695
  %v10385 = vpow.pop %v10384
  %v10386 = vmul.f32 %v10272, 1.442695
  %v10387 = vpow.pop %v10386
  %v10388 = vmul.f32 %v10273, 1.442695
  %v10389 = vpow.pop %v10388
  %v10390 = vmul.f32 %v10274, 1.442695
  %v10391 = vpow.pop %v10390
  %v10392 = vmul.f32 %v10275, 1.442695
  %v10393 = vpow.pop %v10392
  %v10394 = vmul.f32 %v10276, 1.442695
  %v10395 = vpow.pop %v10394
  %v10396 = vmul.f32 %v10277, 1.442695
  %v10397 = vpow.pop %v10396
  %v10398 = vmul.f32 %v10278, 1.442695
  %v10399 = vpow.pop %v10398
  %v10400 = vmul.f32 %v10279, 1.442695
  %v10401 = vpow.pop %v10400
  %v10402 = vmul.f32 %v10280, 1.442695
  %v10403 = vpow.pop %v10402
  %v10404 = vmul.f32 %v10281, 1.442695
  %v10405 = vpow.pop %v10404
  %v10406 = vmul.f32 %v10282, 1.442695
  %v10407 = vpow.pop %v10406
  %v10408 = vmul.f32 %v10283, 1.442695
  %v10409 = vpow.pop %v10408
  %v10410 = vmul.f32 %v10284, 1.442695
  %v10411 = vpow.pop %v10410
  %v10412 = vmul.f32 %v10285, 1.442695
  %v10413 = vpow.pop %v10412
  %v10414 = vadd.f32 %v10287, 1.0
  %v10415 = vadd.f32 %v10289, 1.0
  %v10416 = vadd.f32 %v10291, 1.0
  %v10417 = vadd.f32 %v10293, 1.0
  %v10418 = vadd.f32 %v10295, 1.0
  %v10419 = vadd.f32 %v10297, 1.0
  %v10420 = vadd.f32 %v10299, 1.0
  %v10421 = vadd.f32 %v10301, 1.0
  %v10422 = vadd.f32 %v10303, 1.0
  %v10423 = vadd.f32 %v10305, 1.0
  %v10424 = vadd.f32 %v10307, 1.0
  %v10425 = vadd.f32 %v10309, 1.0
  %v10426 = vadd.f32 %v10311, 1.0
  %v10427 = vadd.f32 %v10313, 1.0
  %v10428 = vadd.f32 %v10315, 1.0
  %v10429 = vadd.f32 %v10317, 1.0
  %v10430 = vadd.f32 %v10319, 1.0
  %v10431 = vadd.f32 %v10321, 1.0
  %v10432 = vadd.f32 %v10323, 1.0
  %v10433 = vadd.f32 %v10325, 1.0
  %v10434 = vadd.f32 %v10327, 1.0
  %v10435 = vadd.f32 %v10329, 1.0
  %v10436 = vadd.f32 %v10331, 1.0
  %v10437 = vadd.f32 %v10333, 1.0
  %v10438 = vadd.f32 %v10335, 1.0
  %v10439 = vadd.f32 %v10337, 1.0
  %v10440 = vadd.f32 %v10339, 1.0
  %v10441 = vadd.f32 %v10341, 1.0
  %v10442 = vadd.f32 %v10343, 1.0
  %v10443 = vadd.f32 %v10345, 1.0
  %v10444 = vadd.f32 %v10347, 1.0
  %v10445 = vadd.f32 %v10349, 1.0
  %v10446 = vadd.f32 %v10351, 1.0
  %v10447 = vadd.f32 %v10353, 1.0
  %v10448 = vadd.f32 %v10355, 1.0
  %v10449 = vadd.f32 %v10357, 1.0
  %v10450 = vadd.f32 %v10359, 1.0
  %v10451 = vadd.f32 %v10361, 1.0
  %v10452 = vadd.f32 %v10363, 1.0
  %v10453 = vadd.f32 %v10365, 1.0
  %v10454 = vadd.f32 %v10367, 1.0
  %v10455 = vadd.f32 %v10369, 1.0
  %v10456 = vadd.f32 %v10371, 1.0
  %v10457 = vadd.f32 %v10373, 1.0
  %v10458 = vadd.f32 %v10375, 1.0
  %v10459 = vadd.f32 %v10377, 1.0
  %v10460 = vadd.f32 %v10379, 1.0
  %v10461 = vadd.f32 %v10381, 1.0
  %v10462 = vadd.f32 %v10383, 1.0
  %v10463 = vadd.f32 %v10385, 1.0
  %v10464 = vadd.f32 %v10387, 1.0
  %v10465 = vadd.f32 %v10389, 1.0
  %v10466 = vadd.f32 %v10391, 1.0
  %v10467 = vadd.f32 %v10393, 1.0
  %v10468 = vadd.f32 %v10395, 1.0
  %v10469 = vadd.f32 %v10397, 1.0
  %v10470 = vadd.f32 %v10399, 1.0
  %v10471 = vadd.f32 %v10401, 1.0
  %v10472 = vadd.f32 %v10403, 1.0
  %v10473 = vadd.f32 %v10405, 1.0
  %v10474 = vadd.f32 %v10407, 1.0
  %v10475 = vadd.f32 %v10409, 1.0
  %v10476 = vadd.f32 %v10411, 1.0
  %v10477 = vadd.f32 %v10413, 1.0
  %v10478 = vrcp.pop %v10414
  %v10479 = vmul.f32 1.0, %v10478
  %v10480 = vrcp.pop %v10415
  %v10481 = vmul.f32 1.0, %v10480
  %v10482 = vrcp.pop %v10416
  %v10483 = vmul.f32 1.0, %v10482
  %v10484 = vrcp.pop %v10417
  %v10485 = vmul.f32 1.0, %v10484
  %v10486 = vrcp.pop %v10418
  %v10487 = vmul.f32 1.0, %v10486
  %v10488 = vrcp.pop %v10419
  %v10489 = vmul.f32 1.0, %v10488
  %v10490 = vrcp.pop %v10420
  %v10491 = vmul.f32 1.0, %v10490
  %v10492 = vrcp.pop %v10421
  %v10493 = vmul.f32 1.0, %v10492
  %v10494 = vrcp.pop %v10422
  %v10495 = vmul.f32 1.0, %v10494
  %v10496 = vrcp.pop %v10423
  %v10497 = vmul.f32 1.0, %v10496
  %v10498 = vrcp.pop %v10424
  %v10499 = vmul.f32 1.0, %v10498
  %v10500 = vrcp.pop %v10425
  %v10501 = vmul.f32 1.0, %v10500
  %v10502 = vrcp.pop %v10426
  %v10503 = vmul.f32 1.0, %v10502
  %v10504 = vrcp.pop %v10427
  %v10505 = vmul.f32 1.0, %v10504
  %v10506 = vrcp.pop %v10428
  %v10507 = vmul.f32 1.0, %v10506
  %v10508 = vrcp.pop %v10429
  %v10509 = vmul.f32 1.0, %v10508
  %v10510 = vrcp.pop %v10430
  %v10511 = vmul.f32 1.0, %v10510
  %v10512 = vrcp.pop %v10431
  %v10513 = vmul.f32 1.0, %v10512
  %v10514 = vrcp.pop %v10432
  %v10515 = vmul.f32 1.0, %v10514
  %v10516 = vrcp.pop %v10433
  %v10517 = vmul.f32 1.0, %v10516
  %v10518 = vrcp.pop %v10434
  %v10519 = vmul.f32 1.0, %v10518
  %v10520 = vrcp.pop %v10435
  %v10521 = vmul.f32 1.0, %v10520
  %v10522 = vrcp.pop %v10436
  %v10523 = vmul.f32 1.0, %v10522
  %v10524 = vrcp.pop %v10437
  %v10525 = vmul.f32 1.0, %v10524
  %v10526 = vrcp.pop %v10438
  %v10527 = vmul.f32 1.0, %v10526
  %v10528 = vrcp.pop %v10439
  %v10529 = vmul.f32 1.0, %v10528
  %v10530 = vrcp.pop %v10440
  %v10531 = vmul.f32 1.0, %v10530
  %v10532 = vrcp.pop %v10441
  %v10533 = vmul.f32 1.0, %v10532
  %v10534 = vrcp.pop %v10442
  %v10535 = vmul.f32 1.0, %v10534
  %v10536 = vrcp.pop %v10443
  %v10537 = vmul.f32 1.0, %v10536
  %v10538 = vrcp.pop %v10444
  %v10539 = vmul.f32 1.0, %v10538
  %v10540 = vrcp.pop %v10445
  %v10541 = vmul.f32 1.0, %v10540
  %v10542 = vrcp.pop %v10446
  %v10543 = vmul.f32 1.0, %v10542
  %v10544 = vrcp.pop %v10447
  %v10545 = vmul.f32 1.0, %v10544
  %v10546 = vrcp.pop %v10448
  %v10547 = vmul.f32 1.0, %v10546
  %v10548 = vrcp.pop %v10449
  %v10549 = vmul.f32 1.0, %v10548
  %v10550 = vrcp.pop %v10450
  %v10551 = vmul.f32 1.0, %v10550
  %v10552 = vrcp.pop %v10451
  %v10553 = vmul.f32 1.0, %v10552
  %v10554 = vrcp.pop %v10452
  %v10555 = vmul.f32 1.0, %v10554
  %v10556 = vrcp.pop %v10453
  %v10557 = vmul.f32 1.0, %v10556
  %v10558 = vrcp.pop %v10454
  %v10559 = vmul.f32 1.0, %v10558
  %v10560 = vrcp.pop %v10455
  %v10561 = vmul.f32 1.0, %v10560
  %v10562 = vrcp.pop %v10456
  %v10563 = vmul.f32 1.0, %v10562
  %v10564 = vrcp.pop %v10457
  %v10565 = vmul.f32 1.0, %v10564
  %v10566 = vrcp.pop %v10458
  %v10567 = vmul.f32 1.0, %v10566
  %v10568 = vrcp.pop %v10459
  %v10569 = vmul.f32 1.0, %v10568
  %v10570 = vrcp.pop %v10460
  %v10571 = vmul.f32 1.0, %v10570
  %v10572 = vrcp.pop %v10461
  %v10573 = vmul.f32 1.0, %v10572
  %v10574 = vrcp.pop %v10462
  %v10575 = vmul.f32 1.0, %v10574
  %v10576 = vrcp.pop %v10463
  %v10577 = vmul.f32 1.0, %v10576
  %v10578 = vrcp.pop %v10464
  %v10579 = vmul.f32 1.0, %v10578
  %v10580 = vrcp.pop %v10465
  %v10581 = vmul.f32 1.0, %v10580
  %v10582 = vrcp.pop %v10466
  %v10583 = vmul.f32 1.0, %v10582
  %v10584 = vrcp.pop %v10467
  %v10585 = vmul.f32 1.0, %v10584
  %v10586 = vrcp.pop %v10468
  %v10587 = vmul.f32 1.0, %v10586
  %v10588 = vrcp.pop %v10469
  %v10589 = vmul.f32 1.0, %v10588
  %v10590 = vrcp.pop %v10470
  %v10591 = vmul.f32 1.0, %v10590
  %v10592 = vrcp.pop %v10471
  %v10593 = vmul.f32 1.0, %v10592
  %v10594 = vrcp.pop %v10472
  %v10595 = vmul.f32 1.0, %v10594
  %v10596 = vrcp.pop %v10473
  %v10597 = vmul.f32 1.0, %v10596
  %v10598 = vrcp.pop %v10474
  %v10599 = vmul.f32 1.0, %v10598
  %v10600 = vrcp.pop %v10475
  %v10601 = vmul.f32 1.0, %v10600
  %v10602 = vrcp.pop %v10476
  %v10603 = vmul.f32 1.0, %v10602
  %v10604 = vrcp.pop %v10477
  %v10605 = vmul.f32 1.0, %v10604
  %10670 = vrot.lane.b32.xlu0 %v9198, 32
  %v10671 = vpop.permute.xlu0 %10670
  %10672 = vrot.lane.b32.xlu0 %v9199, 32
  %v10673 = vpop.permute.xlu0 %10672
  %10674 = vrot.lane.b32.xlu0 %v9200, 32
  %v10675 = vpop.permute.xlu0 %10674
  %10676 = vrot.lane.b32.xlu0 %v9201, 32
  %v10677 = vpop.permute.xlu0 %10676
  %10678 = vrot.lane.b32.xlu0 %v9202, 32
  %v10679 = vpop.permute.xlu0 %10678
  %10680 = vrot.lane.b32.xlu0 %v9203, 32
  %v10681 = vpop.permute.xlu0 %10680
  %10682 = vrot.lane.b32.xlu0 %v9204, 32
  %v10683 = vpop.permute.xlu0 %10682
  %10684 = vrot.lane.b32.xlu0 %v9205, 32
  %v10685 = vpop.permute.xlu0 %10684
  %10686 = vrot.lane.b32.xlu0 %v9206, 32
  %v10687 = vpop.permute.xlu0 %10686
  %10688 = vrot.lane.b32.xlu0 %v9207, 32
  %v10689 = vpop.permute.xlu0 %10688
  %10690 = vrot.lane.b32.xlu0 %v9208, 32
  %v10691 = vpop.permute.xlu0 %10690
  %10692 = vrot.lane.b32.xlu0 %v9209, 32
  %v10693 = vpop.permute.xlu0 %10692
  %10694 = vrot.lane.b32.xlu0 %v9210, 32
  %v10695 = vpop.permute.xlu0 %10694
  %10696 = vrot.lane.b32.xlu0 %v9211, 32
  %v10697 = vpop.permute.xlu0 %10696
  %10698 = vrot.lane.b32.xlu0 %v9212, 32
  %v10699 = vpop.permute.xlu0 %10698
  %10700 = vrot.lane.b32.xlu0 %v9213, 32
  %v10701 = vpop.permute.xlu0 %10700
  %10702 = vrot.lane.b32.xlu0 %v9214, 32
  %v10703 = vpop.permute.xlu0 %10702
  %10704 = vrot.lane.b32.xlu0 %v9215, 32
  %v10705 = vpop.permute.xlu0 %10704
  %10706 = vrot.lane.b32.xlu0 %v9216, 32
  %v10707 = vpop.permute.xlu0 %10706
  %10708 = vrot.lane.b32.xlu0 %v9217, 32
  %v10709 = vpop.permute.xlu0 %10708
  %10710 = vrot.lane.b32.xlu0 %v9218, 32
  %v10711 = vpop.permute.xlu0 %10710
  %10712 = vrot.lane.b32.xlu0 %v9219, 32
  %v10713 = vpop.permute.xlu0 %10712
  %10714 = vrot.lane.b32.xlu0 %v9220, 32
  %v10715 = vpop.permute.xlu0 %10714
  %10716 = vrot.lane.b32.xlu0 %v9221, 32
  %v10717 = vpop.permute.xlu0 %10716
  %10718 = vrot.lane.b32.xlu0 %v9222, 32
  %v10719 = vpop.permute.xlu0 %10718
  %10720 = vrot.lane.b32.xlu0 %v9223, 32
  %v10721 = vpop.permute.xlu0 %10720
  %10722 = vrot.lane.b32.xlu0 %v9224, 32
  %v10723 = vpop.permute.xlu0 %10722
  %10724 = vrot.lane.b32.xlu0 %v9225, 32
  %v10725 = vpop.permute.xlu0 %10724
  %10726 = vrot.lane.b32.xlu0 %v9226, 32
  %v10727 = vpop.permute.xlu0 %10726
  %10728 = vrot.lane.b32.xlu0 %v9227, 32
  %v10729 = vpop.permute.xlu0 %10728
  %10730 = vrot.lane.b32.xlu0 %v9228, 32
  %v10731 = vpop.permute.xlu0 %10730
  %10732 = vrot.lane.b32.xlu0 %v9229, 32
  %v10733 = vpop.permute.xlu0 %10732
  %10734 = vrot.lane.b32.xlu0 %v9230, 32
  %v10735 = vpop.permute.xlu0 %10734
  %10736 = vrot.lane.b32.xlu0 %v9231, 32
  %v10737 = vpop.permute.xlu0 %10736
  %10738 = vrot.lane.b32.xlu0 %v9232, 32
  %v10739 = vpop.permute.xlu0 %10738
  %10740 = vrot.lane.b32.xlu0 %v9233, 32
  %v10741 = vpop.permute.xlu0 %10740
  %10742 = vrot.lane.b32.xlu0 %v9234, 32
  %v10743 = vpop.permute.xlu0 %10742
  %10744 = vrot.lane.b32.xlu0 %v9235, 32
  %v10745 = vpop.permute.xlu0 %10744
  %10746 = vrot.lane.b32.xlu0 %v9236, 32
  %v10747 = vpop.permute.xlu0 %10746
  %10748 = vrot.lane.b32.xlu0 %v9237, 32
  %v10749 = vpop.permute.xlu0 %10748
  %10750 = vrot.lane.b32.xlu0 %v9238, 32
  %v10751 = vpop.permute.xlu0 %10750
  %10752 = vrot.lane.b32.xlu0 %v9239, 32
  %v10753 = vpop.permute.xlu0 %10752
  %10754 = vrot.lane.b32.xlu0 %v9240, 32
  %v10755 = vpop.permute.xlu0 %10754
  %10756 = vrot.lane.b32.xlu0 %v9241, 32
  %v10757 = vpop.permute.xlu0 %10756
  %10758 = vrot.lane.b32.xlu0 %v9242, 32
  %v10759 = vpop.permute.xlu0 %10758
  %10760 = vrot.lane.b32.xlu0 %v9243, 32
  %v10761 = vpop.permute.xlu0 %10760
  %10762 = vrot.lane.b32.xlu0 %v9244, 32
  %v10763 = vpop.permute.xlu0 %10762
  %10764 = vrot.lane.b32.xlu0 %v9245, 32
  %v10765 = vpop.permute.xlu0 %10764
  %10766 = vrot.lane.b32.xlu0 %v9246, 32
  %v10767 = vpop.permute.xlu0 %10766
  %10768 = vrot.lane.b32.xlu0 %v9247, 32
  %v10769 = vpop.permute.xlu0 %10768
  %10770 = vrot.lane.b32.xlu0 %v9248, 32
  %v10771 = vpop.permute.xlu0 %10770
  %10772 = vrot.lane.b32.xlu0 %v9249, 32
  %v10773 = vpop.permute.xlu0 %10772
  %10774 = vrot.lane.b32.xlu0 %v9250, 32
  %v10775 = vpop.permute.xlu0 %10774
  %10776 = vrot.lane.b32.xlu0 %v9251, 32
  %v10777 = vpop.permute.xlu0 %10776
  %10778 = vrot.lane.b32.xlu0 %v9252, 32
  %v10779 = vpop.permute.xlu0 %10778
  %10780 = vrot.lane.b32.xlu0 %v9253, 32
  %v10781 = vpop.permute.xlu0 %10780
  %10782 = vrot.lane.b32.xlu0 %v9254, 32
  %v10783 = vpop.permute.xlu0 %10782
  %10784 = vrot.lane.b32.xlu0 %v9255, 32
  %v10785 = vpop.permute.xlu0 %10784
  %10786 = vrot.lane.b32.xlu0 %v9256, 32
  %v10787 = vpop.permute.xlu0 %10786
  %10788 = vrot.lane.b32.xlu0 %v9257, 32
  %v10789 = vpop.permute.xlu0 %10788
  %10790 = vrot.lane.b32.xlu0 %v9258, 32
  %v10791 = vpop.permute.xlu0 %10790
  %10792 = vrot.lane.b32.xlu0 %v9259, 32
  %v10793 = vpop.permute.xlu0 %10792
  %10794 = vrot.lane.b32.xlu0 %v9260, 32
  %v10795 = vpop.permute.xlu0 %10794
  %10796 = vrot.lane.b32.xlu0 %v9261, 32
  %v10797 = vpop.permute.xlu0 %10796
  %v10862 = vmul.f32 %v10479, %v10671
  %v10863 = vmul.f32 %v10481, %v10673
  %v10864 = vmul.f32 %v10483, %v10675
  %v10865 = vmul.f32 %v10485, %v10677
  %v10866 = vmul.f32 %v10487, %v10679
  %v10867 = vmul.f32 %v10489, %v10681
  %v10868 = vmul.f32 %v10491, %v10683
  %v10869 = vmul.f32 %v10493, %v10685
  %v10870 = vmul.f32 %v10495, %v10687
  %v10871 = vmul.f32 %v10497, %v10689
  %v10872 = vmul.f32 %v10499, %v10691
  %v10873 = vmul.f32 %v10501, %v10693
  %v10874 = vmul.f32 %v10503, %v10695
  %v10875 = vmul.f32 %v10505, %v10697
  %v10876 = vmul.f32 %v10507, %v10699
  %v10877 = vmul.f32 %v10509, %v10701
  %v10878 = vmul.f32 %v10511, %v10703
  %v10879 = vmul.f32 %v10513, %v10705
  %v10880 = vmul.f32 %v10515, %v10707
  %v10881 = vmul.f32 %v10517, %v10709
  %v10882 = vmul.f32 %v10519, %v10711
  %v10883 = vmul.f32 %v10521, %v10713
  %v10884 = vmul.f32 %v10523, %v10715
  %v10885 = vmul.f32 %v10525, %v10717
  %v10886 = vmul.f32 %v10527, %v10719
  %v10887 = vmul.f32 %v10529, %v10721
  %v10888 = vmul.f32 %v10531, %v10723
  %v10889 = vmul.f32 %v10533, %v10725
  %v10890 = vmul.f32 %v10535, %v10727
  %v10891 = vmul.f32 %v10537, %v10729
  %v10892 = vmul.f32 %v10539, %v10731
  %v10893 = vmul.f32 %v10541, %v10733
  %v10894 = vmul.f32 %v10543, %v10735
  %v10895 = vmul.f32 %v10545, %v10737
  %v10896 = vmul.f32 %v10547, %v10739
  %v10897 = vmul.f32 %v10549, %v10741
  %v10898 = vmul.f32 %v10551, %v10743
  %v10899 = vmul.f32 %v10553, %v10745
  %v10900 = vmul.f32 %v10555, %v10747
  %v10901 = vmul.f32 %v10557, %v10749
  %v10902 = vmul.f32 %v10559, %v10751
  %v10903 = vmul.f32 %v10561, %v10753
  %v10904 = vmul.f32 %v10563, %v10755
  %v10905 = vmul.f32 %v10565, %v10757
  %v10906 = vmul.f32 %v10567, %v10759
  %v10907 = vmul.f32 %v10569, %v10761
  %v10908 = vmul.f32 %v10571, %v10763
  %v10909 = vmul.f32 %v10573, %v10765
  %v10910 = vmul.f32 %v10575, %v10767
  %v10911 = vmul.f32 %v10577, %v10769
  %v10912 = vmul.f32 %v10579, %v10771
  %v10913 = vmul.f32 %v10581, %v10773
  %v10914 = vmul.f32 %v10583, %v10775
  %v10915 = vmul.f32 %v10585, %v10777
  %v10916 = vmul.f32 %v10587, %v10779
  %v10917 = vmul.f32 %v10589, %v10781
  %v10918 = vmul.f32 %v10591, %v10783
  %v10919 = vmul.f32 %v10593, %v10785
  %v10920 = vmul.f32 %v10595, %v10787
  %v10921 = vmul.f32 %v10597, %v10789
  %v10922 = vmul.f32 %v10599, %v10791
  %v10923 = vmul.f32 %v10601, %v10793
  %v10924 = vmul.f32 %v10603, %v10795
  %v10925 = vmul.f32 %v10605, %v10797
  %v10926 = vtanh.pop %v9134
  %v10927 = vtanh.pop %v9135
  %v10928 = vtanh.pop %v9136
  %v10929 = vtanh.pop %v9137
  %v10930 = vtanh.pop %v9138
  %v10931 = vtanh.pop %v9139
  %v10932 = vtanh.pop %v9140
  %v10933 = vtanh.pop %v9141
  %v10934 = vtanh.pop %v9142
  %v10935 = vtanh.pop %v9143
  %v10936 = vtanh.pop %v9144
  %v10937 = vtanh.pop %v9145
  %v10938 = vtanh.pop %v9146
  %v10939 = vtanh.pop %v9147
  %v10940 = vtanh.pop %v9148
  %v10941 = vtanh.pop %v9149
  %v10942 = vtanh.pop %v9150
  %v10943 = vtanh.pop %v9151
  %v10944 = vtanh.pop %v9152
  %v10945 = vtanh.pop %v9153
  %v10946 = vtanh.pop %v9154
  %v10947 = vtanh.pop %v9155
  %v10948 = vtanh.pop %v9156
  %v10949 = vtanh.pop %v9157
  %v10950 = vtanh.pop %v9158
  %v10951 = vtanh.pop %v9159
  %v10952 = vtanh.pop %v9160
  %v10953 = vtanh.pop %v9161
  %v10954 = vtanh.pop %v9162
  %v10955 = vtanh.pop %v9163
  %v10956 = vtanh.pop %v9164
  %v10957 = vtanh.pop %v9165
  %v10958 = vtanh.pop %v9166
  %v10959 = vtanh.pop %v9167
  %v10960 = vtanh.pop %v9168
  %v10961 = vtanh.pop %v9169
  %v10962 = vtanh.pop %v9170
  %v10963 = vtanh.pop %v9171
  %v10964 = vtanh.pop %v9172
  %v10965 = vtanh.pop %v9173
  %v10966 = vtanh.pop %v9174
  %v10967 = vtanh.pop %v9175
  %v10968 = vtanh.pop %v9176
  %v10969 = vtanh.pop %v9177
  %v10970 = vtanh.pop %v9178
  %v10971 = vtanh.pop %v9179
  %v10972 = vtanh.pop %v9180
  %v10973 = vtanh.pop %v9181
  %v10974 = vtanh.pop %v9182
  %v10975 = vtanh.pop %v9183
  %v10976 = vtanh.pop %v9184
  %v10977 = vtanh.pop %v9185
  %v10978 = vtanh.pop %v9186
  %v10979 = vtanh.pop %v9187
  %v10980 = vtanh.pop %v9188
  %v10981 = vtanh.pop %v9189
  %v10982 = vtanh.pop %v9190
  %v10983 = vtanh.pop %v9191
  %v10984 = vtanh.pop %v9192
  %v10985 = vtanh.pop %v9193
  %v10986 = vtanh.pop %v9194
  %v10987 = vtanh.pop %v9195
  %v10988 = vtanh.pop %v9196
  %v10989 = vtanh.pop %v9197
  %11054 = vrot.lane.b32.xlu0 %v10926, 64
  %v11055 = vpop.permute.xlu0 %11054
  %11056 = vrot.lane.b32.xlu0 %v10927, 64
  %v11057 = vpop.permute.xlu0 %11056
  %11058 = vrot.lane.b32.xlu0 %v10928, 64
  %v11059 = vpop.permute.xlu0 %11058
  %11060 = vrot.lane.b32.xlu0 %v10929, 64
  %v11061 = vpop.permute.xlu0 %11060
  %11062 = vrot.lane.b32.xlu0 %v10930, 64
  %v11063 = vpop.permute.xlu0 %11062
  %11064 = vrot.lane.b32.xlu0 %v10931, 64
  %v11065 = vpop.permute.xlu0 %11064
  %11066 = vrot.lane.b32.xlu0 %v10932, 64
  %v11067 = vpop.permute.xlu0 %11066
  %11068 = vrot.lane.b32.xlu0 %v10933, 64
  %v11069 = vpop.permute.xlu0 %11068
  %11070 = vrot.lane.b32.xlu0 %v10934, 64
  %v11071 = vpop.permute.xlu0 %11070
  %11072 = vrot.lane.b32.xlu0 %v10935, 64
  %v11073 = vpop.permute.xlu0 %11072
  %11074 = vrot.lane.b32.xlu0 %v10936, 64
  %v11075 = vpop.permute.xlu0 %11074
  %11076 = vrot.lane.b32.xlu0 %v10937, 64
  %v11077 = vpop.permute.xlu0 %11076
  %11078 = vrot.lane.b32.xlu0 %v10938, 64
  %v11079 = vpop.permute.xlu0 %11078
  %11080 = vrot.lane.b32.xlu0 %v10939, 64
  %v11081 = vpop.permute.xlu0 %11080
  %11082 = vrot.lane.b32.xlu0 %v10940, 64
  %v11083 = vpop.permute.xlu0 %11082
  %11084 = vrot.lane.b32.xlu0 %v10941, 64
  %v11085 = vpop.permute.xlu0 %11084
  %11086 = vrot.lane.b32.xlu0 %v10942, 64
  %v11087 = vpop.permute.xlu0 %11086
  %11088 = vrot.lane.b32.xlu0 %v10943, 64
  %v11089 = vpop.permute.xlu0 %11088
  %11090 = vrot.lane.b32.xlu0 %v10944, 64
  %v11091 = vpop.permute.xlu0 %11090
  %11092 = vrot.lane.b32.xlu0 %v10945, 64
  %v11093 = vpop.permute.xlu0 %11092
  %11094 = vrot.lane.b32.xlu0 %v10946, 64
  %v11095 = vpop.permute.xlu0 %11094
  %11096 = vrot.lane.b32.xlu0 %v10947, 64
  %v11097 = vpop.permute.xlu0 %11096
  %11098 = vrot.lane.b32.xlu0 %v10948, 64
  %v11099 = vpop.permute.xlu0 %11098
  %11100 = vrot.lane.b32.xlu0 %v10949, 64
  %v11101 = vpop.permute.xlu0 %11100
  %11102 = vrot.lane.b32.xlu0 %v10950, 64
  %v11103 = vpop.permute.xlu0 %11102
  %11104 = vrot.lane.b32.xlu0 %v10951, 64
  %v11105 = vpop.permute.xlu0 %11104
  %11106 = vrot.lane.b32.xlu0 %v10952, 64
  %v11107 = vpop.permute.xlu0 %11106
  %11108 = vrot.lane.b32.xlu0 %v10953, 64
  %v11109 = vpop.permute.xlu0 %11108
  %11110 = vrot.lane.b32.xlu0 %v10954, 64
  %v11111 = vpop.permute.xlu0 %11110
  %11112 = vrot.lane.b32.xlu0 %v10955, 64
  %v11113 = vpop.permute.xlu0 %11112
  %11114 = vrot.lane.b32.xlu0 %v10956, 64
  %v11115 = vpop.permute.xlu0 %11114
  %11116 = vrot.lane.b32.xlu0 %v10957, 64
  %v11117 = vpop.permute.xlu0 %11116
  %11118 = vrot.lane.b32.xlu0 %v10958, 64
  %v11119 = vpop.permute.xlu0 %11118
  %11120 = vrot.lane.b32.xlu0 %v10959, 64
  %v11121 = vpop.permute.xlu0 %11120
  %11122 = vrot.lane.b32.xlu0 %v10960, 64
  %v11123 = vpop.permute.xlu0 %11122
  %11124 = vrot.lane.b32.xlu0 %v10961, 64
  %v11125 = vpop.permute.xlu0 %11124
  %11126 = vrot.lane.b32.xlu0 %v10962, 64
  %v11127 = vpop.permute.xlu0 %11126
  %11128 = vrot.lane.b32.xlu0 %v10963, 64
  %v11129 = vpop.permute.xlu0 %11128
  %11130 = vrot.lane.b32.xlu0 %v10964, 64
  %v11131 = vpop.permute.xlu0 %11130
  %11132 = vrot.lane.b32.xlu0 %v10965, 64
  %v11133 = vpop.permute.xlu0 %11132
  %11134 = vrot.lane.b32.xlu0 %v10966, 64
  %v11135 = vpop.permute.xlu0 %11134
  %11136 = vrot.lane.b32.xlu0 %v10967, 64
  %v11137 = vpop.permute.xlu0 %11136
  %11138 = vrot.lane.b32.xlu0 %v10968, 64
  %v11139 = vpop.permute.xlu0 %11138
  %11140 = vrot.lane.b32.xlu0 %v10969, 64
  %v11141 = vpop.permute.xlu0 %11140
  %11142 = vrot.lane.b32.xlu0 %v10970, 64
  %v11143 = vpop.permute.xlu0 %11142
  %11144 = vrot.lane.b32.xlu0 %v10971, 64
  %v11145 = vpop.permute.xlu0 %11144
  %11146 = vrot.lane.b32.xlu0 %v10972, 64
  %v11147 = vpop.permute.xlu0 %11146
  %11148 = vrot.lane.b32.xlu0 %v10973, 64
  %v11149 = vpop.permute.xlu0 %11148
  %11150 = vrot.lane.b32.xlu0 %v10974, 64
  %v11151 = vpop.permute.xlu0 %11150
  %11152 = vrot.lane.b32.xlu0 %v10975, 64
  %v11153 = vpop.permute.xlu0 %11152
  %11154 = vrot.lane.b32.xlu0 %v10976, 64
  %v11155 = vpop.permute.xlu0 %11154
  %11156 = vrot.lane.b32.xlu0 %v10977, 64
  %v11157 = vpop.permute.xlu0 %11156
  %11158 = vrot.lane.b32.xlu0 %v10978, 64
  %v11159 = vpop.permute.xlu0 %11158
  %11160 = vrot.lane.b32.xlu0 %v10979, 64
  %v11161 = vpop.permute.xlu0 %11160
  %11162 = vrot.lane.b32.xlu0 %v10980, 64
  %v11163 = vpop.permute.xlu0 %11162
  %11164 = vrot.lane.b32.xlu0 %v10981, 64
  %v11165 = vpop.permute.xlu0 %11164
  %11166 = vrot.lane.b32.xlu0 %v10982, 64
  %v11167 = vpop.permute.xlu0 %11166
  %11168 = vrot.lane.b32.xlu0 %v10983, 64
  %v11169 = vpop.permute.xlu0 %11168
  %11170 = vrot.lane.b32.xlu0 %v10984, 64
  %v11171 = vpop.permute.xlu0 %11170
  %11172 = vrot.lane.b32.xlu0 %v10985, 64
  %v11173 = vpop.permute.xlu0 %11172
  %11174 = vrot.lane.b32.xlu0 %v10986, 64
  %v11175 = vpop.permute.xlu0 %11174
  %11176 = vrot.lane.b32.xlu0 %v10987, 64
  %v11177 = vpop.permute.xlu0 %11176
  %11178 = vrot.lane.b32.xlu0 %v10988, 64
  %v11179 = vpop.permute.xlu0 %11178
  %11180 = vrot.lane.b32.xlu0 %v10989, 64
  %v11181 = vpop.permute.xlu0 %11180
  %v11246 = vmul.f32 %v9679, %v11055
  %v11247 = vmul.f32 %v9681, %v11057
  %v11248 = vmul.f32 %v9683, %v11059
  %v11249 = vmul.f32 %v9685, %v11061
  %v11250 = vmul.f32 %v9687, %v11063
  %v11251 = vmul.f32 %v9689, %v11065
  %v11252 = vmul.f32 %v9691, %v11067
  %v11253 = vmul.f32 %v9693, %v11069
  %v11254 = vmul.f32 %v9695, %v11071
  %v11255 = vmul.f32 %v9697, %v11073
  %v11256 = vmul.f32 %v9699, %v11075
  %v11257 = vmul.f32 %v9701, %v11077
  %v11258 = vmul.f32 %v9703, %v11079
  %v11259 = vmul.f32 %v9705, %v11081
  %v11260 = vmul.f32 %v9707, %v11083
  %v11261 = vmul.f32 %v9709, %v11085
  %v11262 = vmul.f32 %v9711, %v11087
  %v11263 = vmul.f32 %v9713, %v11089
  %v11264 = vmul.f32 %v9715, %v11091
  %v11265 = vmul.f32 %v9717, %v11093
  %v11266 = vmul.f32 %v9719, %v11095
  %v11267 = vmul.f32 %v9721, %v11097
  %v11268 = vmul.f32 %v9723, %v11099
  %v11269 = vmul.f32 %v9725, %v11101
  %v11270 = vmul.f32 %v9727, %v11103
  %v11271 = vmul.f32 %v9729, %v11105
  %v11272 = vmul.f32 %v9731, %v11107
  %v11273 = vmul.f32 %v9733, %v11109
  %v11274 = vmul.f32 %v9735, %v11111
  %v11275 = vmul.f32 %v9737, %v11113
  %v11276 = vmul.f32 %v9739, %v11115
  %v11277 = vmul.f32 %v9741, %v11117
  %v11278 = vmul.f32 %v9743, %v11119
  %v11279 = vmul.f32 %v9745, %v11121
  %v11280 = vmul.f32 %v9747, %v11123
  %v11281 = vmul.f32 %v9749, %v11125
  %v11282 = vmul.f32 %v9751, %v11127
  %v11283 = vmul.f32 %v9753, %v11129
  %v11284 = vmul.f32 %v9755, %v11131
  %v11285 = vmul.f32 %v9757, %v11133
  %v11286 = vmul.f32 %v9759, %v11135
  %v11287 = vmul.f32 %v9761, %v11137
  %v11288 = vmul.f32 %v9763, %v11139
  %v11289 = vmul.f32 %v9765, %v11141
  %v11290 = vmul.f32 %v9767, %v11143
  %v11291 = vmul.f32 %v9769, %v11145
  %v11292 = vmul.f32 %v9771, %v11147
  %v11293 = vmul.f32 %v9773, %v11149
  %v11294 = vmul.f32 %v9775, %v11151
  %v11295 = vmul.f32 %v9777, %v11153
  %v11296 = vmul.f32 %v9779, %v11155
  %v11297 = vmul.f32 %v9781, %v11157
  %v11298 = vmul.f32 %v9783, %v11159
  %v11299 = vmul.f32 %v9785, %v11161
  %v11300 = vmul.f32 %v9787, %v11163
  %v11301 = vmul.f32 %v9789, %v11165
  %v11302 = vmul.f32 %v9791, %v11167
  %v11303 = vmul.f32 %v9793, %v11169
  %v11304 = vmul.f32 %v9795, %v11171
  %v11305 = vmul.f32 %v9797, %v11173
  %v11306 = vmul.f32 %v9799, %v11175
  %v11307 = vmul.f32 %v9801, %v11177
  %v11308 = vmul.f32 %v9803, %v11179
  %v11309 = vmul.f32 %v9805, %v11181
  %11374 = vrot.lane.b32.xlu0 %v11246, 32
  %v11375 = vpop.permute.xlu0 %11374
  %11376 = vrot.lane.b32.xlu0 %v11247, 32
  %v11377 = vpop.permute.xlu0 %11376
  %11378 = vrot.lane.b32.xlu0 %v11248, 32
  %v11379 = vpop.permute.xlu0 %11378
  %11380 = vrot.lane.b32.xlu0 %v11249, 32
  %v11381 = vpop.permute.xlu0 %11380
  %11382 = vrot.lane.b32.xlu0 %v11250, 32
  %v11383 = vpop.permute.xlu0 %11382
  %11384 = vrot.lane.b32.xlu0 %v11251, 32
  %v11385 = vpop.permute.xlu0 %11384
  %11386 = vrot.lane.b32.xlu0 %v11252, 32
  %v11387 = vpop.permute.xlu0 %11386
  %11388 = vrot.lane.b32.xlu0 %v11253, 32
  %v11389 = vpop.permute.xlu0 %11388
  %11390 = vrot.lane.b32.xlu0 %v11254, 32
  %v11391 = vpop.permute.xlu0 %11390
  %11392 = vrot.lane.b32.xlu0 %v11255, 32
  %v11393 = vpop.permute.xlu0 %11392
  %11394 = vrot.lane.b32.xlu0 %v11256, 32
  %v11395 = vpop.permute.xlu0 %11394
  %11396 = vrot.lane.b32.xlu0 %v11257, 32
  %v11397 = vpop.permute.xlu0 %11396
  %11398 = vrot.lane.b32.xlu0 %v11258, 32
  %v11399 = vpop.permute.xlu0 %11398
  %11400 = vrot.lane.b32.xlu0 %v11259, 32
  %v11401 = vpop.permute.xlu0 %11400
  %11402 = vrot.lane.b32.xlu0 %v11260, 32
  %v11403 = vpop.permute.xlu0 %11402
  %11404 = vrot.lane.b32.xlu0 %v11261, 32
  %v11405 = vpop.permute.xlu0 %11404
  %11406 = vrot.lane.b32.xlu0 %v11262, 32
  %v11407 = vpop.permute.xlu0 %11406
  %11408 = vrot.lane.b32.xlu0 %v11263, 32
  %v11409 = vpop.permute.xlu0 %11408
  %11410 = vrot.lane.b32.xlu0 %v11264, 32
  %v11411 = vpop.permute.xlu0 %11410
  %11412 = vrot.lane.b32.xlu0 %v11265, 32
  %v11413 = vpop.permute.xlu0 %11412
  %11414 = vrot.lane.b32.xlu0 %v11266, 32
  %v11415 = vpop.permute.xlu0 %11414
  %11416 = vrot.lane.b32.xlu0 %v11267, 32
  %v11417 = vpop.permute.xlu0 %11416
  %11418 = vrot.lane.b32.xlu0 %v11268, 32
  %v11419 = vpop.permute.xlu0 %11418
  %11420 = vrot.lane.b32.xlu0 %v11269, 32
  %v11421 = vpop.permute.xlu0 %11420
  %11422 = vrot.lane.b32.xlu0 %v11270, 32
  %v11423 = vpop.permute.xlu0 %11422
  %11424 = vrot.lane.b32.xlu0 %v11271, 32
  %v11425 = vpop.permute.xlu0 %11424
  %11426 = vrot.lane.b32.xlu0 %v11272, 32
  %v11427 = vpop.permute.xlu0 %11426
  %11428 = vrot.lane.b32.xlu0 %v11273, 32
  %v11429 = vpop.permute.xlu0 %11428
  %11430 = vrot.lane.b32.xlu0 %v11274, 32
  %v11431 = vpop.permute.xlu0 %11430
  %11432 = vrot.lane.b32.xlu0 %v11275, 32
  %v11433 = vpop.permute.xlu0 %11432
  %11434 = vrot.lane.b32.xlu0 %v11276, 32
  %v11435 = vpop.permute.xlu0 %11434
  %11436 = vrot.lane.b32.xlu0 %v11277, 32
  %v11437 = vpop.permute.xlu0 %11436
  %11438 = vrot.lane.b32.xlu0 %v11278, 32
  %v11439 = vpop.permute.xlu0 %11438
  %11440 = vrot.lane.b32.xlu0 %v11279, 32
  %v11441 = vpop.permute.xlu0 %11440
  %11442 = vrot.lane.b32.xlu0 %v11280, 32
  %v11443 = vpop.permute.xlu0 %11442
  %11444 = vrot.lane.b32.xlu0 %v11281, 32
  %v11445 = vpop.permute.xlu0 %11444
  %11446 = vrot.lane.b32.xlu0 %v11282, 32
  %v11447 = vpop.permute.xlu0 %11446
  %11448 = vrot.lane.b32.xlu0 %v11283, 32
  %v11449 = vpop.permute.xlu0 %11448
  %11450 = vrot.lane.b32.xlu0 %v11284, 32
  %v11451 = vpop.permute.xlu0 %11450
  %11452 = vrot.lane.b32.xlu0 %v11285, 32
  %v11453 = vpop.permute.xlu0 %11452
  %11454 = vrot.lane.b32.xlu0 %v11286, 32
  %v11455 = vpop.permute.xlu0 %11454
  %11456 = vrot.lane.b32.xlu0 %v11287, 32
  %v11457 = vpop.permute.xlu0 %11456
  %11458 = vrot.lane.b32.xlu0 %v11288, 32
  %v11459 = vpop.permute.xlu0 %11458
  %11460 = vrot.lane.b32.xlu0 %v11289, 32
  %v11461 = vpop.permute.xlu0 %11460
  %11462 = vrot.lane.b32.xlu0 %v11290, 32
  %v11463 = vpop.permute.xlu0 %11462
  %11464 = vrot.lane.b32.xlu0 %v11291, 32
  %v11465 = vpop.permute.xlu0 %11464
  %11466 = vrot.lane.b32.xlu0 %v11292, 32
  %v11467 = vpop.permute.xlu0 %11466
  %11468 = vrot.lane.b32.xlu0 %v11293, 32
  %v11469 = vpop.permute.xlu0 %11468
  %11470 = vrot.lane.b32.xlu0 %v11294, 32
  %v11471 = vpop.permute.xlu0 %11470
  %11472 = vrot.lane.b32.xlu0 %v11295, 32
  %v11473 = vpop.permute.xlu0 %11472
  %11474 = vrot.lane.b32.xlu0 %v11296, 32
  %v11475 = vpop.permute.xlu0 %11474
  %11476 = vrot.lane.b32.xlu0 %v11297, 32
  %v11477 = vpop.permute.xlu0 %11476
  %11478 = vrot.lane.b32.xlu0 %v11298, 32
  %v11479 = vpop.permute.xlu0 %11478
  %11480 = vrot.lane.b32.xlu0 %v11299, 32
  %v11481 = vpop.permute.xlu0 %11480
  %11482 = vrot.lane.b32.xlu0 %v11300, 32
  %v11483 = vpop.permute.xlu0 %11482
  %11484 = vrot.lane.b32.xlu0 %v11301, 32
  %v11485 = vpop.permute.xlu0 %11484
  %11486 = vrot.lane.b32.xlu0 %v11302, 32
  %v11487 = vpop.permute.xlu0 %11486
  %11488 = vrot.lane.b32.xlu0 %v11303, 32
  %v11489 = vpop.permute.xlu0 %11488
  %11490 = vrot.lane.b32.xlu0 %v11304, 32
  %v11491 = vpop.permute.xlu0 %11490
  %11492 = vrot.lane.b32.xlu0 %v11305, 32
  %v11493 = vpop.permute.xlu0 %11492
  %11494 = vrot.lane.b32.xlu0 %v11306, 32
  %v11495 = vpop.permute.xlu0 %11494
  %11496 = vrot.lane.b32.xlu0 %v11307, 32
  %v11497 = vpop.permute.xlu0 %11496
  %11498 = vrot.lane.b32.xlu0 %v11308, 32
  %v11499 = vpop.permute.xlu0 %11498
  %11500 = vrot.lane.b32.xlu0 %v11309, 32
  %v11501 = vpop.permute.xlu0 %11500
  %v11566 = vadd.f32 %v10862, %v11375
  %v11567 = vadd.f32 %v10863, %v11377
  %v11568 = vadd.f32 %v10864, %v11379
  %v11569 = vadd.f32 %v10865, %v11381
  %v11570 = vadd.f32 %v10866, %v11383
  %v11571 = vadd.f32 %v10867, %v11385
  %v11572 = vadd.f32 %v10868, %v11387
  %v11573 = vadd.f32 %v10869, %v11389
  %v11574 = vadd.f32 %v10870, %v11391
  %v11575 = vadd.f32 %v10871, %v11393
  %v11576 = vadd.f32 %v10872, %v11395
  %v11577 = vadd.f32 %v10873, %v11397
  %v11578 = vadd.f32 %v10874, %v11399
  %v11579 = vadd.f32 %v10875, %v11401
  %v11580 = vadd.f32 %v10876, %v11403
  %v11581 = vadd.f32 %v10877, %v11405
  %v11582 = vadd.f32 %v10878, %v11407
  %v11583 = vadd.f32 %v10879, %v11409
  %v11584 = vadd.f32 %v10880, %v11411
  %v11585 = vadd.f32 %v10881, %v11413
  %v11586 = vadd.f32 %v10882, %v11415
  %v11587 = vadd.f32 %v10883, %v11417
  %v11588 = vadd.f32 %v10884, %v11419
  %v11589 = vadd.f32 %v10885, %v11421
  %v11590 = vadd.f32 %v10886, %v11423
  %v11591 = vadd.f32 %v10887, %v11425
  %v11592 = vadd.f32 %v10888, %v11427
  %v11593 = vadd.f32 %v10889, %v11429
  %v11594 = vadd.f32 %v10890, %v11431
  %v11595 = vadd.f32 %v10891, %v11433
  %v11596 = vadd.f32 %v10892, %v11435
  %v11597 = vadd.f32 %v10893, %v11437
  %v11598 = vadd.f32 %v10894, %v11439
  %v11599 = vadd.f32 %v10895, %v11441
  %v11600 = vadd.f32 %v10896, %v11443
  %v11601 = vadd.f32 %v10897, %v11445
  %v11602 = vadd.f32 %v10898, %v11447
  %v11603 = vadd.f32 %v10899, %v11449
  %v11604 = vadd.f32 %v10900, %v11451
  %v11605 = vadd.f32 %v10901, %v11453
  %v11606 = vadd.f32 %v10902, %v11455
  %v11607 = vadd.f32 %v10903, %v11457
  %v11608 = vadd.f32 %v10904, %v11459
  %v11609 = vadd.f32 %v10905, %v11461
  %v11610 = vadd.f32 %v10906, %v11463
  %v11611 = vadd.f32 %v10907, %v11465
  %v11612 = vadd.f32 %v10908, %v11467
  %v11613 = vadd.f32 %v10909, %v11469
  %v11614 = vadd.f32 %v10910, %v11471
  %v11615 = vadd.f32 %v10911, %v11473
  %v11616 = vadd.f32 %v10912, %v11475
  %v11617 = vadd.f32 %v10913, %v11477
  %v11618 = vadd.f32 %v10914, %v11479
  %v11619 = vadd.f32 %v10915, %v11481
  %v11620 = vadd.f32 %v10916, %v11483
  %v11621 = vadd.f32 %v10917, %v11485
  %v11622 = vadd.f32 %v10918, %v11487
  %v11623 = vadd.f32 %v10919, %v11489
  %v11624 = vadd.f32 %v10920, %v11491
  %v11625 = vadd.f32 %v10921, %v11493
  %v11626 = vadd.f32 %v10922, %v11495
  %v11627 = vadd.f32 %v10923, %v11497
  %v11628 = vadd.f32 %v10924, %v11499
  %v11629 = vadd.f32 %v10925, %v11501
  %v11630 = vld [vmem:[%s6] sm:$0xff]
  %v11631 = vld [vmem:[%s6 + $0x8] sm:$0xff]
  %v11632 = vld [vmem:[%s6 + $0x10] sm:$0xff]
  %v11633 = vld [vmem:[%s6 + $0x18] sm:$0xff]
  %v11634 = vld [vmem:[%s6 + $0x20] sm:$0xff]
  %v11635 = vld [vmem:[%s6 + $0x28] sm:$0xff]
  %v11636 = vld [vmem:[%s6 + $0x30] sm:$0xff]
  %v11637 = vld [vmem:[%s6 + $0x38] sm:$0xff]
  %v11638 = vld [vmem:[%s6 + $0x40] sm:$0xff]
  %v11639 = vld [vmem:[%s6 + $0x48] sm:$0xff]
  %v11640 = vld [vmem:[%s6 + $0x50] sm:$0xff]
  %v11641 = vld [vmem:[%s6 + $0x58] sm:$0xff]
  %v11642 = vld [vmem:[%s6 + $0x60] sm:$0xff]
  %v11643 = vld [vmem:[%s6 + $0x68] sm:$0xff]
  %v11644 = vld [vmem:[%s6 + $0x70] sm:$0xff]
  %v11645 = vld [vmem:[%s6 + $0x78] sm:$0xff]
  %v11646 = vld [vmem:[%s6 + $0x80] sm:$0xff]
  %v11647 = vld [vmem:[%s6 + $0x88] sm:$0xff]
  %v11648 = vld [vmem:[%s6 + $0x90] sm:$0xff]
  %v11649 = vld [vmem:[%s6 + $0x98] sm:$0xff]
  %v11650 = vld [vmem:[%s6 + $0xa0] sm:$0xff]
  %v11651 = vld [vmem:[%s6 + $0xa8] sm:$0xff]
  %v11652 = vld [vmem:[%s6 + $0xb0] sm:$0xff]
  %v11653 = vld [vmem:[%s6 + $0xb8] sm:$0xff]
  %v11654 = vld [vmem:[%s6 + $0xc0] sm:$0xff]
  %v11655 = vld [vmem:[%s6 + $0xc8] sm:$0xff]
  %v11656 = vld [vmem:[%s6 + $0xd0] sm:$0xff]
  %v11657 = vld [vmem:[%s6 + $0xd8] sm:$0xff]
  %v11658 = vld [vmem:[%s6 + $0xe0] sm:$0xff]
  %v11659 = vld [vmem:[%s6 + $0xe8] sm:$0xff]
  %v11660 = vld [vmem:[%s6 + $0xf0] sm:$0xff]
  %v11661 = vld [vmem:[%s6 + $0xf8] sm:$0xff]
  %11694 = vrot.lane.b32.xlu0 %v11630, 32
  %v11695 = vpop.permute.xlu0 %11694
  %11696 = vrot.lane.b32.xlu0 %v11631, 32
  %v11697 = vpop.permute.xlu0 %11696
  %11698 = vrot.lane.b32.xlu0 %v11632, 32
  %v11699 = vpop.permute.xlu0 %11698
  %11700 = vrot.lane.b32.xlu0 %v11633, 32
  %v11701 = vpop.permute.xlu0 %11700
  %11702 = vrot.lane.b32.xlu0 %v11634, 32
  %v11703 = vpop.permute.xlu0 %11702
  %11704 = vrot.lane.b32.xlu0 %v11635, 32
  %v11705 = vpop.permute.xlu0 %11704
  %11706 = vrot.lane.b32.xlu0 %v11636, 32
  %v11707 = vpop.permute.xlu0 %11706
  %11708 = vrot.lane.b32.xlu0 %v11637, 32
  %v11709 = vpop.permute.xlu0 %11708
  %11710 = vrot.lane.b32.xlu0 %v11638, 32
  %v11711 = vpop.permute.xlu0 %11710
  %11712 = vrot.lane.b32.xlu0 %v11639, 32
  %v11713 = vpop.permute.xlu0 %11712
  %11714 = vrot.lane.b32.xlu0 %v11640, 32
  %v11715 = vpop.permute.xlu0 %11714
  %11716 = vrot.lane.b32.xlu0 %v11641, 32
  %v11717 = vpop.permute.xlu0 %11716
  %11718 = vrot.lane.b32.xlu0 %v11642, 32
  %v11719 = vpop.permute.xlu0 %11718
  %11720 = vrot.lane.b32.xlu0 %v11643, 32
  %v11721 = vpop.permute.xlu0 %11720
  %11722 = vrot.lane.b32.xlu0 %v11644, 32
  %v11723 = vpop.permute.xlu0 %11722
  %11724 = vrot.lane.b32.xlu0 %v11645, 32
  %v11725 = vpop.permute.xlu0 %11724
  %11726 = vrot.lane.b32.xlu0 %v11646, 32
  %v11727 = vpop.permute.xlu0 %11726
  %11728 = vrot.lane.b32.xlu0 %v11647, 32
  %v11729 = vpop.permute.xlu0 %11728
  %11730 = vrot.lane.b32.xlu0 %v11648, 32
  %v11731 = vpop.permute.xlu0 %11730
  %11732 = vrot.lane.b32.xlu0 %v11649, 32
  %v11733 = vpop.permute.xlu0 %11732
  %11734 = vrot.lane.b32.xlu0 %v11650, 32
  %v11735 = vpop.permute.xlu0 %11734
  %11736 = vrot.lane.b32.xlu0 %v11651, 32
  %v11737 = vpop.permute.xlu0 %11736
  %11738 = vrot.lane.b32.xlu0 %v11652, 32
  %v11739 = vpop.permute.xlu0 %11738
  %11740 = vrot.lane.b32.xlu0 %v11653, 32
  %v11741 = vpop.permute.xlu0 %11740
  %11742 = vrot.lane.b32.xlu0 %v11654, 32
  %v11743 = vpop.permute.xlu0 %11742
  %11744 = vrot.lane.b32.xlu0 %v11655, 32
  %v11745 = vpop.permute.xlu0 %11744
  %11746 = vrot.lane.b32.xlu0 %v11656, 32
  %v11747 = vpop.permute.xlu0 %11746
  %11748 = vrot.lane.b32.xlu0 %v11657, 32
  %v11749 = vpop.permute.xlu0 %11748
  %11750 = vrot.lane.b32.xlu0 %v11658, 32
  %v11751 = vpop.permute.xlu0 %11750
  %11752 = vrot.lane.b32.xlu0 %v11659, 32
  %v11753 = vpop.permute.xlu0 %11752
  %11754 = vrot.lane.b32.xlu0 %v11660, 32
  %v11755 = vpop.permute.xlu0 %11754
  %11756 = vrot.lane.b32.xlu0 %v11661, 32
  %v11757 = vpop.permute.xlu0 %11756
  %v11790 = vmul.f32 %v11566, %v11695
  %v11791 = vmul.f32 %v11567, %v11697
  %v11792 = vmul.f32 %v11568, %v11699
  %v11793 = vmul.f32 %v11569, %v11701
  %v11794 = vmul.f32 %v11570, %v11703
  %v11795 = vmul.f32 %v11571, %v11705
  %v11796 = vmul.f32 %v11572, %v11707
  %v11797 = vmul.f32 %v11573, %v11709
  %v11798 = vmul.f32 %v11574, %v11711
  %v11799 = vmul.f32 %v11575, %v11713
  %v11800 = vmul.f32 %v11576, %v11715
  %v11801 = vmul.f32 %v11577, %v11717
  %v11802 = vmul.f32 %v11578, %v11719
  %v11803 = vmul.f32 %v11579, %v11721
  %v11804 = vmul.f32 %v11580, %v11723
  %v11805 = vmul.f32 %v11581, %v11725
  %v11806 = vmul.f32 %v11582, %v11727
  %v11807 = vmul.f32 %v11583, %v11729
  %v11808 = vmul.f32 %v11584, %v11731
  %v11809 = vmul.f32 %v11585, %v11733
  %v11810 = vmul.f32 %v11586, %v11735
  %v11811 = vmul.f32 %v11587, %v11737
  %v11812 = vmul.f32 %v11588, %v11739
  %v11813 = vmul.f32 %v11589, %v11741
  %v11814 = vmul.f32 %v11590, %v11743
  %v11815 = vmul.f32 %v11591, %v11745
  %v11816 = vmul.f32 %v11592, %v11747
  %v11817 = vmul.f32 %v11593, %v11749
  %v11818 = vmul.f32 %v11594, %v11751
  %v11819 = vmul.f32 %v11595, %v11753
  %v11820 = vmul.f32 %v11596, %v11755
  %v11821 = vmul.f32 %v11597, %v11757
  %v11822 = vmul.f32 %v11598, %v11695
  %v11823 = vmul.f32 %v11599, %v11697
  %v11824 = vmul.f32 %v11600, %v11699
  %v11825 = vmul.f32 %v11601, %v11701
  %v11826 = vmul.f32 %v11602, %v11703
  %v11827 = vmul.f32 %v11603, %v11705
  %v11828 = vmul.f32 %v11604, %v11707
  %v11829 = vmul.f32 %v11605, %v11709
  %v11830 = vmul.f32 %v11606, %v11711
  %v11831 = vmul.f32 %v11607, %v11713
  %v11832 = vmul.f32 %v11608, %v11715
  %v11833 = vmul.f32 %v11609, %v11717
  %v11834 = vmul.f32 %v11610, %v11719
  %v11835 = vmul.f32 %v11611, %v11721
  %v11836 = vmul.f32 %v11612, %v11723
  %v11837 = vmul.f32 %v11613, %v11725
  %v11838 = vmul.f32 %v11614, %v11727
  %v11839 = vmul.f32 %v11615, %v11729
  %v11840 = vmul.f32 %v11616, %v11731
  %v11841 = vmul.f32 %v11617, %v11733
  %v11842 = vmul.f32 %v11618, %v11735
  %v11843 = vmul.f32 %v11619, %v11737
  %v11844 = vmul.f32 %v11620, %v11739
  %v11845 = vmul.f32 %v11621, %v11741
  %v11846 = vmul.f32 %v11622, %v11743
  %v11847 = vmul.f32 %v11623, %v11745
  %v11848 = vmul.f32 %v11624, %v11747
  %v11849 = vmul.f32 %v11625, %v11749
  %v11850 = vmul.f32 %v11626, %v11751
  %v11851 = vmul.f32 %v11627, %v11753
  %v11852 = vmul.f32 %v11628, %v11755
  %v11853 = vmul.f32 %v11629, %v11757
  %11918 = vrot.lane.b32.xlu0 %v11790, 64
  %v11919 = vpop.permute.xlu0 %11918
  %11920 = vrot.lane.b32.xlu0 %v11791, 64
  %v11921 = vpop.permute.xlu0 %11920
  %11922 = vrot.lane.b32.xlu0 %v11792, 64
  %v11923 = vpop.permute.xlu0 %11922
  %11924 = vrot.lane.b32.xlu0 %v11793, 64
  %v11925 = vpop.permute.xlu0 %11924
  %11926 = vrot.lane.b32.xlu0 %v11794, 64
  %v11927 = vpop.permute.xlu0 %11926
  %11928 = vrot.lane.b32.xlu0 %v11795, 64
  %v11929 = vpop.permute.xlu0 %11928
  %11930 = vrot.lane.b32.xlu0 %v11796, 64
  %v11931 = vpop.permute.xlu0 %11930
  %11932 = vrot.lane.b32.xlu0 %v11797, 64
  %v11933 = vpop.permute.xlu0 %11932
  %11934 = vrot.lane.b32.xlu0 %v11798, 64
  %v11935 = vpop.permute.xlu0 %11934
  %11936 = vrot.lane.b32.xlu0 %v11799, 64
  %v11937 = vpop.permute.xlu0 %11936
  %11938 = vrot.lane.b32.xlu0 %v11800, 64
  %v11939 = vpop.permute.xlu0 %11938
  %11940 = vrot.lane.b32.xlu0 %v11801, 64
  %v11941 = vpop.permute.xlu0 %11940
  %11942 = vrot.lane.b32.xlu0 %v11802, 64
  %v11943 = vpop.permute.xlu0 %11942
  %11944 = vrot.lane.b32.xlu0 %v11803, 64
  %v11945 = vpop.permute.xlu0 %11944
  %11946 = vrot.lane.b32.xlu0 %v11804, 64
  %v11947 = vpop.permute.xlu0 %11946
  %11948 = vrot.lane.b32.xlu0 %v11805, 64
  %v11949 = vpop.permute.xlu0 %11948
  %11950 = vrot.lane.b32.xlu0 %v11806, 64
  %v11951 = vpop.permute.xlu0 %11950
  %11952 = vrot.lane.b32.xlu0 %v11807, 64
  %v11953 = vpop.permute.xlu0 %11952
  %11954 = vrot.lane.b32.xlu0 %v11808, 64
  %v11955 = vpop.permute.xlu0 %11954
  %11956 = vrot.lane.b32.xlu0 %v11809, 64
  %v11957 = vpop.permute.xlu0 %11956
  %11958 = vrot.lane.b32.xlu0 %v11810, 64
  %v11959 = vpop.permute.xlu0 %11958
  %11960 = vrot.lane.b32.xlu0 %v11811, 64
  %v11961 = vpop.permute.xlu0 %11960
  %11962 = vrot.lane.b32.xlu0 %v11812, 64
  %v11963 = vpop.permute.xlu0 %11962
  %11964 = vrot.lane.b32.xlu0 %v11813, 64
  %v11965 = vpop.permute.xlu0 %11964
  %11966 = vrot.lane.b32.xlu0 %v11814, 64
  %v11967 = vpop.permute.xlu0 %11966
  %11968 = vrot.lane.b32.xlu0 %v11815, 64
  %v11969 = vpop.permute.xlu0 %11968
  %11970 = vrot.lane.b32.xlu0 %v11816, 64
  %v11971 = vpop.permute.xlu0 %11970
  %11972 = vrot.lane.b32.xlu0 %v11817, 64
  %v11973 = vpop.permute.xlu0 %11972
  %11974 = vrot.lane.b32.xlu0 %v11818, 64
  %v11975 = vpop.permute.xlu0 %11974
  %11976 = vrot.lane.b32.xlu0 %v11819, 64
  %v11977 = vpop.permute.xlu0 %11976
  %11978 = vrot.lane.b32.xlu0 %v11820, 64
  %v11979 = vpop.permute.xlu0 %11978
  %11980 = vrot.lane.b32.xlu0 %v11821, 64
  %v11981 = vpop.permute.xlu0 %11980
  %11982 = vrot.lane.b32.xlu0 %v11822, 64
  %v11983 = vpop.permute.xlu0 %11982
  %11984 = vrot.lane.b32.xlu0 %v11823, 64
  %v11985 = vpop.permute.xlu0 %11984
  %11986 = vrot.lane.b32.xlu0 %v11824, 64
  %v11987 = vpop.permute.xlu0 %11986
  %11988 = vrot.lane.b32.xlu0 %v11825, 64
  %v11989 = vpop.permute.xlu0 %11988
  %11990 = vrot.lane.b32.xlu0 %v11826, 64
  %v11991 = vpop.permute.xlu0 %11990
  %11992 = vrot.lane.b32.xlu0 %v11827, 64
  %v11993 = vpop.permute.xlu0 %11992
  %11994 = vrot.lane.b32.xlu0 %v11828, 64
  %v11995 = vpop.permute.xlu0 %11994
  %11996 = vrot.lane.b32.xlu0 %v11829, 64
  %v11997 = vpop.permute.xlu0 %11996
  %11998 = vrot.lane.b32.xlu0 %v11830, 64
  %v11999 = vpop.permute.xlu0 %11998
  %12000 = vrot.lane.b32.xlu0 %v11831, 64
  %v12001 = vpop.permute.xlu0 %12000
  %12002 = vrot.lane.b32.xlu0 %v11832, 64
  %v12003 = vpop.permute.xlu0 %12002
  %12004 = vrot.lane.b32.xlu0 %v11833, 64
  %v12005 = vpop.permute.xlu0 %12004
  %12006 = vrot.lane.b32.xlu0 %v11834, 64
  %v12007 = vpop.permute.xlu0 %12006
  %12008 = vrot.lane.b32.xlu0 %v11835, 64
  %v12009 = vpop.permute.xlu0 %12008
  %12010 = vrot.lane.b32.xlu0 %v11836, 64
  %v12011 = vpop.permute.xlu0 %12010
  %12012 = vrot.lane.b32.xlu0 %v11837, 64
  %v12013 = vpop.permute.xlu0 %12012
  %12014 = vrot.lane.b32.xlu0 %v11838, 64
  %v12015 = vpop.permute.xlu0 %12014
  %12016 = vrot.lane.b32.xlu0 %v11839, 64
  %v12017 = vpop.permute.xlu0 %12016
  %12018 = vrot.lane.b32.xlu0 %v11840, 64
  %v12019 = vpop.permute.xlu0 %12018
  %12020 = vrot.lane.b32.xlu0 %v11841, 64
  %v12021 = vpop.permute.xlu0 %12020
  %12022 = vrot.lane.b32.xlu0 %v11842, 64
  %v12023 = vpop.permute.xlu0 %12022
  %12024 = vrot.lane.b32.xlu0 %v11843, 64
  %v12025 = vpop.permute.xlu0 %12024
  %12026 = vrot.lane.b32.xlu0 %v11844, 64
  %v12027 = vpop.permute.xlu0 %12026
  %12028 = vrot.lane.b32.xlu0 %v11845, 64
  %v12029 = vpop.permute.xlu0 %12028
  %12030 = vrot.lane.b32.xlu0 %v11846, 64
  %v12031 = vpop.permute.xlu0 %12030
  %12032 = vrot.lane.b32.xlu0 %v11847, 64
  %v12033 = vpop.permute.xlu0 %12032
  %12034 = vrot.lane.b32.xlu0 %v11848, 64
  %v12035 = vpop.permute.xlu0 %12034
  %12036 = vrot.lane.b32.xlu0 %v11849, 64
  %v12037 = vpop.permute.xlu0 %12036
  %12038 = vrot.lane.b32.xlu0 %v11850, 64
  %v12039 = vpop.permute.xlu0 %12038
  %12040 = vrot.lane.b32.xlu0 %v11851, 64
  %v12041 = vpop.permute.xlu0 %12040
  %12042 = vrot.lane.b32.xlu0 %v11852, 64
  %v12043 = vpop.permute.xlu0 %12042
  %12044 = vrot.lane.b32.xlu0 %v11853, 64
  %v12045 = vpop.permute.xlu0 %12044
  %v12110 = vadd.f32 %v9134, %v11919
  %v12111 = vadd.f32 %v9135, %v11921
  %v12112 = vadd.f32 %v9136, %v11923
  %v12113 = vadd.f32 %v9137, %v11925
  %v12114 = vadd.f32 %v9138, %v11927
  %v12115 = vadd.f32 %v9139, %v11929
  %v12116 = vadd.f32 %v9140, %v11931
  %v12117 = vadd.f32 %v9141, %v11933
  %v12118 = vadd.f32 %v9142, %v11935
  %v12119 = vadd.f32 %v9143, %v11937
  %v12120 = vadd.f32 %v9144, %v11939
  %v12121 = vadd.f32 %v9145, %v11941
  %v12122 = vadd.f32 %v9146, %v11943
  %v12123 = vadd.f32 %v9147, %v11945
  %v12124 = vadd.f32 %v9148, %v11947
  %v12125 = vadd.f32 %v9149, %v11949
  %v12126 = vadd.f32 %v9150, %v11951
  %v12127 = vadd.f32 %v9151, %v11953
  %v12128 = vadd.f32 %v9152, %v11955
  %v12129 = vadd.f32 %v9153, %v11957
  %v12130 = vadd.f32 %v9154, %v11959
  %v12131 = vadd.f32 %v9155, %v11961
  %v12132 = vadd.f32 %v9156, %v11963
  %v12133 = vadd.f32 %v9157, %v11965
  %v12134 = vadd.f32 %v9158, %v11967
  %v12135 = vadd.f32 %v9159, %v11969
  %v12136 = vadd.f32 %v9160, %v11971
  %v12137 = vadd.f32 %v9161, %v11973
  %v12138 = vadd.f32 %v9162, %v11975
  %v12139 = vadd.f32 %v9163, %v11977
  %v12140 = vadd.f32 %v9164, %v11979
  %v12141 = vadd.f32 %v9165, %v11981
  %v12142 = vadd.f32 %v9166, %v11983
  %v12143 = vadd.f32 %v9167, %v11985
  %v12144 = vadd.f32 %v9168, %v11987
  %v12145 = vadd.f32 %v9169, %v11989
  %v12146 = vadd.f32 %v9170, %v11991
  %v12147 = vadd.f32 %v9171, %v11993
  %v12148 = vadd.f32 %v9172, %v11995
  %v12149 = vadd.f32 %v9173, %v11997
  %v12150 = vadd.f32 %v9174, %v11999
  %v12151 = vadd.f32 %v9175, %v12001
  %v12152 = vadd.f32 %v9176, %v12003
  %v12153 = vadd.f32 %v9177, %v12005
  %v12154 = vadd.f32 %v9178, %v12007
  %v12155 = vadd.f32 %v9179, %v12009
  %v12156 = vadd.f32 %v9180, %v12011
  %v12157 = vadd.f32 %v9181, %v12013
  %v12158 = vadd.f32 %v9182, %v12015
  %v12159 = vadd.f32 %v9183, %v12017
  %v12160 = vadd.f32 %v9184, %v12019
  %v12161 = vadd.f32 %v9185, %v12021
  %v12162 = vadd.f32 %v9186, %v12023
  %v12163 = vadd.f32 %v9187, %v12025
  %v12164 = vadd.f32 %v9188, %v12027
  %v12165 = vadd.f32 %v9189, %v12029
  %v12166 = vadd.f32 %v9190, %v12031
  %v12167 = vadd.f32 %v9191, %v12033
  %v12168 = vadd.f32 %v9192, %v12035
  %v12169 = vadd.f32 %v9193, %v12037
  %v12170 = vadd.f32 %v9194, %v12039
  %v12171 = vadd.f32 %v9195, %v12041
  %v12172 = vadd.f32 %v9196, %v12043
  %v12173 = vadd.f32 %v9197, %v12045
  %v12174 = vxor.u32 %v12110, 2147483648
  %v12175 = vxor.u32 %v12111, 2147483648
  %v12176 = vxor.u32 %v12112, 2147483648
  %v12177 = vxor.u32 %v12113, 2147483648
  %v12178 = vxor.u32 %v12114, 2147483648
  %v12179 = vxor.u32 %v12115, 2147483648
  %v12180 = vxor.u32 %v12116, 2147483648
  %v12181 = vxor.u32 %v12117, 2147483648
  %v12182 = vxor.u32 %v12118, 2147483648
  %v12183 = vxor.u32 %v12119, 2147483648
  %v12184 = vxor.u32 %v12120, 2147483648
  %v12185 = vxor.u32 %v12121, 2147483648
  %v12186 = vxor.u32 %v12122, 2147483648
  %v12187 = vxor.u32 %v12123, 2147483648
  %v12188 = vxor.u32 %v12124, 2147483648
  %v12189 = vxor.u32 %v12125, 2147483648
  %v12190 = vxor.u32 %v12126, 2147483648
  %v12191 = vxor.u32 %v12127, 2147483648
  %v12192 = vxor.u32 %v12128, 2147483648
  %v12193 = vxor.u32 %v12129, 2147483648
  %v12194 = vxor.u32 %v12130, 2147483648
  %v12195 = vxor.u32 %v12131, 2147483648
  %v12196 = vxor.u32 %v12132, 2147483648
  %v12197 = vxor.u32 %v12133, 2147483648
  %v12198 = vxor.u32 %v12134, 2147483648
  %v12199 = vxor.u32 %v12135, 2147483648
  %v12200 = vxor.u32 %v12136, 2147483648
  %v12201 = vxor.u32 %v12137, 2147483648
  %v12202 = vxor.u32 %v12138, 2147483648
  %v12203 = vxor.u32 %v12139, 2147483648
  %v12204 = vxor.u32 %v12140, 2147483648
  %v12205 = vxor.u32 %v12141, 2147483648
  %v12206 = vxor.u32 %v12142, 2147483648
  %v12207 = vxor.u32 %v12143, 2147483648
  %v12208 = vxor.u32 %v12144, 2147483648
  %v12209 = vxor.u32 %v12145, 2147483648
  %v12210 = vxor.u32 %v12146, 2147483648
  %v12211 = vxor.u32 %v12147, 2147483648
  %v12212 = vxor.u32 %v12148, 2147483648
  %v12213 = vxor.u32 %v12149, 2147483648
  %v12214 = vxor.u32 %v12150, 2147483648
  %v12215 = vxor.u32 %v12151, 2147483648
  %v12216 = vxor.u32 %v12152, 2147483648
  %v12217 = vxor.u32 %v12153, 2147483648
  %v12218 = vxor.u32 %v12154, 2147483648
  %v12219 = vxor.u32 %v12155, 2147483648
  %v12220 = vxor.u32 %v12156, 2147483648
  %v12221 = vxor.u32 %v12157, 2147483648
  %v12222 = vxor.u32 %v12158, 2147483648
  %v12223 = vxor.u32 %v12159, 2147483648
  %v12224 = vxor.u32 %v12160, 2147483648
  %v12225 = vxor.u32 %v12161, 2147483648
  %v12226 = vxor.u32 %v12162, 2147483648
  %v12227 = vxor.u32 %v12163, 2147483648
  %v12228 = vxor.u32 %v12164, 2147483648
  %v12229 = vxor.u32 %v12165, 2147483648
  %v12230 = vxor.u32 %v12166, 2147483648
  %v12231 = vxor.u32 %v12167, 2147483648
  %v12232 = vxor.u32 %v12168, 2147483648
  %v12233 = vxor.u32 %v12169, 2147483648
  %v12234 = vxor.u32 %v12170, 2147483648
  %v12235 = vxor.u32 %v12171, 2147483648
  %v12236 = vxor.u32 %v12172, 2147483648
  %v12237 = vxor.u32 %v12173, 2147483648
  %v12238 = vmul.f32 %v12174, 1.442695
  %v12239 = vpow.pop %v12238
  %v12240 = vmul.f32 %v12175, 1.442695
  %v12241 = vpow.pop %v12240
  %v12242 = vmul.f32 %v12176, 1.442695
  %v12243 = vpow.pop %v12242
  %v12244 = vmul.f32 %v12177, 1.442695
  %v12245 = vpow.pop %v12244
  %v12246 = vmul.f32 %v12178, 1.442695
  %v12247 = vpow.pop %v12246
  %v12248 = vmul.f32 %v12179, 1.442695
  %v12249 = vpow.pop %v12248
  %v12250 = vmul.f32 %v12180, 1.442695
  %v12251 = vpow.pop %v12250
  %v12252 = vmul.f32 %v12181, 1.442695
  %v12253 = vpow.pop %v12252
  %v12254 = vmul.f32 %v12182, 1.442695
  %v12255 = vpow.pop %v12254
  %v12256 = vmul.f32 %v12183, 1.442695
  %v12257 = vpow.pop %v12256
  %v12258 = vmul.f32 %v12184, 1.442695
  %v12259 = vpow.pop %v12258
  %v12260 = vmul.f32 %v12185, 1.442695
  %v12261 = vpow.pop %v12260
  %v12262 = vmul.f32 %v12186, 1.442695
  %v12263 = vpow.pop %v12262
  %v12264 = vmul.f32 %v12187, 1.442695
  %v12265 = vpow.pop %v12264
  %v12266 = vmul.f32 %v12188, 1.442695
  %v12267 = vpow.pop %v12266
  %v12268 = vmul.f32 %v12189, 1.442695
  %v12269 = vpow.pop %v12268
  %v12270 = vmul.f32 %v12190, 1.442695
  %v12271 = vpow.pop %v12270
  %v12272 = vmul.f32 %v12191, 1.442695
  %v12273 = vpow.pop %v12272
  %v12274 = vmul.f32 %v12192, 1.442695
  %v12275 = vpow.pop %v12274
  %v12276 = vmul.f32 %v12193, 1.442695
  %v12277 = vpow.pop %v12276
  %v12278 = vmul.f32 %v12194, 1.442695
  %v12279 = vpow.pop %v12278
  %v12280 = vmul.f32 %v12195, 1.442695
  %v12281 = vpow.pop %v12280
  %v12282 = vmul.f32 %v12196, 1.442695
  %v12283 = vpow.pop %v12282
  %v12284 = vmul.f32 %v12197, 1.442695
  %v12285 = vpow.pop %v12284
  %v12286 = vmul.f32 %v12198, 1.442695
  %v12287 = vpow.pop %v12286
  %v12288 = vmul.f32 %v12199, 1.442695
  %v12289 = vpow.pop %v12288
  %v12290 = vmul.f32 %v12200, 1.442695
  %v12291 = vpow.pop %v12290
  %v12292 = vmul.f32 %v12201, 1.442695
  %v12293 = vpow.pop %v12292
  %v12294 = vmul.f32 %v12202, 1.442695
  %v12295 = vpow.pop %v12294
  %v12296 = vmul.f32 %v12203, 1.442695
  %v12297 = vpow.pop %v12296
  %v12298 = vmul.f32 %v12204, 1.442695
  %v12299 = vpow.pop %v12298
  %v12300 = vmul.f32 %v12205, 1.442695
  %v12301 = vpow.pop %v12300
  %v12302 = vmul.f32 %v12206, 1.442695
  %v12303 = vpow.pop %v12302
  %v12304 = vmul.f32 %v12207, 1.442695
  %v12305 = vpow.pop %v12304
  %v12306 = vmul.f32 %v12208, 1.442695
  %v12307 = vpow.pop %v12306
  %v12308 = vmul.f32 %v12209, 1.442695
  %v12309 = vpow.pop %v12308
  %v12310 = vmul.f32 %v12210, 1.442695
  %v12311 = vpow.pop %v12310
  %v12312 = vmul.f32 %v12211, 1.442695
  %v12313 = vpow.pop %v12312
  %v12314 = vmul.f32 %v12212, 1.442695
  %v12315 = vpow.pop %v12314
  %v12316 = vmul.f32 %v12213, 1.442695
  %v12317 = vpow.pop %v12316
  %v12318 = vmul.f32 %v12214, 1.442695
  %v12319 = vpow.pop %v12318
  %v12320 = vmul.f32 %v12215, 1.442695
  %v12321 = vpow.pop %v12320
  %v12322 = vmul.f32 %v12216, 1.442695
  %v12323 = vpow.pop %v12322
  %v12324 = vmul.f32 %v12217, 1.442695
  %v12325 = vpow.pop %v12324
  %v12326 = vmul.f32 %v12218, 1.442695
  %v12327 = vpow.pop %v12326
  %v12328 = vmul.f32 %v12219, 1.442695
  %v12329 = vpow.pop %v12328
  %v12330 = vmul.f32 %v12220, 1.442695
  %v12331 = vpow.pop %v12330
  %v12332 = vmul.f32 %v12221, 1.442695
  %v12333 = vpow.pop %v12332
  %v12334 = vmul.f32 %v12222, 1.442695
  %v12335 = vpow.pop %v12334
  %v12336 = vmul.f32 %v12223, 1.442695
  %v12337 = vpow.pop %v12336
  %v12338 = vmul.f32 %v12224, 1.442695
  %v12339 = vpow.pop %v12338
  %v12340 = vmul.f32 %v12225, 1.442695
  %v12341 = vpow.pop %v12340
  %v12342 = vmul.f32 %v12226, 1.442695
  %v12343 = vpow.pop %v12342
  %v12344 = vmul.f32 %v12227, 1.442695
  %v12345 = vpow.pop %v12344
  %v12346 = vmul.f32 %v12228, 1.442695
  %v12347 = vpow.pop %v12346
  %v12348 = vmul.f32 %v12229, 1.442695
  %v12349 = vpow.pop %v12348
  %v12350 = vmul.f32 %v12230, 1.442695
  %v12351 = vpow.pop %v12350
  %v12352 = vmul.f32 %v12231, 1.442695
  %v12353 = vpow.pop %v12352
  %v12354 = vmul.f32 %v12232, 1.442695
  %v12355 = vpow.pop %v12354
  %v12356 = vmul.f32 %v12233, 1.442695
  %v12357 = vpow.pop %v12356
  %v12358 = vmul.f32 %v12234, 1.442695
  %v12359 = vpow.pop %v12358
  %v12360 = vmul.f32 %v12235, 1.442695
  %v12361 = vpow.pop %v12360
  %v12362 = vmul.f32 %v12236, 1.442695
  %v12363 = vpow.pop %v12362
  %v12364 = vmul.f32 %v12237, 1.442695
  %v12365 = vpow.pop %v12364
  %v12366 = vadd.f32 %v12239, 1.0
  %v12367 = vadd.f32 %v12241, 1.0
  %v12368 = vadd.f32 %v12243, 1.0
  %v12369 = vadd.f32 %v12245, 1.0
  %v12370 = vadd.f32 %v12247, 1.0
  %v12371 = vadd.f32 %v12249, 1.0
  %v12372 = vadd.f32 %v12251, 1.0
  %v12373 = vadd.f32 %v12253, 1.0
  %v12374 = vadd.f32 %v12255, 1.0
  %v12375 = vadd.f32 %v12257, 1.0
  %v12376 = vadd.f32 %v12259, 1.0
  %v12377 = vadd.f32 %v12261, 1.0
  %v12378 = vadd.f32 %v12263, 1.0
  %v12379 = vadd.f32 %v12265, 1.0
  %v12380 = vadd.f32 %v12267, 1.0
  %v12381 = vadd.f32 %v12269, 1.0
  %v12382 = vadd.f32 %v12271, 1.0
  %v12383 = vadd.f32 %v12273, 1.0
  %v12384 = vadd.f32 %v12275, 1.0
  %v12385 = vadd.f32 %v12277, 1.0
  %v12386 = vadd.f32 %v12279, 1.0
  %v12387 = vadd.f32 %v12281, 1.0
  %v12388 = vadd.f32 %v12283, 1.0
  %v12389 = vadd.f32 %v12285, 1.0
  %v12390 = vadd.f32 %v12287, 1.0
  %v12391 = vadd.f32 %v12289, 1.0
  %v12392 = vadd.f32 %v12291, 1.0
  %v12393 = vadd.f32 %v12293, 1.0
  %v12394 = vadd.f32 %v12295, 1.0
  %v12395 = vadd.f32 %v12297, 1.0
  %v12396 = vadd.f32 %v12299, 1.0
  %v12397 = vadd.f32 %v12301, 1.0
  %v12398 = vadd.f32 %v12303, 1.0
  %v12399 = vadd.f32 %v12305, 1.0
  %v12400 = vadd.f32 %v12307, 1.0
  %v12401 = vadd.f32 %v12309, 1.0
  %v12402 = vadd.f32 %v12311, 1.0
  %v12403 = vadd.f32 %v12313, 1.0
  %v12404 = vadd.f32 %v12315, 1.0
  %v12405 = vadd.f32 %v12317, 1.0
  %v12406 = vadd.f32 %v12319, 1.0
  %v12407 = vadd.f32 %v12321, 1.0
  %v12408 = vadd.f32 %v12323, 1.0
  %v12409 = vadd.f32 %v12325, 1.0
  %v12410 = vadd.f32 %v12327, 1.0
  %v12411 = vadd.f32 %v12329, 1.0
  %v12412 = vadd.f32 %v12331, 1.0
  %v12413 = vadd.f32 %v12333, 1.0
  %v12414 = vadd.f32 %v12335, 1.0
  %v12415 = vadd.f32 %v12337, 1.0
  %v12416 = vadd.f32 %v12339, 1.0
  %v12417 = vadd.f32 %v12341, 1.0
  %v12418 = vadd.f32 %v12343, 1.0
  %v12419 = vadd.f32 %v12345, 1.0
  %v12420 = vadd.f32 %v12347, 1.0
  %v12421 = vadd.f32 %v12349, 1.0
  %v12422 = vadd.f32 %v12351, 1.0
  %v12423 = vadd.f32 %v12353, 1.0
  %v12424 = vadd.f32 %v12355, 1.0
  %v12425 = vadd.f32 %v12357, 1.0
  %v12426 = vadd.f32 %v12359, 1.0
  %v12427 = vadd.f32 %v12361, 1.0
  %v12428 = vadd.f32 %v12363, 1.0
  %v12429 = vadd.f32 %v12365, 1.0
  %v12430 = vrcp.pop %v12366
  %v12431 = vmul.f32 1.0, %v12430
  %v12432 = vrcp.pop %v12367
  %v12433 = vmul.f32 1.0, %v12432
  %v12434 = vrcp.pop %v12368
  %v12435 = vmul.f32 1.0, %v12434
  %v12436 = vrcp.pop %v12369
  %v12437 = vmul.f32 1.0, %v12436
  %v12438 = vrcp.pop %v12370
  %v12439 = vmul.f32 1.0, %v12438
  %v12440 = vrcp.pop %v12371
  %v12441 = vmul.f32 1.0, %v12440
  %v12442 = vrcp.pop %v12372
  %v12443 = vmul.f32 1.0, %v12442
  %v12444 = vrcp.pop %v12373
  %v12445 = vmul.f32 1.0, %v12444
  %v12446 = vrcp.pop %v12374
  %v12447 = vmul.f32 1.0, %v12446
  %v12448 = vrcp.pop %v12375
  %v12449 = vmul.f32 1.0, %v12448
  %v12450 = vrcp.pop %v12376
  %v12451 = vmul.f32 1.0, %v12450
  %v12452 = vrcp.pop %v12377
  %v12453 = vmul.f32 1.0, %v12452
  %v12454 = vrcp.pop %v12378
  %v12455 = vmul.f32 1.0, %v12454
  %v12456 = vrcp.pop %v12379
  %v12457 = vmul.f32 1.0, %v12456
  %v12458 = vrcp.pop %v12380
  %v12459 = vmul.f32 1.0, %v12458
  %v12460 = vrcp.pop %v12381
  %v12461 = vmul.f32 1.0, %v12460
  %v12462 = vrcp.pop %v12382
  %v12463 = vmul.f32 1.0, %v12462
  %v12464 = vrcp.pop %v12383
  %v12465 = vmul.f32 1.0, %v12464
  %v12466 = vrcp.pop %v12384
  %v12467 = vmul.f32 1.0, %v12466
  %v12468 = vrcp.pop %v12385
  %v12469 = vmul.f32 1.0, %v12468
  %v12470 = vrcp.pop %v12386
  %v12471 = vmul.f32 1.0, %v12470
  %v12472 = vrcp.pop %v12387
  %v12473 = vmul.f32 1.0, %v12472
  %v12474 = vrcp.pop %v12388
  %v12475 = vmul.f32 1.0, %v12474
  %v12476 = vrcp.pop %v12389
  %v12477 = vmul.f32 1.0, %v12476
  %v12478 = vrcp.pop %v12390
  %v12479 = vmul.f32 1.0, %v12478
  %v12480 = vrcp.pop %v12391
  %v12481 = vmul.f32 1.0, %v12480
  %v12482 = vrcp.pop %v12392
  %v12483 = vmul.f32 1.0, %v12482
  %v12484 = vrcp.pop %v12393
  %v12485 = vmul.f32 1.0, %v12484
  %v12486 = vrcp.pop %v12394
  %v12487 = vmul.f32 1.0, %v12486
  %v12488 = vrcp.pop %v12395
  %v12489 = vmul.f32 1.0, %v12488
  %v12490 = vrcp.pop %v12396
  %v12491 = vmul.f32 1.0, %v12490
  %v12492 = vrcp.pop %v12397
  %v12493 = vmul.f32 1.0, %v12492
  %v12494 = vrcp.pop %v12398
  %v12495 = vmul.f32 1.0, %v12494
  %v12496 = vrcp.pop %v12399
  %v12497 = vmul.f32 1.0, %v12496
  %v12498 = vrcp.pop %v12400
  %v12499 = vmul.f32 1.0, %v12498
  %v12500 = vrcp.pop %v12401
  %v12501 = vmul.f32 1.0, %v12500
  %v12502 = vrcp.pop %v12402
  %v12503 = vmul.f32 1.0, %v12502
  %v12504 = vrcp.pop %v12403
  %v12505 = vmul.f32 1.0, %v12504
  %v12506 = vrcp.pop %v12404
  %v12507 = vmul.f32 1.0, %v12506
  %v12508 = vrcp.pop %v12405
  %v12509 = vmul.f32 1.0, %v12508
  %v12510 = vrcp.pop %v12406
  %v12511 = vmul.f32 1.0, %v12510
  %v12512 = vrcp.pop %v12407
  %v12513 = vmul.f32 1.0, %v12512
  %v12514 = vrcp.pop %v12408
  %v12515 = vmul.f32 1.0, %v12514
  %v12516 = vrcp.pop %v12409
  %v12517 = vmul.f32 1.0, %v12516
  %v12518 = vrcp.pop %v12410
  %v12519 = vmul.f32 1.0, %v12518
  %v12520 = vrcp.pop %v12411
  %v12521 = vmul.f32 1.0, %v12520
  %v12522 = vrcp.pop %v12412
  %v12523 = vmul.f32 1.0, %v12522
  %v12524 = vrcp.pop %v12413
  %v12525 = vmul.f32 1.0, %v12524
  %v12526 = vrcp.pop %v12414
  %v12527 = vmul.f32 1.0, %v12526
  %v12528 = vrcp.pop %v12415
  %v12529 = vmul.f32 1.0, %v12528
  %v12530 = vrcp.pop %v12416
  %v12531 = vmul.f32 1.0, %v12530
  %v12532 = vrcp.pop %v12417
  %v12533 = vmul.f32 1.0, %v12532
  %v12534 = vrcp.pop %v12418
  %v12535 = vmul.f32 1.0, %v12534
  %v12536 = vrcp.pop %v12419
  %v12537 = vmul.f32 1.0, %v12536
  %v12538 = vrcp.pop %v12420
  %v12539 = vmul.f32 1.0, %v12538
  %v12540 = vrcp.pop %v12421
  %v12541 = vmul.f32 1.0, %v12540
  %v12542 = vrcp.pop %v12422
  %v12543 = vmul.f32 1.0, %v12542
  %v12544 = vrcp.pop %v12423
  %v12545 = vmul.f32 1.0, %v12544
  %v12546 = vrcp.pop %v12424
  %v12547 = vmul.f32 1.0, %v12546
  %v12548 = vrcp.pop %v12425
  %v12549 = vmul.f32 1.0, %v12548
  %v12550 = vrcp.pop %v12426
  %v12551 = vmul.f32 1.0, %v12550
  %v12552 = vrcp.pop %v12427
  %v12553 = vmul.f32 1.0, %v12552
  %v12554 = vrcp.pop %v12428
  %v12555 = vmul.f32 1.0, %v12554
  %v12556 = vrcp.pop %v12429
  %v12557 = vmul.f32 1.0, %v12556
  %v12558 = vtanh.pop %v11566
  %v12559 = vtanh.pop %v11567
  %v12560 = vtanh.pop %v11568
  %v12561 = vtanh.pop %v11569
  %v12562 = vtanh.pop %v11570
  %v12563 = vtanh.pop %v11571
  %v12564 = vtanh.pop %v11572
  %v12565 = vtanh.pop %v11573
  %v12566 = vtanh.pop %v11574
  %v12567 = vtanh.pop %v11575
  %v12568 = vtanh.pop %v11576
  %v12569 = vtanh.pop %v11577
  %v12570 = vtanh.pop %v11578
  %v12571 = vtanh.pop %v11579
  %v12572 = vtanh.pop %v11580
  %v12573 = vtanh.pop %v11581
  %v12574 = vtanh.pop %v11582
  %v12575 = vtanh.pop %v11583
  %v12576 = vtanh.pop %v11584
  %v12577 = vtanh.pop %v11585
  %v12578 = vtanh.pop %v11586
  %v12579 = vtanh.pop %v11587
  %v12580 = vtanh.pop %v11588
  %v12581 = vtanh.pop %v11589
  %v12582 = vtanh.pop %v11590
  %v12583 = vtanh.pop %v11591
  %v12584 = vtanh.pop %v11592
  %v12585 = vtanh.pop %v11593
  %v12586 = vtanh.pop %v11594
  %v12587 = vtanh.pop %v11595
  %v12588 = vtanh.pop %v11596
  %v12589 = vtanh.pop %v11597
  %v12590 = vtanh.pop %v11598
  %v12591 = vtanh.pop %v11599
  %v12592 = vtanh.pop %v11600
  %v12593 = vtanh.pop %v11601
  %v12594 = vtanh.pop %v11602
  %v12595 = vtanh.pop %v11603
  %v12596 = vtanh.pop %v11604
  %v12597 = vtanh.pop %v11605
  %v12598 = vtanh.pop %v11606
  %v12599 = vtanh.pop %v11607
  %v12600 = vtanh.pop %v11608
  %v12601 = vtanh.pop %v11609
  %v12602 = vtanh.pop %v11610
  %v12603 = vtanh.pop %v11611
  %v12604 = vtanh.pop %v11612
  %v12605 = vtanh.pop %v11613
  %v12606 = vtanh.pop %v11614
  %v12607 = vtanh.pop %v11615
  %v12608 = vtanh.pop %v11616
  %v12609 = vtanh.pop %v11617
  %v12610 = vtanh.pop %v11618
  %v12611 = vtanh.pop %v11619
  %v12612 = vtanh.pop %v11620
  %v12613 = vtanh.pop %v11621
  %v12614 = vtanh.pop %v11622
  %v12615 = vtanh.pop %v11623
  %v12616 = vtanh.pop %v11624
  %v12617 = vtanh.pop %v11625
  %v12618 = vtanh.pop %v11626
  %v12619 = vtanh.pop %v11627
  %v12620 = vtanh.pop %v11628
  %v12621 = vtanh.pop %v11629
  %12686 = vrot.lane.b32.xlu0 %v12558, 64
  %v12687 = vpop.permute.xlu0 %12686
  %12688 = vrot.lane.b32.xlu0 %v12559, 64
  %v12689 = vpop.permute.xlu0 %12688
  %12690 = vrot.lane.b32.xlu0 %v12560, 64
  %v12691 = vpop.permute.xlu0 %12690
  %12692 = vrot.lane.b32.xlu0 %v12561, 64
  %v12693 = vpop.permute.xlu0 %12692
  %12694 = vrot.lane.b32.xlu0 %v12562, 64
  %v12695 = vpop.permute.xlu0 %12694
  %12696 = vrot.lane.b32.xlu0 %v12563, 64
  %v12697 = vpop.permute.xlu0 %12696
  %12698 = vrot.lane.b32.xlu0 %v12564, 64
  %v12699 = vpop.permute.xlu0 %12698
  %12700 = vrot.lane.b32.xlu0 %v12565, 64
  %v12701 = vpop.permute.xlu0 %12700
  %12702 = vrot.lane.b32.xlu0 %v12566, 64
  %v12703 = vpop.permute.xlu0 %12702
  %12704 = vrot.lane.b32.xlu0 %v12567, 64
  %v12705 = vpop.permute.xlu0 %12704
  %12706 = vrot.lane.b32.xlu0 %v12568, 64
  %v12707 = vpop.permute.xlu0 %12706
  %12708 = vrot.lane.b32.xlu0 %v12569, 64
  %v12709 = vpop.permute.xlu0 %12708
  %12710 = vrot.lane.b32.xlu0 %v12570, 64
  %v12711 = vpop.permute.xlu0 %12710
  %12712 = vrot.lane.b32.xlu0 %v12571, 64
  %v12713 = vpop.permute.xlu0 %12712
  %12714 = vrot.lane.b32.xlu0 %v12572, 64
  %v12715 = vpop.permute.xlu0 %12714
  %12716 = vrot.lane.b32.xlu0 %v12573, 64
  %v12717 = vpop.permute.xlu0 %12716
  %12718 = vrot.lane.b32.xlu0 %v12574, 64
  %v12719 = vpop.permute.xlu0 %12718
  %12720 = vrot.lane.b32.xlu0 %v12575, 64
  %v12721 = vpop.permute.xlu0 %12720
  %12722 = vrot.lane.b32.xlu0 %v12576, 64
  %v12723 = vpop.permute.xlu0 %12722
  %12724 = vrot.lane.b32.xlu0 %v12577, 64
  %v12725 = vpop.permute.xlu0 %12724
  %12726 = vrot.lane.b32.xlu0 %v12578, 64
  %v12727 = vpop.permute.xlu0 %12726
  %12728 = vrot.lane.b32.xlu0 %v12579, 64
  %v12729 = vpop.permute.xlu0 %12728
  %12730 = vrot.lane.b32.xlu0 %v12580, 64
  %v12731 = vpop.permute.xlu0 %12730
  %12732 = vrot.lane.b32.xlu0 %v12581, 64
  %v12733 = vpop.permute.xlu0 %12732
  %12734 = vrot.lane.b32.xlu0 %v12582, 64
  %v12735 = vpop.permute.xlu0 %12734
  %12736 = vrot.lane.b32.xlu0 %v12583, 64
  %v12737 = vpop.permute.xlu0 %12736
  %12738 = vrot.lane.b32.xlu0 %v12584, 64
  %v12739 = vpop.permute.xlu0 %12738
  %12740 = vrot.lane.b32.xlu0 %v12585, 64
  %v12741 = vpop.permute.xlu0 %12740
  %12742 = vrot.lane.b32.xlu0 %v12586, 64
  %v12743 = vpop.permute.xlu0 %12742
  %12744 = vrot.lane.b32.xlu0 %v12587, 64
  %v12745 = vpop.permute.xlu0 %12744
  %12746 = vrot.lane.b32.xlu0 %v12588, 64
  %v12747 = vpop.permute.xlu0 %12746
  %12748 = vrot.lane.b32.xlu0 %v12589, 64
  %v12749 = vpop.permute.xlu0 %12748
  %12750 = vrot.lane.b32.xlu0 %v12590, 64
  %v12751 = vpop.permute.xlu0 %12750
  %12752 = vrot.lane.b32.xlu0 %v12591, 64
  %v12753 = vpop.permute.xlu0 %12752
  %12754 = vrot.lane.b32.xlu0 %v12592, 64
  %v12755 = vpop.permute.xlu0 %12754
  %12756 = vrot.lane.b32.xlu0 %v12593, 64
  %v12757 = vpop.permute.xlu0 %12756
  %12758 = vrot.lane.b32.xlu0 %v12594, 64
  %v12759 = vpop.permute.xlu0 %12758
  %12760 = vrot.lane.b32.xlu0 %v12595, 64
  %v12761 = vpop.permute.xlu0 %12760
  %12762 = vrot.lane.b32.xlu0 %v12596, 64
  %v12763 = vpop.permute.xlu0 %12762
  %12764 = vrot.lane.b32.xlu0 %v12597, 64
  %v12765 = vpop.permute.xlu0 %12764
  %12766 = vrot.lane.b32.xlu0 %v12598, 64
  %v12767 = vpop.permute.xlu0 %12766
  %12768 = vrot.lane.b32.xlu0 %v12599, 64
  %v12769 = vpop.permute.xlu0 %12768
  %12770 = vrot.lane.b32.xlu0 %v12600, 64
  %v12771 = vpop.permute.xlu0 %12770
  %12772 = vrot.lane.b32.xlu0 %v12601, 64
  %v12773 = vpop.permute.xlu0 %12772
  %12774 = vrot.lane.b32.xlu0 %v12602, 64
  %v12775 = vpop.permute.xlu0 %12774
  %12776 = vrot.lane.b32.xlu0 %v12603, 64
  %v12777 = vpop.permute.xlu0 %12776
  %12778 = vrot.lane.b32.xlu0 %v12604, 64
  %v12779 = vpop.permute.xlu0 %12778
  %12780 = vrot.lane.b32.xlu0 %v12605, 64
  %v12781 = vpop.permute.xlu0 %12780
  %12782 = vrot.lane.b32.xlu0 %v12606, 64
  %v12783 = vpop.permute.xlu0 %12782
  %12784 = vrot.lane.b32.xlu0 %v12607, 64
  %v12785 = vpop.permute.xlu0 %12784
  %12786 = vrot.lane.b32.xlu0 %v12608, 64
  %v12787 = vpop.permute.xlu0 %12786
  %12788 = vrot.lane.b32.xlu0 %v12609, 64
  %v12789 = vpop.permute.xlu0 %12788
  %12790 = vrot.lane.b32.xlu0 %v12610, 64
  %v12791 = vpop.permute.xlu0 %12790
  %12792 = vrot.lane.b32.xlu0 %v12611, 64
  %v12793 = vpop.permute.xlu0 %12792
  %12794 = vrot.lane.b32.xlu0 %v12612, 64
  %v12795 = vpop.permute.xlu0 %12794
  %12796 = vrot.lane.b32.xlu0 %v12613, 64
  %v12797 = vpop.permute.xlu0 %12796
  %12798 = vrot.lane.b32.xlu0 %v12614, 64
  %v12799 = vpop.permute.xlu0 %12798
  %12800 = vrot.lane.b32.xlu0 %v12615, 64
  %v12801 = vpop.permute.xlu0 %12800
  %12802 = vrot.lane.b32.xlu0 %v12616, 64
  %v12803 = vpop.permute.xlu0 %12802
  %12804 = vrot.lane.b32.xlu0 %v12617, 64
  %v12805 = vpop.permute.xlu0 %12804
  %12806 = vrot.lane.b32.xlu0 %v12618, 64
  %v12807 = vpop.permute.xlu0 %12806
  %12808 = vrot.lane.b32.xlu0 %v12619, 64
  %v12809 = vpop.permute.xlu0 %12808
  %12810 = vrot.lane.b32.xlu0 %v12620, 64
  %v12811 = vpop.permute.xlu0 %12810
  %12812 = vrot.lane.b32.xlu0 %v12621, 64
  %v12813 = vpop.permute.xlu0 %12812
  %v12878 = vmul.f32 %v12431, %v12687
  %v12879 = vmul.f32 %v12433, %v12689
  %v12880 = vmul.f32 %v12435, %v12691
  %v12881 = vmul.f32 %v12437, %v12693
  %v12882 = vmul.f32 %v12439, %v12695
  %v12883 = vmul.f32 %v12441, %v12697
  %v12884 = vmul.f32 %v12443, %v12699
  %v12885 = vmul.f32 %v12445, %v12701
  %v12886 = vmul.f32 %v12447, %v12703
  %v12887 = vmul.f32 %v12449, %v12705
  %v12888 = vmul.f32 %v12451, %v12707
  %v12889 = vmul.f32 %v12453, %v12709
  %v12890 = vmul.f32 %v12455, %v12711
  %v12891 = vmul.f32 %v12457, %v12713
  %v12892 = vmul.f32 %v12459, %v12715
  %v12893 = vmul.f32 %v12461, %v12717
  %v12894 = vmul.f32 %v12463, %v12719
  %v12895 = vmul.f32 %v12465, %v12721
  %v12896 = vmul.f32 %v12467, %v12723
  %v12897 = vmul.f32 %v12469, %v12725
  %v12898 = vmul.f32 %v12471, %v12727
  %v12899 = vmul.f32 %v12473, %v12729
  %v12900 = vmul.f32 %v12475, %v12731
  %v12901 = vmul.f32 %v12477, %v12733
  %v12902 = vmul.f32 %v12479, %v12735
  %v12903 = vmul.f32 %v12481, %v12737
  %v12904 = vmul.f32 %v12483, %v12739
  %v12905 = vmul.f32 %v12485, %v12741
  %v12906 = vmul.f32 %v12487, %v12743
  %v12907 = vmul.f32 %v12489, %v12745
  %v12908 = vmul.f32 %v12491, %v12747
  %v12909 = vmul.f32 %v12493, %v12749
  %v12910 = vmul.f32 %v12495, %v12751
  %v12911 = vmul.f32 %v12497, %v12753
  %v12912 = vmul.f32 %v12499, %v12755
  %v12913 = vmul.f32 %v12501, %v12757
  %v12914 = vmul.f32 %v12503, %v12759
  %v12915 = vmul.f32 %v12505, %v12761
  %v12916 = vmul.f32 %v12507, %v12763
  %v12917 = vmul.f32 %v12509, %v12765
  %v12918 = vmul.f32 %v12511, %v12767
  %v12919 = vmul.f32 %v12513, %v12769
  %v12920 = vmul.f32 %v12515, %v12771
  %v12921 = vmul.f32 %v12517, %v12773
  %v12922 = vmul.f32 %v12519, %v12775
  %v12923 = vmul.f32 %v12521, %v12777
  %v12924 = vmul.f32 %v12523, %v12779
  %v12925 = vmul.f32 %v12525, %v12781
  %v12926 = vmul.f32 %v12527, %v12783
  %v12927 = vmul.f32 %v12529, %v12785
  %v12928 = vmul.f32 %v12531, %v12787
  %v12929 = vmul.f32 %v12533, %v12789
  %v12930 = vmul.f32 %v12535, %v12791
  %v12931 = vmul.f32 %v12537, %v12793
  %v12932 = vmul.f32 %v12539, %v12795
  %v12933 = vmul.f32 %v12541, %v12797
  %v12934 = vmul.f32 %v12543, %v12799
  %v12935 = vmul.f32 %v12545, %v12801
  %v12936 = vmul.f32 %v12547, %v12803
  %v12937 = vmul.f32 %v12549, %v12805
  %v12938 = vmul.f32 %v12551, %v12807
  %v12939 = vmul.f32 %v12553, %v12809
  %v12940 = vmul.f32 %v12555, %v12811
  %v12941 = vmul.f32 %v12557, %v12813
  %13006 = vrot.lane.b32.xlu0 %v12878, 32
  %v13007 = vpop.permute.xlu0 %13006
  %13008 = vrot.lane.b32.xlu0 %v12879, 32
  %v13009 = vpop.permute.xlu0 %13008
  %13010 = vrot.lane.b32.xlu0 %v12880, 32
  %v13011 = vpop.permute.xlu0 %13010
  %13012 = vrot.lane.b32.xlu0 %v12881, 32
  %v13013 = vpop.permute.xlu0 %13012
  %13014 = vrot.lane.b32.xlu0 %v12882, 32
  %v13015 = vpop.permute.xlu0 %13014
  %13016 = vrot.lane.b32.xlu0 %v12883, 32
  %v13017 = vpop.permute.xlu0 %13016
  %13018 = vrot.lane.b32.xlu0 %v12884, 32
  %v13019 = vpop.permute.xlu0 %13018
  %13020 = vrot.lane.b32.xlu0 %v12885, 32
  %v13021 = vpop.permute.xlu0 %13020
  %13022 = vrot.lane.b32.xlu0 %v12886, 32
  %v13023 = vpop.permute.xlu0 %13022
  %13024 = vrot.lane.b32.xlu0 %v12887, 32
  %v13025 = vpop.permute.xlu0 %13024
  %13026 = vrot.lane.b32.xlu0 %v12888, 32
  %v13027 = vpop.permute.xlu0 %13026
  %13028 = vrot.lane.b32.xlu0 %v12889, 32
  %v13029 = vpop.permute.xlu0 %13028
  %13030 = vrot.lane.b32.xlu0 %v12890, 32
  %v13031 = vpop.permute.xlu0 %13030
  %13032 = vrot.lane.b32.xlu0 %v12891, 32
  %v13033 = vpop.permute.xlu0 %13032
  %13034 = vrot.lane.b32.xlu0 %v12892, 32
  %v13035 = vpop.permute.xlu0 %13034
  %13036 = vrot.lane.b32.xlu0 %v12893, 32
  %v13037 = vpop.permute.xlu0 %13036
  %13038 = vrot.lane.b32.xlu0 %v12894, 32
  %v13039 = vpop.permute.xlu0 %13038
  %13040 = vrot.lane.b32.xlu0 %v12895, 32
  %v13041 = vpop.permute.xlu0 %13040
  %13042 = vrot.lane.b32.xlu0 %v12896, 32
  %v13043 = vpop.permute.xlu0 %13042
  %13044 = vrot.lane.b32.xlu0 %v12897, 32
  %v13045 = vpop.permute.xlu0 %13044
  %13046 = vrot.lane.b32.xlu0 %v12898, 32
  %v13047 = vpop.permute.xlu0 %13046
  %13048 = vrot.lane.b32.xlu0 %v12899, 32
  %v13049 = vpop.permute.xlu0 %13048
  %13050 = vrot.lane.b32.xlu0 %v12900, 32
  %v13051 = vpop.permute.xlu0 %13050
  %13052 = vrot.lane.b32.xlu0 %v12901, 32
  %v13053 = vpop.permute.xlu0 %13052
  %13054 = vrot.lane.b32.xlu0 %v12902, 32
  %v13055 = vpop.permute.xlu0 %13054
  %13056 = vrot.lane.b32.xlu0 %v12903, 32
  %v13057 = vpop.permute.xlu0 %13056
  %13058 = vrot.lane.b32.xlu0 %v12904, 32
  %v13059 = vpop.permute.xlu0 %13058
  %13060 = vrot.lane.b32.xlu0 %v12905, 32
  %v13061 = vpop.permute.xlu0 %13060
  %13062 = vrot.lane.b32.xlu0 %v12906, 32
  %v13063 = vpop.permute.xlu0 %13062
  %13064 = vrot.lane.b32.xlu0 %v12907, 32
  %v13065 = vpop.permute.xlu0 %13064
  %13066 = vrot.lane.b32.xlu0 %v12908, 32
  %v13067 = vpop.permute.xlu0 %13066
  %13068 = vrot.lane.b32.xlu0 %v12909, 32
  %v13069 = vpop.permute.xlu0 %13068
  %13070 = vrot.lane.b32.xlu0 %v12910, 32
  %v13071 = vpop.permute.xlu0 %13070
  %13072 = vrot.lane.b32.xlu0 %v12911, 32
  %v13073 = vpop.permute.xlu0 %13072
  %13074 = vrot.lane.b32.xlu0 %v12912, 32
  %v13075 = vpop.permute.xlu0 %13074
  %13076 = vrot.lane.b32.xlu0 %v12913, 32
  %v13077 = vpop.permute.xlu0 %13076
  %13078 = vrot.lane.b32.xlu0 %v12914, 32
  %v13079 = vpop.permute.xlu0 %13078
  %13080 = vrot.lane.b32.xlu0 %v12915, 32
  %v13081 = vpop.permute.xlu0 %13080
  %13082 = vrot.lane.b32.xlu0 %v12916, 32
  %v13083 = vpop.permute.xlu0 %13082
  %13084 = vrot.lane.b32.xlu0 %v12917, 32
  %v13085 = vpop.permute.xlu0 %13084
  %13086 = vrot.lane.b32.xlu0 %v12918, 32
  %v13087 = vpop.permute.xlu0 %13086
  %13088 = vrot.lane.b32.xlu0 %v12919, 32
  %v13089 = vpop.permute.xlu0 %13088
  %13090 = vrot.lane.b32.xlu0 %v12920, 32
  %v13091 = vpop.permute.xlu0 %13090
  %13092 = vrot.lane.b32.xlu0 %v12921, 32
  %v13093 = vpop.permute.xlu0 %13092
  %13094 = vrot.lane.b32.xlu0 %v12922, 32
  %v13095 = vpop.permute.xlu0 %13094
  %13096 = vrot.lane.b32.xlu0 %v12923, 32
  %v13097 = vpop.permute.xlu0 %13096
  %13098 = vrot.lane.b32.xlu0 %v12924, 32
  %v13099 = vpop.permute.xlu0 %13098
  %13100 = vrot.lane.b32.xlu0 %v12925, 32
  %v13101 = vpop.permute.xlu0 %13100
  %13102 = vrot.lane.b32.xlu0 %v12926, 32
  %v13103 = vpop.permute.xlu0 %13102
  %13104 = vrot.lane.b32.xlu0 %v12927, 32
  %v13105 = vpop.permute.xlu0 %13104
  %13106 = vrot.lane.b32.xlu0 %v12928, 32
  %v13107 = vpop.permute.xlu0 %13106
  %13108 = vrot.lane.b32.xlu0 %v12929, 32
  %v13109 = vpop.permute.xlu0 %13108
  %13110 = vrot.lane.b32.xlu0 %v12930, 32
  %v13111 = vpop.permute.xlu0 %13110
  %13112 = vrot.lane.b32.xlu0 %v12931, 32
  %v13113 = vpop.permute.xlu0 %13112
  %13114 = vrot.lane.b32.xlu0 %v12932, 32
  %v13115 = vpop.permute.xlu0 %13114
  %13116 = vrot.lane.b32.xlu0 %v12933, 32
  %v13117 = vpop.permute.xlu0 %13116
  %13118 = vrot.lane.b32.xlu0 %v12934, 32
  %v13119 = vpop.permute.xlu0 %13118
  %13120 = vrot.lane.b32.xlu0 %v12935, 32
  %v13121 = vpop.permute.xlu0 %13120
  %13122 = vrot.lane.b32.xlu0 %v12936, 32
  %v13123 = vpop.permute.xlu0 %13122
  %13124 = vrot.lane.b32.xlu0 %v12937, 32
  %v13125 = vpop.permute.xlu0 %13124
  %13126 = vrot.lane.b32.xlu0 %v12938, 32
  %v13127 = vpop.permute.xlu0 %13126
  %13128 = vrot.lane.b32.xlu0 %v12939, 32
  %v13129 = vpop.permute.xlu0 %13128
  %13130 = vrot.lane.b32.xlu0 %v12940, 32
  %v13131 = vpop.permute.xlu0 %13130
  %13132 = vrot.lane.b32.xlu0 %v12941, 32
  %v13133 = vpop.permute.xlu0 %13132
  %vm13198 = vcmask 261120
  %13199 = vst.msk [vmem:[%s7] sm:$0xff] %vm13198, %v13007
  %13200 = vst.msk [vmem:[%s7 + $0x8] sm:$0xff] %vm13198, %v13009
  %13201 = vst.msk [vmem:[%s7 + $0x10] sm:$0xff] %vm13198, %v13011
  %13202 = vst.msk [vmem:[%s7 + $0x18] sm:$0xff] %vm13198, %v13013
  %13203 = vst.msk [vmem:[%s7 + $0x20] sm:$0xff] %vm13198, %v13015
  %13204 = vst.msk [vmem:[%s7 + $0x28] sm:$0xff] %vm13198, %v13017
  %13205 = vst.msk [vmem:[%s7 + $0x30] sm:$0xff] %vm13198, %v13019
  %13206 = vst.msk [vmem:[%s7 + $0x38] sm:$0xff] %vm13198, %v13021
  %13207 = vst.msk [vmem:[%s7 + $0x40] sm:$0xff] %vm13198, %v13023
  %13208 = vst.msk [vmem:[%s7 + $0x48] sm:$0xff] %vm13198, %v13025
  %13209 = vst.msk [vmem:[%s7 + $0x50] sm:$0xff] %vm13198, %v13027
  %13210 = vst.msk [vmem:[%s7 + $0x58] sm:$0xff] %vm13198, %v13029
  %13211 = vst.msk [vmem:[%s7 + $0x60] sm:$0xff] %vm13198, %v13031
  %13212 = vst.msk [vmem:[%s7 + $0x68] sm:$0xff] %vm13198, %v13033
  %13213 = vst.msk [vmem:[%s7 + $0x70] sm:$0xff] %vm13198, %v13035
  %13214 = vst.msk [vmem:[%s7 + $0x78] sm:$0xff] %vm13198, %v13037
  %13215 = vst.msk [vmem:[%s7 + $0x80] sm:$0xff] %vm13198, %v13039
  %13216 = vst.msk [vmem:[%s7 + $0x88] sm:$0xff] %vm13198, %v13041
  %13217 = vst.msk [vmem:[%s7 + $0x90] sm:$0xff] %vm13198, %v13043
  %13218 = vst.msk [vmem:[%s7 + $0x98] sm:$0xff] %vm13198, %v13045
  %13219 = vst.msk [vmem:[%s7 + $0xa0] sm:$0xff] %vm13198, %v13047
  %13220 = vst.msk [vmem:[%s7 + $0xa8] sm:$0xff] %vm13198, %v13049
  %13221 = vst.msk [vmem:[%s7 + $0xb0] sm:$0xff] %vm13198, %v13051
  %13222 = vst.msk [vmem:[%s7 + $0xb8] sm:$0xff] %vm13198, %v13053
  %13223 = vst.msk [vmem:[%s7 + $0xc0] sm:$0xff] %vm13198, %v13055
  %13224 = vst.msk [vmem:[%s7 + $0xc8] sm:$0xff] %vm13198, %v13057
  %13225 = vst.msk [vmem:[%s7 + $0xd0] sm:$0xff] %vm13198, %v13059
  %13226 = vst.msk [vmem:[%s7 + $0xd8] sm:$0xff] %vm13198, %v13061
  %13227 = vst.msk [vmem:[%s7 + $0xe0] sm:$0xff] %vm13198, %v13063
  %13228 = vst.msk [vmem:[%s7 + $0xe8] sm:$0xff] %vm13198, %v13065
  %13229 = vst.msk [vmem:[%s7 + $0xf0] sm:$0xff] %vm13198, %v13067
  %13230 = vst.msk [vmem:[%s7 + $0xf8] sm:$0xff] %vm13198, %v13069
  %13231 = vst.msk [vmem:[%s7 + $0x100] sm:$0xff] %vm13198, %v13071
  %13232 = vst.msk [vmem:[%s7 + $0x108] sm:$0xff] %vm13198, %v13073
  %13233 = vst.msk [vmem:[%s7 + $0x110] sm:$0xff] %vm13198, %v13075
  %13234 = vst.msk [vmem:[%s7 + $0x118] sm:$0xff] %vm13198, %v13077
  %13235 = vst.msk [vmem:[%s7 + $0x120] sm:$0xff] %vm13198, %v13079
  %13236 = vst.msk [vmem:[%s7 + $0x128] sm:$0xff] %vm13198, %v13081
  %13237 = vst.msk [vmem:[%s7 + $0x130] sm:$0xff] %vm13198, %v13083
  %13238 = vst.msk [vmem:[%s7 + $0x138] sm:$0xff] %vm13198, %v13085
  %13239 = vst.msk [vmem:[%s7 + $0x140] sm:$0xff] %vm13198, %v13087
  %13240 = vst.msk [vmem:[%s7 + $0x148] sm:$0xff] %vm13198, %v13089
  %13241 = vst.msk [vmem:[%s7 + $0x150] sm:$0xff] %vm13198, %v13091
  %13242 = vst.msk [vmem:[%s7 + $0x158] sm:$0xff] %vm13198, %v13093
  %13243 = vst.msk [vmem:[%s7 + $0x160] sm:$0xff] %vm13198, %v13095
  %13244 = vst.msk [vmem:[%s7 + $0x168] sm:$0xff] %vm13198, %v13097
  %13245 = vst.msk [vmem:[%s7 + $0x170] sm:$0xff] %vm13198, %v13099
  %13246 = vst.msk [vmem:[%s7 + $0x178] sm:$0xff] %vm13198, %v13101
  %13247 = vst.msk [vmem:[%s7 + $0x180] sm:$0xff] %vm13198, %v13103
  %13248 = vst.msk [vmem:[%s7 + $0x188] sm:$0xff] %vm13198, %v13105
  %13249 = vst.msk [vmem:[%s7 + $0x190] sm:$0xff] %vm13198, %v13107
  %13250 = vst.msk [vmem:[%s7 + $0x198] sm:$0xff] %vm13198, %v13109
  %13251 = vst.msk [vmem:[%s7 + $0x1a0] sm:$0xff] %vm13198, %v13111
  %13252 = vst.msk [vmem:[%s7 + $0x1a8] sm:$0xff] %vm13198, %v13113
  %13253 = vst.msk [vmem:[%s7 + $0x1b0] sm:$0xff] %vm13198, %v13115
  %13254 = vst.msk [vmem:[%s7 + $0x1b8] sm:$0xff] %vm13198, %v13117
  %13255 = vst.msk [vmem:[%s7 + $0x1c0] sm:$0xff] %vm13198, %v13119
  %13256 = vst.msk [vmem:[%s7 + $0x1c8] sm:$0xff] %vm13198, %v13121
  %13257 = vst.msk [vmem:[%s7 + $0x1d0] sm:$0xff] %vm13198, %v13123
  %13258 = vst.msk [vmem:[%s7 + $0x1d8] sm:$0xff] %vm13198, %v13125
  %13259 = vst.msk [vmem:[%s7 + $0x1e0] sm:$0xff] %vm13198, %v13127
  %13260 = vst.msk [vmem:[%s7 + $0x1e8] sm:$0xff] %vm13198, %v13129
  %13261 = vst.msk [vmem:[%s7 + $0x1f0] sm:$0xff] %vm13198, %v13131
  %13262 = vst.msk [vmem:[%s7 + $0x1f8] sm:$0xff] %vm13198, %v13133
  %13327 = vrot.lane.b32.xlu0 %v11566, 96
  %v13328 = vpop.permute.xlu0 %13327
  %13329 = vrot.lane.b32.xlu0 %v11567, 96
  %v13330 = vpop.permute.xlu0 %13329
  %13331 = vrot.lane.b32.xlu0 %v11568, 96
  %v13332 = vpop.permute.xlu0 %13331
  %13333 = vrot.lane.b32.xlu0 %v11569, 96
  %v13334 = vpop.permute.xlu0 %13333
  %13335 = vrot.lane.b32.xlu0 %v11570, 96
  %v13336 = vpop.permute.xlu0 %13335
  %13337 = vrot.lane.b32.xlu0 %v11571, 96
  %v13338 = vpop.permute.xlu0 %13337
  %13339 = vrot.lane.b32.xlu0 %v11572, 96
  %v13340 = vpop.permute.xlu0 %13339
  %13341 = vrot.lane.b32.xlu0 %v11573, 96
  %v13342 = vpop.permute.xlu0 %13341
  %13343 = vrot.lane.b32.xlu0 %v11574, 96
  %v13344 = vpop.permute.xlu0 %13343
  %13345 = vrot.lane.b32.xlu0 %v11575, 96
  %v13346 = vpop.permute.xlu0 %13345
  %13347 = vrot.lane.b32.xlu0 %v11576, 96
  %v13348 = vpop.permute.xlu0 %13347
  %13349 = vrot.lane.b32.xlu0 %v11577, 96
  %v13350 = vpop.permute.xlu0 %13349
  %13351 = vrot.lane.b32.xlu0 %v11578, 96
  %v13352 = vpop.permute.xlu0 %13351
  %13353 = vrot.lane.b32.xlu0 %v11579, 96
  %v13354 = vpop.permute.xlu0 %13353
  %13355 = vrot.lane.b32.xlu0 %v11580, 96
  %v13356 = vpop.permute.xlu0 %13355
  %13357 = vrot.lane.b32.xlu0 %v11581, 96
  %v13358 = vpop.permute.xlu0 %13357
  %13359 = vrot.lane.b32.xlu0 %v11582, 96
  %v13360 = vpop.permute.xlu0 %13359
  %13361 = vrot.lane.b32.xlu0 %v11583, 96
  %v13362 = vpop.permute.xlu0 %13361
  %13363 = vrot.lane.b32.xlu0 %v11584, 96
  %v13364 = vpop.permute.xlu0 %13363
  %13365 = vrot.lane.b32.xlu0 %v11585, 96
  %v13366 = vpop.permute.xlu0 %13365
  %13367 = vrot.lane.b32.xlu0 %v11586, 96
  %v13368 = vpop.permute.xlu0 %13367
  %13369 = vrot.lane.b32.xlu0 %v11587, 96
  %v13370 = vpop.permute.xlu0 %13369
  %13371 = vrot.lane.b32.xlu0 %v11588, 96
  %v13372 = vpop.permute.xlu0 %13371
  %13373 = vrot.lane.b32.xlu0 %v11589, 96
  %v13374 = vpop.permute.xlu0 %13373
  %13375 = vrot.lane.b32.xlu0 %v11590, 96
  %v13376 = vpop.permute.xlu0 %13375
  %13377 = vrot.lane.b32.xlu0 %v11591, 96
  %v13378 = vpop.permute.xlu0 %13377
  %13379 = vrot.lane.b32.xlu0 %v11592, 96
  %v13380 = vpop.permute.xlu0 %13379
  %13381 = vrot.lane.b32.xlu0 %v11593, 96
  %v13382 = vpop.permute.xlu0 %13381
  %13383 = vrot.lane.b32.xlu0 %v11594, 96
  %v13384 = vpop.permute.xlu0 %13383
  %13385 = vrot.lane.b32.xlu0 %v11595, 96
  %v13386 = vpop.permute.xlu0 %13385
  %13387 = vrot.lane.b32.xlu0 %v11596, 96
  %v13388 = vpop.permute.xlu0 %13387
  %13389 = vrot.lane.b32.xlu0 %v11597, 96
  %v13390 = vpop.permute.xlu0 %13389
  %13391 = vrot.lane.b32.xlu0 %v11598, 96
  %v13392 = vpop.permute.xlu0 %13391
  %13393 = vrot.lane.b32.xlu0 %v11599, 96
  %v13394 = vpop.permute.xlu0 %13393
  %13395 = vrot.lane.b32.xlu0 %v11600, 96
  %v13396 = vpop.permute.xlu0 %13395
  %13397 = vrot.lane.b32.xlu0 %v11601, 96
  %v13398 = vpop.permute.xlu0 %13397
  %13399 = vrot.lane.b32.xlu0 %v11602, 96
  %v13400 = vpop.permute.xlu0 %13399
  %13401 = vrot.lane.b32.xlu0 %v11603, 96
  %v13402 = vpop.permute.xlu0 %13401
  %13403 = vrot.lane.b32.xlu0 %v11604, 96
  %v13404 = vpop.permute.xlu0 %13403
  %13405 = vrot.lane.b32.xlu0 %v11605, 96
  %v13406 = vpop.permute.xlu0 %13405
  %13407 = vrot.lane.b32.xlu0 %v11606, 96
  %v13408 = vpop.permute.xlu0 %13407
  %13409 = vrot.lane.b32.xlu0 %v11607, 96
  %v13410 = vpop.permute.xlu0 %13409
  %13411 = vrot.lane.b32.xlu0 %v11608, 96
  %v13412 = vpop.permute.xlu0 %13411
  %13413 = vrot.lane.b32.xlu0 %v11609, 96
  %v13414 = vpop.permute.xlu0 %13413
  %13415 = vrot.lane.b32.xlu0 %v11610, 96
  %v13416 = vpop.permute.xlu0 %13415
  %13417 = vrot.lane.b32.xlu0 %v11611, 96
  %v13418 = vpop.permute.xlu0 %13417
  %13419 = vrot.lane.b32.xlu0 %v11612, 96
  %v13420 = vpop.permute.xlu0 %13419
  %13421 = vrot.lane.b32.xlu0 %v11613, 96
  %v13422 = vpop.permute.xlu0 %13421
  %13423 = vrot.lane.b32.xlu0 %v11614, 96
  %v13424 = vpop.permute.xlu0 %13423
  %13425 = vrot.lane.b32.xlu0 %v11615, 96
  %v13426 = vpop.permute.xlu0 %13425
  %13427 = vrot.lane.b32.xlu0 %v11616, 96
  %v13428 = vpop.permute.xlu0 %13427
  %13429 = vrot.lane.b32.xlu0 %v11617, 96
  %v13430 = vpop.permute.xlu0 %13429
  %13431 = vrot.lane.b32.xlu0 %v11618, 96
  %v13432 = vpop.permute.xlu0 %13431
  %13433 = vrot.lane.b32.xlu0 %v11619, 96
  %v13434 = vpop.permute.xlu0 %13433
  %13435 = vrot.lane.b32.xlu0 %v11620, 96
  %v13436 = vpop.permute.xlu0 %13435
  %13437 = vrot.lane.b32.xlu0 %v11621, 96
  %v13438 = vpop.permute.xlu0 %13437
  %13439 = vrot.lane.b32.xlu0 %v11622, 96
  %v13440 = vpop.permute.xlu0 %13439
  %13441 = vrot.lane.b32.xlu0 %v11623, 96
  %v13442 = vpop.permute.xlu0 %13441
  %13443 = vrot.lane.b32.xlu0 %v11624, 96
  %v13444 = vpop.permute.xlu0 %13443
  %13445 = vrot.lane.b32.xlu0 %v11625, 96
  %v13446 = vpop.permute.xlu0 %13445
  %13447 = vrot.lane.b32.xlu0 %v11626, 96
  %v13448 = vpop.permute.xlu0 %13447
  %13449 = vrot.lane.b32.xlu0 %v11627, 96
  %v13450 = vpop.permute.xlu0 %13449
  %13451 = vrot.lane.b32.xlu0 %v11628, 96
  %v13452 = vpop.permute.xlu0 %13451
  %13453 = vrot.lane.b32.xlu0 %v11629, 96
  %v13454 = vpop.permute.xlu0 %13453
  %13519 = vst.msk [vmem:[%s8] sm:$0xff] %vm13198, %v13328
  %13520 = vst.msk [vmem:[%s8 + $0x8] sm:$0xff] %vm13198, %v13330
  %13521 = vst.msk [vmem:[%s8 + $0x10] sm:$0xff] %vm13198, %v13332
  %13522 = vst.msk [vmem:[%s8 + $0x18] sm:$0xff] %vm13198, %v13334
  %13523 = vst.msk [vmem:[%s8 + $0x20] sm:$0xff] %vm13198, %v13336
  %13524 = vst.msk [vmem:[%s8 + $0x28] sm:$0xff] %vm13198, %v13338
  %13525 = vst.msk [vmem:[%s8 + $0x30] sm:$0xff] %vm13198, %v13340
  %13526 = vst.msk [vmem:[%s8 + $0x38] sm:$0xff] %vm13198, %v13342
  %13527 = vst.msk [vmem:[%s8 + $0x40] sm:$0xff] %vm13198, %v13344
  %13528 = vst.msk [vmem:[%s8 + $0x48] sm:$0xff] %vm13198, %v13346
  %13529 = vst.msk [vmem:[%s8 + $0x50] sm:$0xff] %vm13198, %v13348
  %13530 = vst.msk [vmem:[%s8 + $0x58] sm:$0xff] %vm13198, %v13350
  %13531 = vst.msk [vmem:[%s8 + $0x60] sm:$0xff] %vm13198, %v13352
  %13532 = vst.msk [vmem:[%s8 + $0x68] sm:$0xff] %vm13198, %v13354
  %13533 = vst.msk [vmem:[%s8 + $0x70] sm:$0xff] %vm13198, %v13356
  %13534 = vst.msk [vmem:[%s8 + $0x78] sm:$0xff] %vm13198, %v13358
  %13535 = vst.msk [vmem:[%s8 + $0x80] sm:$0xff] %vm13198, %v13360
  %13536 = vst.msk [vmem:[%s8 + $0x88] sm:$0xff] %vm13198, %v13362
  %13537 = vst.msk [vmem:[%s8 + $0x90] sm:$0xff] %vm13198, %v13364
  %13538 = vst.msk [vmem:[%s8 + $0x98] sm:$0xff] %vm13198, %v13366
  %13539 = vst.msk [vmem:[%s8 + $0xa0] sm:$0xff] %vm13198, %v13368
  %13540 = vst.msk [vmem:[%s8 + $0xa8] sm:$0xff] %vm13198, %v13370
  %13541 = vst.msk [vmem:[%s8 + $0xb0] sm:$0xff] %vm13198, %v13372
  %13542 = vst.msk [vmem:[%s8 + $0xb8] sm:$0xff] %vm13198, %v13374
  %13543 = vst.msk [vmem:[%s8 + $0xc0] sm:$0xff] %vm13198, %v13376
  %13544 = vst.msk [vmem:[%s8 + $0xc8] sm:$0xff] %vm13198, %v13378
  %13545 = vst.msk [vmem:[%s8 + $0xd0] sm:$0xff] %vm13198, %v13380
  %13546 = vst.msk [vmem:[%s8 + $0xd8] sm:$0xff] %vm13198, %v13382
  %13547 = vst.msk [vmem:[%s8 + $0xe0] sm:$0xff] %vm13198, %v13384
  %13548 = vst.msk [vmem:[%s8 + $0xe8] sm:$0xff] %vm13198, %v13386
  %13549 = vst.msk [vmem:[%s8 + $0xf0] sm:$0xff] %vm13198, %v13388
  %13550 = vst.msk [vmem:[%s8 + $0xf8] sm:$0xff] %vm13198, %v13390
  %13551 = vst.msk [vmem:[%s8 + $0x100] sm:$0xff] %vm13198, %v13392
  %13552 = vst.msk [vmem:[%s8 + $0x108] sm:$0xff] %vm13198, %v13394
  %13553 = vst.msk [vmem:[%s8 + $0x110] sm:$0xff] %vm13198, %v13396
  %13554 = vst.msk [vmem:[%s8 + $0x118] sm:$0xff] %vm13198, %v13398
  %13555 = vst.msk [vmem:[%s8 + $0x120] sm:$0xff] %vm13198, %v13400
  %13556 = vst.msk [vmem:[%s8 + $0x128] sm:$0xff] %vm13198, %v13402
  %13557 = vst.msk [vmem:[%s8 + $0x130] sm:$0xff] %vm13198, %v13404
  %13558 = vst.msk [vmem:[%s8 + $0x138] sm:$0xff] %vm13198, %v13406
  %13559 = vst.msk [vmem:[%s8 + $0x140] sm:$0xff] %vm13198, %v13408
  %13560 = vst.msk [vmem:[%s8 + $0x148] sm:$0xff] %vm13198, %v13410
  %13561 = vst.msk [vmem:[%s8 + $0x150] sm:$0xff] %vm13198, %v13412
  %13562 = vst.msk [vmem:[%s8 + $0x158] sm:$0xff] %vm13198, %v13414
  %13563 = vst.msk [vmem:[%s8 + $0x160] sm:$0xff] %vm13198, %v13416
  %13564 = vst.msk [vmem:[%s8 + $0x168] sm:$0xff] %vm13198, %v13418
  %13565 = vst.msk [vmem:[%s8 + $0x170] sm:$0xff] %vm13198, %v13420
  %13566 = vst.msk [vmem:[%s8 + $0x178] sm:$0xff] %vm13198, %v13422
  %13567 = vst.msk [vmem:[%s8 + $0x180] sm:$0xff] %vm13198, %v13424
  %13568 = vst.msk [vmem:[%s8 + $0x188] sm:$0xff] %vm13198, %v13426
  %13569 = vst.msk [vmem:[%s8 + $0x190] sm:$0xff] %vm13198, %v13428
  %13570 = vst.msk [vmem:[%s8 + $0x198] sm:$0xff] %vm13198, %v13430
  %13571 = vst.msk [vmem:[%s8 + $0x1a0] sm:$0xff] %vm13198, %v13432
  %13572 = vst.msk [vmem:[%s8 + $0x1a8] sm:$0xff] %vm13198, %v13434
  %13573 = vst.msk [vmem:[%s8 + $0x1b0] sm:$0xff] %vm13198, %v13436
  %13574 = vst.msk [vmem:[%s8 + $0x1b8] sm:$0xff] %vm13198, %v13438
  %13575 = vst.msk [vmem:[%s8 + $0x1c0] sm:$0xff] %vm13198, %v13440
  %13576 = vst.msk [vmem:[%s8 + $0x1c8] sm:$0xff] %vm13198, %v13442
  %13577 = vst.msk [vmem:[%s8 + $0x1d0] sm:$0xff] %vm13198, %v13444
  %13578 = vst.msk [vmem:[%s8 + $0x1d8] sm:$0xff] %vm13198, %v13446
  %13579 = vst.msk [vmem:[%s8 + $0x1e0] sm:$0xff] %vm13198, %v13448
  %13580 = vst.msk [vmem:[%s8 + $0x1e8] sm:$0xff] %vm13198, %v13450
  %13581 = vst.msk [vmem:[%s8 + $0x1f0] sm:$0xff] %vm13198, %v13452
  %13582 = vst.msk [vmem:[%s8 + $0x1f8] sm:$0xff] %vm13198, %v13454
  // Predicated region
  $region30: #{tpu_custom_call.1} parent=0 // pred_check
    _
  $region31: #{tpu_custom_call.1} parent=0 // pred_check_branch
    %13584 = sbr.rel (0) target = $region33
  $region32: #{tpu_custom_call.1} parent=0 // pred_region
    _
  $region33: #{tpu_custom_call.1} parent=0 // pred_fallthru
    _
  // Predicated region
  $region34: #{tpu_custom_call.1} parent=0 // pred_check
    _
  $region35: #{tpu_custom_call.1} parent=0 // pred_check_branch
    %13586 = sbr.rel (0) target = $region37
  $region36: #{tpu_custom_call.1} parent=0 // pred_region
    _
  $region37: #{tpu_custom_call.1} parent=0 // pred_fallthru
    _
  // Predicated region
  $region38: #{tpu_custom_call.1} parent=0 // pred_check
    _
  $region39: #{tpu_custom_call.1} parent=0 // pred_check_branch
    %13588 = sbr.rel (0) target = $region41
  $region40: #{tpu_custom_call.1} parent=0 // pred_region
    _
  $region41: #{tpu_custom_call.1} parent=0 // pred_fallthru
    _
  // Predicated region
  $region42: #{tpu_custom_call.1} parent=0 // pred_check
    _
  $region43: #{tpu_custom_call.1} parent=0 // pred_check_branch
    %13590 = sbr.rel (0) target = $region45
  $region44: #{tpu_custom_call.1} parent=0 // pred_region
    _
  $region45: #{tpu_custom_call.1} parent=0 // pred_fallthru
    _

</llo_original>
